<compile_context>
chip_gen: v6e
topology: v6e:2x2x1
jax: 0.10.0
libtpu: 0.0.40
codegen_flags: <defaults>
</compile_context>

<pallas_src>
import jax
import jax.numpy as jnp
from jax import lax
from jax.experimental import pallas as pl
from jax.experimental.pallas import tpu as pltpu


def _gru_step(x_bf16, h_f32, wih, whh, bg, bhn):
    """Fused-gate PyTorch GRU cell.
    wih: (In, 3H) bf16, whh: (H, 3H) bf16, gate order (r, z, n).
    bg = [b_ir+b_hr, b_iz+b_hz, b_in] (1, 3H) f32, bhn = b_hn (1, H) f32."""
    H = h_f32.shape[-1]
    gi = jnp.dot(x_bf16, wih, preferred_element_type=jnp.float32) + bg
    gh = jnp.dot(h_f32.astype(jnp.bfloat16), whh,
                 preferred_element_type=jnp.float32)
    r = jax.nn.sigmoid(gi[:, :H] + gh[:, :H])
    z = jax.nn.sigmoid(gi[:, H:2 * H] + gh[:, H:2 * H])
    n = jnp.tanh(gi[:, 2 * H:] + r * (gh[:, 2 * H:] + bhn))
    return (1.0 - z) * n + z * h_f32


def seq2seq_kernel(x_emb_ref, tok0_ref, src_sz_ref,
                   e_wih_ref, e_whh_ref, e_bg_ref, e_bhn_ref,
                   emb_dec_ref,
                   w1_ref, b1_ref, w2_ref, b2_ref, v_ref, bv_ref,
                   d_wih_ref, d_whh_ref, d_bg_ref, d_bhn_ref,
                   fc1_w_ref, fc1_b_ref, fc2_w_ref, fc2_b_ref,
                   out_ref, enc_scr, w1_scr):
    B, S, E = x_emb_ref.shape
    H = e_bhn_ref.shape[-1]
    Vtgt = emb_dec_ref.shape[0]
    T, _, OP = out_ref.shape

    x_emb = x_emb_ref[...]                     # (B, S, E) bf16
    src_sz = src_sz_ref[...]                   # (B, 1) int32
    e_wih, e_whh = e_wih_ref[...], e_whh_ref[...]
    e_bg, e_bhn = e_bg_ref[...], e_bhn_ref[...]
    emb_dec = emb_dec_ref[...]
    w1, b1 = w1_ref[...], b1_ref[...]
    w2, b2 = w2_ref[...], b2_ref[...]
    v2 = v_ref[...][:, None, :]                # (1, 1, H) f32 (VPU path)
    bv = bv_ref[...]                           # (1, 1) f32
    d_wih, d_whh = d_wih_ref[...], d_whh_ref[...]
    d_bg, d_bhn = d_bg_ref[...], d_bhn_ref[...]
    fc1_w, fc1_b = fc1_w_ref[...], fc1_b_ref[...]
    fc2_w, fc2_b = fc2_w_ref[...], fc2_b_ref[...]

    # ---------------- Encoder: masked GRU, fully unrolled (S is small) -------
    h = jnp.zeros((B, H), jnp.float32)
    for t in range(S):
        x_t = x_emb[:, t, :]                                   # (B, E) bf16
        h_new = _gru_step(x_t, h, e_wih, e_whh, e_bg, e_bhn)
        mask = (t < src_sz).astype(jnp.float32)                # (B, 1)
        h_m = mask * h_new                 # pad_packed: zeros past src_sz
        h = h_m + (1.0 - mask) * h         # hidden frozen past src_sz
        enc_scr[:, t:t + 1, :] = h_m[:, None, :]
        # W1(enc_output) is decode-loop-invariant: compute while encoding.
        w1_scr[:, t:t + 1, :] = (jnp.dot(h_m.astype(jnp.bfloat16), w1,
                                         preferred_element_type=jnp.float32)
                                 + b1)[:, None, :]

    enc_out = enc_scr[...]                                     # (B, S, H) f32
    w1_enc = w1_scr[...]                                       # (B, S, H) f32

    # ---------------- Decoder loop, fully unrolled (T is small) --------------
    lane_op = lax.broadcasted_iota(jnp.int32, (B, OP), 1)
    lane_v = lax.broadcasted_iota(jnp.int32, (B, Vtgt), 1)
    out_ref[0] = (lane_op == 1).astype(jnp.float32)            # pred_vecs[:,1,0]=1

    # pass_enc2dec_hid=True: decoder hidden initialised from encoder hidden.
    tok = tok0_ref[...]                                        # (B, 1) int32
    for t in range(1, T):
        # decoder embedding of the fed-back token.
        # TODO(synk): for a realistic target vocab replace this tiny one-hot
        # matmul with a VMEM gather of emb_dec rows.
        onehot = (lane_v == tok).astype(jnp.bfloat16)          # (B, Vtgt)
        x = jnp.dot(onehot, emb_dec, preferred_element_type=jnp.float32)  # (B,E)

        # Bahdanau attention: softmax_S( V . tanh(W1 enc + W2 h) ), S on lanes.
        hq = jnp.dot(h.astype(jnp.bfloat16), w2,
                     preferred_element_type=jnp.float32) + b2  # (B, H)
        att = jnp.tanh(w1_enc + hq[:, None, :])                # (B, S, H)
        score = jnp.sum(att * v2, axis=-1) + bv                # (B, S)  VPU+lane-reduce
        score = score - jnp.max(score, axis=-1, keepdims=True)
        aw = jnp.exp(score)
        aw = aw / jnp.sum(aw, axis=-1, keepdims=True)          # (B, S)
        ctx = jnp.sum(aw[:, :, None] * enc_out, axis=1)        # (B, H)

        xin = jnp.concatenate([ctx, x], axis=-1).astype(jnp.bfloat16)  # (B, H+E)
        h = _gru_step(xin, h, d_wih, d_whh, d_bg, d_bhn)

        # fc: Linear(H,E) -> LeakyReLU(0.01) -> Linear(E,O)  (fc2 kept f32)
        hid = jnp.dot(h.astype(jnp.bfloat16), fc1_w,
                      preferred_element_type=jnp.float32) + fc1_b
        hid = jnp.where(hid > 0, hid, 0.01 * hid)
        logits = jnp.dot(hid, fc2_w,
                         preferred_element_type=jnp.float32) + fc2_b   # (B, OP)
        out_ref[t] = logits                                    # lane-dense store

        # argmax feedback (teacher_forcing_ratio = 0); padded lanes are ~-1e9.
        maxv = jnp.max(logits, axis=-1, keepdims=True)
        cand = jnp.where(logits == maxv, lane_op, OP)
        tok = jnp.min(cand, axis=-1, keepdims=True)            # (B, 1) int32


def init_params(key, Vsrc, Vtgt, E, H):
    """Deterministic synthetic parameters, already in kernel layout:
    nn.Linear weights transposed to (in, out); GRU gate weights concatenated
    along the output axis as (In, 3H) in (r, z, n) order; GRU biases pre-fused
    (bg = [b_ir+b_hr, b_iz+b_hz, b_in], bhn = b_hn)."""
    ks = jax.random.split(key, 20)
    n = lambda k, shape, s=0.1: (s * jax.random.normal(k, shape)).astype(jnp.float32)
    return dict(
        emb_enc=n(ks[0], (Vsrc, E)),
        e_wih=n(ks[1], (E, 3 * H)), e_whh=n(ks[2], (H, 3 * H)),
        e_bg=n(ks[3], (1, 3 * H)), e_bhn=n(ks[4], (1, H)),
        emb_dec=n(ks[5], (Vtgt, E)),
        att_w1=n(ks[6], (H, H)), att_b1=n(ks[7], (1, H)),
        att_w2=n(ks[8], (H, H)), att_b2=n(ks[9], (1, H)),
        att_v=n(ks[10], (1, H)), att_bv=n(ks[11], (1, 1)),
        d_wih=n(ks[12], (H + E, 3 * H)), d_whh=n(ks[13], (H, 3 * H)),
        d_bg=n(ks[14], (1, 3 * H)), d_bhn=n(ks[15], (1, H)),
        fc1_w=n(ks[16], (H, E)), fc1_b=n(ks[17], (1, E)),
        fc2_w=n(ks[18], (E, Vtgt)), fc2_b=n(ks[19], (1, Vtgt)),
    )


def seq2seq_forward(src, tgt, src_sz, params, teacher_forcing_ratio=0):
    """src, tgt: (B, seq) int; src_sz: (B, 1) int.  Returns (B, output_dim, T)."""
    # TODO(synk): teacher forcing uses host-side random.random(); only the
    # default teacher_forcing_ratio=0 path (always feed back argmax) is built.
    assert teacher_forcing_ratio == 0
    B, S = src.shape
    T = tgt.shape[1]
    E = params["emb_enc"].shape[1]
    H = params["e_bhn"].shape[1]
    O = params["fc2_w"].shape[1]
    OP = ((O + 127) // 128) * 128          # lane-dense padded output width

    bf = lambda a: a.astype(jnp.bfloat16)
    # Encoder embedding lookup as a gather in the wrapper (no one-hot matmul).
    x_emb = bf(jnp.take(params["emb_enc"], src.astype(jnp.int32), axis=0))  # (B,S,E)

    # fc2 padded to 128 lanes: zero weights, -1e9 bias on padded classes so the
    # in-kernel argmax never selects them; wrapper slices back to O.
    fc2_w = jnp.zeros((E, OP), jnp.float32).at[:, :O].set(params["fc2_w"])
    fc2_b = jnp.full((1, OP), -1e9, jnp.float32).at[:, :O].set(params["fc2_b"])

    inputs = (
        x_emb,
        tgt[:, :1].astype(jnp.int32),                   # tgt[:, 0] as (B, 1)
        src_sz.astype(jnp.int32).reshape(B, 1),
        bf(params["e_wih"]), bf(params["e_whh"]), params["e_bg"], params["e_bhn"],
        bf(params["emb_dec"]),
        bf(params["att_w1"]), params["att_b1"],
        bf(params["att_w2"]), params["att_b2"],
        params["att_v"], params["att_bv"],
        bf(params["d_wih"]), bf(params["d_whh"]), params["d_bg"], params["d_bhn"],
        bf(params["fc1_w"]), params["fc1_b"], fc2_w, fc2_b,
    )
    vmem = pl.BlockSpec(memory_space=pltpu.MemorySpace.VMEM)
    pred_tm = pl.pallas_call(
        seq2seq_kernel,
        out_shape=jax.ShapeDtypeStruct((T, B, OP), jnp.float32),
        in_specs=[vmem] * len(inputs),
        out_specs=vmem,
        scratch_shapes=[pltpu.VMEM((B, S, H), jnp.float32),   # enc_output
                        pltpu.VMEM((B, S, H), jnp.float32)],  # W1(enc_output)
    )(*inputs)
    # back to PyTorch pred_vecs layout: (batch, output_dim, tgt_len)
    return jnp.transpose(pred_tm[:, :, :O], (1, 2, 0))


if __name__ == "__main__":
    key = jax.random.PRNGKey(0)
    B, S, T = 2, 8, 8
    Vsrc, Vtgt, E, H = 20, 24, 32, 32

    k_src, k_tgt, k_par = jax.random.split(key, 3)
    src = jax.random.randint(k_src, (B, S), 0, Vsrc, dtype=jnp.int32)
    tgt = jax.random.randint(k_tgt, (B, T), 0, Vtgt, dtype=jnp.int32)
    # unpadded lengths; max length equals the padded length (pad_packed assumption)
    src_sz = jnp.array([[S], [S - 3]], dtype=jnp.int32)

    params = init_params(k_par, Vsrc, Vtgt, E, H)
    pred_vecs = seq2seq_forward(src, tgt, src_sz, params, teacher_forcing_ratio=0)
    pred_vecs = jax.block_until_ready(pred_vecs)
    assert pred_vecs.shape == (B, Vtgt, T)
    assert bool(jnp.isfinite(pred_vecs).all())
    print("KERNEL_OK")
</pallas_src>

<mosaic_0001>
module attributes {stable_mosaic.version = 11 : i64} {
  func.func @seq2seq_kernel(%arg0: memref<2x8x32xbf16, #tpu.memory_space<vmem>>, %arg1: memref<2x1xi32, #tpu.memory_space<vmem>>, %arg2: memref<2x1xi32, #tpu.memory_space<vmem>>, %arg3: memref<32x96xbf16, #tpu.memory_space<vmem>>, %arg4: memref<32x96xbf16, #tpu.memory_space<vmem>>, %arg5: memref<1x96xf32, #tpu.memory_space<vmem>>, %arg6: memref<1x32xf32, #tpu.memory_space<vmem>>, %arg7: memref<24x32xbf16, #tpu.memory_space<vmem>>, %arg8: memref<32x32xbf16, #tpu.memory_space<vmem>>, %arg9: memref<1x32xf32, #tpu.memory_space<vmem>>, %arg10: memref<32x32xbf16, #tpu.memory_space<vmem>>, %arg11: memref<1x32xf32, #tpu.memory_space<vmem>>, %arg12: memref<1x32xf32, #tpu.memory_space<vmem>>, %arg13: memref<1x1xf32, #tpu.memory_space<vmem>>, %arg14: memref<64x96xbf16, #tpu.memory_space<vmem>>, %arg15: memref<32x96xbf16, #tpu.memory_space<vmem>>, %arg16: memref<1x96xf32, #tpu.memory_space<vmem>>, %arg17: memref<1x32xf32, #tpu.memory_space<vmem>>, %arg18: memref<32x32xbf16, #tpu.memory_space<vmem>>, %arg19: memref<1x32xf32, #tpu.memory_space<vmem>>, %arg20: memref<32x128xf32, #tpu.memory_space<vmem>>, %arg21: memref<1x128xf32, #tpu.memory_space<vmem>>, %arg22: memref<8x2x128xf32, #tpu.memory_space<vmem>>, %arg23: memref<2x8x32xf32, #tpu.memory_space<vmem>>, %arg24: memref<2x8x32xf32, #tpu.memory_space<vmem>>) attributes {dimension_semantics = [], scalar_prefetch = 0 : i64, scratch_operands = 2 : i64, tpu.core_type = #tpu.core_type<tc>} {
    %c0 = arith.constant 0 : index
    %c0_0 = arith.constant 0 : index
    %c0_1 = arith.constant 0 : index
    %0 = vector.load %arg0[%c0, %c0_0, %c0_1] : memref<2x8x32xbf16, #tpu.memory_space<vmem>>, vector<2x8x32xbf16>
    %c0_2 = arith.constant 0 : index
    %c0_3 = arith.constant 0 : index
    %1 = vector.load %arg2[%c0_2, %c0_3] : memref<2x1xi32, #tpu.memory_space<vmem>>, vector<2x1xi32>
    %c0_4 = arith.constant 0 : index
    %c0_5 = arith.constant 0 : index
    %2 = vector.load %arg3[%c0_4, %c0_5] : memref<32x96xbf16, #tpu.memory_space<vmem>>, vector<32x96xbf16>
    %c0_6 = arith.constant 0 : index
    %c0_7 = arith.constant 0 : index
    %3 = vector.load %arg4[%c0_6, %c0_7] : memref<32x96xbf16, #tpu.memory_space<vmem>>, vector<32x96xbf16>
    %c0_8 = arith.constant 0 : index
    %c0_9 = arith.constant 0 : index
    %4 = vector.load %arg5[%c0_8, %c0_9] : memref<1x96xf32, #tpu.memory_space<vmem>>, vector<1x96xf32>
    %c0_10 = arith.constant 0 : index
    %c0_11 = arith.constant 0 : index
    %5 = vector.load %arg6[%c0_10, %c0_11] : memref<1x32xf32, #tpu.memory_space<vmem>>, vector<1x32xf32>
    %c0_12 = arith.constant 0 : index
    %c0_13 = arith.constant 0 : index
    %6 = vector.load %arg7[%c0_12, %c0_13] : memref<24x32xbf16, #tpu.memory_space<vmem>>, vector<24x32xbf16>
    %c0_14 = arith.constant 0 : index
    %c0_15 = arith.constant 0 : index
    %7 = vector.load %arg8[%c0_14, %c0_15] : memref<32x32xbf16, #tpu.memory_space<vmem>>, vector<32x32xbf16>
    %c0_16 = arith.constant 0 : index
    %c0_17 = arith.constant 0 : index
    %8 = vector.load %arg9[%c0_16, %c0_17] : memref<1x32xf32, #tpu.memory_space<vmem>>, vector<1x32xf32>
    %c0_18 = arith.constant 0 : index
    %c0_19 = arith.constant 0 : index
    %9 = vector.load %arg10[%c0_18, %c0_19] : memref<32x32xbf16, #tpu.memory_space<vmem>>, vector<32x32xbf16>
    %c0_20 = arith.constant 0 : index
    %c0_21 = arith.constant 0 : index
    %10 = vector.load %arg11[%c0_20, %c0_21] : memref<1x32xf32, #tpu.memory_space<vmem>>, vector<1x32xf32>
    %c0_22 = arith.constant 0 : index
    %c0_23 = arith.constant 0 : index
    %11 = vector.load %arg12[%c0_22, %c0_23] : memref<1x32xf32, #tpu.memory_space<vmem>>, vector<1x32xf32>
    %12 = vector.shape_cast %11 : vector<1x32xf32> to vector<1x1x32xf32>
    %c0_24 = arith.constant 0 : index
    %c0_25 = arith.constant 0 : index
    %13 = vector.load %arg13[%c0_24, %c0_25] : memref<1x1xf32, #tpu.memory_space<vmem>>, vector<1x1xf32>
    %c0_26 = arith.constant 0 : index
    %c0_27 = arith.constant 0 : index
    %14 = vector.load %arg14[%c0_26, %c0_27] : memref<64x96xbf16, #tpu.memory_space<vmem>>, vector<64x96xbf16>
    %c0_28 = arith.constant 0 : index
    %c0_29 = arith.constant 0 : index
    %15 = vector.load %arg15[%c0_28, %c0_29] : memref<32x96xbf16, #tpu.memory_space<vmem>>, vector<32x96xbf16>
    %c0_30 = arith.constant 0 : index
    %c0_31 = arith.constant 0 : index
    %16 = vector.load %arg16[%c0_30, %c0_31] : memref<1x96xf32, #tpu.memory_space<vmem>>, vector<1x96xf32>
    %c0_32 = arith.constant 0 : index
    %c0_33 = arith.constant 0 : index
    %17 = vector.load %arg17[%c0_32, %c0_33] : memref<1x32xf32, #tpu.memory_space<vmem>>, vector<1x32xf32>
    %c0_34 = arith.constant 0 : index
    %c0_35 = arith.constant 0 : index
    %18 = vector.load %arg18[%c0_34, %c0_35] : memref<32x32xbf16, #tpu.memory_space<vmem>>, vector<32x32xbf16>
    %c0_36 = arith.constant 0 : index
    %c0_37 = arith.constant 0 : index
    %19 = vector.load %arg19[%c0_36, %c0_37] : memref<1x32xf32, #tpu.memory_space<vmem>>, vector<1x32xf32>
    %c0_38 = arith.constant 0 : index
    %c0_39 = arith.constant 0 : index
    %20 = vector.load %arg20[%c0_38, %c0_39] : memref<32x128xf32, #tpu.memory_space<vmem>>, vector<32x128xf32>
    %c0_40 = arith.constant 0 : index
    %c0_41 = arith.constant 0 : index
    %21 = vector.load %arg21[%c0_40, %c0_41] : memref<1x128xf32, #tpu.memory_space<vmem>>, vector<1x128xf32>
    %cst = arith.constant 0.000000e+00 : f32
    %22 = vector.broadcast %cst : f32 to vector<2x32xf32>
    %23 = vector.extract_strided_slice %0 {offsets = [0, 0, 0], sizes = [2, 1, 32], strides = [1, 1, 1]} : vector<2x8x32xbf16> to vector<2x1x32xbf16>
    %24 = vector.shape_cast %23 : vector<2x1x32xbf16> to vector<2x32xbf16>
    %cst_42 = arith.constant dense<0.000000e+00> : vector<2x96xf32>
    %25 = tpu.matmul %24, %2, %cst_42 {dimension_numbers = #tpu.dot_dimension_numbers<[1], [0], [0], [1], [0, 0, 1, 1], [], []>} : vector<2x32xbf16>, vector<32x96xbf16>, vector<2x96xf32> -> vector<2x96xf32>
    %26 = vector.broadcast %4 : vector<1x96xf32> to vector<2x96xf32>
    %27 = arith.addf %25, %26 : vector<2x96xf32>
    %28 = arith.truncf %22 : vector<2x32xf32> to vector<2x32xbf16>
    %cst_43 = arith.constant dense<0.000000e+00> : vector<2x96xf32>
    %29 = tpu.matmul %28, %3, %cst_43 {dimension_numbers = #tpu.dot_dimension_numbers<[1], [0], [0], [1], [0, 0, 1, 1], [], []>} : vector<2x32xbf16>, vector<32x96xbf16>, vector<2x96xf32> -> vector<2x96xf32>
    %30 = vector.extract_strided_slice %27 {offsets = [0, 0], sizes = [2, 32], strides = [1, 1]} : vector<2x96xf32> to vector<2x32xf32>
    %31 = vector.extract_strided_slice %29 {offsets = [0, 0], sizes = [2, 32], strides = [1, 1]} : vector<2x96xf32> to vector<2x32xf32>
    %32 = arith.addf %30, %31 : vector<2x32xf32>
    %33 = arith.negf %32 : vector<2x32xf32>
    %34 = math.exp %33 : vector<2x32xf32>
    %cst_44 = arith.constant 1.000000e+00 : f32
    %35 = vector.broadcast %cst_44 : f32 to vector<2x32xf32>
    %36 = arith.addf %35, %34 : vector<2x32xf32>
    %37 = arith.divf %35, %36 : vector<2x32xf32>
    %38 = vector.extract_strided_slice %27 {offsets = [0, 32], sizes = [2, 32], strides = [1, 1]} : vector<2x96xf32> to vector<2x32xf32>
    %39 = vector.extract_strided_slice %29 {offsets = [0, 32], sizes = [2, 32], strides = [1, 1]} : vector<2x96xf32> to vector<2x32xf32>
    %40 = arith.addf %38, %39 : vector<2x32xf32>
    %41 = arith.negf %40 : vector<2x32xf32>
    %42 = math.exp %41 : vector<2x32xf32>
    %cst_45 = arith.constant 1.000000e+00 : f32
    %43 = vector.broadcast %cst_45 : f32 to vector<2x32xf32>
    %44 = arith.addf %43, %42 : vector<2x32xf32>
    %45 = arith.divf %43, %44 : vector<2x32xf32>
    %46 = vector.extract_strided_slice %27 {offsets = [0, 64], sizes = [2, 32], strides = [1, 1]} : vector<2x96xf32> to vector<2x32xf32>
    %47 = vector.extract_strided_slice %29 {offsets = [0, 64], sizes = [2, 32], strides = [1, 1]} : vector<2x96xf32> to vector<2x32xf32>
    %48 = vector.broadcast %5 : vector<1x32xf32> to vector<2x32xf32>
    %49 = arith.addf %47, %48 : vector<2x32xf32>
    %50 = arith.mulf %37, %49 : vector<2x32xf32>
    %51 = arith.addf %46, %50 : vector<2x32xf32>
    %52 = math.tanh %51 : vector<2x32xf32>
    %cst_46 = arith.constant 1.000000e+00 : f32
    %53 = vector.broadcast %cst_46 : f32 to vector<2x32xf32>
    %54 = arith.subf %53, %45 : vector<2x32xf32>
    %55 = arith.mulf %54, %52 : vector<2x32xf32>
    %56 = arith.mulf %45, %22 : vector<2x32xf32>
    %57 = arith.addf %55, %56 : vector<2x32xf32>
    %c0_i32 = arith.constant 0 : i32
    %58 = vector.broadcast %c0_i32 : i32 to vector<2x1xi32>
    %59 = arith.cmpi sgt, %1, %58 : vector<2x1xi32>
    %60 = arith.extui %59 : vector<2x1xi1> to vector<2x1xi32>
    %61 = arith.sitofp %60 : vector<2x1xi32> to vector<2x1xf32>
    %62 = vector.broadcast %61 : vector<2x1xf32> to vector<2x32xf32>
    %63 = arith.mulf %62, %57 : vector<2x32xf32>
    %cst_47 = arith.constant 1.000000e+00 : f32
    %64 = vector.broadcast %cst_47 : f32 to vector<2x1xf32>
    %65 = arith.subf %64, %61 : vector<2x1xf32>
    %66 = vector.broadcast %65 : vector<2x1xf32> to vector<2x32xf32>
    %67 = arith.mulf %66, %22 : vector<2x32xf32>
    %68 = arith.addf %63, %67 : vector<2x32xf32>
    %69 = vector.shape_cast %63 : vector<2x32xf32> to vector<2x1x32xf32>
    %c0_48 = arith.constant 0 : index
    %c0_49 = arith.constant 0 : index
    %c0_50 = arith.constant 0 : index
    %70 = vector.load %arg23[%c0_48, %c0_49, %c0_50] : memref<2x8x32xf32, #tpu.memory_space<vmem>>, vector<2x1x32xf32>
    tpu.vector_store %arg23[%c0_48, %c0_49, %c0_50], %69 {strides = array<i32>} : memref<2x8x32xf32, #tpu.memory_space<vmem>>, vector<2x1x32xf32>,
    %71 = arith.truncf %63 : vector<2x32xf32> to vector<2x32xbf16>
    %cst_51 = arith.constant dense<0.000000e+00> : vector<2x32xf32>
    %72 = tpu.matmul %71, %7, %cst_51 {dimension_numbers = #tpu.dot_dimension_numbers<[1], [0], [0], [1], [0, 0, 1, 1], [], []>} : vector<2x32xbf16>, vector<32x32xbf16>, vector<2x32xf32> -> vector<2x32xf32>
    %73 = vector.broadcast %8 : vector<1x32xf32> to vector<2x32xf32>
    %74 = arith.addf %72, %73 : vector<2x32xf32>
    %75 = vector.shape_cast %74 : vector<2x32xf32> to vector<2x1x32xf32>
    %c0_52 = arith.constant 0 : index
    %c0_53 = arith.constant 0 : index
    %c0_54 = arith.constant 0 : index
    %76 = vector.load %arg24[%c0_52, %c0_53, %c0_54] : memref<2x8x32xf32, #tpu.memory_space<vmem>>, vector<2x1x32xf32>
    tpu.vector_store %arg24[%c0_52, %c0_53, %c0_54], %75 {strides = array<i32>} : memref<2x8x32xf32, #tpu.memory_space<vmem>>, vector<2x1x32xf32>,
    %77 = vector.extract_strided_slice %0 {offsets = [0, 1, 0], sizes = [2, 1, 32], strides = [1, 1, 1]} : vector<2x8x32xbf16> to vector<2x1x32xbf16>
    %78 = vector.shape_cast %77 : vector<2x1x32xbf16> to vector<2x32xbf16>
    %cst_55 = arith.constant dense<0.000000e+00> : vector<2x96xf32>
    %79 = tpu.matmul %78, %2, %cst_55 {dimension_numbers = #tpu.dot_dimension_numbers<[1], [0], [0], [1], [0, 0, 1, 1], [], []>} : vector<2x32xbf16>, vector<32x96xbf16>, vector<2x96xf32> -> vector<2x96xf32>
    %80 = vector.broadcast %4 : vector<1x96xf32> to vector<2x96xf32>
    %81 = arith.addf %79, %80 : vector<2x96xf32>
    %82 = arith.truncf %68 : vector<2x32xf32> to vector<2x32xbf16>
    %cst_56 = arith.constant dense<0.000000e+00> : vector<2x96xf32>
    %83 = tpu.matmul %82, %3, %cst_56 {dimension_numbers = #tpu.dot_dimension_numbers<[1], [0], [0], [1], [0, 0, 1, 1], [], []>} : vector<2x32xbf16>, vector<32x96xbf16>, vector<2x96xf32> -> vector<2x96xf32>
    %84 = vector.extract_strided_slice %81 {offsets = [0, 0], sizes = [2, 32], strides = [1, 1]} : vector<2x96xf32> to vector<2x32xf32>
    %85 = vector.extract_strided_slice %83 {offsets = [0, 0], sizes = [2, 32], strides = [1, 1]} : vector<2x96xf32> to vector<2x32xf32>
    %86 = arith.addf %84, %85 : vector<2x32xf32>
    %87 = arith.negf %86 : vector<2x32xf32>
    %88 = math.exp %87 : vector<2x32xf32>
    %cst_57 = arith.constant 1.000000e+00 : f32
    %89 = vector.broadcast %cst_57 : f32 to vector<2x32xf32>
    %90 = arith.addf %89, %88 : vector<2x32xf32>
    %91 = arith.divf %89, %90 : vector<2x32xf32>
    %92 = vector.extract_strided_slice %81 {offsets = [0, 32], sizes = [2, 32], strides = [1, 1]} : vector<2x96xf32> to vector<2x32xf32>
    %93 = vector.extract_strided_slice %83 {offsets = [0, 32], sizes = [2, 32], strides = [1, 1]} : vector<2x96xf32> to vector<2x32xf32>
    %94 = arith.addf %92, %93 : vector<2x32xf32>
    %95 = arith.negf %94 : vector<2x32xf32>
    %96 = math.exp %95 : vector<2x32xf32>
    %cst_58 = arith.constant 1.000000e+00 : f32
    %97 = vector.broadcast %cst_58 : f32 to vector<2x32xf32>
    %98 = arith.addf %97, %96 : vector<2x32xf32>
    %99 = arith.divf %97, %98 : vector<2x32xf32>
    %100 = vector.extract_strided_slice %81 {offsets = [0, 64], sizes = [2, 32], strides = [1, 1]} : vector<2x96xf32> to vector<2x32xf32>
    %101 = vector.extract_strided_slice %83 {offsets = [0, 64], sizes = [2, 32], strides = [1, 1]} : vector<2x96xf32> to vector<2x32xf32>
    %102 = vector.broadcast %5 : vector<1x32xf32> to vector<2x32xf32>
    %103 = arith.addf %101, %102 : vector<2x32xf32>
    %104 = arith.mulf %91, %103 : vector<2x32xf32>
    %105 = arith.addf %100, %104 : vector<2x32xf32>
    %106 = math.tanh %105 : vector<2x32xf32>
    %cst_59 = arith.constant 1.000000e+00 : f32
    %107 = vector.broadcast %cst_59 : f32 to vector<2x32xf32>
    %108 = arith.subf %107, %99 : vector<2x32xf32>
    %109 = arith.mulf %108, %106 : vector<2x32xf32>
    %110 = arith.mulf %99, %68 : vector<2x32xf32>
    %111 = arith.addf %109, %110 : vector<2x32xf32>
    %c1_i32 = arith.constant 1 : i32
    %112 = vector.broadcast %c1_i32 : i32 to vector<2x1xi32>
    %113 = arith.cmpi sgt, %1, %112 : vector<2x1xi32>
    %114 = arith.extui %113 : vector<2x1xi1> to vector<2x1xi32>
    %115 = arith.sitofp %114 : vector<2x1xi32> to vector<2x1xf32>
    %116 = vector.broadcast %115 : vector<2x1xf32> to vector<2x32xf32>
    %117 = arith.mulf %116, %111 : vector<2x32xf32>
    %cst_60 = arith.constant 1.000000e+00 : f32
    %118 = vector.broadcast %cst_60 : f32 to vector<2x1xf32>
    %119 = arith.subf %118, %115 : vector<2x1xf32>
    %120 = vector.broadcast %119 : vector<2x1xf32> to vector<2x32xf32>
    %121 = arith.mulf %120, %68 : vector<2x32xf32>
    %122 = arith.addf %117, %121 : vector<2x32xf32>
    %123 = vector.shape_cast %117 : vector<2x32xf32> to vector<2x1x32xf32>
    %c0_61 = arith.constant 0 : index
    %c1 = arith.constant 1 : index
    %c0_62 = arith.constant 0 : index
    %124 = vector.load %arg23[%c0_61, %c1, %c0_62] : memref<2x8x32xf32, #tpu.memory_space<vmem>>, vector<2x1x32xf32>
    tpu.vector_store %arg23[%c0_61, %c1, %c0_62], %123 {strides = array<i32>} : memref<2x8x32xf32, #tpu.memory_space<vmem>>, vector<2x1x32xf32>,
    %125 = arith.truncf %117 : vector<2x32xf32> to vector<2x32xbf16>
    %cst_63 = arith.constant dense<0.000000e+00> : vector<2x32xf32>
    %126 = tpu.matmul %125, %7, %cst_63 {dimension_numbers = #tpu.dot_dimension_numbers<[1], [0], [0], [1], [0, 0, 1, 1], [], []>} : vector<2x32xbf16>, vector<32x32xbf16>, vector<2x32xf32> -> vector<2x32xf32>
    %127 = vector.broadcast %8 : vector<1x32xf32> to vector<2x32xf32>
    %128 = arith.addf %126, %127 : vector<2x32xf32>
    %129 = vector.shape_cast %128 : vector<2x32xf32> to vector<2x1x32xf32>
    %c0_64 = arith.constant 0 : index
    %c1_65 = arith.constant 1 : index
    %c0_66 = arith.constant 0 : index
    %130 = vector.load %arg24[%c0_64, %c1_65, %c0_66] : memref<2x8x32xf32, #tpu.memory_space<vmem>>, vector<2x1x32xf32>
    tpu.vector_store %arg24[%c0_64, %c1_65, %c0_66], %129 {strides = array<i32>} : memref<2x8x32xf32, #tpu.memory_space<vmem>>, vector<2x1x32xf32>,
    %131 = vector.extract_strided_slice %0 {offsets = [0, 2, 0], sizes = [2, 1, 32], strides = [1, 1, 1]} : vector<2x8x32xbf16> to vector<2x1x32xbf16>
    %132 = vector.shape_cast %131 : vector<2x1x32xbf16> to vector<2x32xbf16>
    %cst_67 = arith.constant dense<0.000000e+00> : vector<2x96xf32>
    %133 = tpu.matmul %132, %2, %cst_67 {dimension_numbers = #tpu.dot_dimension_numbers<[1], [0], [0], [1], [0, 0, 1, 1], [], []>} : vector<2x32xbf16>, vector<32x96xbf16>, vector<2x96xf32> -> vector<2x96xf32>
    %134 = vector.broadcast %4 : vector<1x96xf32> to vector<2x96xf32>
    %135 = arith.addf %133, %134 : vector<2x96xf32>
    %136 = arith.truncf %122 : vector<2x32xf32> to vector<2x32xbf16>
    %cst_68 = arith.constant dense<0.000000e+00> : vector<2x96xf32>
    %137 = tpu.matmul %136, %3, %cst_68 {dimension_numbers = #tpu.dot_dimension_numbers<[1], [0], [0], [1], [0, 0, 1, 1], [], []>} : vector<2x32xbf16>, vector<32x96xbf16>, vector<2x96xf32> -> vector<2x96xf32>
    %138 = vector.extract_strided_slice %135 {offsets = [0, 0], sizes = [2, 32], strides = [1, 1]} : vector<2x96xf32> to vector<2x32xf32>
    %139 = vector.extract_strided_slice %137 {offsets = [0, 0], sizes = [2, 32], strides = [1, 1]} : vector<2x96xf32> to vector<2x32xf32>
    %140 = arith.addf %138, %139 : vector<2x32xf32>
    %141 = arith.negf %140 : vector<2x32xf32>
    %142 = math.exp %141 : vector<2x32xf32>
    %cst_69 = arith.constant 1.000000e+00 : f32
    %143 = vector.broadcast %cst_69 : f32 to vector<2x32xf32>
    %144 = arith.addf %143, %142 : vector<2x32xf32>
    %145 = arith.divf %143, %144 : vector<2x32xf32>
    %146 = vector.extract_strided_slice %135 {offsets = [0, 32], sizes = [2, 32], strides = [1, 1]} : vector<2x96xf32> to vector<2x32xf32>
    %147 = vector.extract_strided_slice %137 {offsets = [0, 32], sizes = [2, 32], strides = [1, 1]} : vector<2x96xf32> to vector<2x32xf32>
    %148 = arith.addf %146, %147 : vector<2x32xf32>
    %149 = arith.negf %148 : vector<2x32xf32>
    %150 = math.exp %149 : vector<2x32xf32>
    %cst_70 = arith.constant 1.000000e+00 : f32
    %151 = vector.broadcast %cst_70 : f32 to vector<2x32xf32>
    %152 = arith.addf %151, %150 : vector<2x32xf32>
    %153 = arith.divf %151, %152 : vector<2x32xf32>
    %154 = vector.extract_strided_slice %135 {offsets = [0, 64], sizes = [2, 32], strides = [1, 1]} : vector<2x96xf32> to vector<2x32xf32>
    %155 = vector.extract_strided_slice %137 {offsets = [0, 64], sizes = [2, 32], strides = [1, 1]} : vector<2x96xf32> to vector<2x32xf32>
    %156 = vector.broadcast %5 : vector<1x32xf32> to vector<2x32xf32>
    %157 = arith.addf %155, %156 : vector<2x32xf32>
    %158 = arith.mulf %145, %157 : vector<2x32xf32>
    %159 = arith.addf %154, %158 : vector<2x32xf32>
    %160 = math.tanh %159 : vector<2x32xf32>
    %cst_71 = arith.constant 1.000000e+00 : f32
    %161 = vector.broadcast %cst_71 : f32 to vector<2x32xf32>
    %162 = arith.subf %161, %153 : vector<2x32xf32>
    %163 = arith.mulf %162, %160 : vector<2x32xf32>
    %164 = arith.mulf %153, %122 : vector<2x32xf32>
    %165 = arith.addf %163, %164 : vector<2x32xf32>
    %c2_i32 = arith.constant 2 : i32
    %166 = vector.broadcast %c2_i32 : i32 to vector<2x1xi32>
    %167 = arith.cmpi sgt, %1, %166 : vector<2x1xi32>
    %168 = arith.extui %167 : vector<2x1xi1> to vector<2x1xi32>
    %169 = arith.sitofp %168 : vector<2x1xi32> to vector<2x1xf32>
    %170 = vector.broadcast %169 : vector<2x1xf32> to vector<2x32xf32>
    %171 = arith.mulf %170, %165 : vector<2x32xf32>
    %cst_72 = arith.constant 1.000000e+00 : f32
    %172 = vector.broadcast %cst_72 : f32 to vector<2x1xf32>
    %173 = arith.subf %172, %169 : vector<2x1xf32>
    %174 = vector.broadcast %173 : vector<2x1xf32> to vector<2x32xf32>
    %175 = arith.mulf %174, %122 : vector<2x32xf32>
    %176 = arith.addf %171, %175 : vector<2x32xf32>
    %177 = vector.shape_cast %171 : vector<2x32xf32> to vector<2x1x32xf32>
    %c0_73 = arith.constant 0 : index
    %c2 = arith.constant 2 : index
    %c0_74 = arith.constant 0 : index
    %178 = vector.load %arg23[%c0_73, %c2, %c0_74] : memref<2x8x32xf32, #tpu.memory_space<vmem>>, vector<2x1x32xf32>
    tpu.vector_store %arg23[%c0_73, %c2, %c0_74], %177 {strides = array<i32>} : memref<2x8x32xf32, #tpu.memory_space<vmem>>, vector<2x1x32xf32>,
    %179 = arith.truncf %171 : vector<2x32xf32> to vector<2x32xbf16>
    %cst_75 = arith.constant dense<0.000000e+00> : vector<2x32xf32>
    %180 = tpu.matmul %179, %7, %cst_75 {dimension_numbers = #tpu.dot_dimension_numbers<[1], [0], [0], [1], [0, 0, 1, 1], [], []>} : vector<2x32xbf16>, vector<32x32xbf16>, vector<2x32xf32> -> vector<2x32xf32>
    %181 = vector.broadcast %8 : vector<1x32xf32> to vector<2x32xf32>
    %182 = arith.addf %180, %181 : vector<2x32xf32>
    %183 = vector.shape_cast %182 : vector<2x32xf32> to vector<2x1x32xf32>
    %c0_76 = arith.constant 0 : index
    %c2_77 = arith.constant 2 : index
    %c0_78 = arith.constant 0 : index
    %184 = vector.load %arg24[%c0_76, %c2_77, %c0_78] : memref<2x8x32xf32, #tpu.memory_space<vmem>>, vector<2x1x32xf32>
    tpu.vector_store %arg24[%c0_76, %c2_77, %c0_78], %183 {strides = array<i32>} : memref<2x8x32xf32, #tpu.memory_space<vmem>>, vector<2x1x32xf32>,
    %185 = vector.extract_strided_slice %0 {offsets = [0, 3, 0], sizes = [2, 1, 32], strides = [1, 1, 1]} : vector<2x8x32xbf16> to vector<2x1x32xbf16>
    %186 = vector.shape_cast %185 : vector<2x1x32xbf16> to vector<2x32xbf16>
    %cst_79 = arith.constant dense<0.000000e+00> : vector<2x96xf32>
    %187 = tpu.matmul %186, %2, %cst_79 {dimension_numbers = #tpu.dot_dimension_numbers<[1], [0], [0], [1], [0, 0, 1, 1], [], []>} : vector<2x32xbf16>, vector<32x96xbf16>, vector<2x96xf32> -> vector<2x96xf32>
    %188 = vector.broadcast %4 : vector<1x96xf32> to vector<2x96xf32>
    %189 = arith.addf %187, %188 : vector<2x96xf32>
    %190 = arith.truncf %176 : vector<2x32xf32> to vector<2x32xbf16>
    %cst_80 = arith.constant dense<0.000000e+00> : vector<2x96xf32>
    %191 = tpu.matmul %190, %3, %cst_80 {dimension_numbers = #tpu.dot_dimension_numbers<[1], [0], [0], [1], [0, 0, 1, 1], [], []>} : vector<2x32xbf16>, vector<32x96xbf16>, vector<2x96xf32> -> vector<2x96xf32>
    %192 = vector.extract_strided_slice %189 {offsets = [0, 0], sizes = [2, 32], strides = [1, 1]} : vector<2x96xf32> to vector<2x32xf32>
    %193 = vector.extract_strided_slice %191 {offsets = [0, 0], sizes = [2, 32], strides = [1, 1]} : vector<2x96xf32> to vector<2x32xf32>
    %194 = arith.addf %192, %193 : vector<2x32xf32>
    %195 = arith.negf %194 : vector<2x32xf32>
    %196 = math.exp %195 : vector<2x32xf32>
    %cst_81 = arith.constant 1.000000e+00 : f32
    %197 = vector.broadcast %cst_81 : f32 to vector<2x32xf32>
    %198 = arith.addf %197, %196 : vector<2x32xf32>
    %199 = arith.divf %197, %198 : vector<2x32xf32>
    %200 = vector.extract_strided_slice %189 {offsets = [0, 32], sizes = [2, 32], strides = [1, 1]} : vector<2x96xf32> to vector<2x32xf32>
    %201 = vector.extract_strided_slice %191 {offsets = [0, 32], sizes = [2, 32], strides = [1, 1]} : vector<2x96xf32> to vector<2x32xf32>
    %202 = arith.addf %200, %201 : vector<2x32xf32>
    %203 = arith.negf %202 : vector<2x32xf32>
    %204 = math.exp %203 : vector<2x32xf32>
    %cst_82 = arith.constant 1.000000e+00 : f32
    %205 = vector.broadcast %cst_82 : f32 to vector<2x32xf32>
    %206 = arith.addf %205, %204 : vector<2x32xf32>
    %207 = arith.divf %205, %206 : vector<2x32xf32>
    %208 = vector.extract_strided_slice %189 {offsets = [0, 64], sizes = [2, 32], strides = [1, 1]} : vector<2x96xf32> to vector<2x32xf32>
    %209 = vector.extract_strided_slice %191 {offsets = [0, 64], sizes = [2, 32], strides = [1, 1]} : vector<2x96xf32> to vector<2x32xf32>
    %210 = vector.broadcast %5 : vector<1x32xf32> to vector<2x32xf32>
    %211 = arith.addf %209, %210 : vector<2x32xf32>
    %212 = arith.mulf %199, %211 : vector<2x32xf32>
    %213 = arith.addf %208, %212 : vector<2x32xf32>
    %214 = math.tanh %213 : vector<2x32xf32>
    %cst_83 = arith.constant 1.000000e+00 : f32
    %215 = vector.broadcast %cst_83 : f32 to vector<2x32xf32>
    %216 = arith.subf %215, %207 : vector<2x32xf32>
    %217 = arith.mulf %216, %214 : vector<2x32xf32>
    %218 = arith.mulf %207, %176 : vector<2x32xf32>
    %219 = arith.addf %217, %218 : vector<2x32xf32>
    %c3_i32 = arith.constant 3 : i32
    %220 = vector.broadcast %c3_i32 : i32 to vector<2x1xi32>
    %221 = arith.cmpi sgt, %1, %220 : vector<2x1xi32>
    %222 = arith.extui %221 : vector<2x1xi1> to vector<2x1xi32>
    %223 = arith.sitofp %222 : vector<2x1xi32> to vector<2x1xf32>
    %224 = vector.broadcast %223 : vector<2x1xf32> to vector<2x32xf32>
    %225 = arith.mulf %224, %219 : vector<2x32xf32>
    %cst_84 = arith.constant 1.000000e+00 : f32
    %226 = vector.broadcast %cst_84 : f32 to vector<2x1xf32>
    %227 = arith.subf %226, %223 : vector<2x1xf32>
    %228 = vector.broadcast %227 : vector<2x1xf32> to vector<2x32xf32>
    %229 = arith.mulf %228, %176 : vector<2x32xf32>
    %230 = arith.addf %225, %229 : vector<2x32xf32>
    %231 = vector.shape_cast %225 : vector<2x32xf32> to vector<2x1x32xf32>
    %c0_85 = arith.constant 0 : index
    %c3 = arith.constant 3 : index
    %c0_86 = arith.constant 0 : index
    %232 = vector.load %arg23[%c0_85, %c3, %c0_86] : memref<2x8x32xf32, #tpu.memory_space<vmem>>, vector<2x1x32xf32>
    tpu.vector_store %arg23[%c0_85, %c3, %c0_86], %231 {strides = array<i32>} : memref<2x8x32xf32, #tpu.memory_space<vmem>>, vector<2x1x32xf32>,
    %233 = arith.truncf %225 : vector<2x32xf32> to vector<2x32xbf16>
    %cst_87 = arith.constant dense<0.000000e+00> : vector<2x32xf32>
    %234 = tpu.matmul %233, %7, %cst_87 {dimension_numbers = #tpu.dot_dimension_numbers<[1], [0], [0], [1], [0, 0, 1, 1], [], []>} : vector<2x32xbf16>, vector<32x32xbf16>, vector<2x32xf32> -> vector<2x32xf32>
    %235 = vector.broadcast %8 : vector<1x32xf32> to vector<2x32xf32>
    %236 = arith.addf %234, %235 : vector<2x32xf32>
    %237 = vector.shape_cast %236 : vector<2x32xf32> to vector<2x1x32xf32>
    %c0_88 = arith.constant 0 : index
    %c3_89 = arith.constant 3 : index
    %c0_90 = arith.constant 0 : index
    %238 = vector.load %arg24[%c0_88, %c3_89, %c0_90] : memref<2x8x32xf32, #tpu.memory_space<vmem>>, vector<2x1x32xf32>
    tpu.vector_store %arg24[%c0_88, %c3_89, %c0_90], %237 {strides = array<i32>} : memref<2x8x32xf32, #tpu.memory_space<vmem>>, vector<2x1x32xf32>,
    %239 = vector.extract_strided_slice %0 {offsets = [0, 4, 0], sizes = [2, 1, 32], strides = [1, 1, 1]} : vector<2x8x32xbf16> to vector<2x1x32xbf16>
    %240 = vector.shape_cast %239 : vector<2x1x32xbf16> to vector<2x32xbf16>
    %cst_91 = arith.constant dense<0.000000e+00> : vector<2x96xf32>
    %241 = tpu.matmul %240, %2, %cst_91 {dimension_numbers = #tpu.dot_dimension_numbers<[1], [0], [0], [1], [0, 0, 1, 1], [], []>} : vector<2x32xbf16>, vector<32x96xbf16>, vector<2x96xf32> -> vector<2x96xf32>
    %242 = vector.broadcast %4 : vector<1x96xf32> to vector<2x96xf32>
    %243 = arith.addf %241, %242 : vector<2x96xf32>
    %244 = arith.truncf %230 : vector<2x32xf32> to vector<2x32xbf16>
    %cst_92 = arith.constant dense<0.000000e+00> : vector<2x96xf32>
    %245 = tpu.matmul %244, %3, %cst_92 {dimension_numbers = #tpu.dot_dimension_numbers<[1], [0], [0], [1], [0, 0, 1, 1], [], []>} : vector<2x32xbf16>, vector<32x96xbf16>, vector<2x96xf32> -> vector<2x96xf32>
    %246 = vector.extract_strided_slice %243 {offsets = [0, 0], sizes = [2, 32], strides = [1, 1]} : vector<2x96xf32> to vector<2x32xf32>
    %247 = vector.extract_strided_slice %245 {offsets = [0, 0], sizes = [2, 32], strides = [1, 1]} : vector<2x96xf32> to vector<2x32xf32>
    %248 = arith.addf %246, %247 : vector<2x32xf32>
    %249 = arith.negf %248 : vector<2x32xf32>
    %250 = math.exp %249 : vector<2x32xf32>
    %cst_93 = arith.constant 1.000000e+00 : f32
    %251 = vector.broadcast %cst_93 : f32 to vector<2x32xf32>
    %252 = arith.addf %251, %250 : vector<2x32xf32>
    %253 = arith.divf %251, %252 : vector<2x32xf32>
    %254 = vector.extract_strided_slice %243 {offsets = [0, 32], sizes = [2, 32], strides = [1, 1]} : vector<2x96xf32> to vector<2x32xf32>
    %255 = vector.extract_strided_slice %245 {offsets = [0, 32], sizes = [2, 32], strides = [1, 1]} : vector<2x96xf32> to vector<2x32xf32>
    %256 = arith.addf %254, %255 : vector<2x32xf32>
    %257 = arith.negf %256 : vector<2x32xf32>
    %258 = math.exp %257 : vector<2x32xf32>
    %cst_94 = arith.constant 1.000000e+00 : f32
    %259 = vector.broadcast %cst_94 : f32 to vector<2x32xf32>
    %260 = arith.addf %259, %258 : vector<2x32xf32>
    %261 = arith.divf %259, %260 : vector<2x32xf32>
    %262 = vector.extract_strided_slice %243 {offsets = [0, 64], sizes = [2, 32], strides = [1, 1]} : vector<2x96xf32> to vector<2x32xf32>
    %263 = vector.extract_strided_slice %245 {offsets = [0, 64], sizes = [2, 32], strides = [1, 1]} : vector<2x96xf32> to vector<2x32xf32>
    %264 = vector.broadcast %5 : vector<1x32xf32> to vector<2x32xf32>
    %265 = arith.addf %263, %264 : vector<2x32xf32>
    %266 = arith.mulf %253, %265 : vector<2x32xf32>
    %267 = arith.addf %262, %266 : vector<2x32xf32>
    %268 = math.tanh %267 : vector<2x32xf32>
    %cst_95 = arith.constant 1.000000e+00 : f32
    %269 = vector.broadcast %cst_95 : f32 to vector<2x32xf32>
    %270 = arith.subf %269, %261 : vector<2x32xf32>
    %271 = arith.mulf %270, %268 : vector<2x32xf32>
    %272 = arith.mulf %261, %230 : vector<2x32xf32>
    %273 = arith.addf %271, %272 : vector<2x32xf32>
    %c4_i32 = arith.constant 4 : i32
    %274 = vector.broadcast %c4_i32 : i32 to vector<2x1xi32>
    %275 = arith.cmpi sgt, %1, %274 : vector<2x1xi32>
    %276 = arith.extui %275 : vector<2x1xi1> to vector<2x1xi32>
    %277 = arith.sitofp %276 : vector<2x1xi32> to vector<2x1xf32>
    %278 = vector.broadcast %277 : vector<2x1xf32> to vector<2x32xf32>
    %279 = arith.mulf %278, %273 : vector<2x32xf32>
    %cst_96 = arith.constant 1.000000e+00 : f32
    %280 = vector.broadcast %cst_96 : f32 to vector<2x1xf32>
    %281 = arith.subf %280, %277 : vector<2x1xf32>
    %282 = vector.broadcast %281 : vector<2x1xf32> to vector<2x32xf32>
    %283 = arith.mulf %282, %230 : vector<2x32xf32>
    %284 = arith.addf %279, %283 : vector<2x32xf32>
    %285 = vector.shape_cast %279 : vector<2x32xf32> to vector<2x1x32xf32>
    %c0_97 = arith.constant 0 : index
    %c4 = arith.constant 4 : index
    %c0_98 = arith.constant 0 : index
    %286 = vector.load %arg23[%c0_97, %c4, %c0_98] : memref<2x8x32xf32, #tpu.memory_space<vmem>>, vector<2x1x32xf32>
    tpu.vector_store %arg23[%c0_97, %c4, %c0_98], %285 {strides = array<i32>} : memref<2x8x32xf32, #tpu.memory_space<vmem>>, vector<2x1x32xf32>,
    %287 = arith.truncf %279 : vector<2x32xf32> to vector<2x32xbf16>
    %cst_99 = arith.constant dense<0.000000e+00> : vector<2x32xf32>
    %288 = tpu.matmul %287, %7, %cst_99 {dimension_numbers = #tpu.dot_dimension_numbers<[1], [0], [0], [1], [0, 0, 1, 1], [], []>} : vector<2x32xbf16>, vector<32x32xbf16>, vector<2x32xf32> -> vector<2x32xf32>
    %289 = vector.broadcast %8 : vector<1x32xf32> to vector<2x32xf32>
    %290 = arith.addf %288, %289 : vector<2x32xf32>
    %291 = vector.shape_cast %290 : vector<2x32xf32> to vector<2x1x32xf32>
    %c0_100 = arith.constant 0 : index
    %c4_101 = arith.constant 4 : index
    %c0_102 = arith.constant 0 : index
    %292 = vector.load %arg24[%c0_100, %c4_101, %c0_102] : memref<2x8x32xf32, #tpu.memory_space<vmem>>, vector<2x1x32xf32>
    tpu.vector_store %arg24[%c0_100, %c4_101, %c0_102], %291 {strides = array<i32>} : memref<2x8x32xf32, #tpu.memory_space<vmem>>, vector<2x1x32xf32>,
    %293 = vector.extract_strided_slice %0 {offsets = [0, 5, 0], sizes = [2, 1, 32], strides = [1, 1, 1]} : vector<2x8x32xbf16> to vector<2x1x32xbf16>
    %294 = vector.shape_cast %293 : vector<2x1x32xbf16> to vector<2x32xbf16>
    %cst_103 = arith.constant dense<0.000000e+00> : vector<2x96xf32>
    %295 = tpu.matmul %294, %2, %cst_103 {dimension_numbers = #tpu.dot_dimension_numbers<[1], [0], [0], [1], [0, 0, 1, 1], [], []>} : vector<2x32xbf16>, vector<32x96xbf16>, vector<2x96xf32> -> vector<2x96xf32>
    %296 = vector.broadcast %4 : vector<1x96xf32> to vector<2x96xf32>
    %297 = arith.addf %295, %296 : vector<2x96xf32>
    %298 = arith.truncf %284 : vector<2x32xf32> to vector<2x32xbf16>
    %cst_104 = arith.constant dense<0.000000e+00> : vector<2x96xf32>
    %299 = tpu.matmul %298, %3, %cst_104 {dimension_numbers = #tpu.dot_dimension_numbers<[1], [0], [0], [1], [0, 0, 1, 1], [], []>} : vector<2x32xbf16>, vector<32x96xbf16>, vector<2x96xf32> -> vector<2x96xf32>
    %300 = vector.extract_strided_slice %297 {offsets = [0, 0], sizes = [2, 32], strides = [1, 1]} : vector<2x96xf32> to vector<2x32xf32>
    %301 = vector.extract_strided_slice %299 {offsets = [0, 0], sizes = [2, 32], strides = [1, 1]} : vector<2x96xf32> to vector<2x32xf32>
    %302 = arith.addf %300, %301 : vector<2x32xf32>
    %303 = arith.negf %302 : vector<2x32xf32>
    %304 = math.exp %303 : vector<2x32xf32>
    %cst_105 = arith.constant 1.000000e+00 : f32
    %305 = vector.broadcast %cst_105 : f32 to vector<2x32xf32>
    %306 = arith.addf %305, %304 : vector<2x32xf32>
    %307 = arith.divf %305, %306 : vector<2x32xf32>
    %308 = vector.extract_strided_slice %297 {offsets = [0, 32], sizes = [2, 32], strides = [1, 1]} : vector<2x96xf32> to vector<2x32xf32>
    %309 = vector.extract_strided_slice %299 {offsets = [0, 32], sizes = [2, 32], strides = [1, 1]} : vector<2x96xf32> to vector<2x32xf32>
    %310 = arith.addf %308, %309 : vector<2x32xf32>
    %311 = arith.negf %310 : vector<2x32xf32>
    %312 = math.exp %311 : vector<2x32xf32>
    %cst_106 = arith.constant 1.000000e+00 : f32
    %313 = vector.broadcast %cst_106 : f32 to vector<2x32xf32>
    %314 = arith.addf %313, %312 : vector<2x32xf32>
    %315 = arith.divf %313, %314 : vector<2x32xf32>
    %316 = vector.extract_strided_slice %297 {offsets = [0, 64], sizes = [2, 32], strides = [1, 1]} : vector<2x96xf32> to vector<2x32xf32>
    %317 = vector.extract_strided_slice %299 {offsets = [0, 64], sizes = [2, 32], strides = [1, 1]} : vector<2x96xf32> to vector<2x32xf32>
    %318 = vector.broadcast %5 : vector<1x32xf32> to vector<2x32xf32>
    %319 = arith.addf %317, %318 : vector<2x32xf32>
    %320 = arith.mulf %307, %319 : vector<2x32xf32>
    %321 = arith.addf %316, %320 : vector<2x32xf32>
    %322 = math.tanh %321 : vector<2x32xf32>
    %cst_107 = arith.constant 1.000000e+00 : f32
    %323 = vector.broadcast %cst_107 : f32 to vector<2x32xf32>
    %324 = arith.subf %323, %315 : vector<2x32xf32>
    %325 = arith.mulf %324, %322 : vector<2x32xf32>
    %326 = arith.mulf %315, %284 : vector<2x32xf32>
    %327 = arith.addf %325, %326 : vector<2x32xf32>
    %c5_i32 = arith.constant 5 : i32
    %328 = vector.broadcast %c5_i32 : i32 to vector<2x1xi32>
    %329 = arith.cmpi sgt, %1, %328 : vector<2x1xi32>
    %330 = arith.extui %329 : vector<2x1xi1> to vector<2x1xi32>
    %331 = arith.sitofp %330 : vector<2x1xi32> to vector<2x1xf32>
    %332 = vector.broadcast %331 : vector<2x1xf32> to vector<2x32xf32>
    %333 = arith.mulf %332, %327 : vector<2x32xf32>
    %cst_108 = arith.constant 1.000000e+00 : f32
    %334 = vector.broadcast %cst_108 : f32 to vector<2x1xf32>
    %335 = arith.subf %334, %331 : vector<2x1xf32>
    %336 = vector.broadcast %335 : vector<2x1xf32> to vector<2x32xf32>
    %337 = arith.mulf %336, %284 : vector<2x32xf32>
    %338 = arith.addf %333, %337 : vector<2x32xf32>
    %339 = vector.shape_cast %333 : vector<2x32xf32> to vector<2x1x32xf32>
    %c0_109 = arith.constant 0 : index
    %c5 = arith.constant 5 : index
    %c0_110 = arith.constant 0 : index
    %340 = vector.load %arg23[%c0_109, %c5, %c0_110] : memref<2x8x32xf32, #tpu.memory_space<vmem>>, vector<2x1x32xf32>
    tpu.vector_store %arg23[%c0_109, %c5, %c0_110], %339 {strides = array<i32>} : memref<2x8x32xf32, #tpu.memory_space<vmem>>, vector<2x1x32xf32>,
    %341 = arith.truncf %333 : vector<2x32xf32> to vector<2x32xbf16>
    %cst_111 = arith.constant dense<0.000000e+00> : vector<2x32xf32>
    %342 = tpu.matmul %341, %7, %cst_111 {dimension_numbers = #tpu.dot_dimension_numbers<[1], [0], [0], [1], [0, 0, 1, 1], [], []>} : vector<2x32xbf16>, vector<32x32xbf16>, vector<2x32xf32> -> vector<2x32xf32>
    %343 = vector.broadcast %8 : vector<1x32xf32> to vector<2x32xf32>
    %344 = arith.addf %342, %343 : vector<2x32xf32>
    %345 = vector.shape_cast %344 : vector<2x32xf32> to vector<2x1x32xf32>
    %c0_112 = arith.constant 0 : index
    %c5_113 = arith.constant 5 : index
    %c0_114 = arith.constant 0 : index
    %346 = vector.load %arg24[%c0_112, %c5_113, %c0_114] : memref<2x8x32xf32, #tpu.memory_space<vmem>>, vector<2x1x32xf32>
    tpu.vector_store %arg24[%c0_112, %c5_113, %c0_114], %345 {strides = array<i32>} : memref<2x8x32xf32, #tpu.memory_space<vmem>>, vector<2x1x32xf32>,
    %347 = vector.extract_strided_slice %0 {offsets = [0, 6, 0], sizes = [2, 1, 32], strides = [1, 1, 1]} : vector<2x8x32xbf16> to vector<2x1x32xbf16>
    %348 = vector.shape_cast %347 : vector<2x1x32xbf16> to vector<2x32xbf16>
    %cst_115 = arith.constant dense<0.000000e+00> : vector<2x96xf32>
    %349 = tpu.matmul %348, %2, %cst_115 {dimension_numbers = #tpu.dot_dimension_numbers<[1], [0], [0], [1], [0, 0, 1, 1], [], []>} : vector<2x32xbf16>, vector<32x96xbf16>, vector<2x96xf32> -> vector<2x96xf32>
    %350 = vector.broadcast %4 : vector<1x96xf32> to vector<2x96xf32>
    %351 = arith.addf %349, %350 : vector<2x96xf32>
    %352 = arith.truncf %338 : vector<2x32xf32> to vector<2x32xbf16>
    %cst_116 = arith.constant dense<0.000000e+00> : vector<2x96xf32>
    %353 = tpu.matmul %352, %3, %cst_116 {dimension_numbers = #tpu.dot_dimension_numbers<[1], [0], [0], [1], [0, 0, 1, 1], [], []>} : vector<2x32xbf16>, vector<32x96xbf16>, vector<2x96xf32> -> vector<2x96xf32>
    %354 = vector.extract_strided_slice %351 {offsets = [0, 0], sizes = [2, 32], strides = [1, 1]} : vector<2x96xf32> to vector<2x32xf32>
    %355 = vector.extract_strided_slice %353 {offsets = [0, 0], sizes = [2, 32], strides = [1, 1]} : vector<2x96xf32> to vector<2x32xf32>
    %356 = arith.addf %354, %355 : vector<2x32xf32>
    %357 = arith.negf %356 : vector<2x32xf32>
    %358 = math.exp %357 : vector<2x32xf32>
    %cst_117 = arith.constant 1.000000e+00 : f32
    %359 = vector.broadcast %cst_117 : f32 to vector<2x32xf32>
    %360 = arith.addf %359, %358 : vector<2x32xf32>
    %361 = arith.divf %359, %360 : vector<2x32xf32>
    %362 = vector.extract_strided_slice %351 {offsets = [0, 32], sizes = [2, 32], strides = [1, 1]} : vector<2x96xf32> to vector<2x32xf32>
    %363 = vector.extract_strided_slice %353 {offsets = [0, 32], sizes = [2, 32], strides = [1, 1]} : vector<2x96xf32> to vector<2x32xf32>
    %364 = arith.addf %362, %363 : vector<2x32xf32>
    %365 = arith.negf %364 : vector<2x32xf32>
    %366 = math.exp %365 : vector<2x32xf32>
    %cst_118 = arith.constant 1.000000e+00 : f32
    %367 = vector.broadcast %cst_118 : f32 to vector<2x32xf32>
    %368 = arith.addf %367, %366 : vector<2x32xf32>
    %369 = arith.divf %367, %368 : vector<2x32xf32>
    %370 = vector.extract_strided_slice %351 {offsets = [0, 64], sizes = [2, 32], strides = [1, 1]} : vector<2x96xf32> to vector<2x32xf32>
    %371 = vector.extract_strided_slice %353 {offsets = [0, 64], sizes = [2, 32], strides = [1, 1]} : vector<2x96xf32> to vector<2x32xf32>
    %372 = vector.broadcast %5 : vector<1x32xf32> to vector<2x32xf32>
    %373 = arith.addf %371, %372 : vector<2x32xf32>
    %374 = arith.mulf %361, %373 : vector<2x32xf32>
    %375 = arith.addf %370, %374 : vector<2x32xf32>
    %376 = math.tanh %375 : vector<2x32xf32>
    %cst_119 = arith.constant 1.000000e+00 : f32
    %377 = vector.broadcast %cst_119 : f32 to vector<2x32xf32>
    %378 = arith.subf %377, %369 : vector<2x32xf32>
    %379 = arith.mulf %378, %376 : vector<2x32xf32>
    %380 = arith.mulf %369, %338 : vector<2x32xf32>
    %381 = arith.addf %379, %380 : vector<2x32xf32>
    %c6_i32 = arith.constant 6 : i32
    %382 = vector.broadcast %c6_i32 : i32 to vector<2x1xi32>
    %383 = arith.cmpi sgt, %1, %382 : vector<2x1xi32>
    %384 = arith.extui %383 : vector<2x1xi1> to vector<2x1xi32>
    %385 = arith.sitofp %384 : vector<2x1xi32> to vector<2x1xf32>
    %386 = vector.broadcast %385 : vector<2x1xf32> to vector<2x32xf32>
    %387 = arith.mulf %386, %381 : vector<2x32xf32>
    %cst_120 = arith.constant 1.000000e+00 : f32
    %388 = vector.broadcast %cst_120 : f32 to vector<2x1xf32>
    %389 = arith.subf %388, %385 : vector<2x1xf32>
    %390 = vector.broadcast %389 : vector<2x1xf32> to vector<2x32xf32>
    %391 = arith.mulf %390, %338 : vector<2x32xf32>
    %392 = arith.addf %387, %391 : vector<2x32xf32>
    %393 = vector.shape_cast %387 : vector<2x32xf32> to vector<2x1x32xf32>
    %c0_121 = arith.constant 0 : index
    %c6 = arith.constant 6 : index
    %c0_122 = arith.constant 0 : index
    %394 = vector.load %arg23[%c0_121, %c6, %c0_122] : memref<2x8x32xf32, #tpu.memory_space<vmem>>, vector<2x1x32xf32>
    tpu.vector_store %arg23[%c0_121, %c6, %c0_122], %393 {strides = array<i32>} : memref<2x8x32xf32, #tpu.memory_space<vmem>>, vector<2x1x32xf32>,
    %395 = arith.truncf %387 : vector<2x32xf32> to vector<2x32xbf16>
    %cst_123 = arith.constant dense<0.000000e+00> : vector<2x32xf32>
    %396 = tpu.matmul %395, %7, %cst_123 {dimension_numbers = #tpu.dot_dimension_numbers<[1], [0], [0], [1], [0, 0, 1, 1], [], []>} : vector<2x32xbf16>, vector<32x32xbf16>, vector<2x32xf32> -> vector<2x32xf32>
    %397 = vector.broadcast %8 : vector<1x32xf32> to vector<2x32xf32>
    %398 = arith.addf %396, %397 : vector<2x32xf32>
    %399 = vector.shape_cast %398 : vector<2x32xf32> to vector<2x1x32xf32>
    %c0_124 = arith.constant 0 : index
    %c6_125 = arith.constant 6 : index
    %c0_126 = arith.constant 0 : index
    %400 = vector.load %arg24[%c0_124, %c6_125, %c0_126] : memref<2x8x32xf32, #tpu.memory_space<vmem>>, vector<2x1x32xf32>
    tpu.vector_store %arg24[%c0_124, %c6_125, %c0_126], %399 {strides = array<i32>} : memref<2x8x32xf32, #tpu.memory_space<vmem>>, vector<2x1x32xf32>,
    %401 = vector.extract_strided_slice %0 {offsets = [0, 7, 0], sizes = [2, 1, 32], strides = [1, 1, 1]} : vector<2x8x32xbf16> to vector<2x1x32xbf16>
    %402 = vector.shape_cast %401 : vector<2x1x32xbf16> to vector<2x32xbf16>
    %cst_127 = arith.constant dense<0.000000e+00> : vector<2x96xf32>
    %403 = tpu.matmul %402, %2, %cst_127 {dimension_numbers = #tpu.dot_dimension_numbers<[1], [0], [0], [1], [0, 0, 1, 1], [], []>} : vector<2x32xbf16>, vector<32x96xbf16>, vector<2x96xf32> -> vector<2x96xf32>
    %404 = vector.broadcast %4 : vector<1x96xf32> to vector<2x96xf32>
    %405 = arith.addf %403, %404 : vector<2x96xf32>
    %406 = arith.truncf %392 : vector<2x32xf32> to vector<2x32xbf16>
    %cst_128 = arith.constant dense<0.000000e+00> : vector<2x96xf32>
    %407 = tpu.matmul %406, %3, %cst_128 {dimension_numbers = #tpu.dot_dimension_numbers<[1], [0], [0], [1], [0, 0, 1, 1], [], []>} : vector<2x32xbf16>, vector<32x96xbf16>, vector<2x96xf32> -> vector<2x96xf32>
    %408 = vector.extract_strided_slice %405 {offsets = [0, 0], sizes = [2, 32], strides = [1, 1]} : vector<2x96xf32> to vector<2x32xf32>
    %409 = vector.extract_strided_slice %407 {offsets = [0, 0], sizes = [2, 32], strides = [1, 1]} : vector<2x96xf32> to vector<2x32xf32>
    %410 = arith.addf %408, %409 : vector<2x32xf32>
    %411 = arith.negf %410 : vector<2x32xf32>
    %412 = math.exp %411 : vector<2x32xf32>
    %cst_129 = arith.constant 1.000000e+00 : f32
    %413 = vector.broadcast %cst_129 : f32 to vector<2x32xf32>
    %414 = arith.addf %413, %412 : vector<2x32xf32>
    %415 = arith.divf %413, %414 : vector<2x32xf32>
    %416 = vector.extract_strided_slice %405 {offsets = [0, 32], sizes = [2, 32], strides = [1, 1]} : vector<2x96xf32> to vector<2x32xf32>
    %417 = vector.extract_strided_slice %407 {offsets = [0, 32], sizes = [2, 32], strides = [1, 1]} : vector<2x96xf32> to vector<2x32xf32>
    %418 = arith.addf %416, %417 : vector<2x32xf32>
    %419 = arith.negf %418 : vector<2x32xf32>
    %420 = math.exp %419 : vector<2x32xf32>
    %cst_130 = arith.constant 1.000000e+00 : f32
    %421 = vector.broadcast %cst_130 : f32 to vector<2x32xf32>
    %422 = arith.addf %421, %420 : vector<2x32xf32>
    %423 = arith.divf %421, %422 : vector<2x32xf32>
    %424 = vector.extract_strided_slice %405 {offsets = [0, 64], sizes = [2, 32], strides = [1, 1]} : vector<2x96xf32> to vector<2x32xf32>
    %425 = vector.extract_strided_slice %407 {offsets = [0, 64], sizes = [2, 32], strides = [1, 1]} : vector<2x96xf32> to vector<2x32xf32>
    %426 = vector.broadcast %5 : vector<1x32xf32> to vector<2x32xf32>
    %427 = arith.addf %425, %426 : vector<2x32xf32>
    %428 = arith.mulf %415, %427 : vector<2x32xf32>
    %429 = arith.addf %424, %428 : vector<2x32xf32>
    %430 = math.tanh %429 : vector<2x32xf32>
    %cst_131 = arith.constant 1.000000e+00 : f32
    %431 = vector.broadcast %cst_131 : f32 to vector<2x32xf32>
    %432 = arith.subf %431, %423 : vector<2x32xf32>
    %433 = arith.mulf %432, %430 : vector<2x32xf32>
    %434 = arith.mulf %423, %392 : vector<2x32xf32>
    %435 = arith.addf %433, %434 : vector<2x32xf32>
    %c7_i32 = arith.constant 7 : i32
    %436 = vector.broadcast %c7_i32 : i32 to vector<2x1xi32>
    %437 = arith.cmpi sgt, %1, %436 : vector<2x1xi32>
    %438 = arith.extui %437 : vector<2x1xi1> to vector<2x1xi32>
    %439 = arith.sitofp %438 : vector<2x1xi32> to vector<2x1xf32>
    %440 = vector.broadcast %439 : vector<2x1xf32> to vector<2x32xf32>
    %441 = arith.mulf %440, %435 : vector<2x32xf32>
    %cst_132 = arith.constant 1.000000e+00 : f32
    %442 = vector.broadcast %cst_132 : f32 to vector<2x1xf32>
    %443 = arith.subf %442, %439 : vector<2x1xf32>
    %444 = vector.broadcast %443 : vector<2x1xf32> to vector<2x32xf32>
    %445 = arith.mulf %444, %392 : vector<2x32xf32>
    %446 = arith.addf %441, %445 : vector<2x32xf32>
    %447 = vector.shape_cast %441 : vector<2x32xf32> to vector<2x1x32xf32>
    %c0_133 = arith.constant 0 : index
    %c7 = arith.constant 7 : index
    %c0_134 = arith.constant 0 : index
    %448 = vector.load %arg23[%c0_133, %c7, %c0_134] : memref<2x8x32xf32, #tpu.memory_space<vmem>>, vector<2x1x32xf32>
    tpu.vector_store %arg23[%c0_133, %c7, %c0_134], %447 {strides = array<i32>} : memref<2x8x32xf32, #tpu.memory_space<vmem>>, vector<2x1x32xf32>,
    %449 = arith.truncf %441 : vector<2x32xf32> to vector<2x32xbf16>
    %cst_135 = arith.constant dense<0.000000e+00> : vector<2x32xf32>
    %450 = tpu.matmul %449, %7, %cst_135 {dimension_numbers = #tpu.dot_dimension_numbers<[1], [0], [0], [1], [0, 0, 1, 1], [], []>} : vector<2x32xbf16>, vector<32x32xbf16>, vector<2x32xf32> -> vector<2x32xf32>
    %451 = vector.broadcast %8 : vector<1x32xf32> to vector<2x32xf32>
    %452 = arith.addf %450, %451 : vector<2x32xf32>
    %453 = vector.shape_cast %452 : vector<2x32xf32> to vector<2x1x32xf32>
    %c0_136 = arith.constant 0 : index
    %c7_137 = arith.constant 7 : index
    %c0_138 = arith.constant 0 : index
    %454 = vector.load %arg24[%c0_136, %c7_137, %c0_138] : memref<2x8x32xf32, #tpu.memory_space<vmem>>, vector<2x1x32xf32>
    tpu.vector_store %arg24[%c0_136, %c7_137, %c0_138], %453 {strides = array<i32>} : memref<2x8x32xf32, #tpu.memory_space<vmem>>, vector<2x1x32xf32>,
    %c0_139 = arith.constant 0 : index
    %c0_140 = arith.constant 0 : index
    %c0_141 = arith.constant 0 : index
    %455 = vector.load %arg23[%c0_139, %c0_140, %c0_141] : memref<2x8x32xf32, #tpu.memory_space<vmem>>, vector<2x8x32xf32>
    %c0_142 = arith.constant 0 : index
    %c0_143 = arith.constant 0 : index
    %c0_144 = arith.constant 0 : index
    %456 = vector.load %arg24[%c0_142, %c0_143, %c0_144] : memref<2x8x32xf32, #tpu.memory_space<vmem>>, vector<2x8x32xf32>
    %457 = tpu.iota {dimensions = array<i32: 1>} : vector<2x128xi32>
    %458 = tpu.iota {dimensions = array<i32: 1>} : vector<2x24xi32>
    %c1_i32_145 = arith.constant 1 : i32
    %459 = vector.broadcast %c1_i32_145 : i32 to vector<2x128xi32>
    %460 = arith.cmpi eq, %457, %459 : vector<2x128xi32>
    %461 = arith.extui %460 : vector<2x128xi1> to vector<2x128xi32>
    %462 = arith.sitofp %461 : vector<2x128xi32> to vector<2x128xf32>
    %c0_146 = arith.constant 0 : index
    %c0_147 = arith.constant 0 : index
    %c0_148 = arith.constant 0 : index
    %463 = vector.load %arg22[%c0_146, %c0_147, %c0_148] : memref<8x2x128xf32, #tpu.memory_space<vmem>>, vector<1x2x128xf32>
    %464 = vector.shape_cast %463 : vector<1x2x128xf32> to vector<2x128xf32>
    %465 = vector.shape_cast %462 : vector<2x128xf32> to vector<1x2x128xf32>
    tpu.vector_store %arg22[%c0_146, %c0_147, %c0_148], %465 {strides = array<i32>} : memref<8x2x128xf32, #tpu.memory_space<vmem>>, vector<1x2x128xf32>,
    %c0_149 = arith.constant 0 : index
    %c0_150 = arith.constant 0 : index
    %466 = vector.load %arg1[%c0_149, %c0_150] : memref<2x1xi32, #tpu.memory_space<vmem>>, vector<2x1xi32>
    %467 = vector.broadcast %466 : vector<2x1xi32> to vector<2x24xi32>
    %468 = arith.cmpi eq, %458, %467 : vector<2x24xi32>
    %469 = arith.extui %468 : vector<2x24xi1> to vector<2x24xi32>
    %470 = arith.sitofp %469 : vector<2x24xi32> to vector<2x24xf32>
    %471 = arith.truncf %470 : vector<2x24xf32> to vector<2x24xbf16>
    %cst_151 = arith.constant dense<0.000000e+00> : vector<2x32xf32>
    %472 = tpu.matmul %471, %6, %cst_151 {dimension_numbers = #tpu.dot_dimension_numbers<[1], [0], [0], [1], [0, 0, 1, 1], [], []>} : vector<2x24xbf16>, vector<24x32xbf16>, vector<2x32xf32> -> vector<2x32xf32>
    %473 = arith.truncf %446 : vector<2x32xf32> to vector<2x32xbf16>
    %cst_152 = arith.constant dense<0.000000e+00> : vector<2x32xf32>
    %474 = tpu.matmul %473, %9, %cst_152 {dimension_numbers = #tpu.dot_dimension_numbers<[1], [0], [0], [1], [0, 0, 1, 1], [], []>} : vector<2x32xbf16>, vector<32x32xbf16>, vector<2x32xf32> -> vector<2x32xf32>
    %475 = vector.broadcast %10 : vector<1x32xf32> to vector<2x32xf32>
    %476 = arith.addf %474, %475 : vector<2x32xf32>
    %477 = vector.shape_cast %476 : vector<2x32xf32> to vector<2x1x32xf32>
    %478 = vector.broadcast %477 : vector<2x1x32xf32> to vector<2x8x32xf32>
    %479 = arith.addf %456, %478 : vector<2x8x32xf32>
    %480 = math.tanh %479 : vector<2x8x32xf32>
    %481 = vector.broadcast %12 : vector<1x1x32xf32> to vector<2x8x32xf32>
    %482 = arith.mulf %480, %481 : vector<2x8x32xf32>
    %cst_153 = arith.constant dense<0.000000e+00> : vector<2x8xf32>
    %483 = vector.multi_reduction <add>, %482, %cst_153 [2] : vector<2x8x32xf32> to vector<2x8xf32>
    %484 = vector.broadcast %13 : vector<1x1xf32> to vector<2x8xf32>
    %485 = arith.addf %483, %484 : vector<2x8xf32>
    %cst_154 = arith.constant dense<0xFF800000> : vector<2xf32>
    %486 = vector.multi_reduction <maximumf>, %485, %cst_154 [1] : vector<2x8xf32> to vector<2xf32>
    %487 = vector.shape_cast %486 : vector<2xf32> to vector<2x1xf32>
    %488 = vector.broadcast %487 : vector<2x1xf32> to vector<2x8xf32>
    %489 = arith.subf %485, %488 : vector<2x8xf32>
    %490 = math.exp %489 : vector<2x8xf32>
    %cst_155 = arith.constant dense<0.000000e+00> : vector<2xf32>
    %491 = vector.multi_reduction <add>, %490, %cst_155 [1] : vector<2x8xf32> to vector<2xf32>
    %492 = vector.shape_cast %491 : vector<2xf32> to vector<2x1xf32>
    %493 = vector.broadcast %492 : vector<2x1xf32> to vector<2x8xf32>
    %494 = arith.divf %490, %493 : vector<2x8xf32>
    %495 = vector.shape_cast %494 : vector<2x8xf32> to vector<2x8x1xf32>
    %496 = vector.broadcast %495 : vector<2x8x1xf32> to vector<2x8x32xf32>
    %497 = arith.mulf %496, %455 : vector<2x8x32xf32>
    %cst_156 = arith.constant dense<0.000000e+00> : vector<2x32xf32>
    %498 = vector.multi_reduction <add>, %497, %cst_156 [1] : vector<2x8x32xf32> to vector<2x32xf32>
    %499 = tpu.concatenate %498, %472 in 1 : vector<2x32xf32>, vector<2x32xf32> -> vector<2x64xf32>
    %500 = arith.truncf %499 : vector<2x64xf32> to vector<2x64xbf16>
    %cst_157 = arith.constant dense<0.000000e+00> : vector<2x96xf32>
    %501 = tpu.matmul %500, %14, %cst_157 {dimension_numbers = #tpu.dot_dimension_numbers<[1], [0], [0], [1], [0, 0, 1, 1], [], []>} : vector<2x64xbf16>, vector<64x96xbf16>, vector<2x96xf32> -> vector<2x96xf32>
    %502 = vector.broadcast %16 : vector<1x96xf32> to vector<2x96xf32>
    %503 = arith.addf %501, %502 : vector<2x96xf32>
    %504 = arith.truncf %446 : vector<2x32xf32> to vector<2x32xbf16>
    %cst_158 = arith.constant dense<0.000000e+00> : vector<2x96xf32>
    %505 = tpu.matmul %504, %15, %cst_158 {dimension_numbers = #tpu.dot_dimension_numbers<[1], [0], [0], [1], [0, 0, 1, 1], [], []>} : vector<2x32xbf16>, vector<32x96xbf16>, vector<2x96xf32> -> vector<2x96xf32>
    %506 = vector.extract_strided_slice %503 {offsets = [0, 0], sizes = [2, 32], strides = [1, 1]} : vector<2x96xf32> to vector<2x32xf32>
    %507 = vector.extract_strided_slice %505 {offsets = [0, 0], sizes = [2, 32], strides = [1, 1]} : vector<2x96xf32> to vector<2x32xf32>
    %508 = arith.addf %506, %507 : vector<2x32xf32>
    %509 = arith.negf %508 : vector<2x32xf32>
    %510 = math.exp %509 : vector<2x32xf32>
    %cst_159 = arith.constant 1.000000e+00 : f32
    %511 = vector.broadcast %cst_159 : f32 to vector<2x32xf32>
    %512 = arith.addf %511, %510 : vector<2x32xf32>
    %513 = arith.divf %511, %512 : vector<2x32xf32>
    %514 = vector.extract_strided_slice %503 {offsets = [0, 32], sizes = [2, 32], strides = [1, 1]} : vector<2x96xf32> to vector<2x32xf32>
    %515 = vector.extract_strided_slice %505 {offsets = [0, 32], sizes = [2, 32], strides = [1, 1]} : vector<2x96xf32> to vector<2x32xf32>
    %516 = arith.addf %514, %515 : vector<2x32xf32>
    %517 = arith.negf %516 : vector<2x32xf32>
    %518 = math.exp %517 : vector<2x32xf32>
    %cst_160 = arith.constant 1.000000e+00 : f32
    %519 = vector.broadcast %cst_160 : f32 to vector<2x32xf32>
    %520 = arith.addf %519, %518 : vector<2x32xf32>
    %521 = arith.divf %519, %520 : vector<2x32xf32>
    %522 = vector.extract_strided_slice %503 {offsets = [0, 64], sizes = [2, 32], strides = [1, 1]} : vector<2x96xf32> to vector<2x32xf32>
    %523 = vector.extract_strided_slice %505 {offsets = [0, 64], sizes = [2, 32], strides = [1, 1]} : vector<2x96xf32> to vector<2x32xf32>
    %524 = vector.broadcast %17 : vector<1x32xf32> to vector<2x32xf32>
    %525 = arith.addf %523, %524 : vector<2x32xf32>
    %526 = arith.mulf %513, %525 : vector<2x32xf32>
    %527 = arith.addf %522, %526 : vector<2x32xf32>
    %528 = math.tanh %527 : vector<2x32xf32>
    %cst_161 = arith.constant 1.000000e+00 : f32
    %529 = vector.broadcast %cst_161 : f32 to vector<2x32xf32>
    %530 = arith.subf %529, %521 : vector<2x32xf32>
    %531 = arith.mulf %530, %528 : vector<2x32xf32>
    %532 = arith.mulf %521, %446 : vector<2x32xf32>
    %533 = arith.addf %531, %532 : vector<2x32xf32>
    %534 = arith.truncf %533 : vector<2x32xf32> to vector<2x32xbf16>
    %cst_162 = arith.constant dense<0.000000e+00> : vector<2x32xf32>
    %535 = tpu.matmul %534, %18, %cst_162 {dimension_numbers = #tpu.dot_dimension_numbers<[1], [0], [0], [1], [0, 0, 1, 1], [], []>} : vector<2x32xbf16>, vector<32x32xbf16>, vector<2x32xf32> -> vector<2x32xf32>
    %536 = vector.broadcast %19 : vector<1x32xf32> to vector<2x32xf32>
    %537 = arith.addf %535, %536 : vector<2x32xf32>
    %cst_163 = arith.constant 0.000000e+00 : f32
    %538 = vector.broadcast %cst_163 : f32 to vector<2x32xf32>
    %539 = arith.cmpf ogt, %537, %538 : vector<2x32xf32>
    %cst_164 = arith.constant 0.00999999977 : f32
    %540 = vector.broadcast %cst_164 : f32 to vector<2x32xf32>
    %541 = arith.mulf %540, %537 : vector<2x32xf32>
    %542 = arith.select %539, %537, %541 : vector<2x32xi1>, vector<2x32xf32>
    %cst_165 = arith.constant dense<0.000000e+00> : vector<2x128xf32>
    %543 = tpu.matmul %542, %20, %cst_165 {dimension_numbers = #tpu.dot_dimension_numbers<[1], [0], [0], [1], [0, 0, 1, 1], [], []>} : vector<2x32xf32>, vector<32x128xf32>, vector<2x128xf32> -> vector<2x128xf32>
    %544 = vector.broadcast %21 : vector<1x128xf32> to vector<2x128xf32>
    %545 = arith.addf %543, %544 : vector<2x128xf32>
    %c1_166 = arith.constant 1 : index
    %c0_167 = arith.constant 0 : index
    %c0_168 = arith.constant 0 : index
    %546 = vector.load %arg22[%c1_166, %c0_167, %c0_168] : memref<8x2x128xf32, #tpu.memory_space<vmem>>, vector<1x2x128xf32>
    %547 = vector.shape_cast %546 : vector<1x2x128xf32> to vector<2x128xf32>
    %548 = vector.shape_cast %545 : vector<2x128xf32> to vector<1x2x128xf32>
    tpu.vector_store %arg22[%c1_166, %c0_167, %c0_168], %548 {strides = array<i32>} : memref<8x2x128xf32, #tpu.memory_space<vmem>>, vector<1x2x128xf32>,
    %cst_169 = arith.constant dense<0xFF800000> : vector<2xf32>
    %549 = vector.multi_reduction <maximumf>, %545, %cst_169 [1] : vector<2x128xf32> to vector<2xf32>
    %550 = vector.shape_cast %549 : vector<2xf32> to vector<2x1xf32>
    %551 = vector.broadcast %550 : vector<2x1xf32> to vector<2x128xf32>
    %552 = arith.cmpf oeq, %545, %551 : vector<2x128xf32>
    %c128_i32 = arith.constant 128 : i32
    %553 = vector.broadcast %c128_i32 : i32 to vector<2x128xi32>
    %554 = arith.select %552, %457, %553 : vector<2x128xi1>, vector<2x128xi32>
    %cst_170 = arith.constant dense<2147483647> : vector<2xi32>
    %555 = vector.multi_reduction <minsi>, %554, %cst_170 [1] : vector<2x128xi32> to vector<2xi32>
    %556 = vector.shape_cast %555 : vector<2xi32> to vector<2x1xi32>
    %557 = vector.broadcast %556 : vector<2x1xi32> to vector<2x24xi32>
    %558 = arith.cmpi eq, %458, %557 : vector<2x24xi32>
    %559 = arith.extui %558 : vector<2x24xi1> to vector<2x24xi32>
    %560 = arith.sitofp %559 : vector<2x24xi32> to vector<2x24xf32>
    %561 = arith.truncf %560 : vector<2x24xf32> to vector<2x24xbf16>
    %cst_171 = arith.constant dense<0.000000e+00> : vector<2x32xf32>
    %562 = tpu.matmul %561, %6, %cst_171 {dimension_numbers = #tpu.dot_dimension_numbers<[1], [0], [0], [1], [0, 0, 1, 1], [], []>} : vector<2x24xbf16>, vector<24x32xbf16>, vector<2x32xf32> -> vector<2x32xf32>
    %563 = arith.truncf %533 : vector<2x32xf32> to vector<2x32xbf16>
    %cst_172 = arith.constant dense<0.000000e+00> : vector<2x32xf32>
    %564 = tpu.matmul %563, %9, %cst_172 {dimension_numbers = #tpu.dot_dimension_numbers<[1], [0], [0], [1], [0, 0, 1, 1], [], []>} : vector<2x32xbf16>, vector<32x32xbf16>, vector<2x32xf32> -> vector<2x32xf32>
    %565 = vector.broadcast %10 : vector<1x32xf32> to vector<2x32xf32>
    %566 = arith.addf %564, %565 : vector<2x32xf32>
    %567 = vector.shape_cast %566 : vector<2x32xf32> to vector<2x1x32xf32>
    %568 = vector.broadcast %567 : vector<2x1x32xf32> to vector<2x8x32xf32>
    %569 = arith.addf %456, %568 : vector<2x8x32xf32>
    %570 = math.tanh %569 : vector<2x8x32xf32>
    %571 = vector.broadcast %12 : vector<1x1x32xf32> to vector<2x8x32xf32>
    %572 = arith.mulf %570, %571 : vector<2x8x32xf32>
    %cst_173 = arith.constant dense<0.000000e+00> : vector<2x8xf32>
    %573 = vector.multi_reduction <add>, %572, %cst_173 [2] : vector<2x8x32xf32> to vector<2x8xf32>
    %574 = vector.broadcast %13 : vector<1x1xf32> to vector<2x8xf32>
    %575 = arith.addf %573, %574 : vector<2x8xf32>
    %cst_174 = arith.constant dense<0xFF800000> : vector<2xf32>
    %576 = vector.multi_reduction <maximumf>, %575, %cst_174 [1] : vector<2x8xf32> to vector<2xf32>
    %577 = vector.shape_cast %576 : vector<2xf32> to vector<2x1xf32>
    %578 = vector.broadcast %577 : vector<2x1xf32> to vector<2x8xf32>
    %579 = arith.subf %575, %578 : vector<2x8xf32>
    %580 = math.exp %579 : vector<2x8xf32>
    %cst_175 = arith.constant dense<0.000000e+00> : vector<2xf32>
    %581 = vector.multi_reduction <add>, %580, %cst_175 [1] : vector<2x8xf32> to vector<2xf32>
    %582 = vector.shape_cast %581 : vector<2xf32> to vector<2x1xf32>
    %583 = vector.broadcast %582 : vector<2x1xf32> to vector<2x8xf32>
    %584 = arith.divf %580, %583 : vector<2x8xf32>
    %585 = vector.shape_cast %584 : vector<2x8xf32> to vector<2x8x1xf32>
    %586 = vector.broadcast %585 : vector<2x8x1xf32> to vector<2x8x32xf32>
    %587 = arith.mulf %586, %455 : vector<2x8x32xf32>
    %cst_176 = arith.constant dense<0.000000e+00> : vector<2x32xf32>
    %588 = vector.multi_reduction <add>, %587, %cst_176 [1] : vector<2x8x32xf32> to vector<2x32xf32>
    %589 = tpu.concatenate %588, %562 in 1 : vector<2x32xf32>, vector<2x32xf32> -> vector<2x64xf32>
    %590 = arith.truncf %589 : vector<2x64xf32> to vector<2x64xbf16>
    %cst_177 = arith.constant dense<0.000000e+00> : vector<2x96xf32>
    %591 = tpu.matmul %590, %14, %cst_177 {dimension_numbers = #tpu.dot_dimension_numbers<[1], [0], [0], [1], [0, 0, 1, 1], [], []>} : vector<2x64xbf16>, vector<64x96xbf16>, vector<2x96xf32> -> vector<2x96xf32>
    %592 = vector.broadcast %16 : vector<1x96xf32> to vector<2x96xf32>
    %593 = arith.addf %591, %592 : vector<2x96xf32>
    %594 = arith.truncf %533 : vector<2x32xf32> to vector<2x32xbf16>
    %cst_178 = arith.constant dense<0.000000e+00> : vector<2x96xf32>
    %595 = tpu.matmul %594, %15, %cst_178 {dimension_numbers = #tpu.dot_dimension_numbers<[1], [0], [0], [1], [0, 0, 1, 1], [], []>} : vector<2x32xbf16>, vector<32x96xbf16>, vector<2x96xf32> -> vector<2x96xf32>
    %596 = vector.extract_strided_slice %593 {offsets = [0, 0], sizes = [2, 32], strides = [1, 1]} : vector<2x96xf32> to vector<2x32xf32>
    %597 = vector.extract_strided_slice %595 {offsets = [0, 0], sizes = [2, 32], strides = [1, 1]} : vector<2x96xf32> to vector<2x32xf32>
    %598 = arith.addf %596, %597 : vector<2x32xf32>
    %599 = arith.negf %598 : vector<2x32xf32>
    %600 = math.exp %599 : vector<2x32xf32>
    %cst_179 = arith.constant 1.000000e+00 : f32
    %601 = vector.broadcast %cst_179 : f32 to vector<2x32xf32>
    %602 = arith.addf %601, %600 : vector<2x32xf32>
    %603 = arith.divf %601, %602 : vector<2x32xf32>
    %604 = vector.extract_strided_slice %593 {offsets = [0, 32], sizes = [2, 32], strides = [1, 1]} : vector<2x96xf32> to vector<2x32xf32>
    %605 = vector.extract_strided_slice %595 {offsets = [0, 32], sizes = [2, 32], strides = [1, 1]} : vector<2x96xf32> to vector<2x32xf32>
    %606 = arith.addf %604, %605 : vector<2x32xf32>
    %607 = arith.negf %606 : vector<2x32xf32>
    %608 = math.exp %607 : vector<2x32xf32>
    %cst_180 = arith.constant 1.000000e+00 : f32
    %609 = vector.broadcast %cst_180 : f32 to vector<2x32xf32>
    %610 = arith.addf %609, %608 : vector<2x32xf32>
    %611 = arith.divf %609, %610 : vector<2x32xf32>
    %612 = vector.extract_strided_slice %593 {offsets = [0, 64], sizes = [2, 32], strides = [1, 1]} : vector<2x96xf32> to vector<2x32xf32>
    %613 = vector.extract_strided_slice %595 {offsets = [0, 64], sizes = [2, 32], strides = [1, 1]} : vector<2x96xf32> to vector<2x32xf32>
    %614 = vector.broadcast %17 : vector<1x32xf32> to vector<2x32xf32>
    %615 = arith.addf %613, %614 : vector<2x32xf32>
    %616 = arith.mulf %603, %615 : vector<2x32xf32>
    %617 = arith.addf %612, %616 : vector<2x32xf32>
    %618 = math.tanh %617 : vector<2x32xf32>
    %cst_181 = arith.constant 1.000000e+00 : f32
    %619 = vector.broadcast %cst_181 : f32 to vector<2x32xf32>
    %620 = arith.subf %619, %611 : vector<2x32xf32>
    %621 = arith.mulf %620, %618 : vector<2x32xf32>
    %622 = arith.mulf %611, %533 : vector<2x32xf32>
    %623 = arith.addf %621, %622 : vector<2x32xf32>
    %624 = arith.truncf %623 : vector<2x32xf32> to vector<2x32xbf16>
    %cst_182 = arith.constant dense<0.000000e+00> : vector<2x32xf32>
    %625 = tpu.matmul %624, %18, %cst_182 {dimension_numbers = #tpu.dot_dimension_numbers<[1], [0], [0], [1], [0, 0, 1, 1], [], []>} : vector<2x32xbf16>, vector<32x32xbf16>, vector<2x32xf32> -> vector<2x32xf32>
    %626 = vector.broadcast %19 : vector<1x32xf32> to vector<2x32xf32>
    %627 = arith.addf %625, %626 : vector<2x32xf32>
    %cst_183 = arith.constant 0.000000e+00 : f32
    %628 = vector.broadcast %cst_183 : f32 to vector<2x32xf32>
    %629 = arith.cmpf ogt, %627, %628 : vector<2x32xf32>
    %cst_184 = arith.constant 0.00999999977 : f32
    %630 = vector.broadcast %cst_184 : f32 to vector<2x32xf32>
    %631 = arith.mulf %630, %627 : vector<2x32xf32>
    %632 = arith.select %629, %627, %631 : vector<2x32xi1>, vector<2x32xf32>
    %cst_185 = arith.constant dense<0.000000e+00> : vector<2x128xf32>
    %633 = tpu.matmul %632, %20, %cst_185 {dimension_numbers = #tpu.dot_dimension_numbers<[1], [0], [0], [1], [0, 0, 1, 1], [], []>} : vector<2x32xf32>, vector<32x128xf32>, vector<2x128xf32> -> vector<2x128xf32>
    %634 = vector.broadcast %21 : vector<1x128xf32> to vector<2x128xf32>
    %635 = arith.addf %633, %634 : vector<2x128xf32>
    %c2_186 = arith.constant 2 : index
    %c0_187 = arith.constant 0 : index
    %c0_188 = arith.constant 0 : index
    %636 = vector.load %arg22[%c2_186, %c0_187, %c0_188] : memref<8x2x128xf32, #tpu.memory_space<vmem>>, vector<1x2x128xf32>
    %637 = vector.shape_cast %636 : vector<1x2x128xf32> to vector<2x128xf32>
    %638 = vector.shape_cast %635 : vector<2x128xf32> to vector<1x2x128xf32>
    tpu.vector_store %arg22[%c2_186, %c0_187, %c0_188], %638 {strides = array<i32>} : memref<8x2x128xf32, #tpu.memory_space<vmem>>, vector<1x2x128xf32>,
    %cst_189 = arith.constant dense<0xFF800000> : vector<2xf32>
    %639 = vector.multi_reduction <maximumf>, %635, %cst_189 [1] : vector<2x128xf32> to vector<2xf32>
    %640 = vector.shape_cast %639 : vector<2xf32> to vector<2x1xf32>
    %641 = vector.broadcast %640 : vector<2x1xf32> to vector<2x128xf32>
    %642 = arith.cmpf oeq, %635, %641 : vector<2x128xf32>
    %c128_i32_190 = arith.constant 128 : i32
    %643 = vector.broadcast %c128_i32_190 : i32 to vector<2x128xi32>
    %644 = arith.select %642, %457, %643 : vector<2x128xi1>, vector<2x128xi32>
    %cst_191 = arith.constant dense<2147483647> : vector<2xi32>
    %645 = vector.multi_reduction <minsi>, %644, %cst_191 [1] : vector<2x128xi32> to vector<2xi32>
    %646 = vector.shape_cast %645 : vector<2xi32> to vector<2x1xi32>
    %647 = vector.broadcast %646 : vector<2x1xi32> to vector<2x24xi32>
    %648 = arith.cmpi eq, %458, %647 : vector<2x24xi32>
    %649 = arith.extui %648 : vector<2x24xi1> to vector<2x24xi32>
    %650 = arith.sitofp %649 : vector<2x24xi32> to vector<2x24xf32>
    %651 = arith.truncf %650 : vector<2x24xf32> to vector<2x24xbf16>
    %cst_192 = arith.constant dense<0.000000e+00> : vector<2x32xf32>
    %652 = tpu.matmul %651, %6, %cst_192 {dimension_numbers = #tpu.dot_dimension_numbers<[1], [0], [0], [1], [0, 0, 1, 1], [], []>} : vector<2x24xbf16>, vector<24x32xbf16>, vector<2x32xf32> -> vector<2x32xf32>
    %653 = arith.truncf %623 : vector<2x32xf32> to vector<2x32xbf16>
    %cst_193 = arith.constant dense<0.000000e+00> : vector<2x32xf32>
    %654 = tpu.matmul %653, %9, %cst_193 {dimension_numbers = #tpu.dot_dimension_numbers<[1], [0], [0], [1], [0, 0, 1, 1], [], []>} : vector<2x32xbf16>, vector<32x32xbf16>, vector<2x32xf32> -> vector<2x32xf32>
    %655 = vector.broadcast %10 : vector<1x32xf32> to vector<2x32xf32>
    %656 = arith.addf %654, %655 : vector<2x32xf32>
    %657 = vector.shape_cast %656 : vector<2x32xf32> to vector<2x1x32xf32>
    %658 = vector.broadcast %657 : vector<2x1x32xf32> to vector<2x8x32xf32>
    %659 = arith.addf %456, %658 : vector<2x8x32xf32>
    %660 = math.tanh %659 : vector<2x8x32xf32>
    %661 = vector.broadcast %12 : vector<1x1x32xf32> to vector<2x8x32xf32>
    %662 = arith.mulf %660, %661 : vector<2x8x32xf32>
    %cst_194 = arith.constant dense<0.000000e+00> : vector<2x8xf32>
    %663 = vector.multi_reduction <add>, %662, %cst_194 [2] : vector<2x8x32xf32> to vector<2x8xf32>
    %664 = vector.broadcast %13 : vector<1x1xf32> to vector<2x8xf32>
    %665 = arith.addf %663, %664 : vector<2x8xf32>
    %cst_195 = arith.constant dense<0xFF800000> : vector<2xf32>
    %666 = vector.multi_reduction <maximumf>, %665, %cst_195 [1] : vector<2x8xf32> to vector<2xf32>
    %667 = vector.shape_cast %666 : vector<2xf32> to vector<2x1xf32>
    %668 = vector.broadcast %667 : vector<2x1xf32> to vector<2x8xf32>
    %669 = arith.subf %665, %668 : vector<2x8xf32>
    %670 = math.exp %669 : vector<2x8xf32>
    %cst_196 = arith.constant dense<0.000000e+00> : vector<2xf32>
    %671 = vector.multi_reduction <add>, %670, %cst_196 [1] : vector<2x8xf32> to vector<2xf32>
    %672 = vector.shape_cast %671 : vector<2xf32> to vector<2x1xf32>
    %673 = vector.broadcast %672 : vector<2x1xf32> to vector<2x8xf32>
    %674 = arith.divf %670, %673 : vector<2x8xf32>
    %675 = vector.shape_cast %674 : vector<2x8xf32> to vector<2x8x1xf32>
    %676 = vector.broadcast %675 : vector<2x8x1xf32> to vector<2x8x32xf32>
    %677 = arith.mulf %676, %455 : vector<2x8x32xf32>
    %cst_197 = arith.constant dense<0.000000e+00> : vector<2x32xf32>
    %678 = vector.multi_reduction <add>, %677, %cst_197 [1] : vector<2x8x32xf32> to vector<2x32xf32>
    %679 = tpu.concatenate %678, %652 in 1 : vector<2x32xf32>, vector<2x32xf32> -> vector<2x64xf32>
    %680 = arith.truncf %679 : vector<2x64xf32> to vector<2x64xbf16>
    %cst_198 = arith.constant dense<0.000000e+00> : vector<2x96xf32>
    %681 = tpu.matmul %680, %14, %cst_198 {dimension_numbers = #tpu.dot_dimension_numbers<[1], [0], [0], [1], [0, 0, 1, 1], [], []>} : vector<2x64xbf16>, vector<64x96xbf16>, vector<2x96xf32> -> vector<2x96xf32>
    %682 = vector.broadcast %16 : vector<1x96xf32> to vector<2x96xf32>
    %683 = arith.addf %681, %682 : vector<2x96xf32>
    %684 = arith.truncf %623 : vector<2x32xf32> to vector<2x32xbf16>
    %cst_199 = arith.constant dense<0.000000e+00> : vector<2x96xf32>
    %685 = tpu.matmul %684, %15, %cst_199 {dimension_numbers = #tpu.dot_dimension_numbers<[1], [0], [0], [1], [0, 0, 1, 1], [], []>} : vector<2x32xbf16>, vector<32x96xbf16>, vector<2x96xf32> -> vector<2x96xf32>
    %686 = vector.extract_strided_slice %683 {offsets = [0, 0], sizes = [2, 32], strides = [1, 1]} : vector<2x96xf32> to vector<2x32xf32>
    %687 = vector.extract_strided_slice %685 {offsets = [0, 0], sizes = [2, 32], strides = [1, 1]} : vector<2x96xf32> to vector<2x32xf32>
    %688 = arith.addf %686, %687 : vector<2x32xf32>
    %689 = arith.negf %688 : vector<2x32xf32>
    %690 = math.exp %689 : vector<2x32xf32>
    %cst_200 = arith.constant 1.000000e+00 : f32
    %691 = vector.broadcast %cst_200 : f32 to vector<2x32xf32>
    %692 = arith.addf %691, %690 : vector<2x32xf32>
    %693 = arith.divf %691, %692 : vector<2x32xf32>
    %694 = vector.extract_strided_slice %683 {offsets = [0, 32], sizes = [2, 32], strides = [1, 1]} : vector<2x96xf32> to vector<2x32xf32>
    %695 = vector.extract_strided_slice %685 {offsets = [0, 32], sizes = [2, 32], strides = [1, 1]} : vector<2x96xf32> to vector<2x32xf32>
    %696 = arith.addf %694, %695 : vector<2x32xf32>
    %697 = arith.negf %696 : vector<2x32xf32>
    %698 = math.exp %697 : vector<2x32xf32>
    %cst_201 = arith.constant 1.000000e+00 : f32
    %699 = vector.broadcast %cst_201 : f32 to vector<2x32xf32>
    %700 = arith.addf %699, %698 : vector<2x32xf32>
    %701 = arith.divf %699, %700 : vector<2x32xf32>
    %702 = vector.extract_strided_slice %683 {offsets = [0, 64], sizes = [2, 32], strides = [1, 1]} : vector<2x96xf32> to vector<2x32xf32>
    %703 = vector.extract_strided_slice %685 {offsets = [0, 64], sizes = [2, 32], strides = [1, 1]} : vector<2x96xf32> to vector<2x32xf32>
    %704 = vector.broadcast %17 : vector<1x32xf32> to vector<2x32xf32>
    %705 = arith.addf %703, %704 : vector<2x32xf32>
    %706 = arith.mulf %693, %705 : vector<2x32xf32>
    %707 = arith.addf %702, %706 : vector<2x32xf32>
    %708 = math.tanh %707 : vector<2x32xf32>
    %cst_202 = arith.constant 1.000000e+00 : f32
    %709 = vector.broadcast %cst_202 : f32 to vector<2x32xf32>
    %710 = arith.subf %709, %701 : vector<2x32xf32>
    %711 = arith.mulf %710, %708 : vector<2x32xf32>
    %712 = arith.mulf %701, %623 : vector<2x32xf32>
    %713 = arith.addf %711, %712 : vector<2x32xf32>
    %714 = arith.truncf %713 : vector<2x32xf32> to vector<2x32xbf16>
    %cst_203 = arith.constant dense<0.000000e+00> : vector<2x32xf32>
    %715 = tpu.matmul %714, %18, %cst_203 {dimension_numbers = #tpu.dot_dimension_numbers<[1], [0], [0], [1], [0, 0, 1, 1], [], []>} : vector<2x32xbf16>, vector<32x32xbf16>, vector<2x32xf32> -> vector<2x32xf32>
    %716 = vector.broadcast %19 : vector<1x32xf32> to vector<2x32xf32>
    %717 = arith.addf %715, %716 : vector<2x32xf32>
    %cst_204 = arith.constant 0.000000e+00 : f32
    %718 = vector.broadcast %cst_204 : f32 to vector<2x32xf32>
    %719 = arith.cmpf ogt, %717, %718 : vector<2x32xf32>
    %cst_205 = arith.constant 0.00999999977 : f32
    %720 = vector.broadcast %cst_205 : f32 to vector<2x32xf32>
    %721 = arith.mulf %720, %717 : vector<2x32xf32>
    %722 = arith.select %719, %717, %721 : vector<2x32xi1>, vector<2x32xf32>
    %cst_206 = arith.constant dense<0.000000e+00> : vector<2x128xf32>
    %723 = tpu.matmul %722, %20, %cst_206 {dimension_numbers = #tpu.dot_dimension_numbers<[1], [0], [0], [1], [0, 0, 1, 1], [], []>} : vector<2x32xf32>, vector<32x128xf32>, vector<2x128xf32> -> vector<2x128xf32>
    %724 = vector.broadcast %21 : vector<1x128xf32> to vector<2x128xf32>
    %725 = arith.addf %723, %724 : vector<2x128xf32>
    %c3_207 = arith.constant 3 : index
    %c0_208 = arith.constant 0 : index
    %c0_209 = arith.constant 0 : index
    %726 = vector.load %arg22[%c3_207, %c0_208, %c0_209] : memref<8x2x128xf32, #tpu.memory_space<vmem>>, vector<1x2x128xf32>
    %727 = vector.shape_cast %726 : vector<1x2x128xf32> to vector<2x128xf32>
    %728 = vector.shape_cast %725 : vector<2x128xf32> to vector<1x2x128xf32>
    tpu.vector_store %arg22[%c3_207, %c0_208, %c0_209], %728 {strides = array<i32>} : memref<8x2x128xf32, #tpu.memory_space<vmem>>, vector<1x2x128xf32>,
    %cst_210 = arith.constant dense<0xFF800000> : vector<2xf32>
    %729 = vector.multi_reduction <maximumf>, %725, %cst_210 [1] : vector<2x128xf32> to vector<2xf32>
    %730 = vector.shape_cast %729 : vector<2xf32> to vector<2x1xf32>
    %731 = vector.broadcast %730 : vector<2x1xf32> to vector<2x128xf32>
    %732 = arith.cmpf oeq, %725, %731 : vector<2x128xf32>
    %c128_i32_211 = arith.constant 128 : i32
    %733 = vector.broadcast %c128_i32_211 : i32 to vector<2x128xi32>
    %734 = arith.select %732, %457, %733 : vector<2x128xi1>, vector<2x128xi32>
    %cst_212 = arith.constant dense<2147483647> : vector<2xi32>
    %735 = vector.multi_reduction <minsi>, %734, %cst_212 [1] : vector<2x128xi32> to vector<2xi32>
    %736 = vector.shape_cast %735 : vector<2xi32> to vector<2x1xi32>
    %737 = vector.broadcast %736 : vector<2x1xi32> to vector<2x24xi32>
    %738 = arith.cmpi eq, %458, %737 : vector<2x24xi32>
    %739 = arith.extui %738 : vector<2x24xi1> to vector<2x24xi32>
    %740 = arith.sitofp %739 : vector<2x24xi32> to vector<2x24xf32>
    %741 = arith.truncf %740 : vector<2x24xf32> to vector<2x24xbf16>
    %cst_213 = arith.constant dense<0.000000e+00> : vector<2x32xf32>
    %742 = tpu.matmul %741, %6, %cst_213 {dimension_numbers = #tpu.dot_dimension_numbers<[1], [0], [0], [1], [0, 0, 1, 1], [], []>} : vector<2x24xbf16>, vector<24x32xbf16>, vector<2x32xf32> -> vector<2x32xf32>
    %743 = arith.truncf %713 : vector<2x32xf32> to vector<2x32xbf16>
    %cst_214 = arith.constant dense<0.000000e+00> : vector<2x32xf32>
    %744 = tpu.matmul %743, %9, %cst_214 {dimension_numbers = #tpu.dot_dimension_numbers<[1], [0], [0], [1], [0, 0, 1, 1], [], []>} : vector<2x32xbf16>, vector<32x32xbf16>, vector<2x32xf32> -> vector<2x32xf32>
    %745 = vector.broadcast %10 : vector<1x32xf32> to vector<2x32xf32>
    %746 = arith.addf %744, %745 : vector<2x32xf32>
    %747 = vector.shape_cast %746 : vector<2x32xf32> to vector<2x1x32xf32>
    %748 = vector.broadcast %747 : vector<2x1x32xf32> to vector<2x8x32xf32>
    %749 = arith.addf %456, %748 : vector<2x8x32xf32>
    %750 = math.tanh %749 : vector<2x8x32xf32>
    %751 = vector.broadcast %12 : vector<1x1x32xf32> to vector<2x8x32xf32>
    %752 = arith.mulf %750, %751 : vector<2x8x32xf32>
    %cst_215 = arith.constant dense<0.000000e+00> : vector<2x8xf32>
    %753 = vector.multi_reduction <add>, %752, %cst_215 [2] : vector<2x8x32xf32> to vector<2x8xf32>
    %754 = vector.broadcast %13 : vector<1x1xf32> to vector<2x8xf32>
    %755 = arith.addf %753, %754 : vector<2x8xf32>
    %cst_216 = arith.constant dense<0xFF800000> : vector<2xf32>
    %756 = vector.multi_reduction <maximumf>, %755, %cst_216 [1] : vector<2x8xf32> to vector<2xf32>
    %757 = vector.shape_cast %756 : vector<2xf32> to vector<2x1xf32>
    %758 = vector.broadcast %757 : vector<2x1xf32> to vector<2x8xf32>
    %759 = arith.subf %755, %758 : vector<2x8xf32>
    %760 = math.exp %759 : vector<2x8xf32>
    %cst_217 = arith.constant dense<0.000000e+00> : vector<2xf32>
    %761 = vector.multi_reduction <add>, %760, %cst_217 [1] : vector<2x8xf32> to vector<2xf32>
    %762 = vector.shape_cast %761 : vector<2xf32> to vector<2x1xf32>
    %763 = vector.broadcast %762 : vector<2x1xf32> to vector<2x8xf32>
    %764 = arith.divf %760, %763 : vector<2x8xf32>
    %765 = vector.shape_cast %764 : vector<2x8xf32> to vector<2x8x1xf32>
    %766 = vector.broadcast %765 : vector<2x8x1xf32> to vector<2x8x32xf32>
    %767 = arith.mulf %766, %455 : vector<2x8x32xf32>
    %cst_218 = arith.constant dense<0.000000e+00> : vector<2x32xf32>
    %768 = vector.multi_reduction <add>, %767, %cst_218 [1] : vector<2x8x32xf32> to vector<2x32xf32>
    %769 = tpu.concatenate %768, %742 in 1 : vector<2x32xf32>, vector<2x32xf32> -> vector<2x64xf32>
    %770 = arith.truncf %769 : vector<2x64xf32> to vector<2x64xbf16>
    %cst_219 = arith.constant dense<0.000000e+00> : vector<2x96xf32>
    %771 = tpu.matmul %770, %14, %cst_219 {dimension_numbers = #tpu.dot_dimension_numbers<[1], [0], [0], [1], [0, 0, 1, 1], [], []>} : vector<2x64xbf16>, vector<64x96xbf16>, vector<2x96xf32> -> vector<2x96xf32>
    %772 = vector.broadcast %16 : vector<1x96xf32> to vector<2x96xf32>
    %773 = arith.addf %771, %772 : vector<2x96xf32>
    %774 = arith.truncf %713 : vector<2x32xf32> to vector<2x32xbf16>
    %cst_220 = arith.constant dense<0.000000e+00> : vector<2x96xf32>
    %775 = tpu.matmul %774, %15, %cst_220 {dimension_numbers = #tpu.dot_dimension_numbers<[1], [0], [0], [1], [0, 0, 1, 1], [], []>} : vector<2x32xbf16>, vector<32x96xbf16>, vector<2x96xf32> -> vector<2x96xf32>
    %776 = vector.extract_strided_slice %773 {offsets = [0, 0], sizes = [2, 32], strides = [1, 1]} : vector<2x96xf32> to vector<2x32xf32>
    %777 = vector.extract_strided_slice %775 {offsets = [0, 0], sizes = [2, 32], strides = [1, 1]} : vector<2x96xf32> to vector<2x32xf32>
    %778 = arith.addf %776, %777 : vector<2x32xf32>
    %779 = arith.negf %778 : vector<2x32xf32>
    %780 = math.exp %779 : vector<2x32xf32>
    %cst_221 = arith.constant 1.000000e+00 : f32
    %781 = vector.broadcast %cst_221 : f32 to vector<2x32xf32>
    %782 = arith.addf %781, %780 : vector<2x32xf32>
    %783 = arith.divf %781, %782 : vector<2x32xf32>
    %784 = vector.extract_strided_slice %773 {offsets = [0, 32], sizes = [2, 32], strides = [1, 1]} : vector<2x96xf32> to vector<2x32xf32>
    %785 = vector.extract_strided_slice %775 {offsets = [0, 32], sizes = [2, 32], strides = [1, 1]} : vector<2x96xf32> to vector<2x32xf32>
    %786 = arith.addf %784, %785 : vector<2x32xf32>
    %787 = arith.negf %786 : vector<2x32xf32>
    %788 = math.exp %787 : vector<2x32xf32>
    %cst_222 = arith.constant 1.000000e+00 : f32
    %789 = vector.broadcast %cst_222 : f32 to vector<2x32xf32>
    %790 = arith.addf %789, %788 : vector<2x32xf32>
    %791 = arith.divf %789, %790 : vector<2x32xf32>
    %792 = vector.extract_strided_slice %773 {offsets = [0, 64], sizes = [2, 32], strides = [1, 1]} : vector<2x96xf32> to vector<2x32xf32>
    %793 = vector.extract_strided_slice %775 {offsets = [0, 64], sizes = [2, 32], strides = [1, 1]} : vector<2x96xf32> to vector<2x32xf32>
    %794 = vector.broadcast %17 : vector<1x32xf32> to vector<2x32xf32>
    %795 = arith.addf %793, %794 : vector<2x32xf32>
    %796 = arith.mulf %783, %795 : vector<2x32xf32>
    %797 = arith.addf %792, %796 : vector<2x32xf32>
    %798 = math.tanh %797 : vector<2x32xf32>
    %cst_223 = arith.constant 1.000000e+00 : f32
    %799 = vector.broadcast %cst_223 : f32 to vector<2x32xf32>
    %800 = arith.subf %799, %791 : vector<2x32xf32>
    %801 = arith.mulf %800, %798 : vector<2x32xf32>
    %802 = arith.mulf %791, %713 : vector<2x32xf32>
    %803 = arith.addf %801, %802 : vector<2x32xf32>
    %804 = arith.truncf %803 : vector<2x32xf32> to vector<2x32xbf16>
    %cst_224 = arith.constant dense<0.000000e+00> : vector<2x32xf32>
    %805 = tpu.matmul %804, %18, %cst_224 {dimension_numbers = #tpu.dot_dimension_numbers<[1], [0], [0], [1], [0, 0, 1, 1], [], []>} : vector<2x32xbf16>, vector<32x32xbf16>, vector<2x32xf32> -> vector<2x32xf32>
    %806 = vector.broadcast %19 : vector<1x32xf32> to vector<2x32xf32>
    %807 = arith.addf %805, %806 : vector<2x32xf32>
    %cst_225 = arith.constant 0.000000e+00 : f32
    %808 = vector.broadcast %cst_225 : f32 to vector<2x32xf32>
    %809 = arith.cmpf ogt, %807, %808 : vector<2x32xf32>
    %cst_226 = arith.constant 0.00999999977 : f32
    %810 = vector.broadcast %cst_226 : f32 to vector<2x32xf32>
    %811 = arith.mulf %810, %807 : vector<2x32xf32>
    %812 = arith.select %809, %807, %811 : vector<2x32xi1>, vector<2x32xf32>
    %cst_227 = arith.constant dense<0.000000e+00> : vector<2x128xf32>
    %813 = tpu.matmul %812, %20, %cst_227 {dimension_numbers = #tpu.dot_dimension_numbers<[1], [0], [0], [1], [0, 0, 1, 1], [], []>} : vector<2x32xf32>, vector<32x128xf32>, vector<2x128xf32> -> vector<2x128xf32>
    %814 = vector.broadcast %21 : vector<1x128xf32> to vector<2x128xf32>
    %815 = arith.addf %813, %814 : vector<2x128xf32>
    %c4_228 = arith.constant 4 : index
    %c0_229 = arith.constant 0 : index
    %c0_230 = arith.constant 0 : index
    %816 = vector.load %arg22[%c4_228, %c0_229, %c0_230] : memref<8x2x128xf32, #tpu.memory_space<vmem>>, vector<1x2x128xf32>
    %817 = vector.shape_cast %816 : vector<1x2x128xf32> to vector<2x128xf32>
    %818 = vector.shape_cast %815 : vector<2x128xf32> to vector<1x2x128xf32>
    tpu.vector_store %arg22[%c4_228, %c0_229, %c0_230], %818 {strides = array<i32>} : memref<8x2x128xf32, #tpu.memory_space<vmem>>, vector<1x2x128xf32>,
    %cst_231 = arith.constant dense<0xFF800000> : vector<2xf32>
    %819 = vector.multi_reduction <maximumf>, %815, %cst_231 [1] : vector<2x128xf32> to vector<2xf32>
    %820 = vector.shape_cast %819 : vector<2xf32> to vector<2x1xf32>
    %821 = vector.broadcast %820 : vector<2x1xf32> to vector<2x128xf32>
    %822 = arith.cmpf oeq, %815, %821 : vector<2x128xf32>
    %c128_i32_232 = arith.constant 128 : i32
    %823 = vector.broadcast %c128_i32_232 : i32 to vector<2x128xi32>
    %824 = arith.select %822, %457, %823 : vector<2x128xi1>, vector<2x128xi32>
    %cst_233 = arith.constant dense<2147483647> : vector<2xi32>
    %825 = vector.multi_reduction <minsi>, %824, %cst_233 [1] : vector<2x128xi32> to vector<2xi32>
    %826 = vector.shape_cast %825 : vector<2xi32> to vector<2x1xi32>
    %827 = vector.broadcast %826 : vector<2x1xi32> to vector<2x24xi32>
    %828 = arith.cmpi eq, %458, %827 : vector<2x24xi32>
    %829 = arith.extui %828 : vector<2x24xi1> to vector<2x24xi32>
    %830 = arith.sitofp %829 : vector<2x24xi32> to vector<2x24xf32>
    %831 = arith.truncf %830 : vector<2x24xf32> to vector<2x24xbf16>
    %cst_234 = arith.constant dense<0.000000e+00> : vector<2x32xf32>
    %832 = tpu.matmul %831, %6, %cst_234 {dimension_numbers = #tpu.dot_dimension_numbers<[1], [0], [0], [1], [0, 0, 1, 1], [], []>} : vector<2x24xbf16>, vector<24x32xbf16>, vector<2x32xf32> -> vector<2x32xf32>
    %833 = arith.truncf %803 : vector<2x32xf32> to vector<2x32xbf16>
    %cst_235 = arith.constant dense<0.000000e+00> : vector<2x32xf32>
    %834 = tpu.matmul %833, %9, %cst_235 {dimension_numbers = #tpu.dot_dimension_numbers<[1], [0], [0], [1], [0, 0, 1, 1], [], []>} : vector<2x32xbf16>, vector<32x32xbf16>, vector<2x32xf32> -> vector<2x32xf32>
    %835 = vector.broadcast %10 : vector<1x32xf32> to vector<2x32xf32>
    %836 = arith.addf %834, %835 : vector<2x32xf32>
    %837 = vector.shape_cast %836 : vector<2x32xf32> to vector<2x1x32xf32>
    %838 = vector.broadcast %837 : vector<2x1x32xf32> to vector<2x8x32xf32>
    %839 = arith.addf %456, %838 : vector<2x8x32xf32>
    %840 = math.tanh %839 : vector<2x8x32xf32>
    %841 = vector.broadcast %12 : vector<1x1x32xf32> to vector<2x8x32xf32>
    %842 = arith.mulf %840, %841 : vector<2x8x32xf32>
    %cst_236 = arith.constant dense<0.000000e+00> : vector<2x8xf32>
    %843 = vector.multi_reduction <add>, %842, %cst_236 [2] : vector<2x8x32xf32> to vector<2x8xf32>
    %844 = vector.broadcast %13 : vector<1x1xf32> to vector<2x8xf32>
    %845 = arith.addf %843, %844 : vector<2x8xf32>
    %cst_237 = arith.constant dense<0xFF800000> : vector<2xf32>
    %846 = vector.multi_reduction <maximumf>, %845, %cst_237 [1] : vector<2x8xf32> to vector<2xf32>
    %847 = vector.shape_cast %846 : vector<2xf32> to vector<2x1xf32>
    %848 = vector.broadcast %847 : vector<2x1xf32> to vector<2x8xf32>
    %849 = arith.subf %845, %848 : vector<2x8xf32>
    %850 = math.exp %849 : vector<2x8xf32>
    %cst_238 = arith.constant dense<0.000000e+00> : vector<2xf32>
    %851 = vector.multi_reduction <add>, %850, %cst_238 [1] : vector<2x8xf32> to vector<2xf32>
    %852 = vector.shape_cast %851 : vector<2xf32> to vector<2x1xf32>
    %853 = vector.broadcast %852 : vector<2x1xf32> to vector<2x8xf32>
    %854 = arith.divf %850, %853 : vector<2x8xf32>
    %855 = vector.shape_cast %854 : vector<2x8xf32> to vector<2x8x1xf32>
    %856 = vector.broadcast %855 : vector<2x8x1xf32> to vector<2x8x32xf32>
    %857 = arith.mulf %856, %455 : vector<2x8x32xf32>
    %cst_239 = arith.constant dense<0.000000e+00> : vector<2x32xf32>
    %858 = vector.multi_reduction <add>, %857, %cst_239 [1] : vector<2x8x32xf32> to vector<2x32xf32>
    %859 = tpu.concatenate %858, %832 in 1 : vector<2x32xf32>, vector<2x32xf32> -> vector<2x64xf32>
    %860 = arith.truncf %859 : vector<2x64xf32> to vector<2x64xbf16>
    %cst_240 = arith.constant dense<0.000000e+00> : vector<2x96xf32>
    %861 = tpu.matmul %860, %14, %cst_240 {dimension_numbers = #tpu.dot_dimension_numbers<[1], [0], [0], [1], [0, 0, 1, 1], [], []>} : vector<2x64xbf16>, vector<64x96xbf16>, vector<2x96xf32> -> vector<2x96xf32>
    %862 = vector.broadcast %16 : vector<1x96xf32> to vector<2x96xf32>
    %863 = arith.addf %861, %862 : vector<2x96xf32>
    %864 = arith.truncf %803 : vector<2x32xf32> to vector<2x32xbf16>
    %cst_241 = arith.constant dense<0.000000e+00> : vector<2x96xf32>
    %865 = tpu.matmul %864, %15, %cst_241 {dimension_numbers = #tpu.dot_dimension_numbers<[1], [0], [0], [1], [0, 0, 1, 1], [], []>} : vector<2x32xbf16>, vector<32x96xbf16>, vector<2x96xf32> -> vector<2x96xf32>
    %866 = vector.extract_strided_slice %863 {offsets = [0, 0], sizes = [2, 32], strides = [1, 1]} : vector<2x96xf32> to vector<2x32xf32>
    %867 = vector.extract_strided_slice %865 {offsets = [0, 0], sizes = [2, 32], strides = [1, 1]} : vector<2x96xf32> to vector<2x32xf32>
    %868 = arith.addf %866, %867 : vector<2x32xf32>
    %869 = arith.negf %868 : vector<2x32xf32>
    %870 = math.exp %869 : vector<2x32xf32>
    %cst_242 = arith.constant 1.000000e+00 : f32
    %871 = vector.broadcast %cst_242 : f32 to vector<2x32xf32>
    %872 = arith.addf %871, %870 : vector<2x32xf32>
    %873 = arith.divf %871, %872 : vector<2x32xf32>
    %874 = vector.extract_strided_slice %863 {offsets = [0, 32], sizes = [2, 32], strides = [1, 1]} : vector<2x96xf32> to vector<2x32xf32>
    %875 = vector.extract_strided_slice %865 {offsets = [0, 32], sizes = [2, 32], strides = [1, 1]} : vector<2x96xf32> to vector<2x32xf32>
    %876 = arith.addf %874, %875 : vector<2x32xf32>
    %877 = arith.negf %876 : vector<2x32xf32>
    %878 = math.exp %877 : vector<2x32xf32>
    %cst_243 = arith.constant 1.000000e+00 : f32
    %879 = vector.broadcast %cst_243 : f32 to vector<2x32xf32>
    %880 = arith.addf %879, %878 : vector<2x32xf32>
    %881 = arith.divf %879, %880 : vector<2x32xf32>
    %882 = vector.extract_strided_slice %863 {offsets = [0, 64], sizes = [2, 32], strides = [1, 1]} : vector<2x96xf32> to vector<2x32xf32>
    %883 = vector.extract_strided_slice %865 {offsets = [0, 64], sizes = [2, 32], strides = [1, 1]} : vector<2x96xf32> to vector<2x32xf32>
    %884 = vector.broadcast %17 : vector<1x32xf32> to vector<2x32xf32>
    %885 = arith.addf %883, %884 : vector<2x32xf32>
    %886 = arith.mulf %873, %885 : vector<2x32xf32>
    %887 = arith.addf %882, %886 : vector<2x32xf32>
    %888 = math.tanh %887 : vector<2x32xf32>
    %cst_244 = arith.constant 1.000000e+00 : f32
    %889 = vector.broadcast %cst_244 : f32 to vector<2x32xf32>
    %890 = arith.subf %889, %881 : vector<2x32xf32>
    %891 = arith.mulf %890, %888 : vector<2x32xf32>
    %892 = arith.mulf %881, %803 : vector<2x32xf32>
    %893 = arith.addf %891, %892 : vector<2x32xf32>
    %894 = arith.truncf %893 : vector<2x32xf32> to vector<2x32xbf16>
    %cst_245 = arith.constant dense<0.000000e+00> : vector<2x32xf32>
    %895 = tpu.matmul %894, %18, %cst_245 {dimension_numbers = #tpu.dot_dimension_numbers<[1], [0], [0], [1], [0, 0, 1, 1], [], []>} : vector<2x32xbf16>, vector<32x32xbf16>, vector<2x32xf32> -> vector<2x32xf32>
    %896 = vector.broadcast %19 : vector<1x32xf32> to vector<2x32xf32>
    %897 = arith.addf %895, %896 : vector<2x32xf32>
    %cst_246 = arith.constant 0.000000e+00 : f32
    %898 = vector.broadcast %cst_246 : f32 to vector<2x32xf32>
    %899 = arith.cmpf ogt, %897, %898 : vector<2x32xf32>
    %cst_247 = arith.constant 0.00999999977 : f32
    %900 = vector.broadcast %cst_247 : f32 to vector<2x32xf32>
    %901 = arith.mulf %900, %897 : vector<2x32xf32>
    %902 = arith.select %899, %897, %901 : vector<2x32xi1>, vector<2x32xf32>
    %cst_248 = arith.constant dense<0.000000e+00> : vector<2x128xf32>
    %903 = tpu.matmul %902, %20, %cst_248 {dimension_numbers = #tpu.dot_dimension_numbers<[1], [0], [0], [1], [0, 0, 1, 1], [], []>} : vector<2x32xf32>, vector<32x128xf32>, vector<2x128xf32> -> vector<2x128xf32>
    %904 = vector.broadcast %21 : vector<1x128xf32> to vector<2x128xf32>
    %905 = arith.addf %903, %904 : vector<2x128xf32>
    %c5_249 = arith.constant 5 : index
    %c0_250 = arith.constant 0 : index
    %c0_251 = arith.constant 0 : index
    %906 = vector.load %arg22[%c5_249, %c0_250, %c0_251] : memref<8x2x128xf32, #tpu.memory_space<vmem>>, vector<1x2x128xf32>
    %907 = vector.shape_cast %906 : vector<1x2x128xf32> to vector<2x128xf32>
    %908 = vector.shape_cast %905 : vector<2x128xf32> to vector<1x2x128xf32>
    tpu.vector_store %arg22[%c5_249, %c0_250, %c0_251], %908 {strides = array<i32>} : memref<8x2x128xf32, #tpu.memory_space<vmem>>, vector<1x2x128xf32>,
    %cst_252 = arith.constant dense<0xFF800000> : vector<2xf32>
    %909 = vector.multi_reduction <maximumf>, %905, %cst_252 [1] : vector<2x128xf32> to vector<2xf32>
    %910 = vector.shape_cast %909 : vector<2xf32> to vector<2x1xf32>
    %911 = vector.broadcast %910 : vector<2x1xf32> to vector<2x128xf32>
    %912 = arith.cmpf oeq, %905, %911 : vector<2x128xf32>
    %c128_i32_253 = arith.constant 128 : i32
    %913 = vector.broadcast %c128_i32_253 : i32 to vector<2x128xi32>
    %914 = arith.select %912, %457, %913 : vector<2x128xi1>, vector<2x128xi32>
    %cst_254 = arith.constant dense<2147483647> : vector<2xi32>
    %915 = vector.multi_reduction <minsi>, %914, %cst_254 [1] : vector<2x128xi32> to vector<2xi32>
    %916 = vector.shape_cast %915 : vector<2xi32> to vector<2x1xi32>
    %917 = vector.broadcast %916 : vector<2x1xi32> to vector<2x24xi32>
    %918 = arith.cmpi eq, %458, %917 : vector<2x24xi32>
    %919 = arith.extui %918 : vector<2x24xi1> to vector<2x24xi32>
    %920 = arith.sitofp %919 : vector<2x24xi32> to vector<2x24xf32>
    %921 = arith.truncf %920 : vector<2x24xf32> to vector<2x24xbf16>
    %cst_255 = arith.constant dense<0.000000e+00> : vector<2x32xf32>
    %922 = tpu.matmul %921, %6, %cst_255 {dimension_numbers = #tpu.dot_dimension_numbers<[1], [0], [0], [1], [0, 0, 1, 1], [], []>} : vector<2x24xbf16>, vector<24x32xbf16>, vector<2x32xf32> -> vector<2x32xf32>
    %923 = arith.truncf %893 : vector<2x32xf32> to vector<2x32xbf16>
    %cst_256 = arith.constant dense<0.000000e+00> : vector<2x32xf32>
    %924 = tpu.matmul %923, %9, %cst_256 {dimension_numbers = #tpu.dot_dimension_numbers<[1], [0], [0], [1], [0, 0, 1, 1], [], []>} : vector<2x32xbf16>, vector<32x32xbf16>, vector<2x32xf32> -> vector<2x32xf32>
    %925 = vector.broadcast %10 : vector<1x32xf32> to vector<2x32xf32>
    %926 = arith.addf %924, %925 : vector<2x32xf32>
    %927 = vector.shape_cast %926 : vector<2x32xf32> to vector<2x1x32xf32>
    %928 = vector.broadcast %927 : vector<2x1x32xf32> to vector<2x8x32xf32>
    %929 = arith.addf %456, %928 : vector<2x8x32xf32>
    %930 = math.tanh %929 : vector<2x8x32xf32>
    %931 = vector.broadcast %12 : vector<1x1x32xf32> to vector<2x8x32xf32>
    %932 = arith.mulf %930, %931 : vector<2x8x32xf32>
    %cst_257 = arith.constant dense<0.000000e+00> : vector<2x8xf32>
    %933 = vector.multi_reduction <add>, %932, %cst_257 [2] : vector<2x8x32xf32> to vector<2x8xf32>
    %934 = vector.broadcast %13 : vector<1x1xf32> to vector<2x8xf32>
    %935 = arith.addf %933, %934 : vector<2x8xf32>
    %cst_258 = arith.constant dense<0xFF800000> : vector<2xf32>
    %936 = vector.multi_reduction <maximumf>, %935, %cst_258 [1] : vector<2x8xf32> to vector<2xf32>
    %937 = vector.shape_cast %936 : vector<2xf32> to vector<2x1xf32>
    %938 = vector.broadcast %937 : vector<2x1xf32> to vector<2x8xf32>
    %939 = arith.subf %935, %938 : vector<2x8xf32>
    %940 = math.exp %939 : vector<2x8xf32>
    %cst_259 = arith.constant dense<0.000000e+00> : vector<2xf32>
    %941 = vector.multi_reduction <add>, %940, %cst_259 [1] : vector<2x8xf32> to vector<2xf32>
    %942 = vector.shape_cast %941 : vector<2xf32> to vector<2x1xf32>
    %943 = vector.broadcast %942 : vector<2x1xf32> to vector<2x8xf32>
    %944 = arith.divf %940, %943 : vector<2x8xf32>
    %945 = vector.shape_cast %944 : vector<2x8xf32> to vector<2x8x1xf32>
    %946 = vector.broadcast %945 : vector<2x8x1xf32> to vector<2x8x32xf32>
    %947 = arith.mulf %946, %455 : vector<2x8x32xf32>
    %cst_260 = arith.constant dense<0.000000e+00> : vector<2x32xf32>
    %948 = vector.multi_reduction <add>, %947, %cst_260 [1] : vector<2x8x32xf32> to vector<2x32xf32>
    %949 = tpu.concatenate %948, %922 in 1 : vector<2x32xf32>, vector<2x32xf32> -> vector<2x64xf32>
    %950 = arith.truncf %949 : vector<2x64xf32> to vector<2x64xbf16>
    %cst_261 = arith.constant dense<0.000000e+00> : vector<2x96xf32>
    %951 = tpu.matmul %950, %14, %cst_261 {dimension_numbers = #tpu.dot_dimension_numbers<[1], [0], [0], [1], [0, 0, 1, 1], [], []>} : vector<2x64xbf16>, vector<64x96xbf16>, vector<2x96xf32> -> vector<2x96xf32>
    %952 = vector.broadcast %16 : vector<1x96xf32> to vector<2x96xf32>
    %953 = arith.addf %951, %952 : vector<2x96xf32>
    %954 = arith.truncf %893 : vector<2x32xf32> to vector<2x32xbf16>
    %cst_262 = arith.constant dense<0.000000e+00> : vector<2x96xf32>
    %955 = tpu.matmul %954, %15, %cst_262 {dimension_numbers = #tpu.dot_dimension_numbers<[1], [0], [0], [1], [0, 0, 1, 1], [], []>} : vector<2x32xbf16>, vector<32x96xbf16>, vector<2x96xf32> -> vector<2x96xf32>
    %956 = vector.extract_strided_slice %953 {offsets = [0, 0], sizes = [2, 32], strides = [1, 1]} : vector<2x96xf32> to vector<2x32xf32>
    %957 = vector.extract_strided_slice %955 {offsets = [0, 0], sizes = [2, 32], strides = [1, 1]} : vector<2x96xf32> to vector<2x32xf32>
    %958 = arith.addf %956, %957 : vector<2x32xf32>
    %959 = arith.negf %958 : vector<2x32xf32>
    %960 = math.exp %959 : vector<2x32xf32>
    %cst_263 = arith.constant 1.000000e+00 : f32
    %961 = vector.broadcast %cst_263 : f32 to vector<2x32xf32>
    %962 = arith.addf %961, %960 : vector<2x32xf32>
    %963 = arith.divf %961, %962 : vector<2x32xf32>
    %964 = vector.extract_strided_slice %953 {offsets = [0, 32], sizes = [2, 32], strides = [1, 1]} : vector<2x96xf32> to vector<2x32xf32>
    %965 = vector.extract_strided_slice %955 {offsets = [0, 32], sizes = [2, 32], strides = [1, 1]} : vector<2x96xf32> to vector<2x32xf32>
    %966 = arith.addf %964, %965 : vector<2x32xf32>
    %967 = arith.negf %966 : vector<2x32xf32>
    %968 = math.exp %967 : vector<2x32xf32>
    %cst_264 = arith.constant 1.000000e+00 : f32
    %969 = vector.broadcast %cst_264 : f32 to vector<2x32xf32>
    %970 = arith.addf %969, %968 : vector<2x32xf32>
    %971 = arith.divf %969, %970 : vector<2x32xf32>
    %972 = vector.extract_strided_slice %953 {offsets = [0, 64], sizes = [2, 32], strides = [1, 1]} : vector<2x96xf32> to vector<2x32xf32>
    %973 = vector.extract_strided_slice %955 {offsets = [0, 64], sizes = [2, 32], strides = [1, 1]} : vector<2x96xf32> to vector<2x32xf32>
    %974 = vector.broadcast %17 : vector<1x32xf32> to vector<2x32xf32>
    %975 = arith.addf %973, %974 : vector<2x32xf32>
    %976 = arith.mulf %963, %975 : vector<2x32xf32>
    %977 = arith.addf %972, %976 : vector<2x32xf32>
    %978 = math.tanh %977 : vector<2x32xf32>
    %cst_265 = arith.constant 1.000000e+00 : f32
    %979 = vector.broadcast %cst_265 : f32 to vector<2x32xf32>
    %980 = arith.subf %979, %971 : vector<2x32xf32>
    %981 = arith.mulf %980, %978 : vector<2x32xf32>
    %982 = arith.mulf %971, %893 : vector<2x32xf32>
    %983 = arith.addf %981, %982 : vector<2x32xf32>
    %984 = arith.truncf %983 : vector<2x32xf32> to vector<2x32xbf16>
    %cst_266 = arith.constant dense<0.000000e+00> : vector<2x32xf32>
    %985 = tpu.matmul %984, %18, %cst_266 {dimension_numbers = #tpu.dot_dimension_numbers<[1], [0], [0], [1], [0, 0, 1, 1], [], []>} : vector<2x32xbf16>, vector<32x32xbf16>, vector<2x32xf32> -> vector<2x32xf32>
    %986 = vector.broadcast %19 : vector<1x32xf32> to vector<2x32xf32>
    %987 = arith.addf %985, %986 : vector<2x32xf32>
    %cst_267 = arith.constant 0.000000e+00 : f32
    %988 = vector.broadcast %cst_267 : f32 to vector<2x32xf32>
    %989 = arith.cmpf ogt, %987, %988 : vector<2x32xf32>
    %cst_268 = arith.constant 0.00999999977 : f32
    %990 = vector.broadcast %cst_268 : f32 to vector<2x32xf32>
    %991 = arith.mulf %990, %987 : vector<2x32xf32>
    %992 = arith.select %989, %987, %991 : vector<2x32xi1>, vector<2x32xf32>
    %cst_269 = arith.constant dense<0.000000e+00> : vector<2x128xf32>
    %993 = tpu.matmul %992, %20, %cst_269 {dimension_numbers = #tpu.dot_dimension_numbers<[1], [0], [0], [1], [0, 0, 1, 1], [], []>} : vector<2x32xf32>, vector<32x128xf32>, vector<2x128xf32> -> vector<2x128xf32>
    %994 = vector.broadcast %21 : vector<1x128xf32> to vector<2x128xf32>
    %995 = arith.addf %993, %994 : vector<2x128xf32>
    %c6_270 = arith.constant 6 : index
    %c0_271 = arith.constant 0 : index
    %c0_272 = arith.constant 0 : index
    %996 = vector.load %arg22[%c6_270, %c0_271, %c0_272] : memref<8x2x128xf32, #tpu.memory_space<vmem>>, vector<1x2x128xf32>
    %997 = vector.shape_cast %996 : vector<1x2x128xf32> to vector<2x128xf32>
    %998 = vector.shape_cast %995 : vector<2x128xf32> to vector<1x2x128xf32>
    tpu.vector_store %arg22[%c6_270, %c0_271, %c0_272], %998 {strides = array<i32>} : memref<8x2x128xf32, #tpu.memory_space<vmem>>, vector<1x2x128xf32>,
    %cst_273 = arith.constant dense<0xFF800000> : vector<2xf32>
    %999 = vector.multi_reduction <maximumf>, %995, %cst_273 [1] : vector<2x128xf32> to vector<2xf32>
    %1000 = vector.shape_cast %999 : vector<2xf32> to vector<2x1xf32>
    %1001 = vector.broadcast %1000 : vector<2x1xf32> to vector<2x128xf32>
    %1002 = arith.cmpf oeq, %995, %1001 : vector<2x128xf32>
    %c128_i32_274 = arith.constant 128 : i32
    %1003 = vector.broadcast %c128_i32_274 : i32 to vector<2x128xi32>
    %1004 = arith.select %1002, %457, %1003 : vector<2x128xi1>, vector<2x128xi32>
    %cst_275 = arith.constant dense<2147483647> : vector<2xi32>
    %1005 = vector.multi_reduction <minsi>, %1004, %cst_275 [1] : vector<2x128xi32> to vector<2xi32>
    %1006 = vector.shape_cast %1005 : vector<2xi32> to vector<2x1xi32>
    %1007 = vector.broadcast %1006 : vector<2x1xi32> to vector<2x24xi32>
    %1008 = arith.cmpi eq, %458, %1007 : vector<2x24xi32>
    %1009 = arith.extui %1008 : vector<2x24xi1> to vector<2x24xi32>
    %1010 = arith.sitofp %1009 : vector<2x24xi32> to vector<2x24xf32>
    %1011 = arith.truncf %1010 : vector<2x24xf32> to vector<2x24xbf16>
    %cst_276 = arith.constant dense<0.000000e+00> : vector<2x32xf32>
    %1012 = tpu.matmul %1011, %6, %cst_276 {dimension_numbers = #tpu.dot_dimension_numbers<[1], [0], [0], [1], [0, 0, 1, 1], [], []>} : vector<2x24xbf16>, vector<24x32xbf16>, vector<2x32xf32> -> vector<2x32xf32>
    %1013 = arith.truncf %983 : vector<2x32xf32> to vector<2x32xbf16>
    %cst_277 = arith.constant dense<0.000000e+00> : vector<2x32xf32>
    %1014 = tpu.matmul %1013, %9, %cst_277 {dimension_numbers = #tpu.dot_dimension_numbers<[1], [0], [0], [1], [0, 0, 1, 1], [], []>} : vector<2x32xbf16>, vector<32x32xbf16>, vector<2x32xf32> -> vector<2x32xf32>
    %1015 = vector.broadcast %10 : vector<1x32xf32> to vector<2x32xf32>
    %1016 = arith.addf %1014, %1015 : vector<2x32xf32>
    %1017 = vector.shape_cast %1016 : vector<2x32xf32> to vector<2x1x32xf32>
    %1018 = vector.broadcast %1017 : vector<2x1x32xf32> to vector<2x8x32xf32>
    %1019 = arith.addf %456, %1018 : vector<2x8x32xf32>
    %1020 = math.tanh %1019 : vector<2x8x32xf32>
    %1021 = vector.broadcast %12 : vector<1x1x32xf32> to vector<2x8x32xf32>
    %1022 = arith.mulf %1020, %1021 : vector<2x8x32xf32>
    %cst_278 = arith.constant dense<0.000000e+00> : vector<2x8xf32>
    %1023 = vector.multi_reduction <add>, %1022, %cst_278 [2] : vector<2x8x32xf32> to vector<2x8xf32>
    %1024 = vector.broadcast %13 : vector<1x1xf32> to vector<2x8xf32>
    %1025 = arith.addf %1023, %1024 : vector<2x8xf32>
    %cst_279 = arith.constant dense<0xFF800000> : vector<2xf32>
    %1026 = vector.multi_reduction <maximumf>, %1025, %cst_279 [1] : vector<2x8xf32> to vector<2xf32>
    %1027 = vector.shape_cast %1026 : vector<2xf32> to vector<2x1xf32>
    %1028 = vector.broadcast %1027 : vector<2x1xf32> to vector<2x8xf32>
    %1029 = arith.subf %1025, %1028 : vector<2x8xf32>
    %1030 = math.exp %1029 : vector<2x8xf32>
    %cst_280 = arith.constant dense<0.000000e+00> : vector<2xf32>
    %1031 = vector.multi_reduction <add>, %1030, %cst_280 [1] : vector<2x8xf32> to vector<2xf32>
    %1032 = vector.shape_cast %1031 : vector<2xf32> to vector<2x1xf32>
    %1033 = vector.broadcast %1032 : vector<2x1xf32> to vector<2x8xf32>
    %1034 = arith.divf %1030, %1033 : vector<2x8xf32>
    %1035 = vector.shape_cast %1034 : vector<2x8xf32> to vector<2x8x1xf32>
    %1036 = vector.broadcast %1035 : vector<2x8x1xf32> to vector<2x8x32xf32>
    %1037 = arith.mulf %1036, %455 : vector<2x8x32xf32>
    %cst_281 = arith.constant dense<0.000000e+00> : vector<2x32xf32>
    %1038 = vector.multi_reduction <add>, %1037, %cst_281 [1] : vector<2x8x32xf32> to vector<2x32xf32>
    %1039 = tpu.concatenate %1038, %1012 in 1 : vector<2x32xf32>, vector<2x32xf32> -> vector<2x64xf32>
    %1040 = arith.truncf %1039 : vector<2x64xf32> to vector<2x64xbf16>
    %cst_282 = arith.constant dense<0.000000e+00> : vector<2x96xf32>
    %1041 = tpu.matmul %1040, %14, %cst_282 {dimension_numbers = #tpu.dot_dimension_numbers<[1], [0], [0], [1], [0, 0, 1, 1], [], []>} : vector<2x64xbf16>, vector<64x96xbf16>, vector<2x96xf32> -> vector<2x96xf32>
    %1042 = vector.broadcast %16 : vector<1x96xf32> to vector<2x96xf32>
    %1043 = arith.addf %1041, %1042 : vector<2x96xf32>
    %1044 = arith.truncf %983 : vector<2x32xf32> to vector<2x32xbf16>
    %cst_283 = arith.constant dense<0.000000e+00> : vector<2x96xf32>
    %1045 = tpu.matmul %1044, %15, %cst_283 {dimension_numbers = #tpu.dot_dimension_numbers<[1], [0], [0], [1], [0, 0, 1, 1], [], []>} : vector<2x32xbf16>, vector<32x96xbf16>, vector<2x96xf32> -> vector<2x96xf32>
    %1046 = vector.extract_strided_slice %1043 {offsets = [0, 0], sizes = [2, 32], strides = [1, 1]} : vector<2x96xf32> to vector<2x32xf32>
    %1047 = vector.extract_strided_slice %1045 {offsets = [0, 0], sizes = [2, 32], strides = [1, 1]} : vector<2x96xf32> to vector<2x32xf32>
    %1048 = arith.addf %1046, %1047 : vector<2x32xf32>
    %1049 = arith.negf %1048 : vector<2x32xf32>
    %1050 = math.exp %1049 : vector<2x32xf32>
    %cst_284 = arith.constant 1.000000e+00 : f32
    %1051 = vector.broadcast %cst_284 : f32 to vector<2x32xf32>
    %1052 = arith.addf %1051, %1050 : vector<2x32xf32>
    %1053 = arith.divf %1051, %1052 : vector<2x32xf32>
    %1054 = vector.extract_strided_slice %1043 {offsets = [0, 32], sizes = [2, 32], strides = [1, 1]} : vector<2x96xf32> to vector<2x32xf32>
    %1055 = vector.extract_strided_slice %1045 {offsets = [0, 32], sizes = [2, 32], strides = [1, 1]} : vector<2x96xf32> to vector<2x32xf32>
    %1056 = arith.addf %1054, %1055 : vector<2x32xf32>
    %1057 = arith.negf %1056 : vector<2x32xf32>
    %1058 = math.exp %1057 : vector<2x32xf32>
    %cst_285 = arith.constant 1.000000e+00 : f32
    %1059 = vector.broadcast %cst_285 : f32 to vector<2x32xf32>
    %1060 = arith.addf %1059, %1058 : vector<2x32xf32>
    %1061 = arith.divf %1059, %1060 : vector<2x32xf32>
    %1062 = vector.extract_strided_slice %1043 {offsets = [0, 64], sizes = [2, 32], strides = [1, 1]} : vector<2x96xf32> to vector<2x32xf32>
    %1063 = vector.extract_strided_slice %1045 {offsets = [0, 64], sizes = [2, 32], strides = [1, 1]} : vector<2x96xf32> to vector<2x32xf32>
    %1064 = vector.broadcast %17 : vector<1x32xf32> to vector<2x32xf32>
    %1065 = arith.addf %1063, %1064 : vector<2x32xf32>
    %1066 = arith.mulf %1053, %1065 : vector<2x32xf32>
    %1067 = arith.addf %1062, %1066 : vector<2x32xf32>
    %1068 = math.tanh %1067 : vector<2x32xf32>
    %cst_286 = arith.constant 1.000000e+00 : f32
    %1069 = vector.broadcast %cst_286 : f32 to vector<2x32xf32>
    %1070 = arith.subf %1069, %1061 : vector<2x32xf32>
    %1071 = arith.mulf %1070, %1068 : vector<2x32xf32>
    %1072 = arith.mulf %1061, %983 : vector<2x32xf32>
    %1073 = arith.addf %1071, %1072 : vector<2x32xf32>
    %1074 = arith.truncf %1073 : vector<2x32xf32> to vector<2x32xbf16>
    %cst_287 = arith.constant dense<0.000000e+00> : vector<2x32xf32>
    %1075 = tpu.matmul %1074, %18, %cst_287 {dimension_numbers = #tpu.dot_dimension_numbers<[1], [0], [0], [1], [0, 0, 1, 1], [], []>} : vector<2x32xbf16>, vector<32x32xbf16>, vector<2x32xf32> -> vector<2x32xf32>
    %1076 = vector.broadcast %19 : vector<1x32xf32> to vector<2x32xf32>
    %1077 = arith.addf %1075, %1076 : vector<2x32xf32>
    %cst_288 = arith.constant 0.000000e+00 : f32
    %1078 = vector.broadcast %cst_288 : f32 to vector<2x32xf32>
    %1079 = arith.cmpf ogt, %1077, %1078 : vector<2x32xf32>
    %cst_289 = arith.constant 0.00999999977 : f32
    %1080 = vector.broadcast %cst_289 : f32 to vector<2x32xf32>
    %1081 = arith.mulf %1080, %1077 : vector<2x32xf32>
    %1082 = arith.select %1079, %1077, %1081 : vector<2x32xi1>, vector<2x32xf32>
    %cst_290 = arith.constant dense<0.000000e+00> : vector<2x128xf32>
    %1083 = tpu.matmul %1082, %20, %cst_290 {dimension_numbers = #tpu.dot_dimension_numbers<[1], [0], [0], [1], [0, 0, 1, 1], [], []>} : vector<2x32xf32>, vector<32x128xf32>, vector<2x128xf32> -> vector<2x128xf32>
    %1084 = vector.broadcast %21 : vector<1x128xf32> to vector<2x128xf32>
    %1085 = arith.addf %1083, %1084 : vector<2x128xf32>
    %c7_291 = arith.constant 7 : index
    %c0_292 = arith.constant 0 : index
    %c0_293 = arith.constant 0 : index
    %1086 = vector.load %arg22[%c7_291, %c0_292, %c0_293] : memref<8x2x128xf32, #tpu.memory_space<vmem>>, vector<1x2x128xf32>
    %1087 = vector.shape_cast %1086 : vector<1x2x128xf32> to vector<2x128xf32>
    %1088 = vector.shape_cast %1085 : vector<2x128xf32> to vector<1x2x128xf32>
    tpu.vector_store %arg22[%c7_291, %c0_292, %c0_293], %1088 {strides = array<i32>} : memref<8x2x128xf32, #tpu.memory_space<vmem>>, vector<1x2x128xf32>,
    return
  }
}

</mosaic_0001>

<llo_original>
// kernel: tpu_custom_call.1
$region0: #{tpu_custom_call.1}
  #allocation0 [shape = 'u32[]', space=smem, size = 0x4, offset = 0x4, fixed_abs, tag = 'smem constant byte address 0x4 - core index']
  #allocation1 [shape = 'u32[144,128]{1,0:T(1,128)}', space=vmem, size = 0x12000, scoped, tag = 'internal scratch']
  #allocation2 [shape = 'f32[2,8,32]{2,1,0:T(8,128)}', space=vmem, size = 0x2000, scoped, tag = 'scratch operand']
  #allocation3 [shape = 'f32[2,8,32]{2,1,0:T(8,128)}', space=vmem, size = 0x2000, scoped, tag = 'scratch operand']
  #allocation4 [shape = 'f32[1,1]{1,0:T(1,128)S(1)}', space=vmem, size = 0x200, scoped, tag = 'scoped memory for tpu_custom_call.1']
  %s0 = inlined_call_operand.vmem [shape: bf16[2,8,32], index: 0, kind: input, shape index: {}]
  %s1 = inlined_call_operand.vmem [shape: s32[2,1], index: 1, kind: input, shape index: {}]
  %s2 = inlined_call_operand.vmem [shape: s32[2,1], index: 2, kind: input, shape index: {}]
  %s3 = inlined_call_operand.hbm [shape: bf16[32,96], index: 3, kind: input, shape index: {}]
  %s4 = inlined_call_operand.hbm [shape: bf16[32,96], index: 4, kind: input, shape index: {}]
  %s5 = inlined_call_operand.hbm [shape: f32[1,96], index: 5, kind: input, shape index: {}]
  %s6 = inlined_call_operand.hbm [shape: f32[1,32], index: 6, kind: input, shape index: {}]
  %s7 = inlined_call_operand.hbm [shape: bf16[24,32], index: 7, kind: input, shape index: {}]
  %s8 = inlined_call_operand.hbm [shape: bf16[32,32], index: 8, kind: input, shape index: {}]
  %s9 = inlined_call_operand.hbm [shape: f32[1,32], index: 9, kind: input, shape index: {}]
  %s10 = inlined_call_operand.hbm [shape: bf16[32,32], index: 10, kind: input, shape index: {}]
  %s11 = inlined_call_operand.hbm [shape: f32[1,32], index: 11, kind: input, shape index: {}]
  %s12 = inlined_call_operand.hbm [shape: f32[1,32], index: 12, kind: input, shape index: {}]
  %s13 = inlined_call_operand.<no memory space> [shape: f32[1,1], index: 13, kind: input, shape index: {}]
  %s14 = inlined_call_operand.hbm [shape: bf16[64,96], index: 14, kind: input, shape index: {}]
  %s15 = inlined_call_operand.hbm [shape: bf16[32,96], index: 15, kind: input, shape index: {}]
  %s16 = inlined_call_operand.hbm [shape: f32[1,96], index: 16, kind: input, shape index: {}]
  %s17 = inlined_call_operand.hbm [shape: f32[1,32], index: 17, kind: input, shape index: {}]
  %s18 = inlined_call_operand.hbm [shape: bf16[32,32], index: 18, kind: input, shape index: {}]
  %s19 = inlined_call_operand.hbm [shape: f32[1,32], index: 19, kind: input, shape index: {}]
  %s20 = inlined_call_operand.vmem [shape: f32[32,128], index: 20, kind: input, shape index: {}]
  %s21 = inlined_call_operand.vmem [shape: f32[1,128], index: 21, kind: input, shape index: {}]
  %s22 = inlined_call_operand.hbm [shape: f32[8,2,128], index: 22, kind: output, shape index: {}]
  %s23 = sld [smem:[#allocation0]]
  $region162: #{tpu_custom_call.1} parent=0
    _
  %s25 = ssub.s32 1, %s23
  %s26 = scalar_select 0, %s25, %s23
  %v27 = vstv %s13
  %28 = vst [vmem:[#allocation4] sm:$0x1] %v27
  $region1: #{tpu_custom_call.1} parent=0
    #allocation5 [shape = 'u8[8192]{0}', space=vmem, size = 0x2000, scoped, tag = 'input window, operand 3, single buffered']
    #allocation6 [shape = 's32[1]{0}', space=sflag, size = 0x4, scoped, tag = 'scoped memory for tpu_custom_call.1']
    #allocation7 [shape = 's32[1]{0}', space=sflag, size = 0x4, scoped, tag = 'scoped memory for tpu_custom_call.1']
    #allocation8 [shape = 'u8[8192]{0}', space=vmem, size = 0x2000, scoped, tag = 'input window, operand 4, single buffered']
    #allocation9 [shape = 's32[1]{0}', space=sflag, size = 0x4, scoped, tag = 'scoped memory for tpu_custom_call.1']
    #allocation10 [shape = 'u8[512]{0}', space=vmem, size = 0x400, scoped, tag = 'input window, operand 5, single buffered']
    #allocation11 [shape = 'u8[512]{0}', space=vmem, size = 0x400, scoped, tag = 'input window, operand 6, single buffered']
    #allocation12 [shape = 's32[1]{0}', space=sflag, size = 0x4, scoped, tag = 'scoped memory for tpu_custom_call.1']
    #allocation13 [shape = 'u8[6144]{0}', space=vmem, size = 0x1800, scoped, tag = 'input window, operand 7, single buffered']
    #allocation14 [shape = 'u8[8192]{0}', space=vmem, size = 0x2000, scoped, tag = 'input window, operand 8, single buffered']
    #allocation15 [shape = 's32[1]{0}', space=sflag, size = 0x4, scoped, tag = 'scoped memory for tpu_custom_call.1']
    #allocation16 [shape = 'u8[512]{0}', space=vmem, size = 0x400, scoped, tag = 'input window, operand 9, single buffered']
    #allocation17 [shape = 'u8[8192]{0}', space=vmem, size = 0x2000, scoped, tag = 'input window, operand 10, single buffered']
    #allocation18 [shape = 's32[1]{0}', space=sflag, size = 0x4, scoped, tag = 'scoped memory for tpu_custom_call.1']
    #allocation19 [shape = 'u8[512]{0}', space=vmem, size = 0x400, scoped, tag = 'input window, operand 11, single buffered']
    #allocation20 [shape = 'u8[512]{0}', space=vmem, size = 0x400, scoped, tag = 'input window, operand 12, single buffered']
    #allocation21 [shape = 's32[1]{0}', space=sflag, size = 0x4, scoped, tag = 'scoped memory for tpu_custom_call.1']
    #allocation22 [shape = 'u8[16384]{0}', space=vmem, size = 0x4000, scoped, tag = 'input window, operand 14, single buffered']
    #allocation23 [shape = 'u8[8192]{0}', space=vmem, size = 0x2000, scoped, tag = 'input window, operand 15, single buffered']
    #allocation24 [shape = 's32[1]{0}', space=sflag, size = 0x4, scoped, tag = 'scoped memory for tpu_custom_call.1']
    #allocation25 [shape = 'u8[512]{0}', space=vmem, size = 0x400, scoped, tag = 'input window, operand 16, single buffered']
    #allocation26 [shape = 'u8[512]{0}', space=vmem, size = 0x400, scoped, tag = 'input window, operand 17, single buffered']
    #allocation27 [shape = 's32[1]{0}', space=sflag, size = 0x4, scoped, tag = 'scoped memory for tpu_custom_call.1']
    #allocation28 [shape = 'u8[8192]{0}', space=vmem, size = 0x2000, scoped, tag = 'input window, operand 18, single buffered']
    #allocation29 [shape = 'u8[512]{0}', space=vmem, size = 0x400, scoped, tag = 'input window, operand 19, single buffered']
    #allocation30 [shape = 's32[1]{0}', space=sflag, size = 0x4, scoped, tag = 'scoped memory for tpu_custom_call.1']
    #allocation31 [shape = 'u8[8192]{0}', space=vmem, size = 0x2000, scoped, tag = 'output window, operand 0, single buffered']
    %29 = vsyncpa [#allocation6], 0
    %30 = vsyncpa [#allocation9], 0
    %31 = vsyncpa [#allocation12], 0
    %32 = vsyncpa [#allocation15], 0
    %33 = vsyncpa [#allocation18], 0
    %34 = vsyncpa [#allocation21], 0
    %35 = vsyncpa [#allocation24], 0
    %36 = vsyncpa [#allocation27], 0
    %37 = vsyncpa [#allocation30], 0
    %38 = vsyncpa [#allocation7], 0
    // Predicated region
    $region2: #{tpu_custom_call.1} parent=1 // pred_check
      _
    $region3: #{tpu_custom_call.1} parent=1 // pred_check_branch
      %40 = sbr.rel (0) target = $region5
    $region4: #{tpu_custom_call.1} parent=1 // pred_region
      _
    $region5: #{tpu_custom_call.1} parent=1 // pred_fallthru
      _
    // Predicated region
    $region6: #{tpu_custom_call.1} parent=1 // pred_check
      _
    $region7: #{tpu_custom_call.1} parent=1 // pred_check_branch
      %42 = sbr.rel (0) target = $region9
    $region8: #{tpu_custom_call.1} parent=1 // pred_region
      _
    $region9: #{tpu_custom_call.1} parent=1 // pred_fallthru
      _
    // Predicated region
    $region10: #{tpu_custom_call.1} parent=1 // pred_check
      _
    $region11: #{tpu_custom_call.1} parent=1 // pred_check_branch
      %44 = sbr.rel (0) target = $region13
    $region12: #{tpu_custom_call.1} parent=1 // pred_region
      _
    $region13: #{tpu_custom_call.1} parent=1 // pred_fallthru
      _
    // Predicated region
    $region14: #{tpu_custom_call.1} parent=1 // pred_check
      _
    $region15: #{tpu_custom_call.1} parent=1 // pred_check_branch
      %46 = sbr.rel (0) target = $region17
    $region16: #{tpu_custom_call.1} parent=1 // pred_region
      %s48 = ssub.s32 256, 256
      %49 = vsyncadd [#allocation6], %s48
      %s50 = sshll.u32 [#allocation5], 4
      %s51 = int_to_ptr.vmem [resolvable:$true] %s50
      %56 = dma.hbm_to_vmem [thread:$0]  %s3, 256, %s51, [#allocation6], 64, 64, 4
    $region17: #{tpu_custom_call.1} parent=1 // pred_fallthru
      _
    // Predicated region
    $region18: #{tpu_custom_call.1} parent=1 // pred_check
      _
    $region19: #{tpu_custom_call.1} parent=1 // pred_check_branch
      %58 = sbr.rel (0) target = $region21
    $region20: #{tpu_custom_call.1} parent=1 // pred_region
      %s60 = ssub.s32 256, 256
      %61 = vsyncadd [#allocation9], %s60
      %s62 = sshll.u32 [#allocation8], 4
      %s63 = int_to_ptr.vmem [resolvable:$true] %s62
      %68 = dma.hbm_to_vmem [thread:$0]  %s4, 256, %s63, [#allocation9], 64, 64, 4
    $region21: #{tpu_custom_call.1} parent=1 // pred_fallthru
      _
    // Predicated region
    $region22: #{tpu_custom_call.1} parent=1 // pred_check
      _
    $region23: #{tpu_custom_call.1} parent=1 // pred_check_branch
      %70 = sbr.rel (0) target = $region25
    $region24: #{tpu_custom_call.1} parent=1 // pred_region
      %s72 = ssub.s32 16, 16
      %73 = vsyncadd [#allocation9], %s72
      %s75 = sshll.u32 [#allocation10], 4
      %s76 = int_to_ptr.vmem [resolvable:$true] %s75
      %78 = dma.hbm_to_vmem [thread:$0]  %s5, 16, %s76, [#allocation9]
    $region25: #{tpu_custom_call.1} parent=1 // pred_fallthru
      _
    // Predicated region
    $region26: #{tpu_custom_call.1} parent=1 // pred_check
      _
    $region27: #{tpu_custom_call.1} parent=1 // pred_check_branch
      %80 = sbr.rel (0) target = $region29
    $region28: #{tpu_custom_call.1} parent=1 // pred_region
      %s82 = ssub.s32 16, 16
      %83 = vsyncadd [#allocation12], %s82
      %s85 = sshll.u32 [#allocation11], 4
      %s86 = int_to_ptr.vmem [resolvable:$true] %s85
      %88 = dma.hbm_to_vmem [thread:$0]  %s6, 16, %s86, [#allocation12]
    $region29: #{tpu_custom_call.1} parent=1 // pred_fallthru
      _
    // Predicated region
    $region30: #{tpu_custom_call.1} parent=1 // pred_check
      _
    $region31: #{tpu_custom_call.1} parent=1 // pred_check_branch
      %90 = sbr.rel (0) target = $region33
    $region32: #{tpu_custom_call.1} parent=1 // pred_region
      %s92 = ssub.s32 192, 192
      %93 = vsyncadd [#allocation12], %s92
      %s94 = sshll.u32 [#allocation13], 4
      %s95 = int_to_ptr.vmem [resolvable:$true] %s94
      %100 = dma.hbm_to_vmem [thread:$0]  %s7, 192, %s95, [#allocation12], 64, 64, 4
    $region33: #{tpu_custom_call.1} parent=1 // pred_fallthru
      _
    // Predicated region
    $region34: #{tpu_custom_call.1} parent=1 // pred_check
      _
    $region35: #{tpu_custom_call.1} parent=1 // pred_check_branch
      %102 = sbr.rel (0) target = $region37
    $region36: #{tpu_custom_call.1} parent=1 // pred_region
      %s104 = ssub.s32 256, 256
      %105 = vsyncadd [#allocation15], %s104
      %s106 = sshll.u32 [#allocation14], 4
      %s107 = int_to_ptr.vmem [resolvable:$true] %s106
      %112 = dma.hbm_to_vmem [thread:$0]  %s8, 256, %s107, [#allocation15], 64, 64, 4
    $region37: #{tpu_custom_call.1} parent=1 // pred_fallthru
      _
    // Predicated region
    $region38: #{tpu_custom_call.1} parent=1 // pred_check
      _
    $region39: #{tpu_custom_call.1} parent=1 // pred_check_branch
      %114 = sbr.rel (0) target = $region41
    $region40: #{tpu_custom_call.1} parent=1 // pred_region
      %s116 = ssub.s32 16, 16
      %117 = vsyncadd [#allocation15], %s116
      %s119 = sshll.u32 [#allocation16], 4
      %s120 = int_to_ptr.vmem [resolvable:$true] %s119
      %122 = dma.hbm_to_vmem [thread:$0]  %s9, 16, %s120, [#allocation15]
    $region41: #{tpu_custom_call.1} parent=1 // pred_fallthru
      _
    // Predicated region
    $region42: #{tpu_custom_call.1} parent=1 // pred_check
      _
    $region43: #{tpu_custom_call.1} parent=1 // pred_check_branch
      %124 = sbr.rel (0) target = $region45
    $region44: #{tpu_custom_call.1} parent=1 // pred_region
      %s126 = ssub.s32 256, 256
      %127 = vsyncadd [#allocation18], %s126
      %s128 = sshll.u32 [#allocation17], 4
      %s129 = int_to_ptr.vmem [resolvable:$true] %s128
      %134 = dma.hbm_to_vmem [thread:$0]  %s10, 256, %s129, [#allocation18], 64, 64, 4
    $region45: #{tpu_custom_call.1} parent=1 // pred_fallthru
      _
    // Predicated region
    $region46: #{tpu_custom_call.1} parent=1 // pred_check
      _
    $region47: #{tpu_custom_call.1} parent=1 // pred_check_branch
      %136 = sbr.rel (0) target = $region49
    $region48: #{tpu_custom_call.1} parent=1 // pred_region
      %s138 = ssub.s32 16, 16
      %139 = vsyncadd [#allocation18], %s138
      %s141 = sshll.u32 [#allocation19], 4
      %s142 = int_to_ptr.vmem [resolvable:$true] %s141
      %144 = dma.hbm_to_vmem [thread:$0]  %s11, 16, %s142, [#allocation18]
    $region49: #{tpu_custom_call.1} parent=1 // pred_fallthru
      _
    // Predicated region
    $region50: #{tpu_custom_call.1} parent=1 // pred_check
      _
    $region51: #{tpu_custom_call.1} parent=1 // pred_check_branch
      %146 = sbr.rel (0) target = $region53
    $region52: #{tpu_custom_call.1} parent=1 // pred_region
      %s148 = ssub.s32 16, 16
      %149 = vsyncadd [#allocation21], %s148
      %s151 = sshll.u32 [#allocation20], 4
      %s152 = int_to_ptr.vmem [resolvable:$true] %s151
      %154 = dma.hbm_to_vmem [thread:$0]  %s12, 16, %s152, [#allocation21]
    $region53: #{tpu_custom_call.1} parent=1 // pred_fallthru
      _
    // Predicated region
    $region54: #{tpu_custom_call.1} parent=1 // pred_check
      _
    $region55: #{tpu_custom_call.1} parent=1 // pred_check_branch
      %156 = sbr.rel (0) target = $region57
    $region56: #{tpu_custom_call.1} parent=1 // pred_region
      _
    $region57: #{tpu_custom_call.1} parent=1 // pred_fallthru
      _
    // Predicated region
    $region58: #{tpu_custom_call.1} parent=1 // pred_check
      _
    $region59: #{tpu_custom_call.1} parent=1 // pred_check_branch
      %158 = sbr.rel (0) target = $region61
    $region60: #{tpu_custom_call.1} parent=1 // pred_region
      %s160 = ssub.s32 512, 512
      %161 = vsyncadd [#allocation21], %s160
      %s162 = sshll.u32 [#allocation22], 4
      %s163 = int_to_ptr.vmem [resolvable:$true] %s162
      %168 = dma.hbm_to_vmem [thread:$0]  %s14, 512, %s163, [#allocation21], 64, 64, 4
    $region61: #{tpu_custom_call.1} parent=1 // pred_fallthru
      _
    // Predicated region
    $region62: #{tpu_custom_call.1} parent=1 // pred_check
      _
    $region63: #{tpu_custom_call.1} parent=1 // pred_check_branch
      %170 = sbr.rel (0) target = $region65
    $region64: #{tpu_custom_call.1} parent=1 // pred_region
      %s172 = ssub.s32 256, 256
      %173 = vsyncadd [#allocation24], %s172
      %s174 = sshll.u32 [#allocation23], 4
      %s175 = int_to_ptr.vmem [resolvable:$true] %s174
      %180 = dma.hbm_to_vmem [thread:$0]  %s15, 256, %s175, [#allocation24], 64, 64, 4
    $region65: #{tpu_custom_call.1} parent=1 // pred_fallthru
      _
    // Predicated region
    $region66: #{tpu_custom_call.1} parent=1 // pred_check
      _
    $region67: #{tpu_custom_call.1} parent=1 // pred_check_branch
      %182 = sbr.rel (0) target = $region69
    $region68: #{tpu_custom_call.1} parent=1 // pred_region
      %s184 = ssub.s32 16, 16
      %185 = vsyncadd [#allocation24], %s184
      %s187 = sshll.u32 [#allocation25], 4
      %s188 = int_to_ptr.vmem [resolvable:$true] %s187
      %190 = dma.hbm_to_vmem [thread:$0]  %s16, 16, %s188, [#allocation24]
    $region69: #{tpu_custom_call.1} parent=1 // pred_fallthru
      _
    // Predicated region
    $region70: #{tpu_custom_call.1} parent=1 // pred_check
      _
    $region71: #{tpu_custom_call.1} parent=1 // pred_check_branch
      %192 = sbr.rel (0) target = $region73
    $region72: #{tpu_custom_call.1} parent=1 // pred_region
      %s194 = ssub.s32 16, 16
      %195 = vsyncadd [#allocation27], %s194
      %s197 = sshll.u32 [#allocation26], 4
      %s198 = int_to_ptr.vmem [resolvable:$true] %s197
      %200 = dma.hbm_to_vmem [thread:$0]  %s17, 16, %s198, [#allocation27]
    $region73: #{tpu_custom_call.1} parent=1 // pred_fallthru
      _
    // Predicated region
    $region74: #{tpu_custom_call.1} parent=1 // pred_check
      _
    $region75: #{tpu_custom_call.1} parent=1 // pred_check_branch
      %202 = sbr.rel (0) target = $region77
    $region76: #{tpu_custom_call.1} parent=1 // pred_region
      %s204 = ssub.s32 256, 256
      %205 = vsyncadd [#allocation27], %s204
      %s206 = sshll.u32 [#allocation28], 4
      %s207 = int_to_ptr.vmem [resolvable:$true] %s206
      %212 = dma.hbm_to_vmem [thread:$0]  %s18, 256, %s207, [#allocation27], 64, 64, 4
    $region77: #{tpu_custom_call.1} parent=1 // pred_fallthru
      _
    // Predicated region
    $region78: #{tpu_custom_call.1} parent=1 // pred_check
      _
    $region79: #{tpu_custom_call.1} parent=1 // pred_check_branch
      %214 = sbr.rel (0) target = $region81
    $region80: #{tpu_custom_call.1} parent=1 // pred_region
      %s216 = ssub.s32 16, 16
      %217 = vsyncadd [#allocation30], %s216
      %s219 = sshll.u32 [#allocation29], 4
      %s220 = int_to_ptr.vmem [resolvable:$true] %s219
      %222 = dma.hbm_to_vmem [thread:$0]  %s19, 16, %s220, [#allocation30]
    $region81: #{tpu_custom_call.1} parent=1 // pred_fallthru
      _
    // Predicated region
    $region82: #{tpu_custom_call.1} parent=1 // pred_check
      _
    $region83: #{tpu_custom_call.1} parent=1 // pred_check_branch
      %224 = sbr.rel (0) target = $region85
    $region84: #{tpu_custom_call.1} parent=1 // pred_region
      _
    $region85: #{tpu_custom_call.1} parent=1 // pred_fallthru
      _
    // Predicated region
    $region86: #{tpu_custom_call.1} parent=1 // pred_check
      _
    $region87: #{tpu_custom_call.1} parent=1 // pred_check_branch
      %226 = sbr.rel (0) target = $region89
    $region88: #{tpu_custom_call.1} parent=1 // pred_region
      _
    $region89: #{tpu_custom_call.1} parent=1 // pred_fallthru
      _
    // Predicated region
    $region90: #{tpu_custom_call.1} parent=1 // pred_check
      _
    $region91: #{tpu_custom_call.1} parent=1 // pred_check_branch
      %228 = sbr.rel (0) target = $region93
    $region92: #{tpu_custom_call.1} parent=1 // pred_region
      %229 = dma.done [#allocation6], 256
    $region93: #{tpu_custom_call.1} parent=1 // pred_fallthru
      _
    // Predicated region
    $region94: #{tpu_custom_call.1} parent=1 // pred_check
      _
    $region95: #{tpu_custom_call.1} parent=1 // pred_check_branch
      %231 = sbr.rel (0) target = $region97
    $region96: #{tpu_custom_call.1} parent=1 // pred_region
      %232 = dma.done [#allocation9], 256
    $region97: #{tpu_custom_call.1} parent=1 // pred_fallthru
      _
    // Predicated region
    $region98: #{tpu_custom_call.1} parent=1 // pred_check
      _
    $region99: #{tpu_custom_call.1} parent=1 // pred_check_branch
      %234 = sbr.rel (0) target = $region101
    $region100: #{tpu_custom_call.1} parent=1 // pred_region
      %235 = dma.done [#allocation9], 16
    $region101: #{tpu_custom_call.1} parent=1 // pred_fallthru
      _
    // Predicated region
    $region102: #{tpu_custom_call.1} parent=1 // pred_check
      _
    $region103: #{tpu_custom_call.1} parent=1 // pred_check_branch
      %237 = sbr.rel (0) target = $region105
    $region104: #{tpu_custom_call.1} parent=1 // pred_region
      %238 = dma.done [#allocation12], 16
    $region105: #{tpu_custom_call.1} parent=1 // pred_fallthru
      _
    // Predicated region
    $region106: #{tpu_custom_call.1} parent=1 // pred_check
      _
    $region107: #{tpu_custom_call.1} parent=1 // pred_check_branch
      %240 = sbr.rel (0) target = $region109
    $region108: #{tpu_custom_call.1} parent=1 // pred_region
      %241 = dma.done [#allocation12], 192
    $region109: #{tpu_custom_call.1} parent=1 // pred_fallthru
      _
    // Predicated region
    $region110: #{tpu_custom_call.1} parent=1 // pred_check
      _
    $region111: #{tpu_custom_call.1} parent=1 // pred_check_branch
      %243 = sbr.rel (0) target = $region113
    $region112: #{tpu_custom_call.1} parent=1 // pred_region
      %244 = dma.done [#allocation15], 256
    $region113: #{tpu_custom_call.1} parent=1 // pred_fallthru
      _
    // Predicated region
    $region114: #{tpu_custom_call.1} parent=1 // pred_check
      _
    $region115: #{tpu_custom_call.1} parent=1 // pred_check_branch
      %246 = sbr.rel (0) target = $region117
    $region116: #{tpu_custom_call.1} parent=1 // pred_region
      %247 = dma.done [#allocation15], 16
    $region117: #{tpu_custom_call.1} parent=1 // pred_fallthru
      _
    // Predicated region
    $region118: #{tpu_custom_call.1} parent=1 // pred_check
      _
    $region119: #{tpu_custom_call.1} parent=1 // pred_check_branch
      %249 = sbr.rel (0) target = $region121
    $region120: #{tpu_custom_call.1} parent=1 // pred_region
      %250 = dma.done [#allocation18], 256
    $region121: #{tpu_custom_call.1} parent=1 // pred_fallthru
      _
    // Predicated region
    $region122: #{tpu_custom_call.1} parent=1 // pred_check
      _
    $region123: #{tpu_custom_call.1} parent=1 // pred_check_branch
      %252 = sbr.rel (0) target = $region125
    $region124: #{tpu_custom_call.1} parent=1 // pred_region
      %253 = dma.done [#allocation18], 16
    $region125: #{tpu_custom_call.1} parent=1 // pred_fallthru
      _
    // Predicated region
    $region126: #{tpu_custom_call.1} parent=1 // pred_check
      _
    $region127: #{tpu_custom_call.1} parent=1 // pred_check_branch
      %255 = sbr.rel (0) target = $region129
    $region128: #{tpu_custom_call.1} parent=1 // pred_region
      %256 = dma.done [#allocation21], 16
    $region129: #{tpu_custom_call.1} parent=1 // pred_fallthru
      _
    // Predicated region
    $region130: #{tpu_custom_call.1} parent=1 // pred_check
      _
    $region131: #{tpu_custom_call.1} parent=1 // pred_check_branch
      %258 = sbr.rel (0) target = $region133
    $region132: #{tpu_custom_call.1} parent=1 // pred_region
      %259 = dma.done [#allocation21], 512
    $region133: #{tpu_custom_call.1} parent=1 // pred_fallthru
      _
    // Predicated region
    $region134: #{tpu_custom_call.1} parent=1 // pred_check
      _
    $region135: #{tpu_custom_call.1} parent=1 // pred_check_branch
      %261 = sbr.rel (0) target = $region137
    $region136: #{tpu_custom_call.1} parent=1 // pred_region
      %262 = dma.done [#allocation24], 256
    $region137: #{tpu_custom_call.1} parent=1 // pred_fallthru
      _
    // Predicated region
    $region138: #{tpu_custom_call.1} parent=1 // pred_check
      _
    $region139: #{tpu_custom_call.1} parent=1 // pred_check_branch
      %264 = sbr.rel (0) target = $region141
    $region140: #{tpu_custom_call.1} parent=1 // pred_region
      %265 = dma.done [#allocation24], 16
    $region141: #{tpu_custom_call.1} parent=1 // pred_fallthru
      _
    // Predicated region
    $region142: #{tpu_custom_call.1} parent=1 // pred_check
      _
    $region143: #{tpu_custom_call.1} parent=1 // pred_check_branch
      %267 = sbr.rel (0) target = $region145
    $region144: #{tpu_custom_call.1} parent=1 // pred_region
      %268 = dma.done [#allocation27], 16
    $region145: #{tpu_custom_call.1} parent=1 // pred_fallthru
      _
    // Predicated region
    $region146: #{tpu_custom_call.1} parent=1 // pred_check
      _
    $region147: #{tpu_custom_call.1} parent=1 // pred_check_branch
      %270 = sbr.rel (0) target = $region149
    $region148: #{tpu_custom_call.1} parent=1 // pred_region
      %271 = dma.done [#allocation27], 256
    $region149: #{tpu_custom_call.1} parent=1 // pred_fallthru
      _
    // Predicated region
    $region150: #{tpu_custom_call.1} parent=1 // pred_check
      _
    $region151: #{tpu_custom_call.1} parent=1 // pred_check_branch
      %273 = sbr.rel (0) target = $region153
    $region152: #{tpu_custom_call.1} parent=1 // pred_region
      %274 = dma.done [#allocation30], 16
    $region153: #{tpu_custom_call.1} parent=1 // pred_fallthru
      _
    %v276 = vld [vmem:[%s0] sm:$0xf]
    %v277 = vld [vmem:[%s0 + $0x4] sm:$0xf]
    %v278 = vld [vmem:[%s2] sm:$0x3]
    %v279 = vld [vmem:[#allocation5] sm:$0xf]
    %v280 = vld [vmem:[#allocation5 + $0x4] sm:$0xf]
    %v281 = vld [vmem:[#allocation5 + $0x8] sm:$0xf]
    %v282 = vld [vmem:[#allocation5 + $0xc] sm:$0xf]
    %v283 = vld [vmem:[#allocation8] sm:$0xf]
    %v284 = vld [vmem:[#allocation8 + $0x4] sm:$0xf]
    %v285 = vld [vmem:[#allocation8 + $0x8] sm:$0xf]
    %v286 = vld [vmem:[#allocation8 + $0xc] sm:$0xf]
    %v287 = vld [vmem:[#allocation10] sm:$0x1]
    %v288 = vld [vmem:[#allocation11] sm:$0x1]
    %v289 = vld [vmem:[#allocation13] sm:$0xf]
    %v290 = vld [vmem:[#allocation13 + $0x4] sm:$0xf]
    %v291 = vld [vmem:[#allocation13 + $0x8] sm:$0xf]
    %v292 = vld [vmem:[#allocation14] sm:$0xf]
    %v293 = vld [vmem:[#allocation14 + $0x4] sm:$0xf]
    %v294 = vld [vmem:[#allocation14 + $0x8] sm:$0xf]
    %v295 = vld [vmem:[#allocation14 + $0xc] sm:$0xf]
    %v296 = vld [vmem:[#allocation16] sm:$0x1]
    %v297 = vld [vmem:[#allocation17] sm:$0xf]
    %v298 = vld [vmem:[#allocation17 + $0x4] sm:$0xf]
    %v299 = vld [vmem:[#allocation17 + $0x8] sm:$0xf]
    %v300 = vld [vmem:[#allocation17 + $0xc] sm:$0xf]
    %v301 = vld [vmem:[#allocation19] sm:$0x1]
    %v302 = vld [vmem:[#allocation20] sm:$0x1]
    %v303 = vld [vmem:[#allocation4] sm:$0x1]
    %v304 = vld [vmem:[#allocation22] sm:$0xf]
    %v305 = vld [vmem:[#allocation22 + $0x4] sm:$0xf]
    %v306 = vld [vmem:[#allocation22 + $0x8] sm:$0xf]
    %v307 = vld [vmem:[#allocation22 + $0xc] sm:$0xf]
    %v308 = vld [vmem:[#allocation22 + $0x10] sm:$0xf]
    %v309 = vld [vmem:[#allocation22 + $0x14] sm:$0xf]
    %v310 = vld [vmem:[#allocation22 + $0x18] sm:$0xf]
    %v311 = vld [vmem:[#allocation22 + $0x1c] sm:$0xf]
    %v312 = vld [vmem:[#allocation23] sm:$0xf]
    %v313 = vld [vmem:[#allocation23 + $0x4] sm:$0xf]
    %v314 = vld [vmem:[#allocation23 + $0x8] sm:$0xf]
    %v315 = vld [vmem:[#allocation23 + $0xc] sm:$0xf]
    %v316 = vld [vmem:[#allocation25] sm:$0x1]
    %v317 = vld [vmem:[#allocation26] sm:$0x1]
    %v318 = vld [vmem:[#allocation28] sm:$0xf]
    %v319 = vld [vmem:[#allocation28 + $0x4] sm:$0xf]
    %v320 = vld [vmem:[#allocation28 + $0x8] sm:$0xf]
    %v321 = vld [vmem:[#allocation28 + $0xc] sm:$0xf]
    %v322 = vld [vmem:[#allocation29] sm:$0x1]
    %v323 = vld [vmem:[%s20] sm:$0xff]
    %v324 = vld [vmem:[%s20 + $0x8] sm:$0xff]
    %v325 = vld [vmem:[%s20 + $0x10] sm:$0xff]
    %v326 = vld [vmem:[%s20 + $0x18] sm:$0xff]
    %v327 = vld [vmem:[%s21] sm:$0x1]
    %v329 = vlaneseq
    %v330 = vshrl.u32 %v329, 7
    %v331 = vsub.s32 0, %v330
    %v332 = vrot.slane %v287, %v331
    %v336 = vunpack.c.l.b16 %v276
    %v337 = vunpack.c.l.b16 %v277
    %v338 = vpack.c.b16 %v336, %v336
    %v339 = vpack.c.b16 %v337, %v337
    %v340 = vunpack.c.l.b16 %v338
    %v341 = vunpack.c.l.b16 %v339
    %v342 = vrot.slane %v341, 7
    %vm343 = vcmask 1041409
    %v344 = vsel %vm343, %v342, %v340
    %v345 = vpack.c.b16 %v344, %v344
    %v350 = vunpack.c.l.b16 %v279
    %v351 = vunpack.c.l.b16 %v280
    %v352 = vunpack.c.l.b16 %v281
    %v353 = vunpack.c.l.b16 %v282
    %v354 = vpack.c.b16 %v351, %v350
    %v355 = vpack.c.b16 %v353, %v352
    %vm358 = vcmask 261120
    %v360 = vsel %vm358, %v345, 0
    %362 = vmatprep.subr.bf16.mxu0 0
    %363 = vmatpush1.bf16.msra.mxu0 0
    %364 = vmatprep.subr.bf16.mxu0 0
    %365 = vmatpush1.bf16.msra.mxu0 0
    %366 = vmatprep.subr.bf16.mxu0 0
    %367 = vmatpush1.bf16.msra.mxu0 0
    %368 = vmatprep.subr.bf16.mxu0 0
    %369 = vmatpush1.bf16.msra.mxu0 0
    %370 = vmatprep.subr.bf16.mxu0 0
    %371 = vmatpush1.bf16.msra.mxu0 0
    %372 = vmatprep.subr.bf16.mxu0 0
    %373 = vmatpush1.bf16.msra.mxu0 0
    %374 = vmatprep.subr.bf16.mxu0 0
    %375 = vmatpush1.bf16.msra.mxu0 %v355
    %376 = vmatprep.subr.bf16.mxu0 0
    %377 = vmatpush1.bf16.msra.mxu0 %v354
    %378 = vmatprep.subr.bf16.mxu0 0
    %379 = vmatpush2.bf16.msra.mxu0 0
    %380 = vmatprep.subr.bf16.mxu0 0
    %381 = vmatpush2.bf16.msra.mxu0 0
    %382 = vmatprep.subr.bf16.mxu0 0
    %383 = vmatpush2.bf16.msra.mxu0 0
    %384 = vmatprep.subr.bf16.mxu0 0
    %385 = vmatpush2.bf16.msra.mxu0 0
    %386 = vmatprep.subr.bf16.mxu0 0
    %387 = vmatpush2.bf16.msra.mxu0 0
    %388 = vmatprep.subr.bf16.mxu0 0
    %389 = vmatpush2.bf16.msra.mxu0 0
    %390 = vmatprep.subr.bf16.mxu0 0
    %391 = vmatpush2.bf16.msra.mxu0 0
    %392 = vmatprep.subr.bf16.mxu0 0
    %393 = vmatpush2.bf16.msra.mxu0 0
    %394 = vmatprep.mubr.bf16.mxu0 0
    %395 = vmatmul.mubr.bf16.gmra.mxu0 %v360
    %v396 = vpop.f32.mrf.mxu0
    %v397 = vadd.f32 %v332, %v396
    %v398 = vpop.f32.mrf.mxu0
    %v399 = vpop.f32.mrf.mxu0
    %v400 = vpop.f32.mrf.mxu0
    %401 = vdwg.mxu0
    %v406 = vunpack.c.l.b16 %v283
    %v407 = vunpack.c.l.b16 %v284
    %v408 = vunpack.c.l.b16 %v285
    %v409 = vunpack.c.l.b16 %v286
    %v410 = vpack.c.b16 %v407, %v406
    %v411 = vpack.c.b16 %v409, %v408
    %v415 = vsel %vm358, 0, 0
    %417 = vmatprep.subr.bf16.mxu0 0
    %418 = vmatpush1.bf16.msra.mxu0 0
    %419 = vmatprep.subr.bf16.mxu0 0
    %420 = vmatpush1.bf16.msra.mxu0 0
    %421 = vmatprep.subr.bf16.mxu0 0
    %422 = vmatpush1.bf16.msra.mxu0 0
    %423 = vmatprep.subr.bf16.mxu0 0
    %424 = vmatpush1.bf16.msra.mxu0 0
    %425 = vmatprep.subr.bf16.mxu0 0
    %426 = vmatpush1.bf16.msra.mxu0 0
    %427 = vmatprep.subr.bf16.mxu0 0
    %428 = vmatpush1.bf16.msra.mxu0 0
    %429 = vmatprep.subr.bf16.mxu0 0
    %430 = vmatpush1.bf16.msra.mxu0 %v411
    %431 = vmatprep.subr.bf16.mxu0 0
    %432 = vmatpush1.bf16.msra.mxu0 %v410
    %433 = vmatprep.subr.bf16.mxu0 0
    %434 = vmatpush2.bf16.msra.mxu0 0
    %435 = vmatprep.subr.bf16.mxu0 0
    %436 = vmatpush2.bf16.msra.mxu0 0
    %437 = vmatprep.subr.bf16.mxu0 0
    %438 = vmatpush2.bf16.msra.mxu0 0
    %439 = vmatprep.subr.bf16.mxu0 0
    %440 = vmatpush2.bf16.msra.mxu0 0
    %441 = vmatprep.subr.bf16.mxu0 0
    %442 = vmatpush2.bf16.msra.mxu0 0
    %443 = vmatprep.subr.bf16.mxu0 0
    %444 = vmatpush2.bf16.msra.mxu0 0
    %445 = vmatprep.subr.bf16.mxu0 0
    %446 = vmatpush2.bf16.msra.mxu0 0
    %447 = vmatprep.subr.bf16.mxu0 0
    %448 = vmatpush2.bf16.msra.mxu0 0
    %449 = vmatprep.mubr.bf16.mxu0 0
    %450 = vmatmul.mubr.bf16.gmra.mxu0 %v415
    %v451 = vpop.f32.mrf.mxu0
    %v452 = vadd.f32 0.0, %v451
    %v453 = vpop.f32.mrf.mxu0
    %v454 = vpop.f32.mrf.mxu0
    %v455 = vpop.f32.mrf.mxu0
    %456 = vdwg.mxu0
    %v457 = vadd.f32 %v397, %v452
    %v458 = vxor.u32 %v457, 2147483648
    %v459 = vmul.f32 %v458, 1.442695
    %v460 = vpow.pop %v459
    %v461 = vadd.f32 %v460, 1.0
    %v462 = vrcp.pop %v461
    %v463 = vmul.f32 1.0, %v462
    %v465 = vlaneseq
    %v466 = vshrl.u32 %v465, 7
    %v467 = vsub.s32 0, %v466
    %v468 = vrot.slane %v288, %v467
    %469 = vrot.lane.b32.xlu0 %v468, 64
    %v470 = vpop.permute.xlu0 %469
    %v472 = vadd.f32 %v452, %v470
    %474 = vrot.lane.b32.xlu0 %v472, 64
    %v475 = vpop.permute.xlu0 %474
    %v477 = vmul.f32 %v463, %v475
    %479 = vrot.lane.b32.xlu0 %v477, 64
    %v480 = vpop.permute.xlu0 %479
    %v482 = vadd.f32 %v397, %v480
    %v483 = vtanh.pop %v482
    %v484 = vsub.f32 1.0, %v463
    %486 = vrot.lane.b32.xlu0 %v483, 96
    %v487 = vpop.permute.xlu0 %486
    %v489 = vmul.f32 %v484, %v487
    %v490 = vmul.f32 %v463, 0.0
    %v491 = vadd.f32 %v489, %v490
    %vm492 = vcmp.gt.s32.totalorder %v278, 0
    %v493 = vsel %vm492, 1, 0
    %v494 = vcvt.s32.f32 %v493
    %496 = vset.pattern.permute.xlu0 0
    %497 = vperm.xlu0 %496, %v494
    %v498 = vpop.permute.xlu0 %497
    %v500 = vmul.f32 %v498, %v491
    %v501 = vsub.f32 1.0, %v494
    %503 = vset.pattern.permute.xlu0 0
    %504 = vperm.xlu0 %503, %v501
    %v505 = vpop.permute.xlu0 %504
    %v507 = vmul.f32 %v505, 0.0
    %v508 = vadd.f32 %v500, %v507
    %v511 = vunpack.c.l.s4 1966171168
    %v512 = vunpack.c.0.s8 %v511
    %v513 = vlaneseq
    %v514 = vshrl.u32 %v513, 7
    %v515 = vsub.s32 %v512, %v514
    %v516 = vrot.slane %v500, %v515
    %v517 = vcombine.high %v516, %v516
    %v519 = vunpack.c.l.s4 1966171168
    %v520 = vunpack.c.0.s8 %v519
    %v521 = vlaneseq
    %v522 = vshrl.u32 %v521, 7
    %v523 = vsub.s32 %v520, %v522
    %v524 = vrot.slane %v516, %v523
    %v526 = vunpack.c.l.s4 1966171168
    %v527 = vunpack.c.0.s8 %v526
    %v528 = vlaneseq
    %v529 = vshrl.u32 %v528, 7
    %v530 = vsub.s32 %v527, %v529
    %v531 = vrot.slane %v517, %v530
    %v532 = vlaneseq
    %v533 = vshrl.u32 %v532, 7
    %v534 = vsub.s32 0, %v533
    %v535 = vrot.slane %v524, %v534
    %v536 = vlaneseq
    %v537 = vshrl.u32 %v536, 7
    %v538 = vsub.s32 0, %v537
    %v539 = vrot.slane %v531, %v538
    %540 = vrot.lane.b32.xlu0 %v535, 96
    %v541 = vpop.permute.xlu0 %540
    %542 = vrot.lane.b32.xlu0 %v539, 96
    %v543 = vpop.permute.xlu0 %542
    %vm546 = vcmask 253952
    %547 = vst.msk [vmem:[#allocation2] sm:$0x1] %vm546, %v541
    %548 = vst.msk [vmem:[#allocation2 + $0x8] sm:$0x1] %vm546, %v543
    %v549 = vpack.c.bf16 %v500, %v500
    %v551 = vlaneseq
    %v552 = vshrl.u32 %v551, 7
    %v553 = vsub.s32 0, %v552
    %v554 = vrot.slane %v296, %v553
    %557 = vrot.lane.b32.xlu0 %v549, 96
    %v558 = vpop.permute.xlu0 %557
    %v563 = vunpack.c.l.b16 %v292
    %v564 = vunpack.c.l.b16 %v293
    %v565 = vunpack.c.l.b16 %v294
    %v566 = vunpack.c.l.b16 %v295
    %v567 = vpack.c.b16 %v564, %v563
    %v568 = vpack.c.b16 %v566, %v565
    %v572 = vsel %vm358, %v558, 0
    %574 = vmatprep.subr.bf16.mxu0 0
    %575 = vmatpush1.bf16.msra.mxu0 0
    %576 = vmatprep.subr.bf16.mxu0 0
    %577 = vmatpush1.bf16.msra.mxu0 0
    %578 = vmatprep.subr.bf16.mxu0 0
    %579 = vmatpush1.bf16.msra.mxu0 0
    %580 = vmatprep.subr.bf16.mxu0 0
    %581 = vmatpush1.bf16.msra.mxu0 0
    %582 = vmatprep.subr.bf16.mxu0 0
    %583 = vmatpush1.bf16.msra.mxu0 0
    %584 = vmatprep.subr.bf16.mxu0 0
    %585 = vmatpush1.bf16.msra.mxu0 0
    %586 = vmatprep.subr.bf16.mxu0 0
    %587 = vmatpush1.bf16.msra.mxu0 %v568
    %588 = vmatprep.subr.bf16.mxu0 0
    %589 = vmatpush1.bf16.msra.mxu0 %v567
    %590 = vmatprep.subr.bf16.mxu0 0
    %591 = vmatpush2.bf16.msra.mxu0 0
    %592 = vmatprep.subr.bf16.mxu0 0
    %593 = vmatpush2.bf16.msra.mxu0 0
    %594 = vmatprep.subr.bf16.mxu0 0
    %595 = vmatpush2.bf16.msra.mxu0 0
    %596 = vmatprep.subr.bf16.mxu0 0
    %597 = vmatpush2.bf16.msra.mxu0 0
    %598 = vmatprep.subr.bf16.mxu0 0
    %599 = vmatpush2.bf16.msra.mxu0 0
    %600 = vmatprep.subr.bf16.mxu0 0
    %601 = vmatpush2.bf16.msra.mxu0 0
    %602 = vmatprep.subr.bf16.mxu0 0
    %603 = vmatpush2.bf16.msra.mxu0 0
    %604 = vmatprep.subr.bf16.mxu0 0
    %605 = vmatpush2.bf16.msra.mxu0 0
    %606 = vmatprep.mubr.bf16.mxu0 0
    %607 = vmatmul.mubr.bf16.gmra.mxu0 %v572
    %v608 = vpop.f32.mrf.mxu0
    %v609 = vadd.f32 %v554, %v608
    %v610 = vpop.f32.mrf.mxu0
    %v611 = vpop.f32.mrf.mxu0
    %v612 = vpop.f32.mrf.mxu0
    %613 = vdwg.mxu0
    %v616 = vunpack.c.l.s4 1966171168
    %v617 = vunpack.c.0.s8 %v616
    %v618 = vlaneseq
    %v619 = vshrl.u32 %v618, 7
    %v620 = vsub.s32 %v617, %v619
    %v621 = vrot.slane %v609, %v620
    %v622 = vcombine.high %v621, %v621
    %v624 = vunpack.c.l.s4 1966171168
    %v625 = vunpack.c.0.s8 %v624
    %v626 = vlaneseq
    %v627 = vshrl.u32 %v626, 7
    %v628 = vsub.s32 %v625, %v627
    %v629 = vrot.slane %v621, %v628
    %v631 = vunpack.c.l.s4 1966171168
    %v632 = vunpack.c.0.s8 %v631
    %v633 = vlaneseq
    %v634 = vshrl.u32 %v633, 7
    %v635 = vsub.s32 %v632, %v634
    %v636 = vrot.slane %v622, %v635
    %639 = vst.msk [vmem:[#allocation3] sm:$0x1] %vm546, %v629
    %640 = vst.msk [vmem:[#allocation3 + $0x8] sm:$0x1] %vm546, %v636
    %v641 = vrot.slane %v340, 1
    %v642 = vsel %vm343, %v341, %v641
    %v643 = vpack.c.b16 %v642, %v642
    %v645 = vsel %vm358, %v643, 0
    %647 = vmatprep.subr.bf16.mxu0 0
    %648 = vmatpush1.bf16.msra.mxu0 0
    %649 = vmatprep.subr.bf16.mxu0 0
    %650 = vmatpush1.bf16.msra.mxu0 0
    %651 = vmatprep.subr.bf16.mxu0 0
    %652 = vmatpush1.bf16.msra.mxu0 0
    %653 = vmatprep.subr.bf16.mxu0 0
    %654 = vmatpush1.bf16.msra.mxu0 0
    %655 = vmatprep.subr.bf16.mxu0 0
    %656 = vmatpush1.bf16.msra.mxu0 0
    %657 = vmatprep.subr.bf16.mxu0 0
    %658 = vmatpush1.bf16.msra.mxu0 0
    %659 = vmatprep.subr.bf16.mxu0 0
    %660 = vmatpush1.bf16.msra.mxu0 %v355
    %661 = vmatprep.subr.bf16.mxu0 0
    %662 = vmatpush1.bf16.msra.mxu0 %v354
    %663 = vmatprep.subr.bf16.mxu0 0
    %664 = vmatpush2.bf16.msra.mxu0 0
    %665 = vmatprep.subr.bf16.mxu0 0
    %666 = vmatpush2.bf16.msra.mxu0 0
    %667 = vmatprep.subr.bf16.mxu0 0
    %668 = vmatpush2.bf16.msra.mxu0 0
    %669 = vmatprep.subr.bf16.mxu0 0
    %670 = vmatpush2.bf16.msra.mxu0 0
    %671 = vmatprep.subr.bf16.mxu0 0
    %672 = vmatpush2.bf16.msra.mxu0 0
    %673 = vmatprep.subr.bf16.mxu0 0
    %674 = vmatpush2.bf16.msra.mxu0 0
    %675 = vmatprep.subr.bf16.mxu0 0
    %676 = vmatpush2.bf16.msra.mxu0 0
    %677 = vmatprep.subr.bf16.mxu0 0
    %678 = vmatpush2.bf16.msra.mxu0 0
    %679 = vmatprep.mubr.bf16.mxu0 0
    %680 = vmatmul.mubr.bf16.gmra.mxu0 %v645
    %v681 = vpop.f32.mrf.mxu0
    %v682 = vadd.f32 %v332, %v681
    %v683 = vpop.f32.mrf.mxu0
    %v684 = vpop.f32.mrf.mxu0
    %v685 = vpop.f32.mrf.mxu0
    %686 = vdwg.mxu0
    %v687 = vpack.c.bf16 %v508, %v508
    %689 = vrot.lane.b32.xlu0 %v687, 96
    %v690 = vpop.permute.xlu0 %689
    %v692 = vsel %vm358, %v690, 0
    %694 = vmatprep.subr.bf16.mxu0 0
    %695 = vmatpush1.bf16.msra.mxu0 0
    %696 = vmatprep.subr.bf16.mxu0 0
    %697 = vmatpush1.bf16.msra.mxu0 0
    %698 = vmatprep.subr.bf16.mxu0 0
    %699 = vmatpush1.bf16.msra.mxu0 0
    %700 = vmatprep.subr.bf16.mxu0 0
    %701 = vmatpush1.bf16.msra.mxu0 0
    %702 = vmatprep.subr.bf16.mxu0 0
    %703 = vmatpush1.bf16.msra.mxu0 0
    %704 = vmatprep.subr.bf16.mxu0 0
    %705 = vmatpush1.bf16.msra.mxu0 0
    %706 = vmatprep.subr.bf16.mxu0 0
    %707 = vmatpush1.bf16.msra.mxu0 %v411
    %708 = vmatprep.subr.bf16.mxu0 0
    %709 = vmatpush1.bf16.msra.mxu0 %v410
    %710 = vmatprep.subr.bf16.mxu0 0
    %711 = vmatpush2.bf16.msra.mxu0 0
    %712 = vmatprep.subr.bf16.mxu0 0
    %713 = vmatpush2.bf16.msra.mxu0 0
    %714 = vmatprep.subr.bf16.mxu0 0
    %715 = vmatpush2.bf16.msra.mxu0 0
    %716 = vmatprep.subr.bf16.mxu0 0
    %717 = vmatpush2.bf16.msra.mxu0 0
    %718 = vmatprep.subr.bf16.mxu0 0
    %719 = vmatpush2.bf16.msra.mxu0 0
    %720 = vmatprep.subr.bf16.mxu0 0
    %721 = vmatpush2.bf16.msra.mxu0 0
    %722 = vmatprep.subr.bf16.mxu0 0
    %723 = vmatpush2.bf16.msra.mxu0 0
    %724 = vmatprep.subr.bf16.mxu0 0
    %725 = vmatpush2.bf16.msra.mxu0 0
    %726 = vmatprep.mubr.bf16.mxu0 0
    %727 = vmatmul.mubr.bf16.gmra.mxu0 %v692
    %v728 = vpop.f32.mrf.mxu0
    %v729 = vadd.f32 0.0, %v728
    %v730 = vpop.f32.mrf.mxu0
    %v731 = vpop.f32.mrf.mxu0
    %v732 = vpop.f32.mrf.mxu0
    %733 = vdwg.mxu0
    %v734 = vadd.f32 %v682, %v729
    %v735 = vxor.u32 %v734, 2147483648
    %v736 = vmul.f32 %v735, 1.442695
    %v737 = vpow.pop %v736
    %v738 = vadd.f32 %v737, 1.0
    %v739 = vrcp.pop %v738
    %v740 = vmul.f32 1.0, %v739
    %v741 = vadd.f32 %v729, %v470
    %743 = vrot.lane.b32.xlu0 %v741, 64
    %v744 = vpop.permute.xlu0 %743
    %v746 = vmul.f32 %v740, %v744
    %748 = vrot.lane.b32.xlu0 %v746, 64
    %v749 = vpop.permute.xlu0 %748
    %v751 = vadd.f32 %v682, %v749
    %v752 = vtanh.pop %v751
    %v753 = vsub.f32 1.0, %v740
    %755 = vrot.lane.b32.xlu0 %v752, 96
    %v756 = vpop.permute.xlu0 %755
    %v758 = vmul.f32 %v753, %v756
    %v759 = vmul.f32 %v740, %v508
    %v760 = vadd.f32 %v758, %v759
    %vm761 = vcmp.gt.s32.totalorder %v278, 1
    %v762 = vsel %vm761, 1, 0
    %v763 = vcvt.s32.f32 %v762
    %765 = vset.pattern.permute.xlu0 0
    %766 = vperm.xlu0 %765, %v763
    %v767 = vpop.permute.xlu0 %766
    %v769 = vmul.f32 %v767, %v760
    %v770 = vsub.f32 1.0, %v763
    %772 = vset.pattern.permute.xlu0 0
    %773 = vperm.xlu0 %772, %v770
    %v774 = vpop.permute.xlu0 %773
    %v776 = vmul.f32 %v774, %v508
    %v777 = vadd.f32 %v769, %v776
    %v780 = vunpack.c.l.s4 1966171168
    %v781 = vunpack.c.0.s8 %v780
    %v782 = vlaneseq
    %v783 = vshrl.u32 %v782, 7
    %v784 = vsub.s32 %v781, %v783
    %v785 = vrot.slane %v769, %v784
    %v786 = vcombine.high %v785, %v785
    %v788 = vunpack.c.l.s4 1966171168
    %v789 = vunpack.c.0.s8 %v788
    %v790 = vlaneseq
    %v791 = vshrl.u32 %v790, 7
    %v792 = vsub.s32 %v789, %v791
    %v793 = vrot.slane %v785, %v792
    %v795 = vunpack.c.l.s4 1966171168
    %v796 = vunpack.c.0.s8 %v795
    %v797 = vlaneseq
    %v798 = vshrl.u32 %v797, 7
    %v799 = vsub.s32 %v796, %v798
    %v800 = vrot.slane %v786, %v799
    %v801 = vlaneseq
    %v802 = vshrl.u32 %v801, 7
    %v803 = vsub.s32 0, %v802
    %v804 = vrot.slane %v793, %v803
    %v805 = vlaneseq
    %v806 = vshrl.u32 %v805, 7
    %v807 = vsub.s32 0, %v806
    %v808 = vrot.slane %v800, %v807
    %809 = vrot.lane.b32.xlu0 %v804, 96
    %v810 = vpop.permute.xlu0 %809
    %811 = vrot.lane.b32.xlu0 %v808, 96
    %v812 = vpop.permute.xlu0 %811
    %815 = vst.msk [vmem:[#allocation2 + $0x1] sm:$0x1] %vm546, %v810
    %816 = vst.msk [vmem:[#allocation2 + $0x9] sm:$0x1] %vm546, %v812
    %v817 = vpack.c.bf16 %v769, %v769
    %819 = vrot.lane.b32.xlu0 %v817, 96
    %v820 = vpop.permute.xlu0 %819
    %v822 = vsel %vm358, %v820, 0
    %824 = vmatprep.subr.bf16.mxu0 0
    %825 = vmatpush1.bf16.msra.mxu0 0
    %826 = vmatprep.subr.bf16.mxu0 0
    %827 = vmatpush1.bf16.msra.mxu0 0
    %828 = vmatprep.subr.bf16.mxu0 0
    %829 = vmatpush1.bf16.msra.mxu0 0
    %830 = vmatprep.subr.bf16.mxu0 0
    %831 = vmatpush1.bf16.msra.mxu0 0
    %832 = vmatprep.subr.bf16.mxu0 0
    %833 = vmatpush1.bf16.msra.mxu0 0
    %834 = vmatprep.subr.bf16.mxu0 0
    %835 = vmatpush1.bf16.msra.mxu0 0
    %836 = vmatprep.subr.bf16.mxu0 0
    %837 = vmatpush1.bf16.msra.mxu0 %v568
    %838 = vmatprep.subr.bf16.mxu0 0
    %839 = vmatpush1.bf16.msra.mxu0 %v567
    %840 = vmatprep.subr.bf16.mxu0 0
    %841 = vmatpush2.bf16.msra.mxu0 0
    %842 = vmatprep.subr.bf16.mxu0 0
    %843 = vmatpush2.bf16.msra.mxu0 0
    %844 = vmatprep.subr.bf16.mxu0 0
    %845 = vmatpush2.bf16.msra.mxu0 0
    %846 = vmatprep.subr.bf16.mxu0 0
    %847 = vmatpush2.bf16.msra.mxu0 0
    %848 = vmatprep.subr.bf16.mxu0 0
    %849 = vmatpush2.bf16.msra.mxu0 0
    %850 = vmatprep.subr.bf16.mxu0 0
    %851 = vmatpush2.bf16.msra.mxu0 0
    %852 = vmatprep.subr.bf16.mxu0 0
    %853 = vmatpush2.bf16.msra.mxu0 0
    %854 = vmatprep.subr.bf16.mxu0 0
    %855 = vmatpush2.bf16.msra.mxu0 0
    %856 = vmatprep.mubr.bf16.mxu0 0
    %857 = vmatmul.mubr.bf16.gmra.mxu0 %v822
    %v858 = vpop.f32.mrf.mxu0
    %v859 = vadd.f32 %v554, %v858
    %v860 = vpop.f32.mrf.mxu0
    %v861 = vpop.f32.mrf.mxu0
    %v862 = vpop.f32.mrf.mxu0
    %863 = vdwg.mxu0
    %v866 = vunpack.c.l.s4 1966171168
    %v867 = vunpack.c.0.s8 %v866
    %v868 = vlaneseq
    %v869 = vshrl.u32 %v868, 7
    %v870 = vsub.s32 %v867, %v869
    %v871 = vrot.slane %v859, %v870
    %v872 = vcombine.high %v871, %v871
    %v874 = vunpack.c.l.s4 1966171168
    %v875 = vunpack.c.0.s8 %v874
    %v876 = vlaneseq
    %v877 = vshrl.u32 %v876, 7
    %v878 = vsub.s32 %v875, %v877
    %v879 = vrot.slane %v871, %v878
    %v881 = vunpack.c.l.s4 1966171168
    %v882 = vunpack.c.0.s8 %v881
    %v883 = vlaneseq
    %v884 = vshrl.u32 %v883, 7
    %v885 = vsub.s32 %v882, %v884
    %v886 = vrot.slane %v872, %v885
    %889 = vst.msk [vmem:[#allocation3 + $0x1] sm:$0x1] %vm546, %v879
    %890 = vst.msk [vmem:[#allocation3 + $0x9] sm:$0x1] %vm546, %v886
    %v891 = vrot.slane %v340, 2
    %v892 = vrot.slane %v341, 1
    %v893 = vsel %vm343, %v892, %v891
    %v894 = vpack.c.b16 %v893, %v893
    %v896 = vsel %vm358, %v894, 0
    %898 = vmatprep.subr.bf16.mxu0 0
    %899 = vmatpush1.bf16.msra.mxu0 0
    %900 = vmatprep.subr.bf16.mxu0 0
    %901 = vmatpush1.bf16.msra.mxu0 0
    %902 = vmatprep.subr.bf16.mxu0 0
    %903 = vmatpush1.bf16.msra.mxu0 0
    %904 = vmatprep.subr.bf16.mxu0 0
    %905 = vmatpush1.bf16.msra.mxu0 0
    %906 = vmatprep.subr.bf16.mxu0 0
    %907 = vmatpush1.bf16.msra.mxu0 0
    %908 = vmatprep.subr.bf16.mxu0 0
    %909 = vmatpush1.bf16.msra.mxu0 0
    %910 = vmatprep.subr.bf16.mxu0 0
    %911 = vmatpush1.bf16.msra.mxu0 %v355
    %912 = vmatprep.subr.bf16.mxu0 0
    %913 = vmatpush1.bf16.msra.mxu0 %v354
    %914 = vmatprep.subr.bf16.mxu0 0
    %915 = vmatpush2.bf16.msra.mxu0 0
    %916 = vmatprep.subr.bf16.mxu0 0
    %917 = vmatpush2.bf16.msra.mxu0 0
    %918 = vmatprep.subr.bf16.mxu0 0
    %919 = vmatpush2.bf16.msra.mxu0 0
    %920 = vmatprep.subr.bf16.mxu0 0
    %921 = vmatpush2.bf16.msra.mxu0 0
    %922 = vmatprep.subr.bf16.mxu0 0
    %923 = vmatpush2.bf16.msra.mxu0 0
    %924 = vmatprep.subr.bf16.mxu0 0
    %925 = vmatpush2.bf16.msra.mxu0 0
    %926 = vmatprep.subr.bf16.mxu0 0
    %927 = vmatpush2.bf16.msra.mxu0 0
    %928 = vmatprep.subr.bf16.mxu0 0
    %929 = vmatpush2.bf16.msra.mxu0 0
    %930 = vmatprep.mubr.bf16.mxu0 0
    %931 = vmatmul.mubr.bf16.gmra.mxu0 %v896
    %v932 = vpop.f32.mrf.mxu0
    %v933 = vadd.f32 %v332, %v932
    %v934 = vpop.f32.mrf.mxu0
    %v935 = vpop.f32.mrf.mxu0
    %v936 = vpop.f32.mrf.mxu0
    %937 = vdwg.mxu0
    %v938 = vpack.c.bf16 %v777, %v777
    %940 = vrot.lane.b32.xlu0 %v938, 96
    %v941 = vpop.permute.xlu0 %940
    %v943 = vsel %vm358, %v941, 0
    %945 = vmatprep.subr.bf16.mxu0 0
    %946 = vmatpush1.bf16.msra.mxu0 0
    %947 = vmatprep.subr.bf16.mxu0 0
    %948 = vmatpush1.bf16.msra.mxu0 0
    %949 = vmatprep.subr.bf16.mxu0 0
    %950 = vmatpush1.bf16.msra.mxu0 0
    %951 = vmatprep.subr.bf16.mxu0 0
    %952 = vmatpush1.bf16.msra.mxu0 0
    %953 = vmatprep.subr.bf16.mxu0 0
    %954 = vmatpush1.bf16.msra.mxu0 0
    %955 = vmatprep.subr.bf16.mxu0 0
    %956 = vmatpush1.bf16.msra.mxu0 0
    %957 = vmatprep.subr.bf16.mxu0 0
    %958 = vmatpush1.bf16.msra.mxu0 %v411
    %959 = vmatprep.subr.bf16.mxu0 0
    %960 = vmatpush1.bf16.msra.mxu0 %v410
    %961 = vmatprep.subr.bf16.mxu0 0
    %962 = vmatpush2.bf16.msra.mxu0 0
    %963 = vmatprep.subr.bf16.mxu0 0
    %964 = vmatpush2.bf16.msra.mxu0 0
    %965 = vmatprep.subr.bf16.mxu0 0
    %966 = vmatpush2.bf16.msra.mxu0 0
    %967 = vmatprep.subr.bf16.mxu0 0
    %968 = vmatpush2.bf16.msra.mxu0 0
    %969 = vmatprep.subr.bf16.mxu0 0
    %970 = vmatpush2.bf16.msra.mxu0 0
    %971 = vmatprep.subr.bf16.mxu0 0
    %972 = vmatpush2.bf16.msra.mxu0 0
    %973 = vmatprep.subr.bf16.mxu0 0
    %974 = vmatpush2.bf16.msra.mxu0 0
    %975 = vmatprep.subr.bf16.mxu0 0
    %976 = vmatpush2.bf16.msra.mxu0 0
    %977 = vmatprep.mubr.bf16.mxu0 0
    %978 = vmatmul.mubr.bf16.gmra.mxu0 %v943
    %v979 = vpop.f32.mrf.mxu0
    %v980 = vadd.f32 0.0, %v979
    %v981 = vpop.f32.mrf.mxu0
    %v982 = vpop.f32.mrf.mxu0
    %v983 = vpop.f32.mrf.mxu0
    %984 = vdwg.mxu0
    %v985 = vadd.f32 %v933, %v980
    %v986 = vxor.u32 %v985, 2147483648
    %v987 = vmul.f32 %v986, 1.442695
    %v988 = vpow.pop %v987
    %v989 = vadd.f32 %v988, 1.0
    %v990 = vrcp.pop %v989
    %v991 = vmul.f32 1.0, %v990
    %v992 = vadd.f32 %v980, %v470
    %994 = vrot.lane.b32.xlu0 %v992, 64
    %v995 = vpop.permute.xlu0 %994
    %v997 = vmul.f32 %v991, %v995
    %999 = vrot.lane.b32.xlu0 %v997, 64
    %v1000 = vpop.permute.xlu0 %999
    %v1002 = vadd.f32 %v933, %v1000
    %v1003 = vtanh.pop %v1002
    %v1004 = vsub.f32 1.0, %v991
    %1006 = vrot.lane.b32.xlu0 %v1003, 96
    %v1007 = vpop.permute.xlu0 %1006
    %v1009 = vmul.f32 %v1004, %v1007
    %v1010 = vmul.f32 %v991, %v777
    %v1011 = vadd.f32 %v1009, %v1010
    %vm1012 = vcmp.gt.s32.totalorder %v278, 2
    %v1013 = vsel %vm1012, 1, 0
    %v1014 = vcvt.s32.f32 %v1013
    %1016 = vset.pattern.permute.xlu0 0
    %1017 = vperm.xlu0 %1016, %v1014
    %v1018 = vpop.permute.xlu0 %1017
    %v1020 = vmul.f32 %v1018, %v1011
    %v1021 = vsub.f32 1.0, %v1014
    %1023 = vset.pattern.permute.xlu0 0
    %1024 = vperm.xlu0 %1023, %v1021
    %v1025 = vpop.permute.xlu0 %1024
    %v1027 = vmul.f32 %v1025, %v777
    %v1028 = vadd.f32 %v1020, %v1027
    %v1031 = vunpack.c.l.s4 1966171168
    %v1032 = vunpack.c.0.s8 %v1031
    %v1033 = vlaneseq
    %v1034 = vshrl.u32 %v1033, 7
    %v1035 = vsub.s32 %v1032, %v1034
    %v1036 = vrot.slane %v1020, %v1035
    %v1037 = vcombine.high %v1036, %v1036
    %v1039 = vunpack.c.l.s4 1966171168
    %v1040 = vunpack.c.0.s8 %v1039
    %v1041 = vlaneseq
    %v1042 = vshrl.u32 %v1041, 7
    %v1043 = vsub.s32 %v1040, %v1042
    %v1044 = vrot.slane %v1036, %v1043
    %v1046 = vunpack.c.l.s4 1966171168
    %v1047 = vunpack.c.0.s8 %v1046
    %v1048 = vlaneseq
    %v1049 = vshrl.u32 %v1048, 7
    %v1050 = vsub.s32 %v1047, %v1049
    %v1051 = vrot.slane %v1037, %v1050
    %v1052 = vlaneseq
    %v1053 = vshrl.u32 %v1052, 7
    %v1054 = vsub.s32 0, %v1053
    %v1055 = vrot.slane %v1044, %v1054
    %v1056 = vlaneseq
    %v1057 = vshrl.u32 %v1056, 7
    %v1058 = vsub.s32 0, %v1057
    %v1059 = vrot.slane %v1051, %v1058
    %1060 = vrot.lane.b32.xlu0 %v1055, 96
    %v1061 = vpop.permute.xlu0 %1060
    %1062 = vrot.lane.b32.xlu0 %v1059, 96
    %v1063 = vpop.permute.xlu0 %1062
    %1066 = vst.msk [vmem:[#allocation2 + $0x2] sm:$0x1] %vm546, %v1061
    %1067 = vst.msk [vmem:[#allocation2 + $0xa] sm:$0x1] %vm546, %v1063
    %v1068 = vpack.c.bf16 %v1020, %v1020
    %1070 = vrot.lane.b32.xlu0 %v1068, 96
    %v1071 = vpop.permute.xlu0 %1070
    %v1073 = vsel %vm358, %v1071, 0
    %1075 = vmatprep.subr.bf16.mxu0 0
    %1076 = vmatpush1.bf16.msra.mxu0 0
    %1077 = vmatprep.subr.bf16.mxu0 0
    %1078 = vmatpush1.bf16.msra.mxu0 0
    %1079 = vmatprep.subr.bf16.mxu0 0
    %1080 = vmatpush1.bf16.msra.mxu0 0
    %1081 = vmatprep.subr.bf16.mxu0 0
    %1082 = vmatpush1.bf16.msra.mxu0 0
    %1083 = vmatprep.subr.bf16.mxu0 0
    %1084 = vmatpush1.bf16.msra.mxu0 0
    %1085 = vmatprep.subr.bf16.mxu0 0
    %1086 = vmatpush1.bf16.msra.mxu0 0
    %1087 = vmatprep.subr.bf16.mxu0 0
    %1088 = vmatpush1.bf16.msra.mxu0 %v568
    %1089 = vmatprep.subr.bf16.mxu0 0
    %1090 = vmatpush1.bf16.msra.mxu0 %v567
    %1091 = vmatprep.subr.bf16.mxu0 0
    %1092 = vmatpush2.bf16.msra.mxu0 0
    %1093 = vmatprep.subr.bf16.mxu0 0
    %1094 = vmatpush2.bf16.msra.mxu0 0
    %1095 = vmatprep.subr.bf16.mxu0 0
    %1096 = vmatpush2.bf16.msra.mxu0 0
    %1097 = vmatprep.subr.bf16.mxu0 0
    %1098 = vmatpush2.bf16.msra.mxu0 0
    %1099 = vmatprep.subr.bf16.mxu0 0
    %1100 = vmatpush2.bf16.msra.mxu0 0
    %1101 = vmatprep.subr.bf16.mxu0 0
    %1102 = vmatpush2.bf16.msra.mxu0 0
    %1103 = vmatprep.subr.bf16.mxu0 0
    %1104 = vmatpush2.bf16.msra.mxu0 0
    %1105 = vmatprep.subr.bf16.mxu0 0
    %1106 = vmatpush2.bf16.msra.mxu0 0
    %1107 = vmatprep.mubr.bf16.mxu0 0
    %1108 = vmatmul.mubr.bf16.gmra.mxu0 %v1073
    %v1109 = vpop.f32.mrf.mxu0
    %v1110 = vadd.f32 %v554, %v1109
    %v1111 = vpop.f32.mrf.mxu0
    %v1112 = vpop.f32.mrf.mxu0
    %v1113 = vpop.f32.mrf.mxu0
    %1114 = vdwg.mxu0
    %v1117 = vunpack.c.l.s4 1966171168
    %v1118 = vunpack.c.0.s8 %v1117
    %v1119 = vlaneseq
    %v1120 = vshrl.u32 %v1119, 7
    %v1121 = vsub.s32 %v1118, %v1120
    %v1122 = vrot.slane %v1110, %v1121
    %v1123 = vcombine.high %v1122, %v1122
    %v1125 = vunpack.c.l.s4 1966171168
    %v1126 = vunpack.c.0.s8 %v1125
    %v1127 = vlaneseq
    %v1128 = vshrl.u32 %v1127, 7
    %v1129 = vsub.s32 %v1126, %v1128
    %v1130 = vrot.slane %v1122, %v1129
    %v1132 = vunpack.c.l.s4 1966171168
    %v1133 = vunpack.c.0.s8 %v1132
    %v1134 = vlaneseq
    %v1135 = vshrl.u32 %v1134, 7
    %v1136 = vsub.s32 %v1133, %v1135
    %v1137 = vrot.slane %v1123, %v1136
    %1140 = vst.msk [vmem:[#allocation3 + $0x2] sm:$0x1] %vm546, %v1130
    %1141 = vst.msk [vmem:[#allocation3 + $0xa] sm:$0x1] %vm546, %v1137
    %v1142 = vrot.slane %v340, 3
    %v1143 = vrot.slane %v341, 2
    %v1144 = vsel %vm343, %v1143, %v1142
    %v1145 = vpack.c.b16 %v1144, %v1144
    %v1147 = vsel %vm358, %v1145, 0
    %1149 = vmatprep.subr.bf16.mxu0 0
    %1150 = vmatpush1.bf16.msra.mxu0 0
    %1151 = vmatprep.subr.bf16.mxu0 0
    %1152 = vmatpush1.bf16.msra.mxu0 0
    %1153 = vmatprep.subr.bf16.mxu0 0
    %1154 = vmatpush1.bf16.msra.mxu0 0
    %1155 = vmatprep.subr.bf16.mxu0 0
    %1156 = vmatpush1.bf16.msra.mxu0 0
    %1157 = vmatprep.subr.bf16.mxu0 0
    %1158 = vmatpush1.bf16.msra.mxu0 0
    %1159 = vmatprep.subr.bf16.mxu0 0
    %1160 = vmatpush1.bf16.msra.mxu0 0
    %1161 = vmatprep.subr.bf16.mxu0 0
    %1162 = vmatpush1.bf16.msra.mxu0 %v355
    %1163 = vmatprep.subr.bf16.mxu0 0
    %1164 = vmatpush1.bf16.msra.mxu0 %v354
    %1165 = vmatprep.subr.bf16.mxu0 0
    %1166 = vmatpush2.bf16.msra.mxu0 0
    %1167 = vmatprep.subr.bf16.mxu0 0
    %1168 = vmatpush2.bf16.msra.mxu0 0
    %1169 = vmatprep.subr.bf16.mxu0 0
    %1170 = vmatpush2.bf16.msra.mxu0 0
    %1171 = vmatprep.subr.bf16.mxu0 0
    %1172 = vmatpush2.bf16.msra.mxu0 0
    %1173 = vmatprep.subr.bf16.mxu0 0
    %1174 = vmatpush2.bf16.msra.mxu0 0
    %1175 = vmatprep.subr.bf16.mxu0 0
    %1176 = vmatpush2.bf16.msra.mxu0 0
    %1177 = vmatprep.subr.bf16.mxu0 0
    %1178 = vmatpush2.bf16.msra.mxu0 0
    %1179 = vmatprep.subr.bf16.mxu0 0
    %1180 = vmatpush2.bf16.msra.mxu0 0
    %1181 = vmatprep.mubr.bf16.mxu0 0
    %1182 = vmatmul.mubr.bf16.gmra.mxu0 %v1147
    %v1183 = vpop.f32.mrf.mxu0
    %v1184 = vadd.f32 %v332, %v1183
    %v1185 = vpop.f32.mrf.mxu0
    %v1186 = vpop.f32.mrf.mxu0
    %v1187 = vpop.f32.mrf.mxu0
    %1188 = vdwg.mxu0
    %v1189 = vpack.c.bf16 %v1028, %v1028
    %1191 = vrot.lane.b32.xlu0 %v1189, 96
    %v1192 = vpop.permute.xlu0 %1191
    %v1194 = vsel %vm358, %v1192, 0
    %1196 = vmatprep.subr.bf16.mxu0 0
    %1197 = vmatpush1.bf16.msra.mxu0 0
    %1198 = vmatprep.subr.bf16.mxu0 0
    %1199 = vmatpush1.bf16.msra.mxu0 0
    %1200 = vmatprep.subr.bf16.mxu0 0
    %1201 = vmatpush1.bf16.msra.mxu0 0
    %1202 = vmatprep.subr.bf16.mxu0 0
    %1203 = vmatpush1.bf16.msra.mxu0 0
    %1204 = vmatprep.subr.bf16.mxu0 0
    %1205 = vmatpush1.bf16.msra.mxu0 0
    %1206 = vmatprep.subr.bf16.mxu0 0
    %1207 = vmatpush1.bf16.msra.mxu0 0
    %1208 = vmatprep.subr.bf16.mxu0 0
    %1209 = vmatpush1.bf16.msra.mxu0 %v411
    %1210 = vmatprep.subr.bf16.mxu0 0
    %1211 = vmatpush1.bf16.msra.mxu0 %v410
    %1212 = vmatprep.subr.bf16.mxu0 0
    %1213 = vmatpush2.bf16.msra.mxu0 0
    %1214 = vmatprep.subr.bf16.mxu0 0
    %1215 = vmatpush2.bf16.msra.mxu0 0
    %1216 = vmatprep.subr.bf16.mxu0 0
    %1217 = vmatpush2.bf16.msra.mxu0 0
    %1218 = vmatprep.subr.bf16.mxu0 0
    %1219 = vmatpush2.bf16.msra.mxu0 0
    %1220 = vmatprep.subr.bf16.mxu0 0
    %1221 = vmatpush2.bf16.msra.mxu0 0
    %1222 = vmatprep.subr.bf16.mxu0 0
    %1223 = vmatpush2.bf16.msra.mxu0 0
    %1224 = vmatprep.subr.bf16.mxu0 0
    %1225 = vmatpush2.bf16.msra.mxu0 0
    %1226 = vmatprep.subr.bf16.mxu0 0
    %1227 = vmatpush2.bf16.msra.mxu0 0
    %1228 = vmatprep.mubr.bf16.mxu0 0
    %1229 = vmatmul.mubr.bf16.gmra.mxu0 %v1194
    %v1230 = vpop.f32.mrf.mxu0
    %v1231 = vadd.f32 0.0, %v1230
    %v1232 = vpop.f32.mrf.mxu0
    %v1233 = vpop.f32.mrf.mxu0
    %v1234 = vpop.f32.mrf.mxu0
    %1235 = vdwg.mxu0
    %v1236 = vadd.f32 %v1184, %v1231
    %v1237 = vxor.u32 %v1236, 2147483648
    %v1238 = vmul.f32 %v1237, 1.442695
    %v1239 = vpow.pop %v1238
    %v1240 = vadd.f32 %v1239, 1.0
    %v1241 = vrcp.pop %v1240
    %v1242 = vmul.f32 1.0, %v1241
    %v1243 = vadd.f32 %v1231, %v470
    %1245 = vrot.lane.b32.xlu0 %v1243, 64
    %v1246 = vpop.permute.xlu0 %1245
    %v1248 = vmul.f32 %v1242, %v1246
    %1250 = vrot.lane.b32.xlu0 %v1248, 64
    %v1251 = vpop.permute.xlu0 %1250
    %v1253 = vadd.f32 %v1184, %v1251
    %v1254 = vtanh.pop %v1253
    %v1255 = vsub.f32 1.0, %v1242
    %1257 = vrot.lane.b32.xlu0 %v1254, 96
    %v1258 = vpop.permute.xlu0 %1257
    %v1260 = vmul.f32 %v1255, %v1258
    %v1261 = vmul.f32 %v1242, %v1028
    %v1262 = vadd.f32 %v1260, %v1261
    %vm1263 = vcmp.gt.s32.totalorder %v278, 3
    %v1264 = vsel %vm1263, 1, 0
    %v1265 = vcvt.s32.f32 %v1264
    %1267 = vset.pattern.permute.xlu0 0
    %1268 = vperm.xlu0 %1267, %v1265
    %v1269 = vpop.permute.xlu0 %1268
    %v1271 = vmul.f32 %v1269, %v1262
    %v1272 = vsub.f32 1.0, %v1265
    %1274 = vset.pattern.permute.xlu0 0
    %1275 = vperm.xlu0 %1274, %v1272
    %v1276 = vpop.permute.xlu0 %1275
    %v1278 = vmul.f32 %v1276, %v1028
    %v1279 = vadd.f32 %v1271, %v1278
    %v1282 = vunpack.c.l.s4 1966171168
    %v1283 = vunpack.c.0.s8 %v1282
    %v1284 = vlaneseq
    %v1285 = vshrl.u32 %v1284, 7
    %v1286 = vsub.s32 %v1283, %v1285
    %v1287 = vrot.slane %v1271, %v1286
    %v1288 = vcombine.high %v1287, %v1287
    %v1290 = vunpack.c.l.s4 1966171168
    %v1291 = vunpack.c.0.s8 %v1290
    %v1292 = vlaneseq
    %v1293 = vshrl.u32 %v1292, 7
    %v1294 = vsub.s32 %v1291, %v1293
    %v1295 = vrot.slane %v1287, %v1294
    %v1297 = vunpack.c.l.s4 1966171168
    %v1298 = vunpack.c.0.s8 %v1297
    %v1299 = vlaneseq
    %v1300 = vshrl.u32 %v1299, 7
    %v1301 = vsub.s32 %v1298, %v1300
    %v1302 = vrot.slane %v1288, %v1301
    %v1303 = vlaneseq
    %v1304 = vshrl.u32 %v1303, 7
    %v1305 = vsub.s32 0, %v1304
    %v1306 = vrot.slane %v1295, %v1305
    %v1307 = vlaneseq
    %v1308 = vshrl.u32 %v1307, 7
    %v1309 = vsub.s32 0, %v1308
    %v1310 = vrot.slane %v1302, %v1309
    %1311 = vrot.lane.b32.xlu0 %v1306, 96
    %v1312 = vpop.permute.xlu0 %1311
    %1313 = vrot.lane.b32.xlu0 %v1310, 96
    %v1314 = vpop.permute.xlu0 %1313
    %1317 = vst.msk [vmem:[#allocation2 + $0x3] sm:$0x1] %vm546, %v1312
    %1318 = vst.msk [vmem:[#allocation2 + $0xb] sm:$0x1] %vm546, %v1314
    %v1319 = vpack.c.bf16 %v1271, %v1271
    %1321 = vrot.lane.b32.xlu0 %v1319, 96
    %v1322 = vpop.permute.xlu0 %1321
    %v1324 = vsel %vm358, %v1322, 0
    %1326 = vmatprep.subr.bf16.mxu0 0
    %1327 = vmatpush1.bf16.msra.mxu0 0
    %1328 = vmatprep.subr.bf16.mxu0 0
    %1329 = vmatpush1.bf16.msra.mxu0 0
    %1330 = vmatprep.subr.bf16.mxu0 0
    %1331 = vmatpush1.bf16.msra.mxu0 0
    %1332 = vmatprep.subr.bf16.mxu0 0
    %1333 = vmatpush1.bf16.msra.mxu0 0
    %1334 = vmatprep.subr.bf16.mxu0 0
    %1335 = vmatpush1.bf16.msra.mxu0 0
    %1336 = vmatprep.subr.bf16.mxu0 0
    %1337 = vmatpush1.bf16.msra.mxu0 0
    %1338 = vmatprep.subr.bf16.mxu0 0
    %1339 = vmatpush1.bf16.msra.mxu0 %v568
    %1340 = vmatprep.subr.bf16.mxu0 0
    %1341 = vmatpush1.bf16.msra.mxu0 %v567
    %1342 = vmatprep.subr.bf16.mxu0 0
    %1343 = vmatpush2.bf16.msra.mxu0 0
    %1344 = vmatprep.subr.bf16.mxu0 0
    %1345 = vmatpush2.bf16.msra.mxu0 0
    %1346 = vmatprep.subr.bf16.mxu0 0
    %1347 = vmatpush2.bf16.msra.mxu0 0
    %1348 = vmatprep.subr.bf16.mxu0 0
    %1349 = vmatpush2.bf16.msra.mxu0 0
    %1350 = vmatprep.subr.bf16.mxu0 0
    %1351 = vmatpush2.bf16.msra.mxu0 0
    %1352 = vmatprep.subr.bf16.mxu0 0
    %1353 = vmatpush2.bf16.msra.mxu0 0
    %1354 = vmatprep.subr.bf16.mxu0 0
    %1355 = vmatpush2.bf16.msra.mxu0 0
    %1356 = vmatprep.subr.bf16.mxu0 0
    %1357 = vmatpush2.bf16.msra.mxu0 0
    %1358 = vmatprep.mubr.bf16.mxu0 0
    %1359 = vmatmul.mubr.bf16.gmra.mxu0 %v1324
    %v1360 = vpop.f32.mrf.mxu0
    %v1361 = vadd.f32 %v554, %v1360
    %v1362 = vpop.f32.mrf.mxu0
    %v1363 = vpop.f32.mrf.mxu0
    %v1364 = vpop.f32.mrf.mxu0
    %1365 = vdwg.mxu0
    %v1368 = vunpack.c.l.s4 1966171168
    %v1369 = vunpack.c.0.s8 %v1368
    %v1370 = vlaneseq
    %v1371 = vshrl.u32 %v1370, 7
    %v1372 = vsub.s32 %v1369, %v1371
    %v1373 = vrot.slane %v1361, %v1372
    %v1374 = vcombine.high %v1373, %v1373
    %v1376 = vunpack.c.l.s4 1966171168
    %v1377 = vunpack.c.0.s8 %v1376
    %v1378 = vlaneseq
    %v1379 = vshrl.u32 %v1378, 7
    %v1380 = vsub.s32 %v1377, %v1379
    %v1381 = vrot.slane %v1373, %v1380
    %v1383 = vunpack.c.l.s4 1966171168
    %v1384 = vunpack.c.0.s8 %v1383
    %v1385 = vlaneseq
    %v1386 = vshrl.u32 %v1385, 7
    %v1387 = vsub.s32 %v1384, %v1386
    %v1388 = vrot.slane %v1374, %v1387
    %1391 = vst.msk [vmem:[#allocation3 + $0x3] sm:$0x1] %vm546, %v1381
    %1392 = vst.msk [vmem:[#allocation3 + $0xb] sm:$0x1] %vm546, %v1388
    %v1393 = vrot.slane %v340, 4
    %v1394 = vrot.slane %v341, 3
    %v1395 = vsel %vm343, %v1394, %v1393
    %v1396 = vpack.c.b16 %v1395, %v1395
    %v1398 = vsel %vm358, %v1396, 0
    %1400 = vmatprep.subr.bf16.mxu0 0
    %1401 = vmatpush1.bf16.msra.mxu0 0
    %1402 = vmatprep.subr.bf16.mxu0 0
    %1403 = vmatpush1.bf16.msra.mxu0 0
    %1404 = vmatprep.subr.bf16.mxu0 0
    %1405 = vmatpush1.bf16.msra.mxu0 0
    %1406 = vmatprep.subr.bf16.mxu0 0
    %1407 = vmatpush1.bf16.msra.mxu0 0
    %1408 = vmatprep.subr.bf16.mxu0 0
    %1409 = vmatpush1.bf16.msra.mxu0 0
    %1410 = vmatprep.subr.bf16.mxu0 0
    %1411 = vmatpush1.bf16.msra.mxu0 0
    %1412 = vmatprep.subr.bf16.mxu0 0
    %1413 = vmatpush1.bf16.msra.mxu0 %v355
    %1414 = vmatprep.subr.bf16.mxu0 0
    %1415 = vmatpush1.bf16.msra.mxu0 %v354
    %1416 = vmatprep.subr.bf16.mxu0 0
    %1417 = vmatpush2.bf16.msra.mxu0 0
    %1418 = vmatprep.subr.bf16.mxu0 0
    %1419 = vmatpush2.bf16.msra.mxu0 0
    %1420 = vmatprep.subr.bf16.mxu0 0
    %1421 = vmatpush2.bf16.msra.mxu0 0
    %1422 = vmatprep.subr.bf16.mxu0 0
    %1423 = vmatpush2.bf16.msra.mxu0 0
    %1424 = vmatprep.subr.bf16.mxu0 0
    %1425 = vmatpush2.bf16.msra.mxu0 0
    %1426 = vmatprep.subr.bf16.mxu0 0
    %1427 = vmatpush2.bf16.msra.mxu0 0
    %1428 = vmatprep.subr.bf16.mxu0 0
    %1429 = vmatpush2.bf16.msra.mxu0 0
    %1430 = vmatprep.subr.bf16.mxu0 0
    %1431 = vmatpush2.bf16.msra.mxu0 0
    %1432 = vmatprep.mubr.bf16.mxu0 0
    %1433 = vmatmul.mubr.bf16.gmra.mxu0 %v1398
    %v1434 = vpop.f32.mrf.mxu0
    %v1435 = vadd.f32 %v332, %v1434
    %v1436 = vpop.f32.mrf.mxu0
    %v1437 = vpop.f32.mrf.mxu0
    %v1438 = vpop.f32.mrf.mxu0
    %1439 = vdwg.mxu0
    %v1440 = vpack.c.bf16 %v1279, %v1279
    %1442 = vrot.lane.b32.xlu0 %v1440, 96
    %v1443 = vpop.permute.xlu0 %1442
    %v1445 = vsel %vm358, %v1443, 0
    %1447 = vmatprep.subr.bf16.mxu0 0
    %1448 = vmatpush1.bf16.msra.mxu0 0
    %1449 = vmatprep.subr.bf16.mxu0 0
    %1450 = vmatpush1.bf16.msra.mxu0 0
    %1451 = vmatprep.subr.bf16.mxu0 0
    %1452 = vmatpush1.bf16.msra.mxu0 0
    %1453 = vmatprep.subr.bf16.mxu0 0
    %1454 = vmatpush1.bf16.msra.mxu0 0
    %1455 = vmatprep.subr.bf16.mxu0 0
    %1456 = vmatpush1.bf16.msra.mxu0 0
    %1457 = vmatprep.subr.bf16.mxu0 0
    %1458 = vmatpush1.bf16.msra.mxu0 0
    %1459 = vmatprep.subr.bf16.mxu0 0
    %1460 = vmatpush1.bf16.msra.mxu0 %v411
    %1461 = vmatprep.subr.bf16.mxu0 0
    %1462 = vmatpush1.bf16.msra.mxu0 %v410
    %1463 = vmatprep.subr.bf16.mxu0 0
    %1464 = vmatpush2.bf16.msra.mxu0 0
    %1465 = vmatprep.subr.bf16.mxu0 0
    %1466 = vmatpush2.bf16.msra.mxu0 0
    %1467 = vmatprep.subr.bf16.mxu0 0
    %1468 = vmatpush2.bf16.msra.mxu0 0
    %1469 = vmatprep.subr.bf16.mxu0 0
    %1470 = vmatpush2.bf16.msra.mxu0 0
    %1471 = vmatprep.subr.bf16.mxu0 0
    %1472 = vmatpush2.bf16.msra.mxu0 0
    %1473 = vmatprep.subr.bf16.mxu0 0
    %1474 = vmatpush2.bf16.msra.mxu0 0
    %1475 = vmatprep.subr.bf16.mxu0 0
    %1476 = vmatpush2.bf16.msra.mxu0 0
    %1477 = vmatprep.subr.bf16.mxu0 0
    %1478 = vmatpush2.bf16.msra.mxu0 0
    %1479 = vmatprep.mubr.bf16.mxu0 0
    %1480 = vmatmul.mubr.bf16.gmra.mxu0 %v1445
    %v1481 = vpop.f32.mrf.mxu0
    %v1482 = vadd.f32 0.0, %v1481
    %v1483 = vpop.f32.mrf.mxu0
    %v1484 = vpop.f32.mrf.mxu0
    %v1485 = vpop.f32.mrf.mxu0
    %1486 = vdwg.mxu0
    %v1487 = vadd.f32 %v1435, %v1482
    %v1488 = vxor.u32 %v1487, 2147483648
    %v1489 = vmul.f32 %v1488, 1.442695
    %v1490 = vpow.pop %v1489
    %v1491 = vadd.f32 %v1490, 1.0
    %v1492 = vrcp.pop %v1491
    %v1493 = vmul.f32 1.0, %v1492
    %v1494 = vadd.f32 %v1482, %v470
    %1496 = vrot.lane.b32.xlu0 %v1494, 64
    %v1497 = vpop.permute.xlu0 %1496
    %v1499 = vmul.f32 %v1493, %v1497
    %1501 = vrot.lane.b32.xlu0 %v1499, 64
    %v1502 = vpop.permute.xlu0 %1501
    %v1504 = vadd.f32 %v1435, %v1502
    %v1505 = vtanh.pop %v1504
    %v1506 = vsub.f32 1.0, %v1493
    %1508 = vrot.lane.b32.xlu0 %v1505, 96
    %v1509 = vpop.permute.xlu0 %1508
    %v1511 = vmul.f32 %v1506, %v1509
    %v1512 = vmul.f32 %v1493, %v1279
    %v1513 = vadd.f32 %v1511, %v1512
    %vm1514 = vcmp.gt.s32.totalorder %v278, 4
    %v1515 = vsel %vm1514, 1, 0
    %v1516 = vcvt.s32.f32 %v1515
    %1518 = vset.pattern.permute.xlu0 0
    %1519 = vperm.xlu0 %1518, %v1516
    %v1520 = vpop.permute.xlu0 %1519
    %v1522 = vmul.f32 %v1520, %v1513
    %v1523 = vsub.f32 1.0, %v1516
    %1525 = vset.pattern.permute.xlu0 0
    %1526 = vperm.xlu0 %1525, %v1523
    %v1527 = vpop.permute.xlu0 %1526
    %v1529 = vmul.f32 %v1527, %v1279
    %v1530 = vadd.f32 %v1522, %v1529
    %v1533 = vunpack.c.l.s4 1966171168
    %v1534 = vunpack.c.0.s8 %v1533
    %v1535 = vlaneseq
    %v1536 = vshrl.u32 %v1535, 7
    %v1537 = vsub.s32 %v1534, %v1536
    %v1538 = vrot.slane %v1522, %v1537
    %v1539 = vcombine.high %v1538, %v1538
    %v1541 = vunpack.c.l.s4 1966171168
    %v1542 = vunpack.c.0.s8 %v1541
    %v1543 = vlaneseq
    %v1544 = vshrl.u32 %v1543, 7
    %v1545 = vsub.s32 %v1542, %v1544
    %v1546 = vrot.slane %v1538, %v1545
    %v1548 = vunpack.c.l.s4 1966171168
    %v1549 = vunpack.c.0.s8 %v1548
    %v1550 = vlaneseq
    %v1551 = vshrl.u32 %v1550, 7
    %v1552 = vsub.s32 %v1549, %v1551
    %v1553 = vrot.slane %v1539, %v1552
    %v1554 = vlaneseq
    %v1555 = vshrl.u32 %v1554, 7
    %v1556 = vsub.s32 0, %v1555
    %v1557 = vrot.slane %v1546, %v1556
    %v1558 = vlaneseq
    %v1559 = vshrl.u32 %v1558, 7
    %v1560 = vsub.s32 0, %v1559
    %v1561 = vrot.slane %v1553, %v1560
    %1562 = vrot.lane.b32.xlu0 %v1557, 96
    %v1563 = vpop.permute.xlu0 %1562
    %1564 = vrot.lane.b32.xlu0 %v1561, 96
    %v1565 = vpop.permute.xlu0 %1564
    %1568 = vst.msk [vmem:[#allocation2 + $0x4] sm:$0x1] %vm546, %v1563
    %1569 = vst.msk [vmem:[#allocation2 + $0xc] sm:$0x1] %vm546, %v1565
    %v1570 = vpack.c.bf16 %v1522, %v1522
    %1572 = vrot.lane.b32.xlu0 %v1570, 96
    %v1573 = vpop.permute.xlu0 %1572
    %v1575 = vsel %vm358, %v1573, 0
    %1577 = vmatprep.subr.bf16.mxu0 0
    %1578 = vmatpush1.bf16.msra.mxu0 0
    %1579 = vmatprep.subr.bf16.mxu0 0
    %1580 = vmatpush1.bf16.msra.mxu0 0
    %1581 = vmatprep.subr.bf16.mxu0 0
    %1582 = vmatpush1.bf16.msra.mxu0 0
    %1583 = vmatprep.subr.bf16.mxu0 0
    %1584 = vmatpush1.bf16.msra.mxu0 0
    %1585 = vmatprep.subr.bf16.mxu0 0
    %1586 = vmatpush1.bf16.msra.mxu0 0
    %1587 = vmatprep.subr.bf16.mxu0 0
    %1588 = vmatpush1.bf16.msra.mxu0 0
    %1589 = vmatprep.subr.bf16.mxu0 0
    %1590 = vmatpush1.bf16.msra.mxu0 %v568
    %1591 = vmatprep.subr.bf16.mxu0 0
    %1592 = vmatpush1.bf16.msra.mxu0 %v567
    %1593 = vmatprep.subr.bf16.mxu0 0
    %1594 = vmatpush2.bf16.msra.mxu0 0
    %1595 = vmatprep.subr.bf16.mxu0 0
    %1596 = vmatpush2.bf16.msra.mxu0 0
    %1597 = vmatprep.subr.bf16.mxu0 0
    %1598 = vmatpush2.bf16.msra.mxu0 0
    %1599 = vmatprep.subr.bf16.mxu0 0
    %1600 = vmatpush2.bf16.msra.mxu0 0
    %1601 = vmatprep.subr.bf16.mxu0 0
    %1602 = vmatpush2.bf16.msra.mxu0 0
    %1603 = vmatprep.subr.bf16.mxu0 0
    %1604 = vmatpush2.bf16.msra.mxu0 0
    %1605 = vmatprep.subr.bf16.mxu0 0
    %1606 = vmatpush2.bf16.msra.mxu0 0
    %1607 = vmatprep.subr.bf16.mxu0 0
    %1608 = vmatpush2.bf16.msra.mxu0 0
    %1609 = vmatprep.mubr.bf16.mxu0 0
    %1610 = vmatmul.mubr.bf16.gmra.mxu0 %v1575
    %v1611 = vpop.f32.mrf.mxu0
    %v1612 = vadd.f32 %v554, %v1611
    %v1613 = vpop.f32.mrf.mxu0
    %v1614 = vpop.f32.mrf.mxu0
    %v1615 = vpop.f32.mrf.mxu0
    %1616 = vdwg.mxu0
    %v1619 = vunpack.c.l.s4 1966171168
    %v1620 = vunpack.c.0.s8 %v1619
    %v1621 = vlaneseq
    %v1622 = vshrl.u32 %v1621, 7
    %v1623 = vsub.s32 %v1620, %v1622
    %v1624 = vrot.slane %v1612, %v1623
    %v1625 = vcombine.high %v1624, %v1624
    %v1627 = vunpack.c.l.s4 1966171168
    %v1628 = vunpack.c.0.s8 %v1627
    %v1629 = vlaneseq
    %v1630 = vshrl.u32 %v1629, 7
    %v1631 = vsub.s32 %v1628, %v1630
    %v1632 = vrot.slane %v1624, %v1631
    %v1634 = vunpack.c.l.s4 1966171168
    %v1635 = vunpack.c.0.s8 %v1634
    %v1636 = vlaneseq
    %v1637 = vshrl.u32 %v1636, 7
    %v1638 = vsub.s32 %v1635, %v1637
    %v1639 = vrot.slane %v1625, %v1638
    %1642 = vst.msk [vmem:[#allocation3 + $0x4] sm:$0x1] %vm546, %v1632
    %1643 = vst.msk [vmem:[#allocation3 + $0xc] sm:$0x1] %vm546, %v1639
    %v1644 = vrot.slane %v340, 5
    %v1645 = vrot.slane %v341, 4
    %v1646 = vsel %vm343, %v1645, %v1644
    %v1647 = vpack.c.b16 %v1646, %v1646
    %v1649 = vsel %vm358, %v1647, 0
    %1651 = vmatprep.subr.bf16.mxu0 0
    %1652 = vmatpush1.bf16.msra.mxu0 0
    %1653 = vmatprep.subr.bf16.mxu0 0
    %1654 = vmatpush1.bf16.msra.mxu0 0
    %1655 = vmatprep.subr.bf16.mxu0 0
    %1656 = vmatpush1.bf16.msra.mxu0 0
    %1657 = vmatprep.subr.bf16.mxu0 0
    %1658 = vmatpush1.bf16.msra.mxu0 0
    %1659 = vmatprep.subr.bf16.mxu0 0
    %1660 = vmatpush1.bf16.msra.mxu0 0
    %1661 = vmatprep.subr.bf16.mxu0 0
    %1662 = vmatpush1.bf16.msra.mxu0 0
    %1663 = vmatprep.subr.bf16.mxu0 0
    %1664 = vmatpush1.bf16.msra.mxu0 %v355
    %1665 = vmatprep.subr.bf16.mxu0 0
    %1666 = vmatpush1.bf16.msra.mxu0 %v354
    %1667 = vmatprep.subr.bf16.mxu0 0
    %1668 = vmatpush2.bf16.msra.mxu0 0
    %1669 = vmatprep.subr.bf16.mxu0 0
    %1670 = vmatpush2.bf16.msra.mxu0 0
    %1671 = vmatprep.subr.bf16.mxu0 0
    %1672 = vmatpush2.bf16.msra.mxu0 0
    %1673 = vmatprep.subr.bf16.mxu0 0
    %1674 = vmatpush2.bf16.msra.mxu0 0
    %1675 = vmatprep.subr.bf16.mxu0 0
    %1676 = vmatpush2.bf16.msra.mxu0 0
    %1677 = vmatprep.subr.bf16.mxu0 0
    %1678 = vmatpush2.bf16.msra.mxu0 0
    %1679 = vmatprep.subr.bf16.mxu0 0
    %1680 = vmatpush2.bf16.msra.mxu0 0
    %1681 = vmatprep.subr.bf16.mxu0 0
    %1682 = vmatpush2.bf16.msra.mxu0 0
    %1683 = vmatprep.mubr.bf16.mxu0 0
    %1684 = vmatmul.mubr.bf16.gmra.mxu0 %v1649
    %v1685 = vpop.f32.mrf.mxu0
    %v1686 = vadd.f32 %v332, %v1685
    %v1687 = vpop.f32.mrf.mxu0
    %v1688 = vpop.f32.mrf.mxu0
    %v1689 = vpop.f32.mrf.mxu0
    %1690 = vdwg.mxu0
    %v1691 = vpack.c.bf16 %v1530, %v1530
    %1693 = vrot.lane.b32.xlu0 %v1691, 96
    %v1694 = vpop.permute.xlu0 %1693
    %v1696 = vsel %vm358, %v1694, 0
    %1698 = vmatprep.subr.bf16.mxu0 0
    %1699 = vmatpush1.bf16.msra.mxu0 0
    %1700 = vmatprep.subr.bf16.mxu0 0
    %1701 = vmatpush1.bf16.msra.mxu0 0
    %1702 = vmatprep.subr.bf16.mxu0 0
    %1703 = vmatpush1.bf16.msra.mxu0 0
    %1704 = vmatprep.subr.bf16.mxu0 0
    %1705 = vmatpush1.bf16.msra.mxu0 0
    %1706 = vmatprep.subr.bf16.mxu0 0
    %1707 = vmatpush1.bf16.msra.mxu0 0
    %1708 = vmatprep.subr.bf16.mxu0 0
    %1709 = vmatpush1.bf16.msra.mxu0 0
    %1710 = vmatprep.subr.bf16.mxu0 0
    %1711 = vmatpush1.bf16.msra.mxu0 %v411
    %1712 = vmatprep.subr.bf16.mxu0 0
    %1713 = vmatpush1.bf16.msra.mxu0 %v410
    %1714 = vmatprep.subr.bf16.mxu0 0
    %1715 = vmatpush2.bf16.msra.mxu0 0
    %1716 = vmatprep.subr.bf16.mxu0 0
    %1717 = vmatpush2.bf16.msra.mxu0 0
    %1718 = vmatprep.subr.bf16.mxu0 0
    %1719 = vmatpush2.bf16.msra.mxu0 0
    %1720 = vmatprep.subr.bf16.mxu0 0
    %1721 = vmatpush2.bf16.msra.mxu0 0
    %1722 = vmatprep.subr.bf16.mxu0 0
    %1723 = vmatpush2.bf16.msra.mxu0 0
    %1724 = vmatprep.subr.bf16.mxu0 0
    %1725 = vmatpush2.bf16.msra.mxu0 0
    %1726 = vmatprep.subr.bf16.mxu0 0
    %1727 = vmatpush2.bf16.msra.mxu0 0
    %1728 = vmatprep.subr.bf16.mxu0 0
    %1729 = vmatpush2.bf16.msra.mxu0 0
    %1730 = vmatprep.mubr.bf16.mxu0 0
    %1731 = vmatmul.mubr.bf16.gmra.mxu0 %v1696
    %v1732 = vpop.f32.mrf.mxu0
    %v1733 = vadd.f32 0.0, %v1732
    %v1734 = vpop.f32.mrf.mxu0
    %v1735 = vpop.f32.mrf.mxu0
    %v1736 = vpop.f32.mrf.mxu0
    %1737 = vdwg.mxu0
    %v1738 = vadd.f32 %v1686, %v1733
    %v1739 = vxor.u32 %v1738, 2147483648
    %v1740 = vmul.f32 %v1739, 1.442695
    %v1741 = vpow.pop %v1740
    %v1742 = vadd.f32 %v1741, 1.0
    %v1743 = vrcp.pop %v1742
    %v1744 = vmul.f32 1.0, %v1743
    %v1745 = vadd.f32 %v1733, %v470
    %1747 = vrot.lane.b32.xlu0 %v1745, 64
    %v1748 = vpop.permute.xlu0 %1747
    %v1750 = vmul.f32 %v1744, %v1748
    %1752 = vrot.lane.b32.xlu0 %v1750, 64
    %v1753 = vpop.permute.xlu0 %1752
    %v1755 = vadd.f32 %v1686, %v1753
    %v1756 = vtanh.pop %v1755
    %v1757 = vsub.f32 1.0, %v1744
    %1759 = vrot.lane.b32.xlu0 %v1756, 96
    %v1760 = vpop.permute.xlu0 %1759
    %v1762 = vmul.f32 %v1757, %v1760
    %v1763 = vmul.f32 %v1744, %v1530
    %v1764 = vadd.f32 %v1762, %v1763
    %vm1765 = vcmp.gt.s32.totalorder %v278, 5
    %v1766 = vsel %vm1765, 1, 0
    %v1767 = vcvt.s32.f32 %v1766
    %1769 = vset.pattern.permute.xlu0 0
    %1770 = vperm.xlu0 %1769, %v1767
    %v1771 = vpop.permute.xlu0 %1770
    %v1773 = vmul.f32 %v1771, %v1764
    %v1774 = vsub.f32 1.0, %v1767
    %1776 = vset.pattern.permute.xlu0 0
    %1777 = vperm.xlu0 %1776, %v1774
    %v1778 = vpop.permute.xlu0 %1777
    %v1780 = vmul.f32 %v1778, %v1530
    %v1781 = vadd.f32 %v1773, %v1780
    %v1784 = vunpack.c.l.s4 1966171168
    %v1785 = vunpack.c.0.s8 %v1784
    %v1786 = vlaneseq
    %v1787 = vshrl.u32 %v1786, 7
    %v1788 = vsub.s32 %v1785, %v1787
    %v1789 = vrot.slane %v1773, %v1788
    %v1790 = vcombine.high %v1789, %v1789
    %v1792 = vunpack.c.l.s4 1966171168
    %v1793 = vunpack.c.0.s8 %v1792
    %v1794 = vlaneseq
    %v1795 = vshrl.u32 %v1794, 7
    %v1796 = vsub.s32 %v1793, %v1795
    %v1797 = vrot.slane %v1789, %v1796
    %v1799 = vunpack.c.l.s4 1966171168
    %v1800 = vunpack.c.0.s8 %v1799
    %v1801 = vlaneseq
    %v1802 = vshrl.u32 %v1801, 7
    %v1803 = vsub.s32 %v1800, %v1802
    %v1804 = vrot.slane %v1790, %v1803
    %v1805 = vlaneseq
    %v1806 = vshrl.u32 %v1805, 7
    %v1807 = vsub.s32 0, %v1806
    %v1808 = vrot.slane %v1797, %v1807
    %v1809 = vlaneseq
    %v1810 = vshrl.u32 %v1809, 7
    %v1811 = vsub.s32 0, %v1810
    %v1812 = vrot.slane %v1804, %v1811
    %1813 = vrot.lane.b32.xlu0 %v1808, 96
    %v1814 = vpop.permute.xlu0 %1813
    %1815 = vrot.lane.b32.xlu0 %v1812, 96
    %v1816 = vpop.permute.xlu0 %1815
    %1819 = vst.msk [vmem:[#allocation2 + $0x5] sm:$0x1] %vm546, %v1814
    %1820 = vst.msk [vmem:[#allocation2 + $0xd] sm:$0x1] %vm546, %v1816
    %v1821 = vpack.c.bf16 %v1773, %v1773
    %1823 = vrot.lane.b32.xlu0 %v1821, 96
    %v1824 = vpop.permute.xlu0 %1823
    %v1826 = vsel %vm358, %v1824, 0
    %1828 = vmatprep.subr.bf16.mxu0 0
    %1829 = vmatpush1.bf16.msra.mxu0 0
    %1830 = vmatprep.subr.bf16.mxu0 0
    %1831 = vmatpush1.bf16.msra.mxu0 0
    %1832 = vmatprep.subr.bf16.mxu0 0
    %1833 = vmatpush1.bf16.msra.mxu0 0
    %1834 = vmatprep.subr.bf16.mxu0 0
    %1835 = vmatpush1.bf16.msra.mxu0 0
    %1836 = vmatprep.subr.bf16.mxu0 0
    %1837 = vmatpush1.bf16.msra.mxu0 0
    %1838 = vmatprep.subr.bf16.mxu0 0
    %1839 = vmatpush1.bf16.msra.mxu0 0
    %1840 = vmatprep.subr.bf16.mxu0 0
    %1841 = vmatpush1.bf16.msra.mxu0 %v568
    %1842 = vmatprep.subr.bf16.mxu0 0
    %1843 = vmatpush1.bf16.msra.mxu0 %v567
    %1844 = vmatprep.subr.bf16.mxu0 0
    %1845 = vmatpush2.bf16.msra.mxu0 0
    %1846 = vmatprep.subr.bf16.mxu0 0
    %1847 = vmatpush2.bf16.msra.mxu0 0
    %1848 = vmatprep.subr.bf16.mxu0 0
    %1849 = vmatpush2.bf16.msra.mxu0 0
    %1850 = vmatprep.subr.bf16.mxu0 0
    %1851 = vmatpush2.bf16.msra.mxu0 0
    %1852 = vmatprep.subr.bf16.mxu0 0
    %1853 = vmatpush2.bf16.msra.mxu0 0
    %1854 = vmatprep.subr.bf16.mxu0 0
    %1855 = vmatpush2.bf16.msra.mxu0 0
    %1856 = vmatprep.subr.bf16.mxu0 0
    %1857 = vmatpush2.bf16.msra.mxu0 0
    %1858 = vmatprep.subr.bf16.mxu0 0
    %1859 = vmatpush2.bf16.msra.mxu0 0
    %1860 = vmatprep.mubr.bf16.mxu0 0
    %1861 = vmatmul.mubr.bf16.gmra.mxu0 %v1826
    %v1862 = vpop.f32.mrf.mxu0
    %v1863 = vadd.f32 %v554, %v1862
    %v1864 = vpop.f32.mrf.mxu0
    %v1865 = vpop.f32.mrf.mxu0
    %v1866 = vpop.f32.mrf.mxu0
    %1867 = vdwg.mxu0
    %v1870 = vunpack.c.l.s4 1966171168
    %v1871 = vunpack.c.0.s8 %v1870
    %v1872 = vlaneseq
    %v1873 = vshrl.u32 %v1872, 7
    %v1874 = vsub.s32 %v1871, %v1873
    %v1875 = vrot.slane %v1863, %v1874
    %v1876 = vcombine.high %v1875, %v1875
    %v1878 = vunpack.c.l.s4 1966171168
    %v1879 = vunpack.c.0.s8 %v1878
    %v1880 = vlaneseq
    %v1881 = vshrl.u32 %v1880, 7
    %v1882 = vsub.s32 %v1879, %v1881
    %v1883 = vrot.slane %v1875, %v1882
    %v1885 = vunpack.c.l.s4 1966171168
    %v1886 = vunpack.c.0.s8 %v1885
    %v1887 = vlaneseq
    %v1888 = vshrl.u32 %v1887, 7
    %v1889 = vsub.s32 %v1886, %v1888
    %v1890 = vrot.slane %v1876, %v1889
    %1893 = vst.msk [vmem:[#allocation3 + $0x5] sm:$0x1] %vm546, %v1883
    %1894 = vst.msk [vmem:[#allocation3 + $0xd] sm:$0x1] %vm546, %v1890
    %v1895 = vrot.slane %v340, 6
    %v1896 = vrot.slane %v341, 5
    %v1897 = vsel %vm343, %v1896, %v1895
    %v1898 = vpack.c.b16 %v1897, %v1897
    %v1900 = vsel %vm358, %v1898, 0
    %1902 = vmatprep.subr.bf16.mxu0 0
    %1903 = vmatpush1.bf16.msra.mxu0 0
    %1904 = vmatprep.subr.bf16.mxu0 0
    %1905 = vmatpush1.bf16.msra.mxu0 0
    %1906 = vmatprep.subr.bf16.mxu0 0
    %1907 = vmatpush1.bf16.msra.mxu0 0
    %1908 = vmatprep.subr.bf16.mxu0 0
    %1909 = vmatpush1.bf16.msra.mxu0 0
    %1910 = vmatprep.subr.bf16.mxu0 0
    %1911 = vmatpush1.bf16.msra.mxu0 0
    %1912 = vmatprep.subr.bf16.mxu0 0
    %1913 = vmatpush1.bf16.msra.mxu0 0
    %1914 = vmatprep.subr.bf16.mxu0 0
    %1915 = vmatpush1.bf16.msra.mxu0 %v355
    %1916 = vmatprep.subr.bf16.mxu0 0
    %1917 = vmatpush1.bf16.msra.mxu0 %v354
    %1918 = vmatprep.subr.bf16.mxu0 0
    %1919 = vmatpush2.bf16.msra.mxu0 0
    %1920 = vmatprep.subr.bf16.mxu0 0
    %1921 = vmatpush2.bf16.msra.mxu0 0
    %1922 = vmatprep.subr.bf16.mxu0 0
    %1923 = vmatpush2.bf16.msra.mxu0 0
    %1924 = vmatprep.subr.bf16.mxu0 0
    %1925 = vmatpush2.bf16.msra.mxu0 0
    %1926 = vmatprep.subr.bf16.mxu0 0
    %1927 = vmatpush2.bf16.msra.mxu0 0
    %1928 = vmatprep.subr.bf16.mxu0 0
    %1929 = vmatpush2.bf16.msra.mxu0 0
    %1930 = vmatprep.subr.bf16.mxu0 0
    %1931 = vmatpush2.bf16.msra.mxu0 0
    %1932 = vmatprep.subr.bf16.mxu0 0
    %1933 = vmatpush2.bf16.msra.mxu0 0
    %1934 = vmatprep.mubr.bf16.mxu0 0
    %1935 = vmatmul.mubr.bf16.gmra.mxu0 %v1900
    %v1936 = vpop.f32.mrf.mxu0
    %v1937 = vadd.f32 %v332, %v1936
    %v1938 = vpop.f32.mrf.mxu0
    %v1939 = vpop.f32.mrf.mxu0
    %v1940 = vpop.f32.mrf.mxu0
    %1941 = vdwg.mxu0
    %v1942 = vpack.c.bf16 %v1781, %v1781
    %1944 = vrot.lane.b32.xlu0 %v1942, 96
    %v1945 = vpop.permute.xlu0 %1944
    %v1947 = vsel %vm358, %v1945, 0
    %1949 = vmatprep.subr.bf16.mxu0 0
    %1950 = vmatpush1.bf16.msra.mxu0 0
    %1951 = vmatprep.subr.bf16.mxu0 0
    %1952 = vmatpush1.bf16.msra.mxu0 0
    %1953 = vmatprep.subr.bf16.mxu0 0
    %1954 = vmatpush1.bf16.msra.mxu0 0
    %1955 = vmatprep.subr.bf16.mxu0 0
    %1956 = vmatpush1.bf16.msra.mxu0 0
    %1957 = vmatprep.subr.bf16.mxu0 0
    %1958 = vmatpush1.bf16.msra.mxu0 0
    %1959 = vmatprep.subr.bf16.mxu0 0
    %1960 = vmatpush1.bf16.msra.mxu0 0
    %1961 = vmatprep.subr.bf16.mxu0 0
    %1962 = vmatpush1.bf16.msra.mxu0 %v411
    %1963 = vmatprep.subr.bf16.mxu0 0
    %1964 = vmatpush1.bf16.msra.mxu0 %v410
    %1965 = vmatprep.subr.bf16.mxu0 0
    %1966 = vmatpush2.bf16.msra.mxu0 0
    %1967 = vmatprep.subr.bf16.mxu0 0
    %1968 = vmatpush2.bf16.msra.mxu0 0
    %1969 = vmatprep.subr.bf16.mxu0 0
    %1970 = vmatpush2.bf16.msra.mxu0 0
    %1971 = vmatprep.subr.bf16.mxu0 0
    %1972 = vmatpush2.bf16.msra.mxu0 0
    %1973 = vmatprep.subr.bf16.mxu0 0
    %1974 = vmatpush2.bf16.msra.mxu0 0
    %1975 = vmatprep.subr.bf16.mxu0 0
    %1976 = vmatpush2.bf16.msra.mxu0 0
    %1977 = vmatprep.subr.bf16.mxu0 0
    %1978 = vmatpush2.bf16.msra.mxu0 0
    %1979 = vmatprep.subr.bf16.mxu0 0
    %1980 = vmatpush2.bf16.msra.mxu0 0
    %1981 = vmatprep.mubr.bf16.mxu0 0
    %1982 = vmatmul.mubr.bf16.gmra.mxu0 %v1947
    %v1983 = vpop.f32.mrf.mxu0
    %v1984 = vadd.f32 0.0, %v1983
    %v1985 = vpop.f32.mrf.mxu0
    %v1986 = vpop.f32.mrf.mxu0
    %v1987 = vpop.f32.mrf.mxu0
    %1988 = vdwg.mxu0
    %v1989 = vadd.f32 %v1937, %v1984
    %v1990 = vxor.u32 %v1989, 2147483648
    %v1991 = vmul.f32 %v1990, 1.442695
    %v1992 = vpow.pop %v1991
    %v1993 = vadd.f32 %v1992, 1.0
    %v1994 = vrcp.pop %v1993
    %v1995 = vmul.f32 1.0, %v1994
    %v1996 = vadd.f32 %v1984, %v470
    %1998 = vrot.lane.b32.xlu0 %v1996, 64
    %v1999 = vpop.permute.xlu0 %1998
    %v2001 = vmul.f32 %v1995, %v1999
    %2003 = vrot.lane.b32.xlu0 %v2001, 64
    %v2004 = vpop.permute.xlu0 %2003
    %v2006 = vadd.f32 %v1937, %v2004
    %v2007 = vtanh.pop %v2006
    %v2008 = vsub.f32 1.0, %v1995
    %2010 = vrot.lane.b32.xlu0 %v2007, 96
    %v2011 = vpop.permute.xlu0 %2010
    %v2013 = vmul.f32 %v2008, %v2011
    %v2014 = vmul.f32 %v1995, %v1781
    %v2015 = vadd.f32 %v2013, %v2014
    %vm2016 = vcmp.gt.s32.totalorder %v278, 6
    %v2017 = vsel %vm2016, 1, 0
    %v2018 = vcvt.s32.f32 %v2017
    %2020 = vset.pattern.permute.xlu0 0
    %2021 = vperm.xlu0 %2020, %v2018
    %v2022 = vpop.permute.xlu0 %2021
    %v2024 = vmul.f32 %v2022, %v2015
    %v2025 = vsub.f32 1.0, %v2018
    %2027 = vset.pattern.permute.xlu0 0
    %2028 = vperm.xlu0 %2027, %v2025
    %v2029 = vpop.permute.xlu0 %2028
    %v2031 = vmul.f32 %v2029, %v1781
    %v2032 = vadd.f32 %v2024, %v2031
    %v2035 = vunpack.c.l.s4 1966171168
    %v2036 = vunpack.c.0.s8 %v2035
    %v2037 = vlaneseq
    %v2038 = vshrl.u32 %v2037, 7
    %v2039 = vsub.s32 %v2036, %v2038
    %v2040 = vrot.slane %v2024, %v2039
    %v2041 = vcombine.high %v2040, %v2040
    %v2043 = vunpack.c.l.s4 1966171168
    %v2044 = vunpack.c.0.s8 %v2043
    %v2045 = vlaneseq
    %v2046 = vshrl.u32 %v2045, 7
    %v2047 = vsub.s32 %v2044, %v2046
    %v2048 = vrot.slane %v2040, %v2047
    %v2050 = vunpack.c.l.s4 1966171168
    %v2051 = vunpack.c.0.s8 %v2050
    %v2052 = vlaneseq
    %v2053 = vshrl.u32 %v2052, 7
    %v2054 = vsub.s32 %v2051, %v2053
    %v2055 = vrot.slane %v2041, %v2054
    %v2056 = vlaneseq
    %v2057 = vshrl.u32 %v2056, 7
    %v2058 = vsub.s32 0, %v2057
    %v2059 = vrot.slane %v2048, %v2058
    %v2060 = vlaneseq
    %v2061 = vshrl.u32 %v2060, 7
    %v2062 = vsub.s32 0, %v2061
    %v2063 = vrot.slane %v2055, %v2062
    %2064 = vrot.lane.b32.xlu0 %v2059, 96
    %v2065 = vpop.permute.xlu0 %2064
    %2066 = vrot.lane.b32.xlu0 %v2063, 96
    %v2067 = vpop.permute.xlu0 %2066
    %2070 = vst.msk [vmem:[#allocation2 + $0x6] sm:$0x1] %vm546, %v2065
    %2071 = vst.msk [vmem:[#allocation2 + $0xe] sm:$0x1] %vm546, %v2067
    %v2072 = vpack.c.bf16 %v2024, %v2024
    %2074 = vrot.lane.b32.xlu0 %v2072, 96
    %v2075 = vpop.permute.xlu0 %2074
    %v2077 = vsel %vm358, %v2075, 0
    %2079 = vmatprep.subr.bf16.mxu0 0
    %2080 = vmatpush1.bf16.msra.mxu0 0
    %2081 = vmatprep.subr.bf16.mxu0 0
    %2082 = vmatpush1.bf16.msra.mxu0 0
    %2083 = vmatprep.subr.bf16.mxu0 0
    %2084 = vmatpush1.bf16.msra.mxu0 0
    %2085 = vmatprep.subr.bf16.mxu0 0
    %2086 = vmatpush1.bf16.msra.mxu0 0
    %2087 = vmatprep.subr.bf16.mxu0 0
    %2088 = vmatpush1.bf16.msra.mxu0 0
    %2089 = vmatprep.subr.bf16.mxu0 0
    %2090 = vmatpush1.bf16.msra.mxu0 0
    %2091 = vmatprep.subr.bf16.mxu0 0
    %2092 = vmatpush1.bf16.msra.mxu0 %v568
    %2093 = vmatprep.subr.bf16.mxu0 0
    %2094 = vmatpush1.bf16.msra.mxu0 %v567
    %2095 = vmatprep.subr.bf16.mxu0 0
    %2096 = vmatpush2.bf16.msra.mxu0 0
    %2097 = vmatprep.subr.bf16.mxu0 0
    %2098 = vmatpush2.bf16.msra.mxu0 0
    %2099 = vmatprep.subr.bf16.mxu0 0
    %2100 = vmatpush2.bf16.msra.mxu0 0
    %2101 = vmatprep.subr.bf16.mxu0 0
    %2102 = vmatpush2.bf16.msra.mxu0 0
    %2103 = vmatprep.subr.bf16.mxu0 0
    %2104 = vmatpush2.bf16.msra.mxu0 0
    %2105 = vmatprep.subr.bf16.mxu0 0
    %2106 = vmatpush2.bf16.msra.mxu0 0
    %2107 = vmatprep.subr.bf16.mxu0 0
    %2108 = vmatpush2.bf16.msra.mxu0 0
    %2109 = vmatprep.subr.bf16.mxu0 0
    %2110 = vmatpush2.bf16.msra.mxu0 0
    %2111 = vmatprep.mubr.bf16.mxu0 0
    %2112 = vmatmul.mubr.bf16.gmra.mxu0 %v2077
    %v2113 = vpop.f32.mrf.mxu0
    %v2114 = vadd.f32 %v554, %v2113
    %v2115 = vpop.f32.mrf.mxu0
    %v2116 = vpop.f32.mrf.mxu0
    %v2117 = vpop.f32.mrf.mxu0
    %2118 = vdwg.mxu0
    %v2121 = vunpack.c.l.s4 1966171168
    %v2122 = vunpack.c.0.s8 %v2121
    %v2123 = vlaneseq
    %v2124 = vshrl.u32 %v2123, 7
    %v2125 = vsub.s32 %v2122, %v2124
    %v2126 = vrot.slane %v2114, %v2125
    %v2127 = vcombine.high %v2126, %v2126
    %v2129 = vunpack.c.l.s4 1966171168
    %v2130 = vunpack.c.0.s8 %v2129
    %v2131 = vlaneseq
    %v2132 = vshrl.u32 %v2131, 7
    %v2133 = vsub.s32 %v2130, %v2132
    %v2134 = vrot.slane %v2126, %v2133
    %v2136 = vunpack.c.l.s4 1966171168
    %v2137 = vunpack.c.0.s8 %v2136
    %v2138 = vlaneseq
    %v2139 = vshrl.u32 %v2138, 7
    %v2140 = vsub.s32 %v2137, %v2139
    %v2141 = vrot.slane %v2127, %v2140
    %2144 = vst.msk [vmem:[#allocation3 + $0x6] sm:$0x1] %vm546, %v2134
    %2145 = vst.msk [vmem:[#allocation3 + $0xe] sm:$0x1] %vm546, %v2141
    %v2146 = vrot.slane %v340, 7
    %v2147 = vrot.slane %v341, 6
    %v2148 = vsel %vm343, %v2147, %v2146
    %v2149 = vpack.c.b16 %v2148, %v2148
    %v2151 = vsel %vm358, %v2149, 0
    %2153 = vmatprep.subr.bf16.mxu0 0
    %2154 = vmatpush1.bf16.msra.mxu0 0
    %2155 = vmatprep.subr.bf16.mxu0 0
    %2156 = vmatpush1.bf16.msra.mxu0 0
    %2157 = vmatprep.subr.bf16.mxu0 0
    %2158 = vmatpush1.bf16.msra.mxu0 0
    %2159 = vmatprep.subr.bf16.mxu0 0
    %2160 = vmatpush1.bf16.msra.mxu0 0
    %2161 = vmatprep.subr.bf16.mxu0 0
    %2162 = vmatpush1.bf16.msra.mxu0 0
    %2163 = vmatprep.subr.bf16.mxu0 0
    %2164 = vmatpush1.bf16.msra.mxu0 0
    %2165 = vmatprep.subr.bf16.mxu0 0
    %2166 = vmatpush1.bf16.msra.mxu0 %v355
    %2167 = vmatprep.subr.bf16.mxu0 0
    %2168 = vmatpush1.bf16.msra.mxu0 %v354
    %2169 = vmatprep.subr.bf16.mxu0 0
    %2170 = vmatpush2.bf16.msra.mxu0 0
    %2171 = vmatprep.subr.bf16.mxu0 0
    %2172 = vmatpush2.bf16.msra.mxu0 0
    %2173 = vmatprep.subr.bf16.mxu0 0
    %2174 = vmatpush2.bf16.msra.mxu0 0
    %2175 = vmatprep.subr.bf16.mxu0 0
    %2176 = vmatpush2.bf16.msra.mxu0 0
    %2177 = vmatprep.subr.bf16.mxu0 0
    %2178 = vmatpush2.bf16.msra.mxu0 0
    %2179 = vmatprep.subr.bf16.mxu0 0
    %2180 = vmatpush2.bf16.msra.mxu0 0
    %2181 = vmatprep.subr.bf16.mxu0 0
    %2182 = vmatpush2.bf16.msra.mxu0 0
    %2183 = vmatprep.subr.bf16.mxu0 0
    %2184 = vmatpush2.bf16.msra.mxu0 0
    %2185 = vmatprep.mubr.bf16.mxu0 0
    %2186 = vmatmul.mubr.bf16.gmra.mxu0 %v2151
    %v2187 = vpop.f32.mrf.mxu0
    %v2188 = vadd.f32 %v332, %v2187
    %v2189 = vpop.f32.mrf.mxu0
    %v2190 = vpop.f32.mrf.mxu0
    %v2191 = vpop.f32.mrf.mxu0
    %2192 = vdwg.mxu0
    %v2193 = vpack.c.bf16 %v2032, %v2032
    %2195 = vrot.lane.b32.xlu0 %v2193, 96
    %v2196 = vpop.permute.xlu0 %2195
    %v2198 = vsel %vm358, %v2196, 0
    %2200 = vmatprep.subr.bf16.mxu0 0
    %2201 = vmatpush1.bf16.msra.mxu0 0
    %2202 = vmatprep.subr.bf16.mxu0 0
    %2203 = vmatpush1.bf16.msra.mxu0 0
    %2204 = vmatprep.subr.bf16.mxu0 0
    %2205 = vmatpush1.bf16.msra.mxu0 0
    %2206 = vmatprep.subr.bf16.mxu0 0
    %2207 = vmatpush1.bf16.msra.mxu0 0
    %2208 = vmatprep.subr.bf16.mxu0 0
    %2209 = vmatpush1.bf16.msra.mxu0 0
    %2210 = vmatprep.subr.bf16.mxu0 0
    %2211 = vmatpush1.bf16.msra.mxu0 0
    %2212 = vmatprep.subr.bf16.mxu0 0
    %2213 = vmatpush1.bf16.msra.mxu0 %v411
    %2214 = vmatprep.subr.bf16.mxu0 0
    %2215 = vmatpush1.bf16.msra.mxu0 %v410
    %2216 = vmatprep.subr.bf16.mxu0 0
    %2217 = vmatpush2.bf16.msra.mxu0 0
    %2218 = vmatprep.subr.bf16.mxu0 0
    %2219 = vmatpush2.bf16.msra.mxu0 0
    %2220 = vmatprep.subr.bf16.mxu0 0
    %2221 = vmatpush2.bf16.msra.mxu0 0
    %2222 = vmatprep.subr.bf16.mxu0 0
    %2223 = vmatpush2.bf16.msra.mxu0 0
    %2224 = vmatprep.subr.bf16.mxu0 0
    %2225 = vmatpush2.bf16.msra.mxu0 0
    %2226 = vmatprep.subr.bf16.mxu0 0
    %2227 = vmatpush2.bf16.msra.mxu0 0
    %2228 = vmatprep.subr.bf16.mxu0 0
    %2229 = vmatpush2.bf16.msra.mxu0 0
    %2230 = vmatprep.subr.bf16.mxu0 0
    %2231 = vmatpush2.bf16.msra.mxu0 0
    %2232 = vmatprep.mubr.bf16.mxu0 0
    %2233 = vmatmul.mubr.bf16.gmra.mxu0 %v2198
    %v2234 = vpop.f32.mrf.mxu0
    %v2235 = vadd.f32 0.0, %v2234
    %v2236 = vpop.f32.mrf.mxu0
    %v2237 = vpop.f32.mrf.mxu0
    %v2238 = vpop.f32.mrf.mxu0
    %2239 = vdwg.mxu0
    %v2240 = vadd.f32 %v2188, %v2235
    %v2241 = vxor.u32 %v2240, 2147483648
    %v2242 = vmul.f32 %v2241, 1.442695
    %v2243 = vpow.pop %v2242
    %v2244 = vadd.f32 %v2243, 1.0
    %v2245 = vrcp.pop %v2244
    %v2246 = vmul.f32 1.0, %v2245
    %v2247 = vadd.f32 %v2235, %v470
    %2249 = vrot.lane.b32.xlu0 %v2247, 64
    %v2250 = vpop.permute.xlu0 %2249
    %v2252 = vmul.f32 %v2246, %v2250
    %2254 = vrot.lane.b32.xlu0 %v2252, 64
    %v2255 = vpop.permute.xlu0 %2254
    %v2257 = vadd.f32 %v2188, %v2255
    %v2258 = vtanh.pop %v2257
    %v2259 = vsub.f32 1.0, %v2246
    %2261 = vrot.lane.b32.xlu0 %v2258, 96
    %v2262 = vpop.permute.xlu0 %2261
    %v2264 = vmul.f32 %v2259, %v2262
    %v2265 = vmul.f32 %v2246, %v2032
    %v2266 = vadd.f32 %v2264, %v2265
    %vm2267 = vcmp.gt.s32.totalorder %v278, 7
    %v2268 = vsel %vm2267, 1, 0
    %v2269 = vcvt.s32.f32 %v2268
    %2271 = vset.pattern.permute.xlu0 0
    %2272 = vperm.xlu0 %2271, %v2269
    %v2273 = vpop.permute.xlu0 %2272
    %v2275 = vmul.f32 %v2273, %v2266
    %v2276 = vsub.f32 1.0, %v2269
    %2278 = vset.pattern.permute.xlu0 0
    %2279 = vperm.xlu0 %2278, %v2276
    %v2280 = vpop.permute.xlu0 %2279
    %v2282 = vmul.f32 %v2280, %v2032
    %v2283 = vadd.f32 %v2275, %v2282
    %v2286 = vunpack.c.l.s4 1966171168
    %v2287 = vunpack.c.0.s8 %v2286
    %v2288 = vlaneseq
    %v2289 = vshrl.u32 %v2288, 7
    %v2290 = vsub.s32 %v2287, %v2289
    %v2291 = vrot.slane %v2275, %v2290
    %v2292 = vcombine.high %v2291, %v2291
    %v2294 = vunpack.c.l.s4 1966171168
    %v2295 = vunpack.c.0.s8 %v2294
    %v2296 = vlaneseq
    %v2297 = vshrl.u32 %v2296, 7
    %v2298 = vsub.s32 %v2295, %v2297
    %v2299 = vrot.slane %v2291, %v2298
    %v2301 = vunpack.c.l.s4 1966171168
    %v2302 = vunpack.c.0.s8 %v2301
    %v2303 = vlaneseq
    %v2304 = vshrl.u32 %v2303, 7
    %v2305 = vsub.s32 %v2302, %v2304
    %v2306 = vrot.slane %v2292, %v2305
    %v2307 = vlaneseq
    %v2308 = vshrl.u32 %v2307, 7
    %v2309 = vsub.s32 0, %v2308
    %v2310 = vrot.slane %v2299, %v2309
    %v2311 = vlaneseq
    %v2312 = vshrl.u32 %v2311, 7
    %v2313 = vsub.s32 0, %v2312
    %v2314 = vrot.slane %v2306, %v2313
    %2315 = vrot.lane.b32.xlu0 %v2310, 96
    %v2316 = vpop.permute.xlu0 %2315
    %2317 = vrot.lane.b32.xlu0 %v2314, 96
    %v2318 = vpop.permute.xlu0 %2317
    %2321 = vst.msk [vmem:[#allocation2 + $0x7] sm:$0x1] %vm546, %v2316
    %2322 = vst.msk [vmem:[#allocation2 + $0xf] sm:$0x1] %vm546, %v2318
    %v2323 = vpack.c.bf16 %v2275, %v2275
    %2325 = vrot.lane.b32.xlu0 %v2323, 96
    %v2326 = vpop.permute.xlu0 %2325
    %v2328 = vsel %vm358, %v2326, 0
    %2330 = vmatprep.subr.bf16.mxu0 0
    %2331 = vmatpush1.bf16.msra.mxu0 0
    %2332 = vmatprep.subr.bf16.mxu0 0
    %2333 = vmatpush1.bf16.msra.mxu0 0
    %2334 = vmatprep.subr.bf16.mxu0 0
    %2335 = vmatpush1.bf16.msra.mxu0 0
    %2336 = vmatprep.subr.bf16.mxu0 0
    %2337 = vmatpush1.bf16.msra.mxu0 0
    %2338 = vmatprep.subr.bf16.mxu0 0
    %2339 = vmatpush1.bf16.msra.mxu0 0
    %2340 = vmatprep.subr.bf16.mxu0 0
    %2341 = vmatpush1.bf16.msra.mxu0 0
    %2342 = vmatprep.subr.bf16.mxu0 0
    %2343 = vmatpush1.bf16.msra.mxu0 %v568
    %2344 = vmatprep.subr.bf16.mxu0 0
    %2345 = vmatpush1.bf16.msra.mxu0 %v567
    %2346 = vmatprep.subr.bf16.mxu0 0
    %2347 = vmatpush2.bf16.msra.mxu0 0
    %2348 = vmatprep.subr.bf16.mxu0 0
    %2349 = vmatpush2.bf16.msra.mxu0 0
    %2350 = vmatprep.subr.bf16.mxu0 0
    %2351 = vmatpush2.bf16.msra.mxu0 0
    %2352 = vmatprep.subr.bf16.mxu0 0
    %2353 = vmatpush2.bf16.msra.mxu0 0
    %2354 = vmatprep.subr.bf16.mxu0 0
    %2355 = vmatpush2.bf16.msra.mxu0 0
    %2356 = vmatprep.subr.bf16.mxu0 0
    %2357 = vmatpush2.bf16.msra.mxu0 0
    %2358 = vmatprep.subr.bf16.mxu0 0
    %2359 = vmatpush2.bf16.msra.mxu0 0
    %2360 = vmatprep.subr.bf16.mxu0 0
    %2361 = vmatpush2.bf16.msra.mxu0 0
    %2362 = vmatprep.mubr.bf16.mxu0 0
    %2363 = vmatmul.mubr.bf16.gmra.mxu0 %v2328
    %v2364 = vpop.f32.mrf.mxu0
    %v2365 = vadd.f32 %v554, %v2364
    %v2366 = vpop.f32.mrf.mxu0
    %v2367 = vpop.f32.mrf.mxu0
    %v2368 = vpop.f32.mrf.mxu0
    %2369 = vdwg.mxu0
    %v2372 = vunpack.c.l.s4 1966171168
    %v2373 = vunpack.c.0.s8 %v2372
    %v2374 = vlaneseq
    %v2375 = vshrl.u32 %v2374, 7
    %v2376 = vsub.s32 %v2373, %v2375
    %v2377 = vrot.slane %v2365, %v2376
    %v2378 = vcombine.high %v2377, %v2377
    %v2380 = vunpack.c.l.s4 1966171168
    %v2381 = vunpack.c.0.s8 %v2380
    %v2382 = vlaneseq
    %v2383 = vshrl.u32 %v2382, 7
    %v2384 = vsub.s32 %v2381, %v2383
    %v2385 = vrot.slane %v2377, %v2384
    %v2387 = vunpack.c.l.s4 1966171168
    %v2388 = vunpack.c.0.s8 %v2387
    %v2389 = vlaneseq
    %v2390 = vshrl.u32 %v2389, 7
    %v2391 = vsub.s32 %v2388, %v2390
    %v2392 = vrot.slane %v2378, %v2391
    %2395 = vst.msk [vmem:[#allocation3 + $0x7] sm:$0x1] %vm546, %v2385
    %2396 = vst.msk [vmem:[#allocation3 + $0xf] sm:$0x1] %vm546, %v2392
    %v2397 = vld [vmem:[#allocation2] sm:$0xff]
    %v2398 = vld [vmem:[#allocation2 + $0x8] sm:$0xff]
    %v2399 = vld [vmem:[#allocation3] sm:$0xff]
    %v2400 = vld [vmem:[#allocation3 + $0x8] sm:$0xff]
    %v2401 = vlaneseq
    %v2402 = vand.u32 %v2401, 127
    %vm2403 = vcmp.eq.s32.totalorder %v2402, 1
    %v2404 = vsel %vm2403, 1, 0
    %v2405 = vcvt.s32.f32 %v2404
    %2406 = vst [vmem:[#allocation31] sm:$0x3] %v2405
    %v2407 = vld [vmem:[%s1] sm:$0x3]
    %2408 = vset.pattern.permute.xlu0 0
    %2409 = vperm.xlu0 %2408, %v2407
    %v2410 = vpop.permute.xlu0 %2409
    %vm2411 = vcmp.eq.s32.totalorder %v2402, %v2410
    %v2412 = vsel %vm2411, 1, 0
    %v2413 = vcvt.s32.f32 %v2412
    %v2414 = vpack.c.bf16 %v2413, %v2413
    %v2418 = vunpack.c.l.b16 %v289
    %v2419 = vunpack.c.l.b16 %v290
    %v2420 = vunpack.c.l.b16 %v291
    %v2421 = vpack.c.b16 %v2419, %v2418
    %v2422 = vpack.c.b16 %v2420, %v2420
    %vm2424 = vcmask 195584
    %v2426 = vsel %vm2424, %v2414, 0
    %vm2428 = vcmask 1043456
    %v2430 = vsel %vm2428, %v2422, 0
    %2432 = vmatprep.subr.bf16.mxu0 0
    %2433 = vmatpush1.bf16.msra.mxu0 0
    %2434 = vmatprep.subr.bf16.mxu0 0
    %2435 = vmatpush1.bf16.msra.mxu0 0
    %2436 = vmatprep.subr.bf16.mxu0 0
    %2437 = vmatpush1.bf16.msra.mxu0 0
    %2438 = vmatprep.subr.bf16.mxu0 0
    %2439 = vmatpush1.bf16.msra.mxu0 0
    %2440 = vmatprep.subr.bf16.mxu0 0
    %2441 = vmatpush1.bf16.msra.mxu0 0
    %2442 = vmatprep.subr.bf16.mxu0 0
    %2443 = vmatpush1.bf16.msra.mxu0 0
    %2444 = vmatprep.subr.bf16.mxu0 0
    %2445 = vmatpush1.bf16.msra.mxu0 %v2430
    %2446 = vmatprep.subr.bf16.mxu0 0
    %2447 = vmatpush1.bf16.msra.mxu0 %v2421
    %2448 = vmatprep.subr.bf16.mxu0 0
    %2449 = vmatpush2.bf16.msra.mxu0 0
    %2450 = vmatprep.subr.bf16.mxu0 0
    %2451 = vmatpush2.bf16.msra.mxu0 0
    %2452 = vmatprep.subr.bf16.mxu0 0
    %2453 = vmatpush2.bf16.msra.mxu0 0
    %2454 = vmatprep.subr.bf16.mxu0 0
    %2455 = vmatpush2.bf16.msra.mxu0 0
    %2456 = vmatprep.subr.bf16.mxu0 0
    %2457 = vmatpush2.bf16.msra.mxu0 0
    %2458 = vmatprep.subr.bf16.mxu0 0
    %2459 = vmatpush2.bf16.msra.mxu0 0
    %2460 = vmatprep.subr.bf16.mxu0 0
    %2461 = vmatpush2.bf16.msra.mxu0 0
    %2462 = vmatprep.subr.bf16.mxu0 0
    %2463 = vmatpush2.bf16.msra.mxu0 0
    %2464 = vmatprep.mubr.bf16.mxu0 0
    %2465 = vmatmul.mubr.bf16.gmra.mxu0 %v2426
    %v2466 = vpop.f32.mrf.mxu0
    %v2467 = vadd.f32 0.0, %v2466
    %v2468 = vpop.f32.mrf.mxu0
    %v2469 = vpop.f32.mrf.mxu0
    %v2470 = vpop.f32.mrf.mxu0
    %2471 = vdwg.mxu0
    %v2472 = vpack.c.bf16 %v2283, %v2283
    %v2474 = vlaneseq
    %v2475 = vshrl.u32 %v2474, 7
    %v2476 = vsub.s32 0, %v2475
    %v2477 = vrot.slane %v301, %v2476
    %2480 = vrot.lane.b32.xlu0 %v2472, 96
    %v2481 = vpop.permute.xlu0 %2480
    %v2486 = vunpack.c.l.b16 %v297
    %v2487 = vunpack.c.l.b16 %v298
    %v2488 = vunpack.c.l.b16 %v299
    %v2489 = vunpack.c.l.b16 %v300
    %v2490 = vpack.c.b16 %v2487, %v2486
    %v2491 = vpack.c.b16 %v2489, %v2488
    %v2495 = vsel %vm358, %v2481, 0
    %2497 = vmatprep.subr.bf16.mxu0 0
    %2498 = vmatpush1.bf16.msra.mxu0 0
    %2499 = vmatprep.subr.bf16.mxu0 0
    %2500 = vmatpush1.bf16.msra.mxu0 0
    %2501 = vmatprep.subr.bf16.mxu0 0
    %2502 = vmatpush1.bf16.msra.mxu0 0
    %2503 = vmatprep.subr.bf16.mxu0 0
    %2504 = vmatpush1.bf16.msra.mxu0 0
    %2505 = vmatprep.subr.bf16.mxu0 0
    %2506 = vmatpush1.bf16.msra.mxu0 0
    %2507 = vmatprep.subr.bf16.mxu0 0
    %2508 = vmatpush1.bf16.msra.mxu0 0
    %2509 = vmatprep.subr.bf16.mxu0 0
    %2510 = vmatpush1.bf16.msra.mxu0 %v2491
    %2511 = vmatprep.subr.bf16.mxu0 0
    %2512 = vmatpush1.bf16.msra.mxu0 %v2490
    %2513 = vmatprep.subr.bf16.mxu0 0
    %2514 = vmatpush2.bf16.msra.mxu0 0
    %2515 = vmatprep.subr.bf16.mxu0 0
    %2516 = vmatpush2.bf16.msra.mxu0 0
    %2517 = vmatprep.subr.bf16.mxu0 0
    %2518 = vmatpush2.bf16.msra.mxu0 0
    %2519 = vmatprep.subr.bf16.mxu0 0
    %2520 = vmatpush2.bf16.msra.mxu0 0
    %2521 = vmatprep.subr.bf16.mxu0 0
    %2522 = vmatpush2.bf16.msra.mxu0 0
    %2523 = vmatprep.subr.bf16.mxu0 0
    %2524 = vmatpush2.bf16.msra.mxu0 0
    %2525 = vmatprep.subr.bf16.mxu0 0
    %2526 = vmatpush2.bf16.msra.mxu0 0
    %2527 = vmatprep.subr.bf16.mxu0 0
    %2528 = vmatpush2.bf16.msra.mxu0 0
    %2529 = vmatprep.mubr.bf16.mxu0 0
    %2530 = vmatmul.mubr.bf16.gmra.mxu0 %v2495
    %v2531 = vpop.f32.mrf.mxu0
    %v2532 = vadd.f32 %v2477, %v2531
    %v2533 = vpop.f32.mrf.mxu0
    %v2534 = vpop.f32.mrf.mxu0
    %v2535 = vpop.f32.mrf.mxu0
    %2536 = vdwg.mxu0
    %v2539 = vunpack.c.l.s4 1966171168
    %v2540 = vunpack.c.0.s8 %v2539
    %v2541 = vlaneseq
    %v2542 = vshrl.u32 %v2541, 7
    %v2543 = vsub.s32 %v2540, %v2542
    %v2544 = vrot.slane %v2532, %v2543
    %v2545 = vcombine.high %v2544, %v2544
    %v2547 = vunpack.c.l.s4 1966171168
    %v2548 = vunpack.c.0.s8 %v2547
    %v2549 = vlaneseq
    %v2550 = vshrl.u32 %v2549, 7
    %v2551 = vsub.s32 %v2548, %v2550
    %v2552 = vrot.slane %v2544, %v2551
    %v2554 = vunpack.c.l.s4 1966171168
    %v2555 = vunpack.c.0.s8 %v2554
    %v2556 = vlaneseq
    %v2557 = vshrl.u32 %v2556, 7
    %v2558 = vsub.s32 %v2555, %v2557
    %v2559 = vrot.slane %v2545, %v2558
    %v2560 = vlaneseq
    %v2561 = vshrl.u32 %v2560, 7
    %v2562 = vsub.s32 0, %v2561
    %v2563 = vrot.slane %v2552, %v2562
    %v2564 = vlaneseq
    %v2565 = vshrl.u32 %v2564, 7
    %v2566 = vsub.s32 0, %v2565
    %v2567 = vrot.slane %v2559, %v2566
    %v2570 = vadd.f32 %v2399, %v2563
    %v2571 = vadd.f32 %v2400, %v2567
    %v2572 = vtanh.pop %v2570
    %v2573 = vtanh.pop %v2571
    %v2575 = vlaneseq
    %v2576 = vshrl.u32 %v2575, 7
    %v2577 = vsub.s32 0, %v2576
    %v2578 = vrot.slane %v302, %v2577
    %v2580 = vmul.f32 %v2572, %v2578
    %v2581 = vmul.f32 %v2573, %v2578
    %v2582 = vsel %vm358, %v2580, 0.0
    %2583 = vadd.xlane.f32.xlu0 %v2582
    %v2584 = vpop.xlane.xlu0 %2583
    %v2585 = vsel %vm358, %v2581, 0.0
    %2586 = vadd.xlane.f32.xlu0 %v2585
    %v2587 = vpop.xlane.xlu0 %2586
    %v2589 = vlaneseq
    %v2590 = vshrl.u32 %v2589, 7
    %v2591 = vsub.s32 0, %v2590
    %v2592 = vrot.slane %v303, %v2591
    %2593 = vset.pattern.permute.xlu0 0
    %2594 = vperm.xlu0 %2593, %v2592
    %v2595 = vpop.permute.xlu0 %2594
    %v2597 = vadd.f32 %v2584, %v2595
    %v2598 = vadd.f32 %v2587, %v2595
    %v2601 = vlaneseq
    %v2602 = vshrl.u32 %v2601, 7
    %v2603 = vsub.s32 %v2402, %v2602
    %v2604 = vrot.slane %v2597, %v2603
    %v2605 = vlaneseq
    %v2606 = vshrl.u32 %v2605, 7
    %v2607 = vsub.s32 %v2402, %v2606
    %v2608 = vrot.slane %v2598, %v2607
    %v2609 = vsel %vm343, %v2608, %v2604
    %vm2611 = vcmask 58368
    %v2612 = vsel %vm2611, %v2609, -inf
    %2613 = vmax.xlane.f32.xlu0 %v2612
    %v2614 = vpop.xlane.xlu0 %2613
    %v2616 = vlaneseq
    %v2617 = vshrl.u32 %v2616, 7
    %v2618 = vsub.s32 0, %v2617
    %v2619 = vrot.slane %v2614, %v2618
    %v2620 = vlaneseq
    %v2621 = vshrl.u32 %v2620, 7
    %v2622 = vsub.s32 1, %v2621
    %v2623 = vrot.slane %v2614, %v2622
    %v2626 = vsub.f32 %v2597, %v2619
    %v2627 = vsub.f32 %v2598, %v2623
    %v2628 = vmul.f32 %v2626, 1.442695
    %v2629 = vpow.pop %v2628
    %v2630 = vmul.f32 %v2627, 1.442695
    %v2631 = vpow.pop %v2630
    %2634 = vset.pattern.permute.xlu0 0
    %2635 = vperm.xlu0 %2634, %v2629
    %v2636 = vpop.permute.xlu0 %2635
    %2637 = vset.pattern.permute.xlu0 0
    %2638 = vperm.xlu0 %2637, %v2631
    %v2639 = vpop.permute.xlu0 %2638
    %v2640 = vlaneseq
    %v2641 = vshrl.u32 %v2640, 7
    %v2642 = vsub.s32 %v2402, %v2641
    %v2643 = vrot.slane %v2636, %v2642
    %v2644 = vlaneseq
    %v2645 = vshrl.u32 %v2644, 7
    %v2646 = vsub.s32 %v2402, %v2645
    %v2647 = vrot.slane %v2639, %v2646
    %v2648 = vsel %vm343, %v2647, %v2643
    %v2650 = vsel %vm2611, %v2648, 0.0
    %2651 = vadd.xlane.f32.xlu0 %v2650
    %v2652 = vpop.xlane.xlu0 %2651
    %v2654 = vlaneseq
    %v2655 = vshrl.u32 %v2654, 7
    %v2656 = vsub.s32 0, %v2655
    %v2657 = vrot.slane %v2652, %v2656
    %v2658 = vlaneseq
    %v2659 = vshrl.u32 %v2658, 7
    %v2660 = vsub.s32 1, %v2659
    %v2661 = vrot.slane %v2652, %v2660
    %v2664 = vrcp.pop %v2657
    %v2665 = vmul.f32 %v2629, %v2664
    %v2666 = vrcp.pop %v2661
    %v2667 = vmul.f32 %v2631, %v2666
    %2669 = vset.pattern.permute.xlu0 0
    %2670 = vperm.xlu0 %2669, %v2665
    %v2671 = vpop.permute.xlu0 %2670
    %2674 = vset.pattern.permute.xlu0 0
    %2675 = vperm.xlu0 %2674, %v2667
    %v2676 = vpop.permute.xlu0 %2675
    %v2678 = vmul.f32 %v2671, %v2397
    %v2679 = vmul.f32 %v2676, %v2398
    %v2680 = vsel %vm358, %v2678, 0.0
    %v2681 = vrot.slane %v2680, 4
    %v2682 = vadd.f32 %v2680, %v2681
    %v2683 = vrot.slane %v2682, 2
    %v2684 = vadd.f32 %v2682, %v2683
    %v2685 = vrot.slane %v2684, 1
    %v2686 = vadd.f32 %v2684, %v2685
    %v2687 = vsel %vm358, %v2679, 0.0
    %v2688 = vrot.slane %v2687, 4
    %v2689 = vadd.f32 %v2687, %v2688
    %v2690 = vrot.slane %v2689, 2
    %v2691 = vadd.f32 %v2689, %v2690
    %v2692 = vrot.slane %v2691, 1
    %v2693 = vadd.f32 %v2691, %v2692
    %v2696 = vsel %vm343, %v2693, %v2686
    %2699 = vrot.lane.b32.xlu0 %v2467, 32
    %v2700 = vpop.permute.xlu0 %2699
    %v2702 = vsel %vm358, %v2696, %v2700
    %v2703 = vpack.c.bf16 %v2702, %v2702
    %v2705 = vlaneseq
    %v2706 = vshrl.u32 %v2705, 7
    %v2707 = vsub.s32 0, %v2706
    %v2708 = vrot.slane %v316, %v2707
    %v2718 = vunpack.c.l.b16 %v304
    %v2719 = vunpack.c.l.b16 %v305
    %v2720 = vunpack.c.l.b16 %v306
    %v2721 = vunpack.c.l.b16 %v307
    %v2722 = vunpack.c.l.b16 %v308
    %v2723 = vunpack.c.l.b16 %v309
    %v2724 = vunpack.c.l.b16 %v310
    %v2725 = vunpack.c.l.b16 %v311
    %v2726 = vpack.c.b16 %v2719, %v2718
    %v2727 = vpack.c.b16 %v2721, %v2720
    %v2728 = vpack.c.b16 %v2723, %v2722
    %v2729 = vpack.c.b16 %v2725, %v2724
    %vm2734 = vcmask 523264
    %v2736 = vsel %vm2734, %v2703, 0
    %2738 = vmatprep.subr.bf16.mxu0 0
    %2739 = vmatpush1.bf16.msra.mxu0 0
    %2740 = vmatprep.subr.bf16.mxu0 0
    %2741 = vmatpush1.bf16.msra.mxu0 0
    %2742 = vmatprep.subr.bf16.mxu0 0
    %2743 = vmatpush1.bf16.msra.mxu0 0
    %2744 = vmatprep.subr.bf16.mxu0 0
    %2745 = vmatpush1.bf16.msra.mxu0 0
    %2746 = vmatprep.subr.bf16.mxu0 0
    %2747 = vmatpush1.bf16.msra.mxu0 %v2729
    %2748 = vmatprep.subr.bf16.mxu0 0
    %2749 = vmatpush1.bf16.msra.mxu0 %v2728
    %2750 = vmatprep.subr.bf16.mxu0 0
    %2751 = vmatpush1.bf16.msra.mxu0 %v2727
    %2752 = vmatprep.subr.bf16.mxu0 0
    %2753 = vmatpush1.bf16.msra.mxu0 %v2726
    %2754 = vmatprep.subr.bf16.mxu0 0
    %2755 = vmatpush2.bf16.msra.mxu0 0
    %2756 = vmatprep.subr.bf16.mxu0 0
    %2757 = vmatpush2.bf16.msra.mxu0 0
    %2758 = vmatprep.subr.bf16.mxu0 0
    %2759 = vmatpush2.bf16.msra.mxu0 0
    %2760 = vmatprep.subr.bf16.mxu0 0
    %2761 = vmatpush2.bf16.msra.mxu0 0
    %2762 = vmatprep.subr.bf16.mxu0 0
    %2763 = vmatpush2.bf16.msra.mxu0 0
    %2764 = vmatprep.subr.bf16.mxu0 0
    %2765 = vmatpush2.bf16.msra.mxu0 0
    %2766 = vmatprep.subr.bf16.mxu0 0
    %2767 = vmatpush2.bf16.msra.mxu0 0
    %2768 = vmatprep.subr.bf16.mxu0 0
    %2769 = vmatpush2.bf16.msra.mxu0 0
    %2770 = vmatprep.mubr.bf16.mxu0 0
    %2771 = vmatmul.mubr.bf16.gmra.mxu0 %v2736
    %v2772 = vpop.f32.mrf.mxu0
    %v2773 = vadd.f32 %v2708, %v2772
    %v2774 = vpop.f32.mrf.mxu0
    %v2775 = vpop.f32.mrf.mxu0
    %v2776 = vpop.f32.mrf.mxu0
    %2777 = vdwg.mxu0
    %v2782 = vunpack.c.l.b16 %v312
    %v2783 = vunpack.c.l.b16 %v313
    %v2784 = vunpack.c.l.b16 %v314
    %v2785 = vunpack.c.l.b16 %v315
    %v2786 = vpack.c.b16 %v2783, %v2782
    %v2787 = vpack.c.b16 %v2785, %v2784
    %2790 = vmatprep.subr.bf16.mxu0 0
    %2791 = vmatpush1.bf16.msra.mxu0 0
    %2792 = vmatprep.subr.bf16.mxu0 0
    %2793 = vmatpush1.bf16.msra.mxu0 0
    %2794 = vmatprep.subr.bf16.mxu0 0
    %2795 = vmatpush1.bf16.msra.mxu0 0
    %2796 = vmatprep.subr.bf16.mxu0 0
    %2797 = vmatpush1.bf16.msra.mxu0 0
    %2798 = vmatprep.subr.bf16.mxu0 0
    %2799 = vmatpush1.bf16.msra.mxu0 0
    %2800 = vmatprep.subr.bf16.mxu0 0
    %2801 = vmatpush1.bf16.msra.mxu0 0
    %2802 = vmatprep.subr.bf16.mxu0 0
    %2803 = vmatpush1.bf16.msra.mxu0 %v2787
    %2804 = vmatprep.subr.bf16.mxu0 0
    %2805 = vmatpush1.bf16.msra.mxu0 %v2786
    %2806 = vmatprep.subr.bf16.mxu0 0
    %2807 = vmatpush2.bf16.msra.mxu0 0
    %2808 = vmatprep.subr.bf16.mxu0 0
    %2809 = vmatpush2.bf16.msra.mxu0 0
    %2810 = vmatprep.subr.bf16.mxu0 0
    %2811 = vmatpush2.bf16.msra.mxu0 0
    %2812 = vmatprep.subr.bf16.mxu0 0
    %2813 = vmatpush2.bf16.msra.mxu0 0
    %2814 = vmatprep.subr.bf16.mxu0 0
    %2815 = vmatpush2.bf16.msra.mxu0 0
    %2816 = vmatprep.subr.bf16.mxu0 0
    %2817 = vmatpush2.bf16.msra.mxu0 0
    %2818 = vmatprep.subr.bf16.mxu0 0
    %2819 = vmatpush2.bf16.msra.mxu0 0
    %2820 = vmatprep.subr.bf16.mxu0 0
    %2821 = vmatpush2.bf16.msra.mxu0 0
    %2822 = vmatprep.mubr.bf16.mxu0 0
    %2823 = vmatmul.mubr.bf16.gmra.mxu0 %v2495
    %v2824 = vpop.f32.mrf.mxu0
    %v2825 = vadd.f32 0.0, %v2824
    %v2826 = vpop.f32.mrf.mxu0
    %v2827 = vpop.f32.mrf.mxu0
    %v2828 = vpop.f32.mrf.mxu0
    %2829 = vdwg.mxu0
    %v2830 = vadd.f32 %v2773, %v2825
    %v2831 = vxor.u32 %v2830, 2147483648
    %v2832 = vmul.f32 %v2831, 1.442695
    %v2833 = vpow.pop %v2832
    %v2834 = vadd.f32 %v2833, 1.0
    %v2835 = vrcp.pop %v2834
    %v2836 = vmul.f32 1.0, %v2835
    %v2838 = vlaneseq
    %v2839 = vshrl.u32 %v2838, 7
    %v2840 = vsub.s32 0, %v2839
    %v2841 = vrot.slane %v317, %v2840
    %2842 = vrot.lane.b32.xlu0 %v2841, 64
    %v2843 = vpop.permute.xlu0 %2842
    %v2845 = vadd.f32 %v2825, %v2843
    %2847 = vrot.lane.b32.xlu0 %v2845, 64
    %v2848 = vpop.permute.xlu0 %2847
    %v2850 = vmul.f32 %v2836, %v2848
    %2852 = vrot.lane.b32.xlu0 %v2850, 64
    %v2853 = vpop.permute.xlu0 %2852
    %v2855 = vadd.f32 %v2773, %v2853
    %v2856 = vtanh.pop %v2855
    %v2857 = vsub.f32 1.0, %v2836
    %2859 = vrot.lane.b32.xlu0 %v2856, 96
    %v2860 = vpop.permute.xlu0 %2859
    %v2862 = vmul.f32 %v2857, %v2860
    %v2863 = vmul.f32 %v2836, %v2283
    %v2864 = vadd.f32 %v2862, %v2863
    %v2865 = vpack.c.bf16 %v2864, %v2864
    %v2867 = vlaneseq
    %v2868 = vshrl.u32 %v2867, 7
    %v2869 = vsub.s32 0, %v2868
    %v2870 = vrot.slane %v322, %v2869
    %2873 = vrot.lane.b32.xlu0 %v2865, 96
    %v2874 = vpop.permute.xlu0 %2873
    %v2879 = vunpack.c.l.b16 %v318
    %v2880 = vunpack.c.l.b16 %v319
    %v2881 = vunpack.c.l.b16 %v320
    %v2882 = vunpack.c.l.b16 %v321
    %v2883 = vpack.c.b16 %v2880, %v2879
    %v2884 = vpack.c.b16 %v2882, %v2881
    %v2888 = vsel %vm358, %v2874, 0
    %2890 = vmatprep.subr.bf16.mxu0 0
    %2891 = vmatpush1.bf16.msra.mxu0 0
    %2892 = vmatprep.subr.bf16.mxu0 0
    %2893 = vmatpush1.bf16.msra.mxu0 0
    %2894 = vmatprep.subr.bf16.mxu0 0
    %2895 = vmatpush1.bf16.msra.mxu0 0
    %2896 = vmatprep.subr.bf16.mxu0 0
    %2897 = vmatpush1.bf16.msra.mxu0 0
    %2898 = vmatprep.subr.bf16.mxu0 0
    %2899 = vmatpush1.bf16.msra.mxu0 0
    %2900 = vmatprep.subr.bf16.mxu0 0
    %2901 = vmatpush1.bf16.msra.mxu0 0
    %2902 = vmatprep.subr.bf16.mxu0 0
    %2903 = vmatpush1.bf16.msra.mxu0 %v2884
    %2904 = vmatprep.subr.bf16.mxu0 0
    %2905 = vmatpush1.bf16.msra.mxu0 %v2883
    %2906 = vmatprep.subr.bf16.mxu0 0
    %2907 = vmatpush2.bf16.msra.mxu0 0
    %2908 = vmatprep.subr.bf16.mxu0 0
    %2909 = vmatpush2.bf16.msra.mxu0 0
    %2910 = vmatprep.subr.bf16.mxu0 0
    %2911 = vmatpush2.bf16.msra.mxu0 0
    %2912 = vmatprep.subr.bf16.mxu0 0
    %2913 = vmatpush2.bf16.msra.mxu0 0
    %2914 = vmatprep.subr.bf16.mxu0 0
    %2915 = vmatpush2.bf16.msra.mxu0 0
    %2916 = vmatprep.subr.bf16.mxu0 0
    %2917 = vmatpush2.bf16.msra.mxu0 0
    %2918 = vmatprep.subr.bf16.mxu0 0
    %2919 = vmatpush2.bf16.msra.mxu0 0
    %2920 = vmatprep.subr.bf16.mxu0 0
    %2921 = vmatpush2.bf16.msra.mxu0 0
    %2922 = vmatprep.mubr.bf16.mxu0 0
    %2923 = vmatmul.mubr.bf16.gmra.mxu0 %v2888
    %v2924 = vpop.f32.mrf.mxu0
    %v2925 = vadd.f32 %v2870, %v2924
    %v2926 = vpop.f32.mrf.mxu0
    %v2927 = vpop.f32.mrf.mxu0
    %v2928 = vpop.f32.mrf.mxu0
    %2929 = vdwg.mxu0
    %vm2930 = vcmp.gt.f32.partialorder %v2925, 0.0
    %v2931 = vmul.f32 %v2925, 0.01
    %v2932 = vsel %vm2930, %v2925, %v2931
    %v2934 = vlaneseq
    %v2935 = vshrl.u32 %v2934, 7
    %v2936 = vsub.s32 0, %v2935
    %v2937 = vrot.slane %v327, %v2936
    %v2940 = vsel %vm358, %v2932, 0
    %2942 = vmatprep.subr.mxu0 0.0
    %2943 = vmatpush1.msra.mxu0 0.0
    %2944 = vmatprep.subr.mxu0 0.0
    %2945 = vmatpush1.msra.mxu0 0.0
    %2946 = vmatprep.subr.mxu0 0.0
    %2947 = vmatpush1.msra.mxu0 0.0
    %2948 = vmatprep.subr.mxu0 0.0
    %2949 = vmatpush1.msra.mxu0 0.0
    %2950 = vmatprep.subr.mxu0 0.0
    %2951 = vmatpush1.msra.mxu0 0.0
    %2952 = vmatprep.subr.mxu0 0.0
    %2953 = vmatpush1.msra.mxu0 0.0
    %2954 = vmatprep.subr.mxu0 0.0
    %2955 = vmatpush1.msra.mxu0 0.0
    %2956 = vmatprep.subr.mxu0 0.0
    %2957 = vmatpush1.msra.mxu0 0.0
    %2958 = vmatprep.subr.mxu0 0.0
    %2959 = vmatpush1.msra.mxu0 0.0
    %2960 = vmatprep.subr.mxu0 0.0
    %2961 = vmatpush1.msra.mxu0 0.0
    %2962 = vmatprep.subr.mxu0 0.0
    %2963 = vmatpush1.msra.mxu0 0.0
    %2964 = vmatprep.subr.mxu0 0.0
    %2965 = vmatpush1.msra.mxu0 0.0
    %2966 = vmatprep.subr.mxu0 0.0
    %2967 = vmatpush1.msra.mxu0 %v326
    %2968 = vmatprep.subr.mxu0 0.0
    %2969 = vmatpush1.msra.mxu0 %v325
    %2970 = vmatprep.subr.mxu0 0.0
    %2971 = vmatpush1.msra.mxu0 %v324
    %2972 = vmatprep.subr.mxu0 0.0
    %2973 = vmatpush1.msra.mxu0 %v323
    %2974 = vmatprep.subr.mxu0 0.0
    %2975 = vmatpush2.msra.mxu0 0.0
    %2976 = vmatprep.subr.mxu0 0.0
    %2977 = vmatpush2.msra.mxu0 0.0
    %2978 = vmatprep.subr.mxu0 0.0
    %2979 = vmatpush2.msra.mxu0 0.0
    %2980 = vmatprep.subr.mxu0 0.0
    %2981 = vmatpush2.msra.mxu0 0.0
    %2982 = vmatprep.subr.mxu0 0.0
    %2983 = vmatpush2.msra.mxu0 0.0
    %2984 = vmatprep.subr.mxu0 0.0
    %2985 = vmatpush2.msra.mxu0 0.0
    %2986 = vmatprep.subr.mxu0 0.0
    %2987 = vmatpush2.msra.mxu0 0.0
    %2988 = vmatprep.subr.mxu0 0.0
    %2989 = vmatpush2.msra.mxu0 0.0
    %2990 = vmatprep.subr.mxu0 0.0
    %2991 = vmatpush2.msra.mxu0 0.0
    %2992 = vmatprep.subr.mxu0 0.0
    %2993 = vmatpush2.msra.mxu0 0.0
    %2994 = vmatprep.subr.mxu0 0.0
    %2995 = vmatpush2.msra.mxu0 0.0
    %2996 = vmatprep.subr.mxu0 0.0
    %2997 = vmatpush2.msra.mxu0 0.0
    %2998 = vmatprep.subr.mxu0 0.0
    %2999 = vmatpush2.msra.mxu0 0.0
    %3000 = vmatprep.subr.mxu0 0.0
    %3001 = vmatpush2.msra.mxu0 0.0
    %3002 = vmatprep.subr.mxu0 0.0
    %3003 = vmatpush2.msra.mxu0 0.0
    %3004 = vmatprep.subr.mxu0 0.0
    %3005 = vmatpush2.msra.mxu0 0.0
    %3006 = vmatprep.mubr.f32.mxu0 0.0
    %3007 = vmatmul.mubr.f32.gmra.mxu0 %v2940
    %v3008 = vpop.f32.mrf.mxu0
    %v3009 = vadd.f32 %v2937, %v3008
    %v3010 = vpop.f32.mrf.mxu0
    %3011 = vdwg.mxu0
    %s3012 = scalar_lea.vmem [#allocation31], 2
    %3013 = vst [vmem:[%s3012] sm:$0x3] %v3009
    %vm3014 = vcmask 1041408
    %v3015 = vsel %vm3014, %v3009, -inf
    %3016 = vmax.xlane.f32.xlu0 %v3015
    %v3017 = vpop.xlane.xlu0 %3016
    %vm3018 = vcmp.eq.f32.partialorder %v3009, %v3017
    %v3019 = vsel %vm3018, %v2402, 128
    %v3020 = vsel %vm3014, %v3019, 2147483647
    %v3021 = vand.u32 %v3020, 65535
    %v3022 = vshra.s32 %v3020, 16
    %v3023 = vcvt.s32.f32 %v3021
    %v3024 = vcvt.s32.f32 %v3022
    %3025 = vmin.xlane.f32.xlu0 %v3024
    %v3026 = vpop.xlane.xlu0 %3025
    %vm3027 = vcmp.eq.f32.partialorder %v3024, %v3026
    %v3028 = vsel %vm3027, %v3023, inf
    %3029 = vmin.xlane.f32.xlu0 %v3028
    %v3030 = vpop.xlane.xlu0 %3029
    %v3031 = vcvt.f32.s32 %v3030
    %v3032 = vcvt.f32.s32 %v3026
    %v3033 = vshll.u32 %v3032, 16
    %v3034 = vadd.s32 %v3033, %v3031
    %vm3035 = vcmp.eq.s32.totalorder %v2402, %v3034
    %v3036 = vsel %vm3035, 1, 0
    %v3037 = vcvt.s32.f32 %v3036
    %v3038 = vpack.c.bf16 %v3037, %v3037
    %v3040 = vsel %vm2424, %v3038, 0
    %3042 = vmatprep.subr.bf16.mxu0 0
    %3043 = vmatpush1.bf16.msra.mxu0 0
    %3044 = vmatprep.subr.bf16.mxu0 0
    %3045 = vmatpush1.bf16.msra.mxu0 0
    %3046 = vmatprep.subr.bf16.mxu0 0
    %3047 = vmatpush1.bf16.msra.mxu0 0
    %3048 = vmatprep.subr.bf16.mxu0 0
    %3049 = vmatpush1.bf16.msra.mxu0 0
    %3050 = vmatprep.subr.bf16.mxu0 0
    %3051 = vmatpush1.bf16.msra.mxu0 0
    %3052 = vmatprep.subr.bf16.mxu0 0
    %3053 = vmatpush1.bf16.msra.mxu0 0
    %3054 = vmatprep.subr.bf16.mxu0 0
    %3055 = vmatpush1.bf16.msra.mxu0 %v2430
    %3056 = vmatprep.subr.bf16.mxu0 0
    %3057 = vmatpush1.bf16.msra.mxu0 %v2421
    %3058 = vmatprep.subr.bf16.mxu0 0
    %3059 = vmatpush2.bf16.msra.mxu0 0
    %3060 = vmatprep.subr.bf16.mxu0 0
    %3061 = vmatpush2.bf16.msra.mxu0 0
    %3062 = vmatprep.subr.bf16.mxu0 0
    %3063 = vmatpush2.bf16.msra.mxu0 0
    %3064 = vmatprep.subr.bf16.mxu0 0
    %3065 = vmatpush2.bf16.msra.mxu0 0
    %3066 = vmatprep.subr.bf16.mxu0 0
    %3067 = vmatpush2.bf16.msra.mxu0 0
    %3068 = vmatprep.subr.bf16.mxu0 0
    %3069 = vmatpush2.bf16.msra.mxu0 0
    %3070 = vmatprep.subr.bf16.mxu0 0
    %3071 = vmatpush2.bf16.msra.mxu0 0
    %3072 = vmatprep.subr.bf16.mxu0 0
    %3073 = vmatpush2.bf16.msra.mxu0 0
    %3074 = vmatprep.mubr.bf16.mxu0 0
    %3075 = vmatmul.mubr.bf16.gmra.mxu0 %v3040
    %v3076 = vpop.f32.mrf.mxu0
    %v3077 = vadd.f32 0.0, %v3076
    %v3078 = vpop.f32.mrf.mxu0
    %v3079 = vpop.f32.mrf.mxu0
    %v3080 = vpop.f32.mrf.mxu0
    %3081 = vdwg.mxu0
    %3082 = vmatprep.subr.bf16.mxu0 0
    %3083 = vmatpush1.bf16.msra.mxu0 0
    %3084 = vmatprep.subr.bf16.mxu0 0
    %3085 = vmatpush1.bf16.msra.mxu0 0
    %3086 = vmatprep.subr.bf16.mxu0 0
    %3087 = vmatpush1.bf16.msra.mxu0 0
    %3088 = vmatprep.subr.bf16.mxu0 0
    %3089 = vmatpush1.bf16.msra.mxu0 0
    %3090 = vmatprep.subr.bf16.mxu0 0
    %3091 = vmatpush1.bf16.msra.mxu0 0
    %3092 = vmatprep.subr.bf16.mxu0 0
    %3093 = vmatpush1.bf16.msra.mxu0 0
    %3094 = vmatprep.subr.bf16.mxu0 0
    %3095 = vmatpush1.bf16.msra.mxu0 %v2491
    %3096 = vmatprep.subr.bf16.mxu0 0
    %3097 = vmatpush1.bf16.msra.mxu0 %v2490
    %3098 = vmatprep.subr.bf16.mxu0 0
    %3099 = vmatpush2.bf16.msra.mxu0 0
    %3100 = vmatprep.subr.bf16.mxu0 0
    %3101 = vmatpush2.bf16.msra.mxu0 0
    %3102 = vmatprep.subr.bf16.mxu0 0
    %3103 = vmatpush2.bf16.msra.mxu0 0
    %3104 = vmatprep.subr.bf16.mxu0 0
    %3105 = vmatpush2.bf16.msra.mxu0 0
    %3106 = vmatprep.subr.bf16.mxu0 0
    %3107 = vmatpush2.bf16.msra.mxu0 0
    %3108 = vmatprep.subr.bf16.mxu0 0
    %3109 = vmatpush2.bf16.msra.mxu0 0
    %3110 = vmatprep.subr.bf16.mxu0 0
    %3111 = vmatpush2.bf16.msra.mxu0 0
    %3112 = vmatprep.subr.bf16.mxu0 0
    %3113 = vmatpush2.bf16.msra.mxu0 0
    %3114 = vmatprep.mubr.bf16.mxu0 0
    %3115 = vmatmul.mubr.bf16.gmra.mxu0 %v2888
    %v3116 = vpop.f32.mrf.mxu0
    %v3117 = vadd.f32 %v2477, %v3116
    %v3118 = vpop.f32.mrf.mxu0
    %v3119 = vpop.f32.mrf.mxu0
    %v3120 = vpop.f32.mrf.mxu0
    %3121 = vdwg.mxu0
    %v3124 = vunpack.c.l.s4 1966171168
    %v3125 = vunpack.c.0.s8 %v3124
    %v3126 = vlaneseq
    %v3127 = vshrl.u32 %v3126, 7
    %v3128 = vsub.s32 %v3125, %v3127
    %v3129 = vrot.slane %v3117, %v3128
    %v3130 = vcombine.high %v3129, %v3129
    %v3132 = vunpack.c.l.s4 1966171168
    %v3133 = vunpack.c.0.s8 %v3132
    %v3134 = vlaneseq
    %v3135 = vshrl.u32 %v3134, 7
    %v3136 = vsub.s32 %v3133, %v3135
    %v3137 = vrot.slane %v3129, %v3136
    %v3139 = vunpack.c.l.s4 1966171168
    %v3140 = vunpack.c.0.s8 %v3139
    %v3141 = vlaneseq
    %v3142 = vshrl.u32 %v3141, 7
    %v3143 = vsub.s32 %v3140, %v3142
    %v3144 = vrot.slane %v3130, %v3143
    %v3145 = vlaneseq
    %v3146 = vshrl.u32 %v3145, 7
    %v3147 = vsub.s32 0, %v3146
    %v3148 = vrot.slane %v3137, %v3147
    %v3149 = vlaneseq
    %v3150 = vshrl.u32 %v3149, 7
    %v3151 = vsub.s32 0, %v3150
    %v3152 = vrot.slane %v3144, %v3151
    %v3155 = vadd.f32 %v2399, %v3148
    %v3156 = vadd.f32 %v2400, %v3152
    %v3157 = vtanh.pop %v3155
    %v3158 = vtanh.pop %v3156
    %v3159 = vmul.f32 %v3157, %v2578
    %v3160 = vmul.f32 %v3158, %v2578
    %v3161 = vsel %vm358, %v3159, 0.0
    %3162 = vadd.xlane.f32.xlu0 %v3161
    %v3163 = vpop.xlane.xlu0 %3162
    %v3164 = vsel %vm358, %v3160, 0.0
    %3165 = vadd.xlane.f32.xlu0 %v3164
    %v3166 = vpop.xlane.xlu0 %3165
    %v3167 = vadd.f32 %v3163, %v2595
    %v3168 = vadd.f32 %v3166, %v2595
    %v3171 = vlaneseq
    %v3172 = vshrl.u32 %v3171, 7
    %v3173 = vsub.s32 %v2402, %v3172
    %v3174 = vrot.slane %v3167, %v3173
    %v3175 = vlaneseq
    %v3176 = vshrl.u32 %v3175, 7
    %v3177 = vsub.s32 %v2402, %v3176
    %v3178 = vrot.slane %v3168, %v3177
    %v3179 = vsel %vm343, %v3178, %v3174
    %v3181 = vsel %vm2611, %v3179, -inf
    %3182 = vmax.xlane.f32.xlu0 %v3181
    %v3183 = vpop.xlane.xlu0 %3182
    %v3185 = vlaneseq
    %v3186 = vshrl.u32 %v3185, 7
    %v3187 = vsub.s32 0, %v3186
    %v3188 = vrot.slane %v3183, %v3187
    %v3189 = vlaneseq
    %v3190 = vshrl.u32 %v3189, 7
    %v3191 = vsub.s32 1, %v3190
    %v3192 = vrot.slane %v3183, %v3191
    %v3195 = vsub.f32 %v3167, %v3188
    %v3196 = vsub.f32 %v3168, %v3192
    %v3197 = vmul.f32 %v3195, 1.442695
    %v3198 = vpow.pop %v3197
    %v3199 = vmul.f32 %v3196, 1.442695
    %v3200 = vpow.pop %v3199
    %3203 = vset.pattern.permute.xlu0 0
    %3204 = vperm.xlu0 %3203, %v3198
    %v3205 = vpop.permute.xlu0 %3204
    %3206 = vset.pattern.permute.xlu0 0
    %3207 = vperm.xlu0 %3206, %v3200
    %v3208 = vpop.permute.xlu0 %3207
    %v3209 = vlaneseq
    %v3210 = vshrl.u32 %v3209, 7
    %v3211 = vsub.s32 %v2402, %v3210
    %v3212 = vrot.slane %v3205, %v3211
    %v3213 = vlaneseq
    %v3214 = vshrl.u32 %v3213, 7
    %v3215 = vsub.s32 %v2402, %v3214
    %v3216 = vrot.slane %v3208, %v3215
    %v3217 = vsel %vm343, %v3216, %v3212
    %v3219 = vsel %vm2611, %v3217, 0.0
    %3220 = vadd.xlane.f32.xlu0 %v3219
    %v3221 = vpop.xlane.xlu0 %3220
    %v3223 = vlaneseq
    %v3224 = vshrl.u32 %v3223, 7
    %v3225 = vsub.s32 0, %v3224
    %v3226 = vrot.slane %v3221, %v3225
    %v3227 = vlaneseq
    %v3228 = vshrl.u32 %v3227, 7
    %v3229 = vsub.s32 1, %v3228
    %v3230 = vrot.slane %v3221, %v3229
    %v3233 = vrcp.pop %v3226
    %v3234 = vmul.f32 %v3198, %v3233
    %v3235 = vrcp.pop %v3230
    %v3236 = vmul.f32 %v3200, %v3235
    %3238 = vset.pattern.permute.xlu0 0
    %3239 = vperm.xlu0 %3238, %v3234
    %v3240 = vpop.permute.xlu0 %3239
    %3243 = vset.pattern.permute.xlu0 0
    %3244 = vperm.xlu0 %3243, %v3236
    %v3245 = vpop.permute.xlu0 %3244
    %v3247 = vmul.f32 %v3240, %v2397
    %v3248 = vmul.f32 %v3245, %v2398
    %v3249 = vsel %vm358, %v3247, 0.0
    %v3250 = vrot.slane %v3249, 4
    %v3251 = vadd.f32 %v3249, %v3250
    %v3252 = vrot.slane %v3251, 2
    %v3253 = vadd.f32 %v3251, %v3252
    %v3254 = vrot.slane %v3253, 1
    %v3255 = vadd.f32 %v3253, %v3254
    %v3256 = vsel %vm358, %v3248, 0.0
    %v3257 = vrot.slane %v3256, 4
    %v3258 = vadd.f32 %v3256, %v3257
    %v3259 = vrot.slane %v3258, 2
    %v3260 = vadd.f32 %v3258, %v3259
    %v3261 = vrot.slane %v3260, 1
    %v3262 = vadd.f32 %v3260, %v3261
    %v3265 = vsel %vm343, %v3262, %v3255
    %3268 = vrot.lane.b32.xlu0 %v3077, 32
    %v3269 = vpop.permute.xlu0 %3268
    %v3271 = vsel %vm358, %v3265, %v3269
    %v3272 = vpack.c.bf16 %v3271, %v3271
    %v3274 = vsel %vm2734, %v3272, 0
    %3276 = vmatprep.subr.bf16.mxu0 0
    %3277 = vmatpush1.bf16.msra.mxu0 0
    %3278 = vmatprep.subr.bf16.mxu0 0
    %3279 = vmatpush1.bf16.msra.mxu0 0
    %3280 = vmatprep.subr.bf16.mxu0 0
    %3281 = vmatpush1.bf16.msra.mxu0 0
    %3282 = vmatprep.subr.bf16.mxu0 0
    %3283 = vmatpush1.bf16.msra.mxu0 0
    %3284 = vmatprep.subr.bf16.mxu0 0
    %3285 = vmatpush1.bf16.msra.mxu0 %v2729
    %3286 = vmatprep.subr.bf16.mxu0 0
    %3287 = vmatpush1.bf16.msra.mxu0 %v2728
    %3288 = vmatprep.subr.bf16.mxu0 0
    %3289 = vmatpush1.bf16.msra.mxu0 %v2727
    %3290 = vmatprep.subr.bf16.mxu0 0
    %3291 = vmatpush1.bf16.msra.mxu0 %v2726
    %3292 = vmatprep.subr.bf16.mxu0 0
    %3293 = vmatpush2.bf16.msra.mxu0 0
    %3294 = vmatprep.subr.bf16.mxu0 0
    %3295 = vmatpush2.bf16.msra.mxu0 0
    %3296 = vmatprep.subr.bf16.mxu0 0
    %3297 = vmatpush2.bf16.msra.mxu0 0
    %3298 = vmatprep.subr.bf16.mxu0 0
    %3299 = vmatpush2.bf16.msra.mxu0 0
    %3300 = vmatprep.subr.bf16.mxu0 0
    %3301 = vmatpush2.bf16.msra.mxu0 0
    %3302 = vmatprep.subr.bf16.mxu0 0
    %3303 = vmatpush2.bf16.msra.mxu0 0
    %3304 = vmatprep.subr.bf16.mxu0 0
    %3305 = vmatpush2.bf16.msra.mxu0 0
    %3306 = vmatprep.subr.bf16.mxu0 0
    %3307 = vmatpush2.bf16.msra.mxu0 0
    %3308 = vmatprep.mubr.bf16.mxu0 0
    %3309 = vmatmul.mubr.bf16.gmra.mxu0 %v3274
    %v3310 = vpop.f32.mrf.mxu0
    %v3311 = vadd.f32 %v2708, %v3310
    %v3312 = vpop.f32.mrf.mxu0
    %v3313 = vpop.f32.mrf.mxu0
    %v3314 = vpop.f32.mrf.mxu0
    %3315 = vdwg.mxu0
    %3316 = vmatprep.subr.bf16.mxu0 0
    %3317 = vmatpush1.bf16.msra.mxu0 0
    %3318 = vmatprep.subr.bf16.mxu0 0
    %3319 = vmatpush1.bf16.msra.mxu0 0
    %3320 = vmatprep.subr.bf16.mxu0 0
    %3321 = vmatpush1.bf16.msra.mxu0 0
    %3322 = vmatprep.subr.bf16.mxu0 0
    %3323 = vmatpush1.bf16.msra.mxu0 0
    %3324 = vmatprep.subr.bf16.mxu0 0
    %3325 = vmatpush1.bf16.msra.mxu0 0
    %3326 = vmatprep.subr.bf16.mxu0 0
    %3327 = vmatpush1.bf16.msra.mxu0 0
    %3328 = vmatprep.subr.bf16.mxu0 0
    %3329 = vmatpush1.bf16.msra.mxu0 %v2787
    %3330 = vmatprep.subr.bf16.mxu0 0
    %3331 = vmatpush1.bf16.msra.mxu0 %v2786
    %3332 = vmatprep.subr.bf16.mxu0 0
    %3333 = vmatpush2.bf16.msra.mxu0 0
    %3334 = vmatprep.subr.bf16.mxu0 0
    %3335 = vmatpush2.bf16.msra.mxu0 0
    %3336 = vmatprep.subr.bf16.mxu0 0
    %3337 = vmatpush2.bf16.msra.mxu0 0
    %3338 = vmatprep.subr.bf16.mxu0 0
    %3339 = vmatpush2.bf16.msra.mxu0 0
    %3340 = vmatprep.subr.bf16.mxu0 0
    %3341 = vmatpush2.bf16.msra.mxu0 0
    %3342 = vmatprep.subr.bf16.mxu0 0
    %3343 = vmatpush2.bf16.msra.mxu0 0
    %3344 = vmatprep.subr.bf16.mxu0 0
    %3345 = vmatpush2.bf16.msra.mxu0 0
    %3346 = vmatprep.subr.bf16.mxu0 0
    %3347 = vmatpush2.bf16.msra.mxu0 0
    %3348 = vmatprep.mubr.bf16.mxu0 0
    %3349 = vmatmul.mubr.bf16.gmra.mxu0 %v2888
    %v3350 = vpop.f32.mrf.mxu0
    %v3351 = vadd.f32 0.0, %v3350
    %v3352 = vpop.f32.mrf.mxu0
    %v3353 = vpop.f32.mrf.mxu0
    %v3354 = vpop.f32.mrf.mxu0
    %3355 = vdwg.mxu0
    %v3356 = vadd.f32 %v3311, %v3351
    %v3357 = vxor.u32 %v3356, 2147483648
    %v3358 = vmul.f32 %v3357, 1.442695
    %v3359 = vpow.pop %v3358
    %v3360 = vadd.f32 %v3359, 1.0
    %v3361 = vrcp.pop %v3360
    %v3362 = vmul.f32 1.0, %v3361
    %v3363 = vadd.f32 %v3351, %v2843
    %3365 = vrot.lane.b32.xlu0 %v3363, 64
    %v3366 = vpop.permute.xlu0 %3365
    %v3368 = vmul.f32 %v3362, %v3366
    %3370 = vrot.lane.b32.xlu0 %v3368, 64
    %v3371 = vpop.permute.xlu0 %3370
    %v3373 = vadd.f32 %v3311, %v3371
    %v3374 = vtanh.pop %v3373
    %v3375 = vsub.f32 1.0, %v3362
    %3377 = vrot.lane.b32.xlu0 %v3374, 96
    %v3378 = vpop.permute.xlu0 %3377
    %v3380 = vmul.f32 %v3375, %v3378
    %v3381 = vmul.f32 %v3362, %v2864
    %v3382 = vadd.f32 %v3380, %v3381
    %v3383 = vpack.c.bf16 %v3382, %v3382
    %3385 = vrot.lane.b32.xlu0 %v3383, 96
    %v3386 = vpop.permute.xlu0 %3385
    %v3388 = vsel %vm358, %v3386, 0
    %3390 = vmatprep.subr.bf16.mxu0 0
    %3391 = vmatpush1.bf16.msra.mxu0 0
    %3392 = vmatprep.subr.bf16.mxu0 0
    %3393 = vmatpush1.bf16.msra.mxu0 0
    %3394 = vmatprep.subr.bf16.mxu0 0
    %3395 = vmatpush1.bf16.msra.mxu0 0
    %3396 = vmatprep.subr.bf16.mxu0 0
    %3397 = vmatpush1.bf16.msra.mxu0 0
    %3398 = vmatprep.subr.bf16.mxu0 0
    %3399 = vmatpush1.bf16.msra.mxu0 0
    %3400 = vmatprep.subr.bf16.mxu0 0
    %3401 = vmatpush1.bf16.msra.mxu0 0
    %3402 = vmatprep.subr.bf16.mxu0 0
    %3403 = vmatpush1.bf16.msra.mxu0 %v2884
    %3404 = vmatprep.subr.bf16.mxu0 0
    %3405 = vmatpush1.bf16.msra.mxu0 %v2883
    %3406 = vmatprep.subr.bf16.mxu0 0
    %3407 = vmatpush2.bf16.msra.mxu0 0
    %3408 = vmatprep.subr.bf16.mxu0 0
    %3409 = vmatpush2.bf16.msra.mxu0 0
    %3410 = vmatprep.subr.bf16.mxu0 0
    %3411 = vmatpush2.bf16.msra.mxu0 0
    %3412 = vmatprep.subr.bf16.mxu0 0
    %3413 = vmatpush2.bf16.msra.mxu0 0
    %3414 = vmatprep.subr.bf16.mxu0 0
    %3415 = vmatpush2.bf16.msra.mxu0 0
    %3416 = vmatprep.subr.bf16.mxu0 0
    %3417 = vmatpush2.bf16.msra.mxu0 0
    %3418 = vmatprep.subr.bf16.mxu0 0
    %3419 = vmatpush2.bf16.msra.mxu0 0
    %3420 = vmatprep.subr.bf16.mxu0 0
    %3421 = vmatpush2.bf16.msra.mxu0 0
    %3422 = vmatprep.mubr.bf16.mxu0 0
    %3423 = vmatmul.mubr.bf16.gmra.mxu0 %v3388
    %v3424 = vpop.f32.mrf.mxu0
    %v3425 = vadd.f32 %v2870, %v3424
    %v3426 = vpop.f32.mrf.mxu0
    %v3427 = vpop.f32.mrf.mxu0
    %v3428 = vpop.f32.mrf.mxu0
    %3429 = vdwg.mxu0
    %vm3430 = vcmp.gt.f32.partialorder %v3425, 0.0
    %v3431 = vmul.f32 %v3425, 0.01
    %v3432 = vsel %vm3430, %v3425, %v3431
    %v3434 = vsel %vm358, %v3432, 0
    %3436 = vmatprep.subr.mxu0 0.0
    %3437 = vmatpush1.msra.mxu0 0.0
    %3438 = vmatprep.subr.mxu0 0.0
    %3439 = vmatpush1.msra.mxu0 0.0
    %3440 = vmatprep.subr.mxu0 0.0
    %3441 = vmatpush1.msra.mxu0 0.0
    %3442 = vmatprep.subr.mxu0 0.0
    %3443 = vmatpush1.msra.mxu0 0.0
    %3444 = vmatprep.subr.mxu0 0.0
    %3445 = vmatpush1.msra.mxu0 0.0
    %3446 = vmatprep.subr.mxu0 0.0
    %3447 = vmatpush1.msra.mxu0 0.0
    %3448 = vmatprep.subr.mxu0 0.0
    %3449 = vmatpush1.msra.mxu0 0.0
    %3450 = vmatprep.subr.mxu0 0.0
    %3451 = vmatpush1.msra.mxu0 0.0
    %3452 = vmatprep.subr.mxu0 0.0
    %3453 = vmatpush1.msra.mxu0 0.0
    %3454 = vmatprep.subr.mxu0 0.0
    %3455 = vmatpush1.msra.mxu0 0.0
    %3456 = vmatprep.subr.mxu0 0.0
    %3457 = vmatpush1.msra.mxu0 0.0
    %3458 = vmatprep.subr.mxu0 0.0
    %3459 = vmatpush1.msra.mxu0 0.0
    %3460 = vmatprep.subr.mxu0 0.0
    %3461 = vmatpush1.msra.mxu0 %v326
    %3462 = vmatprep.subr.mxu0 0.0
    %3463 = vmatpush1.msra.mxu0 %v325
    %3464 = vmatprep.subr.mxu0 0.0
    %3465 = vmatpush1.msra.mxu0 %v324
    %3466 = vmatprep.subr.mxu0 0.0
    %3467 = vmatpush1.msra.mxu0 %v323
    %3468 = vmatprep.subr.mxu0 0.0
    %3469 = vmatpush2.msra.mxu0 0.0
    %3470 = vmatprep.subr.mxu0 0.0
    %3471 = vmatpush2.msra.mxu0 0.0
    %3472 = vmatprep.subr.mxu0 0.0
    %3473 = vmatpush2.msra.mxu0 0.0
    %3474 = vmatprep.subr.mxu0 0.0
    %3475 = vmatpush2.msra.mxu0 0.0
    %3476 = vmatprep.subr.mxu0 0.0
    %3477 = vmatpush2.msra.mxu0 0.0
    %3478 = vmatprep.subr.mxu0 0.0
    %3479 = vmatpush2.msra.mxu0 0.0
    %3480 = vmatprep.subr.mxu0 0.0
    %3481 = vmatpush2.msra.mxu0 0.0
    %3482 = vmatprep.subr.mxu0 0.0
    %3483 = vmatpush2.msra.mxu0 0.0
    %3484 = vmatprep.subr.mxu0 0.0
    %3485 = vmatpush2.msra.mxu0 0.0
    %3486 = vmatprep.subr.mxu0 0.0
    %3487 = vmatpush2.msra.mxu0 0.0
    %3488 = vmatprep.subr.mxu0 0.0
    %3489 = vmatpush2.msra.mxu0 0.0
    %3490 = vmatprep.subr.mxu0 0.0
    %3491 = vmatpush2.msra.mxu0 0.0
    %3492 = vmatprep.subr.mxu0 0.0
    %3493 = vmatpush2.msra.mxu0 0.0
    %3494 = vmatprep.subr.mxu0 0.0
    %3495 = vmatpush2.msra.mxu0 0.0
    %3496 = vmatprep.subr.mxu0 0.0
    %3497 = vmatpush2.msra.mxu0 0.0
    %3498 = vmatprep.subr.mxu0 0.0
    %3499 = vmatpush2.msra.mxu0 0.0
    %3500 = vmatprep.mubr.f32.mxu0 0.0
    %3501 = vmatmul.mubr.f32.gmra.mxu0 %v3434
    %v3502 = vpop.f32.mrf.mxu0
    %v3503 = vadd.f32 %v2937, %v3502
    %v3504 = vpop.f32.mrf.mxu0
    %3505 = vdwg.mxu0
    %s3506 = scalar_lea.vmem [#allocation31], 4
    %3507 = vst [vmem:[%s3506] sm:$0x3] %v3503
    %v3508 = vsel %vm3014, %v3503, -inf
    %3509 = vmax.xlane.f32.xlu0 %v3508
    %v3510 = vpop.xlane.xlu0 %3509
    %vm3511 = vcmp.eq.f32.partialorder %v3503, %v3510
    %v3512 = vsel %vm3511, %v2402, 128
    %v3513 = vsel %vm3014, %v3512, 2147483647
    %v3514 = vand.u32 %v3513, 65535
    %v3515 = vshra.s32 %v3513, 16
    %v3516 = vcvt.s32.f32 %v3514
    %v3517 = vcvt.s32.f32 %v3515
    %3518 = vmin.xlane.f32.xlu0 %v3517
    %v3519 = vpop.xlane.xlu0 %3518
    %vm3520 = vcmp.eq.f32.partialorder %v3517, %v3519
    %v3521 = vsel %vm3520, %v3516, inf
    %3522 = vmin.xlane.f32.xlu0 %v3521
    %v3523 = vpop.xlane.xlu0 %3522
    %v3524 = vcvt.f32.s32 %v3523
    %v3525 = vcvt.f32.s32 %v3519
    %v3526 = vshll.u32 %v3525, 16
    %v3527 = vadd.s32 %v3526, %v3524
    %vm3528 = vcmp.eq.s32.totalorder %v2402, %v3527
    %v3529 = vsel %vm3528, 1, 0
    %v3530 = vcvt.s32.f32 %v3529
    %v3531 = vpack.c.bf16 %v3530, %v3530
    %v3533 = vsel %vm2424, %v3531, 0
    %3535 = vmatprep.subr.bf16.mxu0 0
    %3536 = vmatpush1.bf16.msra.mxu0 0
    %3537 = vmatprep.subr.bf16.mxu0 0
    %3538 = vmatpush1.bf16.msra.mxu0 0
    %3539 = vmatprep.subr.bf16.mxu0 0
    %3540 = vmatpush1.bf16.msra.mxu0 0
    %3541 = vmatprep.subr.bf16.mxu0 0
    %3542 = vmatpush1.bf16.msra.mxu0 0
    %3543 = vmatprep.subr.bf16.mxu0 0
    %3544 = vmatpush1.bf16.msra.mxu0 0
    %3545 = vmatprep.subr.bf16.mxu0 0
    %3546 = vmatpush1.bf16.msra.mxu0 0
    %3547 = vmatprep.subr.bf16.mxu0 0
    %3548 = vmatpush1.bf16.msra.mxu0 %v2430
    %3549 = vmatprep.subr.bf16.mxu0 0
    %3550 = vmatpush1.bf16.msra.mxu0 %v2421
    %3551 = vmatprep.subr.bf16.mxu0 0
    %3552 = vmatpush2.bf16.msra.mxu0 0
    %3553 = vmatprep.subr.bf16.mxu0 0
    %3554 = vmatpush2.bf16.msra.mxu0 0
    %3555 = vmatprep.subr.bf16.mxu0 0
    %3556 = vmatpush2.bf16.msra.mxu0 0
    %3557 = vmatprep.subr.bf16.mxu0 0
    %3558 = vmatpush2.bf16.msra.mxu0 0
    %3559 = vmatprep.subr.bf16.mxu0 0
    %3560 = vmatpush2.bf16.msra.mxu0 0
    %3561 = vmatprep.subr.bf16.mxu0 0
    %3562 = vmatpush2.bf16.msra.mxu0 0
    %3563 = vmatprep.subr.bf16.mxu0 0
    %3564 = vmatpush2.bf16.msra.mxu0 0
    %3565 = vmatprep.subr.bf16.mxu0 0
    %3566 = vmatpush2.bf16.msra.mxu0 0
    %3567 = vmatprep.mubr.bf16.mxu0 0
    %3568 = vmatmul.mubr.bf16.gmra.mxu0 %v3533
    %v3569 = vpop.f32.mrf.mxu0
    %v3570 = vadd.f32 0.0, %v3569
    %v3571 = vpop.f32.mrf.mxu0
    %v3572 = vpop.f32.mrf.mxu0
    %v3573 = vpop.f32.mrf.mxu0
    %3574 = vdwg.mxu0
    %3575 = vmatprep.subr.bf16.mxu0 0
    %3576 = vmatpush1.bf16.msra.mxu0 0
    %3577 = vmatprep.subr.bf16.mxu0 0
    %3578 = vmatpush1.bf16.msra.mxu0 0
    %3579 = vmatprep.subr.bf16.mxu0 0
    %3580 = vmatpush1.bf16.msra.mxu0 0
    %3581 = vmatprep.subr.bf16.mxu0 0
    %3582 = vmatpush1.bf16.msra.mxu0 0
    %3583 = vmatprep.subr.bf16.mxu0 0
    %3584 = vmatpush1.bf16.msra.mxu0 0
    %3585 = vmatprep.subr.bf16.mxu0 0
    %3586 = vmatpush1.bf16.msra.mxu0 0
    %3587 = vmatprep.subr.bf16.mxu0 0
    %3588 = vmatpush1.bf16.msra.mxu0 %v2491
    %3589 = vmatprep.subr.bf16.mxu0 0
    %3590 = vmatpush1.bf16.msra.mxu0 %v2490
    %3591 = vmatprep.subr.bf16.mxu0 0
    %3592 = vmatpush2.bf16.msra.mxu0 0
    %3593 = vmatprep.subr.bf16.mxu0 0
    %3594 = vmatpush2.bf16.msra.mxu0 0
    %3595 = vmatprep.subr.bf16.mxu0 0
    %3596 = vmatpush2.bf16.msra.mxu0 0
    %3597 = vmatprep.subr.bf16.mxu0 0
    %3598 = vmatpush2.bf16.msra.mxu0 0
    %3599 = vmatprep.subr.bf16.mxu0 0
    %3600 = vmatpush2.bf16.msra.mxu0 0
    %3601 = vmatprep.subr.bf16.mxu0 0
    %3602 = vmatpush2.bf16.msra.mxu0 0
    %3603 = vmatprep.subr.bf16.mxu0 0
    %3604 = vmatpush2.bf16.msra.mxu0 0
    %3605 = vmatprep.subr.bf16.mxu0 0
    %3606 = vmatpush2.bf16.msra.mxu0 0
    %3607 = vmatprep.mubr.bf16.mxu0 0
    %3608 = vmatmul.mubr.bf16.gmra.mxu0 %v3388
    %v3609 = vpop.f32.mrf.mxu0
    %v3610 = vadd.f32 %v2477, %v3609
    %v3611 = vpop.f32.mrf.mxu0
    %v3612 = vpop.f32.mrf.mxu0
    %v3613 = vpop.f32.mrf.mxu0
    %3614 = vdwg.mxu0
    %v3617 = vunpack.c.l.s4 1966171168
    %v3618 = vunpack.c.0.s8 %v3617
    %v3619 = vlaneseq
    %v3620 = vshrl.u32 %v3619, 7
    %v3621 = vsub.s32 %v3618, %v3620
    %v3622 = vrot.slane %v3610, %v3621
    %v3623 = vcombine.high %v3622, %v3622
    %v3625 = vunpack.c.l.s4 1966171168
    %v3626 = vunpack.c.0.s8 %v3625
    %v3627 = vlaneseq
    %v3628 = vshrl.u32 %v3627, 7
    %v3629 = vsub.s32 %v3626, %v3628
    %v3630 = vrot.slane %v3622, %v3629
    %v3632 = vunpack.c.l.s4 1966171168
    %v3633 = vunpack.c.0.s8 %v3632
    %v3634 = vlaneseq
    %v3635 = vshrl.u32 %v3634, 7
    %v3636 = vsub.s32 %v3633, %v3635
    %v3637 = vrot.slane %v3623, %v3636
    %v3638 = vlaneseq
    %v3639 = vshrl.u32 %v3638, 7
    %v3640 = vsub.s32 0, %v3639
    %v3641 = vrot.slane %v3630, %v3640
    %v3642 = vlaneseq
    %v3643 = vshrl.u32 %v3642, 7
    %v3644 = vsub.s32 0, %v3643
    %v3645 = vrot.slane %v3637, %v3644
    %v3648 = vadd.f32 %v2399, %v3641
    %v3649 = vadd.f32 %v2400, %v3645
    %v3650 = vtanh.pop %v3648
    %v3651 = vtanh.pop %v3649
    %v3652 = vmul.f32 %v3650, %v2578
    %v3653 = vmul.f32 %v3651, %v2578
    %v3654 = vsel %vm358, %v3652, 0.0
    %3655 = vadd.xlane.f32.xlu0 %v3654
    %v3656 = vpop.xlane.xlu0 %3655
    %v3657 = vsel %vm358, %v3653, 0.0
    %3658 = vadd.xlane.f32.xlu0 %v3657
    %v3659 = vpop.xlane.xlu0 %3658
    %v3660 = vadd.f32 %v3656, %v2595
    %v3661 = vadd.f32 %v3659, %v2595
    %v3664 = vlaneseq
    %v3665 = vshrl.u32 %v3664, 7
    %v3666 = vsub.s32 %v2402, %v3665
    %v3667 = vrot.slane %v3660, %v3666
    %v3668 = vlaneseq
    %v3669 = vshrl.u32 %v3668, 7
    %v3670 = vsub.s32 %v2402, %v3669
    %v3671 = vrot.slane %v3661, %v3670
    %v3672 = vsel %vm343, %v3671, %v3667
    %v3674 = vsel %vm2611, %v3672, -inf
    %3675 = vmax.xlane.f32.xlu0 %v3674
    %v3676 = vpop.xlane.xlu0 %3675
    %v3678 = vlaneseq
    %v3679 = vshrl.u32 %v3678, 7
    %v3680 = vsub.s32 0, %v3679
    %v3681 = vrot.slane %v3676, %v3680
    %v3682 = vlaneseq
    %v3683 = vshrl.u32 %v3682, 7
    %v3684 = vsub.s32 1, %v3683
    %v3685 = vrot.slane %v3676, %v3684
    %v3688 = vsub.f32 %v3660, %v3681
    %v3689 = vsub.f32 %v3661, %v3685
    %v3690 = vmul.f32 %v3688, 1.442695
    %v3691 = vpow.pop %v3690
    %v3692 = vmul.f32 %v3689, 1.442695
    %v3693 = vpow.pop %v3692
    %3696 = vset.pattern.permute.xlu0 0
    %3697 = vperm.xlu0 %3696, %v3691
    %v3698 = vpop.permute.xlu0 %3697
    %3699 = vset.pattern.permute.xlu0 0
    %3700 = vperm.xlu0 %3699, %v3693
    %v3701 = vpop.permute.xlu0 %3700
    %v3702 = vlaneseq
    %v3703 = vshrl.u32 %v3702, 7
    %v3704 = vsub.s32 %v2402, %v3703
    %v3705 = vrot.slane %v3698, %v3704
    %v3706 = vlaneseq
    %v3707 = vshrl.u32 %v3706, 7
    %v3708 = vsub.s32 %v2402, %v3707
    %v3709 = vrot.slane %v3701, %v3708
    %v3710 = vsel %vm343, %v3709, %v3705
    %v3712 = vsel %vm2611, %v3710, 0.0
    %3713 = vadd.xlane.f32.xlu0 %v3712
    %v3714 = vpop.xlane.xlu0 %3713
    %v3716 = vlaneseq
    %v3717 = vshrl.u32 %v3716, 7
    %v3718 = vsub.s32 0, %v3717
    %v3719 = vrot.slane %v3714, %v3718
    %v3720 = vlaneseq
    %v3721 = vshrl.u32 %v3720, 7
    %v3722 = vsub.s32 1, %v3721
    %v3723 = vrot.slane %v3714, %v3722
    %v3726 = vrcp.pop %v3719
    %v3727 = vmul.f32 %v3691, %v3726
    %v3728 = vrcp.pop %v3723
    %v3729 = vmul.f32 %v3693, %v3728
    %3731 = vset.pattern.permute.xlu0 0
    %3732 = vperm.xlu0 %3731, %v3727
    %v3733 = vpop.permute.xlu0 %3732
    %3736 = vset.pattern.permute.xlu0 0
    %3737 = vperm.xlu0 %3736, %v3729
    %v3738 = vpop.permute.xlu0 %3737
    %v3740 = vmul.f32 %v3733, %v2397
    %v3741 = vmul.f32 %v3738, %v2398
    %v3742 = vsel %vm358, %v3740, 0.0
    %v3743 = vrot.slane %v3742, 4
    %v3744 = vadd.f32 %v3742, %v3743
    %v3745 = vrot.slane %v3744, 2
    %v3746 = vadd.f32 %v3744, %v3745
    %v3747 = vrot.slane %v3746, 1
    %v3748 = vadd.f32 %v3746, %v3747
    %v3749 = vsel %vm358, %v3741, 0.0
    %v3750 = vrot.slane %v3749, 4
    %v3751 = vadd.f32 %v3749, %v3750
    %v3752 = vrot.slane %v3751, 2
    %v3753 = vadd.f32 %v3751, %v3752
    %v3754 = vrot.slane %v3753, 1
    %v3755 = vadd.f32 %v3753, %v3754
    %v3758 = vsel %vm343, %v3755, %v3748
    %3761 = vrot.lane.b32.xlu0 %v3570, 32
    %v3762 = vpop.permute.xlu0 %3761
    %v3764 = vsel %vm358, %v3758, %v3762
    %v3765 = vpack.c.bf16 %v3764, %v3764
    %v3767 = vsel %vm2734, %v3765, 0
    %3769 = vmatprep.subr.bf16.mxu0 0
    %3770 = vmatpush1.bf16.msra.mxu0 0
    %3771 = vmatprep.subr.bf16.mxu0 0
    %3772 = vmatpush1.bf16.msra.mxu0 0
    %3773 = vmatprep.subr.bf16.mxu0 0
    %3774 = vmatpush1.bf16.msra.mxu0 0
    %3775 = vmatprep.subr.bf16.mxu0 0
    %3776 = vmatpush1.bf16.msra.mxu0 0
    %3777 = vmatprep.subr.bf16.mxu0 0
    %3778 = vmatpush1.bf16.msra.mxu0 %v2729
    %3779 = vmatprep.subr.bf16.mxu0 0
    %3780 = vmatpush1.bf16.msra.mxu0 %v2728
    %3781 = vmatprep.subr.bf16.mxu0 0
    %3782 = vmatpush1.bf16.msra.mxu0 %v2727
    %3783 = vmatprep.subr.bf16.mxu0 0
    %3784 = vmatpush1.bf16.msra.mxu0 %v2726
    %3785 = vmatprep.subr.bf16.mxu0 0
    %3786 = vmatpush2.bf16.msra.mxu0 0
    %3787 = vmatprep.subr.bf16.mxu0 0
    %3788 = vmatpush2.bf16.msra.mxu0 0
    %3789 = vmatprep.subr.bf16.mxu0 0
    %3790 = vmatpush2.bf16.msra.mxu0 0
    %3791 = vmatprep.subr.bf16.mxu0 0
    %3792 = vmatpush2.bf16.msra.mxu0 0
    %3793 = vmatprep.subr.bf16.mxu0 0
    %3794 = vmatpush2.bf16.msra.mxu0 0
    %3795 = vmatprep.subr.bf16.mxu0 0
    %3796 = vmatpush2.bf16.msra.mxu0 0
    %3797 = vmatprep.subr.bf16.mxu0 0
    %3798 = vmatpush2.bf16.msra.mxu0 0
    %3799 = vmatprep.subr.bf16.mxu0 0
    %3800 = vmatpush2.bf16.msra.mxu0 0
    %3801 = vmatprep.mubr.bf16.mxu0 0
    %3802 = vmatmul.mubr.bf16.gmra.mxu0 %v3767
    %v3803 = vpop.f32.mrf.mxu0
    %v3804 = vadd.f32 %v2708, %v3803
    %v3805 = vpop.f32.mrf.mxu0
    %v3806 = vpop.f32.mrf.mxu0
    %v3807 = vpop.f32.mrf.mxu0
    %3808 = vdwg.mxu0
    %3809 = vmatprep.subr.bf16.mxu0 0
    %3810 = vmatpush1.bf16.msra.mxu0 0
    %3811 = vmatprep.subr.bf16.mxu0 0
    %3812 = vmatpush1.bf16.msra.mxu0 0
    %3813 = vmatprep.subr.bf16.mxu0 0
    %3814 = vmatpush1.bf16.msra.mxu0 0
    %3815 = vmatprep.subr.bf16.mxu0 0
    %3816 = vmatpush1.bf16.msra.mxu0 0
    %3817 = vmatprep.subr.bf16.mxu0 0
    %3818 = vmatpush1.bf16.msra.mxu0 0
    %3819 = vmatprep.subr.bf16.mxu0 0
    %3820 = vmatpush1.bf16.msra.mxu0 0
    %3821 = vmatprep.subr.bf16.mxu0 0
    %3822 = vmatpush1.bf16.msra.mxu0 %v2787
    %3823 = vmatprep.subr.bf16.mxu0 0
    %3824 = vmatpush1.bf16.msra.mxu0 %v2786
    %3825 = vmatprep.subr.bf16.mxu0 0
    %3826 = vmatpush2.bf16.msra.mxu0 0
    %3827 = vmatprep.subr.bf16.mxu0 0
    %3828 = vmatpush2.bf16.msra.mxu0 0
    %3829 = vmatprep.subr.bf16.mxu0 0
    %3830 = vmatpush2.bf16.msra.mxu0 0
    %3831 = vmatprep.subr.bf16.mxu0 0
    %3832 = vmatpush2.bf16.msra.mxu0 0
    %3833 = vmatprep.subr.bf16.mxu0 0
    %3834 = vmatpush2.bf16.msra.mxu0 0
    %3835 = vmatprep.subr.bf16.mxu0 0
    %3836 = vmatpush2.bf16.msra.mxu0 0
    %3837 = vmatprep.subr.bf16.mxu0 0
    %3838 = vmatpush2.bf16.msra.mxu0 0
    %3839 = vmatprep.subr.bf16.mxu0 0
    %3840 = vmatpush2.bf16.msra.mxu0 0
    %3841 = vmatprep.mubr.bf16.mxu0 0
    %3842 = vmatmul.mubr.bf16.gmra.mxu0 %v3388
    %v3843 = vpop.f32.mrf.mxu0
    %v3844 = vadd.f32 0.0, %v3843
    %v3845 = vpop.f32.mrf.mxu0
    %v3846 = vpop.f32.mrf.mxu0
    %v3847 = vpop.f32.mrf.mxu0
    %3848 = vdwg.mxu0
    %v3849 = vadd.f32 %v3804, %v3844
    %v3850 = vxor.u32 %v3849, 2147483648
    %v3851 = vmul.f32 %v3850, 1.442695
    %v3852 = vpow.pop %v3851
    %v3853 = vadd.f32 %v3852, 1.0
    %v3854 = vrcp.pop %v3853
    %v3855 = vmul.f32 1.0, %v3854
    %v3856 = vadd.f32 %v3844, %v2843
    %3858 = vrot.lane.b32.xlu0 %v3856, 64
    %v3859 = vpop.permute.xlu0 %3858
    %v3861 = vmul.f32 %v3855, %v3859
    %3863 = vrot.lane.b32.xlu0 %v3861, 64
    %v3864 = vpop.permute.xlu0 %3863
    %v3866 = vadd.f32 %v3804, %v3864
    %v3867 = vtanh.pop %v3866
    %v3868 = vsub.f32 1.0, %v3855
    %3870 = vrot.lane.b32.xlu0 %v3867, 96
    %v3871 = vpop.permute.xlu0 %3870
    %v3873 = vmul.f32 %v3868, %v3871
    %v3874 = vmul.f32 %v3855, %v3382
    %v3875 = vadd.f32 %v3873, %v3874
    %v3876 = vpack.c.bf16 %v3875, %v3875
    %3878 = vrot.lane.b32.xlu0 %v3876, 96
    %v3879 = vpop.permute.xlu0 %3878
    %v3881 = vsel %vm358, %v3879, 0
    %3883 = vmatprep.subr.bf16.mxu0 0
    %3884 = vmatpush1.bf16.msra.mxu0 0
    %3885 = vmatprep.subr.bf16.mxu0 0
    %3886 = vmatpush1.bf16.msra.mxu0 0
    %3887 = vmatprep.subr.bf16.mxu0 0
    %3888 = vmatpush1.bf16.msra.mxu0 0
    %3889 = vmatprep.subr.bf16.mxu0 0
    %3890 = vmatpush1.bf16.msra.mxu0 0
    %3891 = vmatprep.subr.bf16.mxu0 0
    %3892 = vmatpush1.bf16.msra.mxu0 0
    %3893 = vmatprep.subr.bf16.mxu0 0
    %3894 = vmatpush1.bf16.msra.mxu0 0
    %3895 = vmatprep.subr.bf16.mxu0 0
    %3896 = vmatpush1.bf16.msra.mxu0 %v2884
    %3897 = vmatprep.subr.bf16.mxu0 0
    %3898 = vmatpush1.bf16.msra.mxu0 %v2883
    %3899 = vmatprep.subr.bf16.mxu0 0
    %3900 = vmatpush2.bf16.msra.mxu0 0
    %3901 = vmatprep.subr.bf16.mxu0 0
    %3902 = vmatpush2.bf16.msra.mxu0 0
    %3903 = vmatprep.subr.bf16.mxu0 0
    %3904 = vmatpush2.bf16.msra.mxu0 0
    %3905 = vmatprep.subr.bf16.mxu0 0
    %3906 = vmatpush2.bf16.msra.mxu0 0
    %3907 = vmatprep.subr.bf16.mxu0 0
    %3908 = vmatpush2.bf16.msra.mxu0 0
    %3909 = vmatprep.subr.bf16.mxu0 0
    %3910 = vmatpush2.bf16.msra.mxu0 0
    %3911 = vmatprep.subr.bf16.mxu0 0
    %3912 = vmatpush2.bf16.msra.mxu0 0
    %3913 = vmatprep.subr.bf16.mxu0 0
    %3914 = vmatpush2.bf16.msra.mxu0 0
    %3915 = vmatprep.mubr.bf16.mxu0 0
    %3916 = vmatmul.mubr.bf16.gmra.mxu0 %v3881
    %v3917 = vpop.f32.mrf.mxu0
    %v3918 = vadd.f32 %v2870, %v3917
    %v3919 = vpop.f32.mrf.mxu0
    %v3920 = vpop.f32.mrf.mxu0
    %v3921 = vpop.f32.mrf.mxu0
    %3922 = vdwg.mxu0
    %vm3923 = vcmp.gt.f32.partialorder %v3918, 0.0
    %v3924 = vmul.f32 %v3918, 0.01
    %v3925 = vsel %vm3923, %v3918, %v3924
    %v3927 = vsel %vm358, %v3925, 0
    %3929 = vmatprep.subr.mxu0 0.0
    %3930 = vmatpush1.msra.mxu0 0.0
    %3931 = vmatprep.subr.mxu0 0.0
    %3932 = vmatpush1.msra.mxu0 0.0
    %3933 = vmatprep.subr.mxu0 0.0
    %3934 = vmatpush1.msra.mxu0 0.0
    %3935 = vmatprep.subr.mxu0 0.0
    %3936 = vmatpush1.msra.mxu0 0.0
    %3937 = vmatprep.subr.mxu0 0.0
    %3938 = vmatpush1.msra.mxu0 0.0
    %3939 = vmatprep.subr.mxu0 0.0
    %3940 = vmatpush1.msra.mxu0 0.0
    %3941 = vmatprep.subr.mxu0 0.0
    %3942 = vmatpush1.msra.mxu0 0.0
    %3943 = vmatprep.subr.mxu0 0.0
    %3944 = vmatpush1.msra.mxu0 0.0
    %3945 = vmatprep.subr.mxu0 0.0
    %3946 = vmatpush1.msra.mxu0 0.0
    %3947 = vmatprep.subr.mxu0 0.0
    %3948 = vmatpush1.msra.mxu0 0.0
    %3949 = vmatprep.subr.mxu0 0.0
    %3950 = vmatpush1.msra.mxu0 0.0
    %3951 = vmatprep.subr.mxu0 0.0
    %3952 = vmatpush1.msra.mxu0 0.0
    %3953 = vmatprep.subr.mxu0 0.0
    %3954 = vmatpush1.msra.mxu0 %v326
    %3955 = vmatprep.subr.mxu0 0.0
    %3956 = vmatpush1.msra.mxu0 %v325
    %3957 = vmatprep.subr.mxu0 0.0
    %3958 = vmatpush1.msra.mxu0 %v324
    %3959 = vmatprep.subr.mxu0 0.0
    %3960 = vmatpush1.msra.mxu0 %v323
    %3961 = vmatprep.subr.mxu0 0.0
    %3962 = vmatpush2.msra.mxu0 0.0
    %3963 = vmatprep.subr.mxu0 0.0
    %3964 = vmatpush2.msra.mxu0 0.0
    %3965 = vmatprep.subr.mxu0 0.0
    %3966 = vmatpush2.msra.mxu0 0.0
    %3967 = vmatprep.subr.mxu0 0.0
    %3968 = vmatpush2.msra.mxu0 0.0
    %3969 = vmatprep.subr.mxu0 0.0
    %3970 = vmatpush2.msra.mxu0 0.0
    %3971 = vmatprep.subr.mxu0 0.0
    %3972 = vmatpush2.msra.mxu0 0.0
    %3973 = vmatprep.subr.mxu0 0.0
    %3974 = vmatpush2.msra.mxu0 0.0
    %3975 = vmatprep.subr.mxu0 0.0
    %3976 = vmatpush2.msra.mxu0 0.0
    %3977 = vmatprep.subr.mxu0 0.0
    %3978 = vmatpush2.msra.mxu0 0.0
    %3979 = vmatprep.subr.mxu0 0.0
    %3980 = vmatpush2.msra.mxu0 0.0
    %3981 = vmatprep.subr.mxu0 0.0
    %3982 = vmatpush2.msra.mxu0 0.0
    %3983 = vmatprep.subr.mxu0 0.0
    %3984 = vmatpush2.msra.mxu0 0.0
    %3985 = vmatprep.subr.mxu0 0.0
    %3986 = vmatpush2.msra.mxu0 0.0
    %3987 = vmatprep.subr.mxu0 0.0
    %3988 = vmatpush2.msra.mxu0 0.0
    %3989 = vmatprep.subr.mxu0 0.0
    %3990 = vmatpush2.msra.mxu0 0.0
    %3991 = vmatprep.subr.mxu0 0.0
    %3992 = vmatpush2.msra.mxu0 0.0
    %3993 = vmatprep.mubr.f32.mxu0 0.0
    %3994 = vmatmul.mubr.f32.gmra.mxu0 %v3927
    %v3995 = vpop.f32.mrf.mxu0
    %v3996 = vadd.f32 %v2937, %v3995
    %v3997 = vpop.f32.mrf.mxu0
    %3998 = vdwg.mxu0
    %s3999 = scalar_lea.vmem [#allocation31], 6
    %4000 = vst [vmem:[%s3999] sm:$0x3] %v3996
    %v4001 = vsel %vm3014, %v3996, -inf
    %4002 = vmax.xlane.f32.xlu0 %v4001
    %v4003 = vpop.xlane.xlu0 %4002
    %vm4004 = vcmp.eq.f32.partialorder %v3996, %v4003
    %v4005 = vsel %vm4004, %v2402, 128
    %v4006 = vsel %vm3014, %v4005, 2147483647
    %v4007 = vand.u32 %v4006, 65535
    %v4008 = vshra.s32 %v4006, 16
    %v4009 = vcvt.s32.f32 %v4007
    %v4010 = vcvt.s32.f32 %v4008
    %4011 = vmin.xlane.f32.xlu0 %v4010
    %v4012 = vpop.xlane.xlu0 %4011
    %vm4013 = vcmp.eq.f32.partialorder %v4010, %v4012
    %v4014 = vsel %vm4013, %v4009, inf
    %4015 = vmin.xlane.f32.xlu0 %v4014
    %v4016 = vpop.xlane.xlu0 %4015
    %v4017 = vcvt.f32.s32 %v4016
    %v4018 = vcvt.f32.s32 %v4012
    %v4019 = vshll.u32 %v4018, 16
    %v4020 = vadd.s32 %v4019, %v4017
    %vm4021 = vcmp.eq.s32.totalorder %v2402, %v4020
    %v4022 = vsel %vm4021, 1, 0
    %v4023 = vcvt.s32.f32 %v4022
    %v4024 = vpack.c.bf16 %v4023, %v4023
    %v4026 = vsel %vm2424, %v4024, 0
    %4028 = vmatprep.subr.bf16.mxu0 0
    %4029 = vmatpush1.bf16.msra.mxu0 0
    %4030 = vmatprep.subr.bf16.mxu0 0
    %4031 = vmatpush1.bf16.msra.mxu0 0
    %4032 = vmatprep.subr.bf16.mxu0 0
    %4033 = vmatpush1.bf16.msra.mxu0 0
    %4034 = vmatprep.subr.bf16.mxu0 0
    %4035 = vmatpush1.bf16.msra.mxu0 0
    %4036 = vmatprep.subr.bf16.mxu0 0
    %4037 = vmatpush1.bf16.msra.mxu0 0
    %4038 = vmatprep.subr.bf16.mxu0 0
    %4039 = vmatpush1.bf16.msra.mxu0 0
    %4040 = vmatprep.subr.bf16.mxu0 0
    %4041 = vmatpush1.bf16.msra.mxu0 %v2430
    %4042 = vmatprep.subr.bf16.mxu0 0
    %4043 = vmatpush1.bf16.msra.mxu0 %v2421
    %4044 = vmatprep.subr.bf16.mxu0 0
    %4045 = vmatpush2.bf16.msra.mxu0 0
    %4046 = vmatprep.subr.bf16.mxu0 0
    %4047 = vmatpush2.bf16.msra.mxu0 0
    %4048 = vmatprep.subr.bf16.mxu0 0
    %4049 = vmatpush2.bf16.msra.mxu0 0
    %4050 = vmatprep.subr.bf16.mxu0 0
    %4051 = vmatpush2.bf16.msra.mxu0 0
    %4052 = vmatprep.subr.bf16.mxu0 0
    %4053 = vmatpush2.bf16.msra.mxu0 0
    %4054 = vmatprep.subr.bf16.mxu0 0
    %4055 = vmatpush2.bf16.msra.mxu0 0
    %4056 = vmatprep.subr.bf16.mxu0 0
    %4057 = vmatpush2.bf16.msra.mxu0 0
    %4058 = vmatprep.subr.bf16.mxu0 0
    %4059 = vmatpush2.bf16.msra.mxu0 0
    %4060 = vmatprep.mubr.bf16.mxu0 0
    %4061 = vmatmul.mubr.bf16.gmra.mxu0 %v4026
    %v4062 = vpop.f32.mrf.mxu0
    %v4063 = vadd.f32 0.0, %v4062
    %v4064 = vpop.f32.mrf.mxu0
    %v4065 = vpop.f32.mrf.mxu0
    %v4066 = vpop.f32.mrf.mxu0
    %4067 = vdwg.mxu0
    %4068 = vmatprep.subr.bf16.mxu0 0
    %4069 = vmatpush1.bf16.msra.mxu0 0
    %4070 = vmatprep.subr.bf16.mxu0 0
    %4071 = vmatpush1.bf16.msra.mxu0 0
    %4072 = vmatprep.subr.bf16.mxu0 0
    %4073 = vmatpush1.bf16.msra.mxu0 0
    %4074 = vmatprep.subr.bf16.mxu0 0
    %4075 = vmatpush1.bf16.msra.mxu0 0
    %4076 = vmatprep.subr.bf16.mxu0 0
    %4077 = vmatpush1.bf16.msra.mxu0 0
    %4078 = vmatprep.subr.bf16.mxu0 0
    %4079 = vmatpush1.bf16.msra.mxu0 0
    %4080 = vmatprep.subr.bf16.mxu0 0
    %4081 = vmatpush1.bf16.msra.mxu0 %v2491
    %4082 = vmatprep.subr.bf16.mxu0 0
    %4083 = vmatpush1.bf16.msra.mxu0 %v2490
    %4084 = vmatprep.subr.bf16.mxu0 0
    %4085 = vmatpush2.bf16.msra.mxu0 0
    %4086 = vmatprep.subr.bf16.mxu0 0
    %4087 = vmatpush2.bf16.msra.mxu0 0
    %4088 = vmatprep.subr.bf16.mxu0 0
    %4089 = vmatpush2.bf16.msra.mxu0 0
    %4090 = vmatprep.subr.bf16.mxu0 0
    %4091 = vmatpush2.bf16.msra.mxu0 0
    %4092 = vmatprep.subr.bf16.mxu0 0
    %4093 = vmatpush2.bf16.msra.mxu0 0
    %4094 = vmatprep.subr.bf16.mxu0 0
    %4095 = vmatpush2.bf16.msra.mxu0 0
    %4096 = vmatprep.subr.bf16.mxu0 0
    %4097 = vmatpush2.bf16.msra.mxu0 0
    %4098 = vmatprep.subr.bf16.mxu0 0
    %4099 = vmatpush2.bf16.msra.mxu0 0
    %4100 = vmatprep.mubr.bf16.mxu0 0
    %4101 = vmatmul.mubr.bf16.gmra.mxu0 %v3881
    %v4102 = vpop.f32.mrf.mxu0
    %v4103 = vadd.f32 %v2477, %v4102
    %v4104 = vpop.f32.mrf.mxu0
    %v4105 = vpop.f32.mrf.mxu0
    %v4106 = vpop.f32.mrf.mxu0
    %4107 = vdwg.mxu0
    %v4110 = vunpack.c.l.s4 1966171168
    %v4111 = vunpack.c.0.s8 %v4110
    %v4112 = vlaneseq
    %v4113 = vshrl.u32 %v4112, 7
    %v4114 = vsub.s32 %v4111, %v4113
    %v4115 = vrot.slane %v4103, %v4114
    %v4116 = vcombine.high %v4115, %v4115
    %v4118 = vunpack.c.l.s4 1966171168
    %v4119 = vunpack.c.0.s8 %v4118
    %v4120 = vlaneseq
    %v4121 = vshrl.u32 %v4120, 7
    %v4122 = vsub.s32 %v4119, %v4121
    %v4123 = vrot.slane %v4115, %v4122
    %v4125 = vunpack.c.l.s4 1966171168
    %v4126 = vunpack.c.0.s8 %v4125
    %v4127 = vlaneseq
    %v4128 = vshrl.u32 %v4127, 7
    %v4129 = vsub.s32 %v4126, %v4128
    %v4130 = vrot.slane %v4116, %v4129
    %v4131 = vlaneseq
    %v4132 = vshrl.u32 %v4131, 7
    %v4133 = vsub.s32 0, %v4132
    %v4134 = vrot.slane %v4123, %v4133
    %v4135 = vlaneseq
    %v4136 = vshrl.u32 %v4135, 7
    %v4137 = vsub.s32 0, %v4136
    %v4138 = vrot.slane %v4130, %v4137
    %v4141 = vadd.f32 %v2399, %v4134
    %v4142 = vadd.f32 %v2400, %v4138
    %v4143 = vtanh.pop %v4141
    %v4144 = vtanh.pop %v4142
    %v4145 = vmul.f32 %v4143, %v2578
    %v4146 = vmul.f32 %v4144, %v2578
    %v4147 = vsel %vm358, %v4145, 0.0
    %4148 = vadd.xlane.f32.xlu0 %v4147
    %v4149 = vpop.xlane.xlu0 %4148
    %v4150 = vsel %vm358, %v4146, 0.0
    %4151 = vadd.xlane.f32.xlu0 %v4150
    %v4152 = vpop.xlane.xlu0 %4151
    %v4153 = vadd.f32 %v4149, %v2595
    %v4154 = vadd.f32 %v4152, %v2595
    %v4157 = vlaneseq
    %v4158 = vshrl.u32 %v4157, 7
    %v4159 = vsub.s32 %v2402, %v4158
    %v4160 = vrot.slane %v4153, %v4159
    %v4161 = vlaneseq
    %v4162 = vshrl.u32 %v4161, 7
    %v4163 = vsub.s32 %v2402, %v4162
    %v4164 = vrot.slane %v4154, %v4163
    %v4165 = vsel %vm343, %v4164, %v4160
    %v4167 = vsel %vm2611, %v4165, -inf
    %4168 = vmax.xlane.f32.xlu0 %v4167
    %v4169 = vpop.xlane.xlu0 %4168
    %v4171 = vlaneseq
    %v4172 = vshrl.u32 %v4171, 7
    %v4173 = vsub.s32 0, %v4172
    %v4174 = vrot.slane %v4169, %v4173
    %v4175 = vlaneseq
    %v4176 = vshrl.u32 %v4175, 7
    %v4177 = vsub.s32 1, %v4176
    %v4178 = vrot.slane %v4169, %v4177
    %v4181 = vsub.f32 %v4153, %v4174
    %v4182 = vsub.f32 %v4154, %v4178
    %v4183 = vmul.f32 %v4181, 1.442695
    %v4184 = vpow.pop %v4183
    %v4185 = vmul.f32 %v4182, 1.442695
    %v4186 = vpow.pop %v4185
    %4189 = vset.pattern.permute.xlu0 0
    %4190 = vperm.xlu0 %4189, %v4184
    %v4191 = vpop.permute.xlu0 %4190
    %4192 = vset.pattern.permute.xlu0 0
    %4193 = vperm.xlu0 %4192, %v4186
    %v4194 = vpop.permute.xlu0 %4193
    %v4195 = vlaneseq
    %v4196 = vshrl.u32 %v4195, 7
    %v4197 = vsub.s32 %v2402, %v4196
    %v4198 = vrot.slane %v4191, %v4197
    %v4199 = vlaneseq
    %v4200 = vshrl.u32 %v4199, 7
    %v4201 = vsub.s32 %v2402, %v4200
    %v4202 = vrot.slane %v4194, %v4201
    %v4203 = vsel %vm343, %v4202, %v4198
    %v4205 = vsel %vm2611, %v4203, 0.0
    %4206 = vadd.xlane.f32.xlu0 %v4205
    %v4207 = vpop.xlane.xlu0 %4206
    %v4209 = vlaneseq
    %v4210 = vshrl.u32 %v4209, 7
    %v4211 = vsub.s32 0, %v4210
    %v4212 = vrot.slane %v4207, %v4211
    %v4213 = vlaneseq
    %v4214 = vshrl.u32 %v4213, 7
    %v4215 = vsub.s32 1, %v4214
    %v4216 = vrot.slane %v4207, %v4215
    %v4219 = vrcp.pop %v4212
    %v4220 = vmul.f32 %v4184, %v4219
    %v4221 = vrcp.pop %v4216
    %v4222 = vmul.f32 %v4186, %v4221
    %4224 = vset.pattern.permute.xlu0 0
    %4225 = vperm.xlu0 %4224, %v4220
    %v4226 = vpop.permute.xlu0 %4225
    %4229 = vset.pattern.permute.xlu0 0
    %4230 = vperm.xlu0 %4229, %v4222
    %v4231 = vpop.permute.xlu0 %4230
    %v4233 = vmul.f32 %v4226, %v2397
    %v4234 = vmul.f32 %v4231, %v2398
    %v4235 = vsel %vm358, %v4233, 0.0
    %v4236 = vrot.slane %v4235, 4
    %v4237 = vadd.f32 %v4235, %v4236
    %v4238 = vrot.slane %v4237, 2
    %v4239 = vadd.f32 %v4237, %v4238
    %v4240 = vrot.slane %v4239, 1
    %v4241 = vadd.f32 %v4239, %v4240
    %v4242 = vsel %vm358, %v4234, 0.0
    %v4243 = vrot.slane %v4242, 4
    %v4244 = vadd.f32 %v4242, %v4243
    %v4245 = vrot.slane %v4244, 2
    %v4246 = vadd.f32 %v4244, %v4245
    %v4247 = vrot.slane %v4246, 1
    %v4248 = vadd.f32 %v4246, %v4247
    %v4251 = vsel %vm343, %v4248, %v4241
    %4254 = vrot.lane.b32.xlu0 %v4063, 32
    %v4255 = vpop.permute.xlu0 %4254
    %v4257 = vsel %vm358, %v4251, %v4255
    %v4258 = vpack.c.bf16 %v4257, %v4257
    %v4260 = vsel %vm2734, %v4258, 0
    %4262 = vmatprep.subr.bf16.mxu0 0
    %4263 = vmatpush1.bf16.msra.mxu0 0
    %4264 = vmatprep.subr.bf16.mxu0 0
    %4265 = vmatpush1.bf16.msra.mxu0 0
    %4266 = vmatprep.subr.bf16.mxu0 0
    %4267 = vmatpush1.bf16.msra.mxu0 0
    %4268 = vmatprep.subr.bf16.mxu0 0
    %4269 = vmatpush1.bf16.msra.mxu0 0
    %4270 = vmatprep.subr.bf16.mxu0 0
    %4271 = vmatpush1.bf16.msra.mxu0 %v2729
    %4272 = vmatprep.subr.bf16.mxu0 0
    %4273 = vmatpush1.bf16.msra.mxu0 %v2728
    %4274 = vmatprep.subr.bf16.mxu0 0
    %4275 = vmatpush1.bf16.msra.mxu0 %v2727
    %4276 = vmatprep.subr.bf16.mxu0 0
    %4277 = vmatpush1.bf16.msra.mxu0 %v2726
    %4278 = vmatprep.subr.bf16.mxu0 0
    %4279 = vmatpush2.bf16.msra.mxu0 0
    %4280 = vmatprep.subr.bf16.mxu0 0
    %4281 = vmatpush2.bf16.msra.mxu0 0
    %4282 = vmatprep.subr.bf16.mxu0 0
    %4283 = vmatpush2.bf16.msra.mxu0 0
    %4284 = vmatprep.subr.bf16.mxu0 0
    %4285 = vmatpush2.bf16.msra.mxu0 0
    %4286 = vmatprep.subr.bf16.mxu0 0
    %4287 = vmatpush2.bf16.msra.mxu0 0
    %4288 = vmatprep.subr.bf16.mxu0 0
    %4289 = vmatpush2.bf16.msra.mxu0 0
    %4290 = vmatprep.subr.bf16.mxu0 0
    %4291 = vmatpush2.bf16.msra.mxu0 0
    %4292 = vmatprep.subr.bf16.mxu0 0
    %4293 = vmatpush2.bf16.msra.mxu0 0
    %4294 = vmatprep.mubr.bf16.mxu0 0
    %4295 = vmatmul.mubr.bf16.gmra.mxu0 %v4260
    %v4296 = vpop.f32.mrf.mxu0
    %v4297 = vadd.f32 %v2708, %v4296
    %v4298 = vpop.f32.mrf.mxu0
    %v4299 = vpop.f32.mrf.mxu0
    %v4300 = vpop.f32.mrf.mxu0
    %4301 = vdwg.mxu0
    %4302 = vmatprep.subr.bf16.mxu0 0
    %4303 = vmatpush1.bf16.msra.mxu0 0
    %4304 = vmatprep.subr.bf16.mxu0 0
    %4305 = vmatpush1.bf16.msra.mxu0 0
    %4306 = vmatprep.subr.bf16.mxu0 0
    %4307 = vmatpush1.bf16.msra.mxu0 0
    %4308 = vmatprep.subr.bf16.mxu0 0
    %4309 = vmatpush1.bf16.msra.mxu0 0
    %4310 = vmatprep.subr.bf16.mxu0 0
    %4311 = vmatpush1.bf16.msra.mxu0 0
    %4312 = vmatprep.subr.bf16.mxu0 0
    %4313 = vmatpush1.bf16.msra.mxu0 0
    %4314 = vmatprep.subr.bf16.mxu0 0
    %4315 = vmatpush1.bf16.msra.mxu0 %v2787
    %4316 = vmatprep.subr.bf16.mxu0 0
    %4317 = vmatpush1.bf16.msra.mxu0 %v2786
    %4318 = vmatprep.subr.bf16.mxu0 0
    %4319 = vmatpush2.bf16.msra.mxu0 0
    %4320 = vmatprep.subr.bf16.mxu0 0
    %4321 = vmatpush2.bf16.msra.mxu0 0
    %4322 = vmatprep.subr.bf16.mxu0 0
    %4323 = vmatpush2.bf16.msra.mxu0 0
    %4324 = vmatprep.subr.bf16.mxu0 0
    %4325 = vmatpush2.bf16.msra.mxu0 0
    %4326 = vmatprep.subr.bf16.mxu0 0
    %4327 = vmatpush2.bf16.msra.mxu0 0
    %4328 = vmatprep.subr.bf16.mxu0 0
    %4329 = vmatpush2.bf16.msra.mxu0 0
    %4330 = vmatprep.subr.bf16.mxu0 0
    %4331 = vmatpush2.bf16.msra.mxu0 0
    %4332 = vmatprep.subr.bf16.mxu0 0
    %4333 = vmatpush2.bf16.msra.mxu0 0
    %4334 = vmatprep.mubr.bf16.mxu0 0
    %4335 = vmatmul.mubr.bf16.gmra.mxu0 %v3881
    %v4336 = vpop.f32.mrf.mxu0
    %v4337 = vadd.f32 0.0, %v4336
    %v4338 = vpop.f32.mrf.mxu0
    %v4339 = vpop.f32.mrf.mxu0
    %v4340 = vpop.f32.mrf.mxu0
    %4341 = vdwg.mxu0
    %v4342 = vadd.f32 %v4297, %v4337
    %v4343 = vxor.u32 %v4342, 2147483648
    %v4344 = vmul.f32 %v4343, 1.442695
    %v4345 = vpow.pop %v4344
    %v4346 = vadd.f32 %v4345, 1.0
    %v4347 = vrcp.pop %v4346
    %v4348 = vmul.f32 1.0, %v4347
    %v4349 = vadd.f32 %v4337, %v2843
    %4351 = vrot.lane.b32.xlu0 %v4349, 64
    %v4352 = vpop.permute.xlu0 %4351
    %v4354 = vmul.f32 %v4348, %v4352
    %4356 = vrot.lane.b32.xlu0 %v4354, 64
    %v4357 = vpop.permute.xlu0 %4356
    %v4359 = vadd.f32 %v4297, %v4357
    %v4360 = vtanh.pop %v4359
    %v4361 = vsub.f32 1.0, %v4348
    %4363 = vrot.lane.b32.xlu0 %v4360, 96
    %v4364 = vpop.permute.xlu0 %4363
    %v4366 = vmul.f32 %v4361, %v4364
    %v4367 = vmul.f32 %v4348, %v3875
    %v4368 = vadd.f32 %v4366, %v4367
    %v4369 = vpack.c.bf16 %v4368, %v4368
    %4371 = vrot.lane.b32.xlu0 %v4369, 96
    %v4372 = vpop.permute.xlu0 %4371
    %v4374 = vsel %vm358, %v4372, 0
    %4376 = vmatprep.subr.bf16.mxu0 0
    %4377 = vmatpush1.bf16.msra.mxu0 0
    %4378 = vmatprep.subr.bf16.mxu0 0
    %4379 = vmatpush1.bf16.msra.mxu0 0
    %4380 = vmatprep.subr.bf16.mxu0 0
    %4381 = vmatpush1.bf16.msra.mxu0 0
    %4382 = vmatprep.subr.bf16.mxu0 0
    %4383 = vmatpush1.bf16.msra.mxu0 0
    %4384 = vmatprep.subr.bf16.mxu0 0
    %4385 = vmatpush1.bf16.msra.mxu0 0
    %4386 = vmatprep.subr.bf16.mxu0 0
    %4387 = vmatpush1.bf16.msra.mxu0 0
    %4388 = vmatprep.subr.bf16.mxu0 0
    %4389 = vmatpush1.bf16.msra.mxu0 %v2884
    %4390 = vmatprep.subr.bf16.mxu0 0
    %4391 = vmatpush1.bf16.msra.mxu0 %v2883
    %4392 = vmatprep.subr.bf16.mxu0 0
    %4393 = vmatpush2.bf16.msra.mxu0 0
    %4394 = vmatprep.subr.bf16.mxu0 0
    %4395 = vmatpush2.bf16.msra.mxu0 0
    %4396 = vmatprep.subr.bf16.mxu0 0
    %4397 = vmatpush2.bf16.msra.mxu0 0
    %4398 = vmatprep.subr.bf16.mxu0 0
    %4399 = vmatpush2.bf16.msra.mxu0 0
    %4400 = vmatprep.subr.bf16.mxu0 0
    %4401 = vmatpush2.bf16.msra.mxu0 0
    %4402 = vmatprep.subr.bf16.mxu0 0
    %4403 = vmatpush2.bf16.msra.mxu0 0
    %4404 = vmatprep.subr.bf16.mxu0 0
    %4405 = vmatpush2.bf16.msra.mxu0 0
    %4406 = vmatprep.subr.bf16.mxu0 0
    %4407 = vmatpush2.bf16.msra.mxu0 0
    %4408 = vmatprep.mubr.bf16.mxu0 0
    %4409 = vmatmul.mubr.bf16.gmra.mxu0 %v4374
    %v4410 = vpop.f32.mrf.mxu0
    %v4411 = vadd.f32 %v2870, %v4410
    %v4412 = vpop.f32.mrf.mxu0
    %v4413 = vpop.f32.mrf.mxu0
    %v4414 = vpop.f32.mrf.mxu0
    %4415 = vdwg.mxu0
    %vm4416 = vcmp.gt.f32.partialorder %v4411, 0.0
    %v4417 = vmul.f32 %v4411, 0.01
    %v4418 = vsel %vm4416, %v4411, %v4417
    %v4420 = vsel %vm358, %v4418, 0
    %4422 = vmatprep.subr.mxu0 0.0
    %4423 = vmatpush1.msra.mxu0 0.0
    %4424 = vmatprep.subr.mxu0 0.0
    %4425 = vmatpush1.msra.mxu0 0.0
    %4426 = vmatprep.subr.mxu0 0.0
    %4427 = vmatpush1.msra.mxu0 0.0
    %4428 = vmatprep.subr.mxu0 0.0
    %4429 = vmatpush1.msra.mxu0 0.0
    %4430 = vmatprep.subr.mxu0 0.0
    %4431 = vmatpush1.msra.mxu0 0.0
    %4432 = vmatprep.subr.mxu0 0.0
    %4433 = vmatpush1.msra.mxu0 0.0
    %4434 = vmatprep.subr.mxu0 0.0
    %4435 = vmatpush1.msra.mxu0 0.0
    %4436 = vmatprep.subr.mxu0 0.0
    %4437 = vmatpush1.msra.mxu0 0.0
    %4438 = vmatprep.subr.mxu0 0.0
    %4439 = vmatpush1.msra.mxu0 0.0
    %4440 = vmatprep.subr.mxu0 0.0
    %4441 = vmatpush1.msra.mxu0 0.0
    %4442 = vmatprep.subr.mxu0 0.0
    %4443 = vmatpush1.msra.mxu0 0.0
    %4444 = vmatprep.subr.mxu0 0.0
    %4445 = vmatpush1.msra.mxu0 0.0
    %4446 = vmatprep.subr.mxu0 0.0
    %4447 = vmatpush1.msra.mxu0 %v326
    %4448 = vmatprep.subr.mxu0 0.0
    %4449 = vmatpush1.msra.mxu0 %v325
    %4450 = vmatprep.subr.mxu0 0.0
    %4451 = vmatpush1.msra.mxu0 %v324
    %4452 = vmatprep.subr.mxu0 0.0
    %4453 = vmatpush1.msra.mxu0 %v323
    %4454 = vmatprep.subr.mxu0 0.0
    %4455 = vmatpush2.msra.mxu0 0.0
    %4456 = vmatprep.subr.mxu0 0.0
    %4457 = vmatpush2.msra.mxu0 0.0
    %4458 = vmatprep.subr.mxu0 0.0
    %4459 = vmatpush2.msra.mxu0 0.0
    %4460 = vmatprep.subr.mxu0 0.0
    %4461 = vmatpush2.msra.mxu0 0.0
    %4462 = vmatprep.subr.mxu0 0.0
    %4463 = vmatpush2.msra.mxu0 0.0
    %4464 = vmatprep.subr.mxu0 0.0
    %4465 = vmatpush2.msra.mxu0 0.0
    %4466 = vmatprep.subr.mxu0 0.0
    %4467 = vmatpush2.msra.mxu0 0.0
    %4468 = vmatprep.subr.mxu0 0.0
    %4469 = vmatpush2.msra.mxu0 0.0
    %4470 = vmatprep.subr.mxu0 0.0
    %4471 = vmatpush2.msra.mxu0 0.0
    %4472 = vmatprep.subr.mxu0 0.0
    %4473 = vmatpush2.msra.mxu0 0.0
    %4474 = vmatprep.subr.mxu0 0.0
    %4475 = vmatpush2.msra.mxu0 0.0
    %4476 = vmatprep.subr.mxu0 0.0
    %4477 = vmatpush2.msra.mxu0 0.0
    %4478 = vmatprep.subr.mxu0 0.0
    %4479 = vmatpush2.msra.mxu0 0.0
    %4480 = vmatprep.subr.mxu0 0.0
    %4481 = vmatpush2.msra.mxu0 0.0
    %4482 = vmatprep.subr.mxu0 0.0
    %4483 = vmatpush2.msra.mxu0 0.0
    %4484 = vmatprep.subr.mxu0 0.0
    %4485 = vmatpush2.msra.mxu0 0.0
    %4486 = vmatprep.mubr.f32.mxu0 0.0
    %4487 = vmatmul.mubr.f32.gmra.mxu0 %v4420
    %v4488 = vpop.f32.mrf.mxu0
    %v4489 = vadd.f32 %v2937, %v4488
    %v4490 = vpop.f32.mrf.mxu0
    %4491 = vdwg.mxu0
    %s4492 = scalar_lea.vmem [#allocation31], 8
    %4493 = vst [vmem:[%s4492] sm:$0x3] %v4489
    %v4494 = vsel %vm3014, %v4489, -inf
    %4495 = vmax.xlane.f32.xlu0 %v4494
    %v4496 = vpop.xlane.xlu0 %4495
    %vm4497 = vcmp.eq.f32.partialorder %v4489, %v4496
    %v4498 = vsel %vm4497, %v2402, 128
    %v4499 = vsel %vm3014, %v4498, 2147483647
    %v4500 = vand.u32 %v4499, 65535
    %v4501 = vshra.s32 %v4499, 16
    %v4502 = vcvt.s32.f32 %v4500
    %v4503 = vcvt.s32.f32 %v4501
    %4504 = vmin.xlane.f32.xlu0 %v4503
    %v4505 = vpop.xlane.xlu0 %4504
    %vm4506 = vcmp.eq.f32.partialorder %v4503, %v4505
    %v4507 = vsel %vm4506, %v4502, inf
    %4508 = vmin.xlane.f32.xlu0 %v4507
    %v4509 = vpop.xlane.xlu0 %4508
    %v4510 = vcvt.f32.s32 %v4509
    %v4511 = vcvt.f32.s32 %v4505
    %v4512 = vshll.u32 %v4511, 16
    %v4513 = vadd.s32 %v4512, %v4510
    %vm4514 = vcmp.eq.s32.totalorder %v2402, %v4513
    %v4515 = vsel %vm4514, 1, 0
    %v4516 = vcvt.s32.f32 %v4515
    %v4517 = vpack.c.bf16 %v4516, %v4516
    %v4519 = vsel %vm2424, %v4517, 0
    %4521 = vmatprep.subr.bf16.mxu0 0
    %4522 = vmatpush1.bf16.msra.mxu0 0
    %4523 = vmatprep.subr.bf16.mxu0 0
    %4524 = vmatpush1.bf16.msra.mxu0 0
    %4525 = vmatprep.subr.bf16.mxu0 0
    %4526 = vmatpush1.bf16.msra.mxu0 0
    %4527 = vmatprep.subr.bf16.mxu0 0
    %4528 = vmatpush1.bf16.msra.mxu0 0
    %4529 = vmatprep.subr.bf16.mxu0 0
    %4530 = vmatpush1.bf16.msra.mxu0 0
    %4531 = vmatprep.subr.bf16.mxu0 0
    %4532 = vmatpush1.bf16.msra.mxu0 0
    %4533 = vmatprep.subr.bf16.mxu0 0
    %4534 = vmatpush1.bf16.msra.mxu0 %v2430
    %4535 = vmatprep.subr.bf16.mxu0 0
    %4536 = vmatpush1.bf16.msra.mxu0 %v2421
    %4537 = vmatprep.subr.bf16.mxu0 0
    %4538 = vmatpush2.bf16.msra.mxu0 0
    %4539 = vmatprep.subr.bf16.mxu0 0
    %4540 = vmatpush2.bf16.msra.mxu0 0
    %4541 = vmatprep.subr.bf16.mxu0 0
    %4542 = vmatpush2.bf16.msra.mxu0 0
    %4543 = vmatprep.subr.bf16.mxu0 0
    %4544 = vmatpush2.bf16.msra.mxu0 0
    %4545 = vmatprep.subr.bf16.mxu0 0
    %4546 = vmatpush2.bf16.msra.mxu0 0
    %4547 = vmatprep.subr.bf16.mxu0 0
    %4548 = vmatpush2.bf16.msra.mxu0 0
    %4549 = vmatprep.subr.bf16.mxu0 0
    %4550 = vmatpush2.bf16.msra.mxu0 0
    %4551 = vmatprep.subr.bf16.mxu0 0
    %4552 = vmatpush2.bf16.msra.mxu0 0
    %4553 = vmatprep.mubr.bf16.mxu0 0
    %4554 = vmatmul.mubr.bf16.gmra.mxu0 %v4519
    %v4555 = vpop.f32.mrf.mxu0
    %v4556 = vadd.f32 0.0, %v4555
    %v4557 = vpop.f32.mrf.mxu0
    %v4558 = vpop.f32.mrf.mxu0
    %v4559 = vpop.f32.mrf.mxu0
    %4560 = vdwg.mxu0
    %4561 = vmatprep.subr.bf16.mxu0 0
    %4562 = vmatpush1.bf16.msra.mxu0 0
    %4563 = vmatprep.subr.bf16.mxu0 0
    %4564 = vmatpush1.bf16.msra.mxu0 0
    %4565 = vmatprep.subr.bf16.mxu0 0
    %4566 = vmatpush1.bf16.msra.mxu0 0
    %4567 = vmatprep.subr.bf16.mxu0 0
    %4568 = vmatpush1.bf16.msra.mxu0 0
    %4569 = vmatprep.subr.bf16.mxu0 0
    %4570 = vmatpush1.bf16.msra.mxu0 0
    %4571 = vmatprep.subr.bf16.mxu0 0
    %4572 = vmatpush1.bf16.msra.mxu0 0
    %4573 = vmatprep.subr.bf16.mxu0 0
    %4574 = vmatpush1.bf16.msra.mxu0 %v2491
    %4575 = vmatprep.subr.bf16.mxu0 0
    %4576 = vmatpush1.bf16.msra.mxu0 %v2490
    %4577 = vmatprep.subr.bf16.mxu0 0
    %4578 = vmatpush2.bf16.msra.mxu0 0
    %4579 = vmatprep.subr.bf16.mxu0 0
    %4580 = vmatpush2.bf16.msra.mxu0 0
    %4581 = vmatprep.subr.bf16.mxu0 0
    %4582 = vmatpush2.bf16.msra.mxu0 0
    %4583 = vmatprep.subr.bf16.mxu0 0
    %4584 = vmatpush2.bf16.msra.mxu0 0
    %4585 = vmatprep.subr.bf16.mxu0 0
    %4586 = vmatpush2.bf16.msra.mxu0 0
    %4587 = vmatprep.subr.bf16.mxu0 0
    %4588 = vmatpush2.bf16.msra.mxu0 0
    %4589 = vmatprep.subr.bf16.mxu0 0
    %4590 = vmatpush2.bf16.msra.mxu0 0
    %4591 = vmatprep.subr.bf16.mxu0 0
    %4592 = vmatpush2.bf16.msra.mxu0 0
    %4593 = vmatprep.mubr.bf16.mxu0 0
    %4594 = vmatmul.mubr.bf16.gmra.mxu0 %v4374
    %v4595 = vpop.f32.mrf.mxu0
    %v4596 = vadd.f32 %v2477, %v4595
    %v4597 = vpop.f32.mrf.mxu0
    %v4598 = vpop.f32.mrf.mxu0
    %v4599 = vpop.f32.mrf.mxu0
    %4600 = vdwg.mxu0
    %v4603 = vunpack.c.l.s4 1966171168
    %v4604 = vunpack.c.0.s8 %v4603
    %v4605 = vlaneseq
    %v4606 = vshrl.u32 %v4605, 7
    %v4607 = vsub.s32 %v4604, %v4606
    %v4608 = vrot.slane %v4596, %v4607
    %v4609 = vcombine.high %v4608, %v4608
    %v4611 = vunpack.c.l.s4 1966171168
    %v4612 = vunpack.c.0.s8 %v4611
    %v4613 = vlaneseq
    %v4614 = vshrl.u32 %v4613, 7
    %v4615 = vsub.s32 %v4612, %v4614
    %v4616 = vrot.slane %v4608, %v4615
    %v4618 = vunpack.c.l.s4 1966171168
    %v4619 = vunpack.c.0.s8 %v4618
    %v4620 = vlaneseq
    %v4621 = vshrl.u32 %v4620, 7
    %v4622 = vsub.s32 %v4619, %v4621
    %v4623 = vrot.slane %v4609, %v4622
    %v4624 = vlaneseq
    %v4625 = vshrl.u32 %v4624, 7
    %v4626 = vsub.s32 0, %v4625
    %v4627 = vrot.slane %v4616, %v4626
    %v4628 = vlaneseq
    %v4629 = vshrl.u32 %v4628, 7
    %v4630 = vsub.s32 0, %v4629
    %v4631 = vrot.slane %v4623, %v4630
    %v4634 = vadd.f32 %v2399, %v4627
    %v4635 = vadd.f32 %v2400, %v4631
    %v4636 = vtanh.pop %v4634
    %v4637 = vtanh.pop %v4635
    %v4638 = vmul.f32 %v4636, %v2578
    %v4639 = vmul.f32 %v4637, %v2578
    %v4640 = vsel %vm358, %v4638, 0.0
    %4641 = vadd.xlane.f32.xlu0 %v4640
    %v4642 = vpop.xlane.xlu0 %4641
    %v4643 = vsel %vm358, %v4639, 0.0
    %4644 = vadd.xlane.f32.xlu0 %v4643
    %v4645 = vpop.xlane.xlu0 %4644
    %v4646 = vadd.f32 %v4642, %v2595
    %v4647 = vadd.f32 %v4645, %v2595
    %v4650 = vlaneseq
    %v4651 = vshrl.u32 %v4650, 7
    %v4652 = vsub.s32 %v2402, %v4651
    %v4653 = vrot.slane %v4646, %v4652
    %v4654 = vlaneseq
    %v4655 = vshrl.u32 %v4654, 7
    %v4656 = vsub.s32 %v2402, %v4655
    %v4657 = vrot.slane %v4647, %v4656
    %v4658 = vsel %vm343, %v4657, %v4653
    %v4660 = vsel %vm2611, %v4658, -inf
    %4661 = vmax.xlane.f32.xlu0 %v4660
    %v4662 = vpop.xlane.xlu0 %4661
    %v4664 = vlaneseq
    %v4665 = vshrl.u32 %v4664, 7
    %v4666 = vsub.s32 0, %v4665
    %v4667 = vrot.slane %v4662, %v4666
    %v4668 = vlaneseq
    %v4669 = vshrl.u32 %v4668, 7
    %v4670 = vsub.s32 1, %v4669
    %v4671 = vrot.slane %v4662, %v4670
    %v4674 = vsub.f32 %v4646, %v4667
    %v4675 = vsub.f32 %v4647, %v4671
    %v4676 = vmul.f32 %v4674, 1.442695
    %v4677 = vpow.pop %v4676
    %v4678 = vmul.f32 %v4675, 1.442695
    %v4679 = vpow.pop %v4678
    %4682 = vset.pattern.permute.xlu0 0
    %4683 = vperm.xlu0 %4682, %v4677
    %v4684 = vpop.permute.xlu0 %4683
    %4685 = vset.pattern.permute.xlu0 0
    %4686 = vperm.xlu0 %4685, %v4679
    %v4687 = vpop.permute.xlu0 %4686
    %v4688 = vlaneseq
    %v4689 = vshrl.u32 %v4688, 7
    %v4690 = vsub.s32 %v2402, %v4689
    %v4691 = vrot.slane %v4684, %v4690
    %v4692 = vlaneseq
    %v4693 = vshrl.u32 %v4692, 7
    %v4694 = vsub.s32 %v2402, %v4693
    %v4695 = vrot.slane %v4687, %v4694
    %v4696 = vsel %vm343, %v4695, %v4691
    %v4698 = vsel %vm2611, %v4696, 0.0
    %4699 = vadd.xlane.f32.xlu0 %v4698
    %v4700 = vpop.xlane.xlu0 %4699
    %v4702 = vlaneseq
    %v4703 = vshrl.u32 %v4702, 7
    %v4704 = vsub.s32 0, %v4703
    %v4705 = vrot.slane %v4700, %v4704
    %v4706 = vlaneseq
    %v4707 = vshrl.u32 %v4706, 7
    %v4708 = vsub.s32 1, %v4707
    %v4709 = vrot.slane %v4700, %v4708
    %v4712 = vrcp.pop %v4705
    %v4713 = vmul.f32 %v4677, %v4712
    %v4714 = vrcp.pop %v4709
    %v4715 = vmul.f32 %v4679, %v4714
    %4717 = vset.pattern.permute.xlu0 0
    %4718 = vperm.xlu0 %4717, %v4713
    %v4719 = vpop.permute.xlu0 %4718
    %4722 = vset.pattern.permute.xlu0 0
    %4723 = vperm.xlu0 %4722, %v4715
    %v4724 = vpop.permute.xlu0 %4723
    %v4726 = vmul.f32 %v4719, %v2397
    %v4727 = vmul.f32 %v4724, %v2398
    %v4728 = vsel %vm358, %v4726, 0.0
    %v4729 = vrot.slane %v4728, 4
    %v4730 = vadd.f32 %v4728, %v4729
    %v4731 = vrot.slane %v4730, 2
    %v4732 = vadd.f32 %v4730, %v4731
    %v4733 = vrot.slane %v4732, 1
    %v4734 = vadd.f32 %v4732, %v4733
    %v4735 = vsel %vm358, %v4727, 0.0
    %v4736 = vrot.slane %v4735, 4
    %v4737 = vadd.f32 %v4735, %v4736
    %v4738 = vrot.slane %v4737, 2
    %v4739 = vadd.f32 %v4737, %v4738
    %v4740 = vrot.slane %v4739, 1
    %v4741 = vadd.f32 %v4739, %v4740
    %v4744 = vsel %vm343, %v4741, %v4734
    %4747 = vrot.lane.b32.xlu0 %v4556, 32
    %v4748 = vpop.permute.xlu0 %4747
    %v4750 = vsel %vm358, %v4744, %v4748
    %v4751 = vpack.c.bf16 %v4750, %v4750
    %v4753 = vsel %vm2734, %v4751, 0
    %4755 = vmatprep.subr.bf16.mxu0 0
    %4756 = vmatpush1.bf16.msra.mxu0 0
    %4757 = vmatprep.subr.bf16.mxu0 0
    %4758 = vmatpush1.bf16.msra.mxu0 0
    %4759 = vmatprep.subr.bf16.mxu0 0
    %4760 = vmatpush1.bf16.msra.mxu0 0
    %4761 = vmatprep.subr.bf16.mxu0 0
    %4762 = vmatpush1.bf16.msra.mxu0 0
    %4763 = vmatprep.subr.bf16.mxu0 0
    %4764 = vmatpush1.bf16.msra.mxu0 %v2729
    %4765 = vmatprep.subr.bf16.mxu0 0
    %4766 = vmatpush1.bf16.msra.mxu0 %v2728
    %4767 = vmatprep.subr.bf16.mxu0 0
    %4768 = vmatpush1.bf16.msra.mxu0 %v2727
    %4769 = vmatprep.subr.bf16.mxu0 0
    %4770 = vmatpush1.bf16.msra.mxu0 %v2726
    %4771 = vmatprep.subr.bf16.mxu0 0
    %4772 = vmatpush2.bf16.msra.mxu0 0
    %4773 = vmatprep.subr.bf16.mxu0 0
    %4774 = vmatpush2.bf16.msra.mxu0 0
    %4775 = vmatprep.subr.bf16.mxu0 0
    %4776 = vmatpush2.bf16.msra.mxu0 0
    %4777 = vmatprep.subr.bf16.mxu0 0
    %4778 = vmatpush2.bf16.msra.mxu0 0
    %4779 = vmatprep.subr.bf16.mxu0 0
    %4780 = vmatpush2.bf16.msra.mxu0 0
    %4781 = vmatprep.subr.bf16.mxu0 0
    %4782 = vmatpush2.bf16.msra.mxu0 0
    %4783 = vmatprep.subr.bf16.mxu0 0
    %4784 = vmatpush2.bf16.msra.mxu0 0
    %4785 = vmatprep.subr.bf16.mxu0 0
    %4786 = vmatpush2.bf16.msra.mxu0 0
    %4787 = vmatprep.mubr.bf16.mxu0 0
    %4788 = vmatmul.mubr.bf16.gmra.mxu0 %v4753
    %v4789 = vpop.f32.mrf.mxu0
    %v4790 = vadd.f32 %v2708, %v4789
    %v4791 = vpop.f32.mrf.mxu0
    %v4792 = vpop.f32.mrf.mxu0
    %v4793 = vpop.f32.mrf.mxu0
    %4794 = vdwg.mxu0
    %4795 = vmatprep.subr.bf16.mxu0 0
    %4796 = vmatpush1.bf16.msra.mxu0 0
    %4797 = vmatprep.subr.bf16.mxu0 0
    %4798 = vmatpush1.bf16.msra.mxu0 0
    %4799 = vmatprep.subr.bf16.mxu0 0
    %4800 = vmatpush1.bf16.msra.mxu0 0
    %4801 = vmatprep.subr.bf16.mxu0 0
    %4802 = vmatpush1.bf16.msra.mxu0 0
    %4803 = vmatprep.subr.bf16.mxu0 0
    %4804 = vmatpush1.bf16.msra.mxu0 0
    %4805 = vmatprep.subr.bf16.mxu0 0
    %4806 = vmatpush1.bf16.msra.mxu0 0
    %4807 = vmatprep.subr.bf16.mxu0 0
    %4808 = vmatpush1.bf16.msra.mxu0 %v2787
    %4809 = vmatprep.subr.bf16.mxu0 0
    %4810 = vmatpush1.bf16.msra.mxu0 %v2786
    %4811 = vmatprep.subr.bf16.mxu0 0
    %4812 = vmatpush2.bf16.msra.mxu0 0
    %4813 = vmatprep.subr.bf16.mxu0 0
    %4814 = vmatpush2.bf16.msra.mxu0 0
    %4815 = vmatprep.subr.bf16.mxu0 0
    %4816 = vmatpush2.bf16.msra.mxu0 0
    %4817 = vmatprep.subr.bf16.mxu0 0
    %4818 = vmatpush2.bf16.msra.mxu0 0
    %4819 = vmatprep.subr.bf16.mxu0 0
    %4820 = vmatpush2.bf16.msra.mxu0 0
    %4821 = vmatprep.subr.bf16.mxu0 0
    %4822 = vmatpush2.bf16.msra.mxu0 0
    %4823 = vmatprep.subr.bf16.mxu0 0
    %4824 = vmatpush2.bf16.msra.mxu0 0
    %4825 = vmatprep.subr.bf16.mxu0 0
    %4826 = vmatpush2.bf16.msra.mxu0 0
    %4827 = vmatprep.mubr.bf16.mxu0 0
    %4828 = vmatmul.mubr.bf16.gmra.mxu0 %v4374
    %v4829 = vpop.f32.mrf.mxu0
    %v4830 = vadd.f32 0.0, %v4829
    %v4831 = vpop.f32.mrf.mxu0
    %v4832 = vpop.f32.mrf.mxu0
    %v4833 = vpop.f32.mrf.mxu0
    %4834 = vdwg.mxu0
    %v4835 = vadd.f32 %v4790, %v4830
    %v4836 = vxor.u32 %v4835, 2147483648
    %v4837 = vmul.f32 %v4836, 1.442695
    %v4838 = vpow.pop %v4837
    %v4839 = vadd.f32 %v4838, 1.0
    %v4840 = vrcp.pop %v4839
    %v4841 = vmul.f32 1.0, %v4840
    %v4842 = vadd.f32 %v4830, %v2843
    %4844 = vrot.lane.b32.xlu0 %v4842, 64
    %v4845 = vpop.permute.xlu0 %4844
    %v4847 = vmul.f32 %v4841, %v4845
    %4849 = vrot.lane.b32.xlu0 %v4847, 64
    %v4850 = vpop.permute.xlu0 %4849
    %v4852 = vadd.f32 %v4790, %v4850
    %v4853 = vtanh.pop %v4852
    %v4854 = vsub.f32 1.0, %v4841
    %4856 = vrot.lane.b32.xlu0 %v4853, 96
    %v4857 = vpop.permute.xlu0 %4856
    %v4859 = vmul.f32 %v4854, %v4857
    %v4860 = vmul.f32 %v4841, %v4368
    %v4861 = vadd.f32 %v4859, %v4860
    %v4862 = vpack.c.bf16 %v4861, %v4861
    %4864 = vrot.lane.b32.xlu0 %v4862, 96
    %v4865 = vpop.permute.xlu0 %4864
    %v4867 = vsel %vm358, %v4865, 0
    %4869 = vmatprep.subr.bf16.mxu0 0
    %4870 = vmatpush1.bf16.msra.mxu0 0
    %4871 = vmatprep.subr.bf16.mxu0 0
    %4872 = vmatpush1.bf16.msra.mxu0 0
    %4873 = vmatprep.subr.bf16.mxu0 0
    %4874 = vmatpush1.bf16.msra.mxu0 0
    %4875 = vmatprep.subr.bf16.mxu0 0
    %4876 = vmatpush1.bf16.msra.mxu0 0
    %4877 = vmatprep.subr.bf16.mxu0 0
    %4878 = vmatpush1.bf16.msra.mxu0 0
    %4879 = vmatprep.subr.bf16.mxu0 0
    %4880 = vmatpush1.bf16.msra.mxu0 0
    %4881 = vmatprep.subr.bf16.mxu0 0
    %4882 = vmatpush1.bf16.msra.mxu0 %v2884
    %4883 = vmatprep.subr.bf16.mxu0 0
    %4884 = vmatpush1.bf16.msra.mxu0 %v2883
    %4885 = vmatprep.subr.bf16.mxu0 0
    %4886 = vmatpush2.bf16.msra.mxu0 0
    %4887 = vmatprep.subr.bf16.mxu0 0
    %4888 = vmatpush2.bf16.msra.mxu0 0
    %4889 = vmatprep.subr.bf16.mxu0 0
    %4890 = vmatpush2.bf16.msra.mxu0 0
    %4891 = vmatprep.subr.bf16.mxu0 0
    %4892 = vmatpush2.bf16.msra.mxu0 0
    %4893 = vmatprep.subr.bf16.mxu0 0
    %4894 = vmatpush2.bf16.msra.mxu0 0
    %4895 = vmatprep.subr.bf16.mxu0 0
    %4896 = vmatpush2.bf16.msra.mxu0 0
    %4897 = vmatprep.subr.bf16.mxu0 0
    %4898 = vmatpush2.bf16.msra.mxu0 0
    %4899 = vmatprep.subr.bf16.mxu0 0
    %4900 = vmatpush2.bf16.msra.mxu0 0
    %4901 = vmatprep.mubr.bf16.mxu0 0
    %4902 = vmatmul.mubr.bf16.gmra.mxu0 %v4867
    %v4903 = vpop.f32.mrf.mxu0
    %v4904 = vadd.f32 %v2870, %v4903
    %v4905 = vpop.f32.mrf.mxu0
    %v4906 = vpop.f32.mrf.mxu0
    %v4907 = vpop.f32.mrf.mxu0
    %4908 = vdwg.mxu0
    %vm4909 = vcmp.gt.f32.partialorder %v4904, 0.0
    %v4910 = vmul.f32 %v4904, 0.01
    %v4911 = vsel %vm4909, %v4904, %v4910
    %v4913 = vsel %vm358, %v4911, 0
    %4915 = vmatprep.subr.mxu0 0.0
    %4916 = vmatpush1.msra.mxu0 0.0
    %4917 = vmatprep.subr.mxu0 0.0
    %4918 = vmatpush1.msra.mxu0 0.0
    %4919 = vmatprep.subr.mxu0 0.0
    %4920 = vmatpush1.msra.mxu0 0.0
    %4921 = vmatprep.subr.mxu0 0.0
    %4922 = vmatpush1.msra.mxu0 0.0
    %4923 = vmatprep.subr.mxu0 0.0
    %4924 = vmatpush1.msra.mxu0 0.0
    %4925 = vmatprep.subr.mxu0 0.0
    %4926 = vmatpush1.msra.mxu0 0.0
    %4927 = vmatprep.subr.mxu0 0.0
    %4928 = vmatpush1.msra.mxu0 0.0
    %4929 = vmatprep.subr.mxu0 0.0
    %4930 = vmatpush1.msra.mxu0 0.0
    %4931 = vmatprep.subr.mxu0 0.0
    %4932 = vmatpush1.msra.mxu0 0.0
    %4933 = vmatprep.subr.mxu0 0.0
    %4934 = vmatpush1.msra.mxu0 0.0
    %4935 = vmatprep.subr.mxu0 0.0
    %4936 = vmatpush1.msra.mxu0 0.0
    %4937 = vmatprep.subr.mxu0 0.0
    %4938 = vmatpush1.msra.mxu0 0.0
    %4939 = vmatprep.subr.mxu0 0.0
    %4940 = vmatpush1.msra.mxu0 %v326
    %4941 = vmatprep.subr.mxu0 0.0
    %4942 = vmatpush1.msra.mxu0 %v325
    %4943 = vmatprep.subr.mxu0 0.0
    %4944 = vmatpush1.msra.mxu0 %v324
    %4945 = vmatprep.subr.mxu0 0.0
    %4946 = vmatpush1.msra.mxu0 %v323
    %4947 = vmatprep.subr.mxu0 0.0
    %4948 = vmatpush2.msra.mxu0 0.0
    %4949 = vmatprep.subr.mxu0 0.0
    %4950 = vmatpush2.msra.mxu0 0.0
    %4951 = vmatprep.subr.mxu0 0.0
    %4952 = vmatpush2.msra.mxu0 0.0
    %4953 = vmatprep.subr.mxu0 0.0
    %4954 = vmatpush2.msra.mxu0 0.0
    %4955 = vmatprep.subr.mxu0 0.0
    %4956 = vmatpush2.msra.mxu0 0.0
    %4957 = vmatprep.subr.mxu0 0.0
    %4958 = vmatpush2.msra.mxu0 0.0
    %4959 = vmatprep.subr.mxu0 0.0
    %4960 = vmatpush2.msra.mxu0 0.0
    %4961 = vmatprep.subr.mxu0 0.0
    %4962 = vmatpush2.msra.mxu0 0.0
    %4963 = vmatprep.subr.mxu0 0.0
    %4964 = vmatpush2.msra.mxu0 0.0
    %4965 = vmatprep.subr.mxu0 0.0
    %4966 = vmatpush2.msra.mxu0 0.0
    %4967 = vmatprep.subr.mxu0 0.0
    %4968 = vmatpush2.msra.mxu0 0.0
    %4969 = vmatprep.subr.mxu0 0.0
    %4970 = vmatpush2.msra.mxu0 0.0
    %4971 = vmatprep.subr.mxu0 0.0
    %4972 = vmatpush2.msra.mxu0 0.0
    %4973 = vmatprep.subr.mxu0 0.0
    %4974 = vmatpush2.msra.mxu0 0.0
    %4975 = vmatprep.subr.mxu0 0.0
    %4976 = vmatpush2.msra.mxu0 0.0
    %4977 = vmatprep.subr.mxu0 0.0
    %4978 = vmatpush2.msra.mxu0 0.0
    %4979 = vmatprep.mubr.f32.mxu0 0.0
    %4980 = vmatmul.mubr.f32.gmra.mxu0 %v4913
    %v4981 = vpop.f32.mrf.mxu0
    %v4982 = vadd.f32 %v2937, %v4981
    %v4983 = vpop.f32.mrf.mxu0
    %4984 = vdwg.mxu0
    %s4985 = scalar_lea.vmem [#allocation31], 10
    %4986 = vst [vmem:[%s4985] sm:$0x3] %v4982
    %v4987 = vsel %vm3014, %v4982, -inf
    %4988 = vmax.xlane.f32.xlu0 %v4987
    %v4989 = vpop.xlane.xlu0 %4988
    %vm4990 = vcmp.eq.f32.partialorder %v4982, %v4989
    %v4991 = vsel %vm4990, %v2402, 128
    %v4992 = vsel %vm3014, %v4991, 2147483647
    %v4993 = vand.u32 %v4992, 65535
    %v4994 = vshra.s32 %v4992, 16
    %v4995 = vcvt.s32.f32 %v4993
    %v4996 = vcvt.s32.f32 %v4994
    %4997 = vmin.xlane.f32.xlu0 %v4996
    %v4998 = vpop.xlane.xlu0 %4997
    %vm4999 = vcmp.eq.f32.partialorder %v4996, %v4998
    %v5000 = vsel %vm4999, %v4995, inf
    %5001 = vmin.xlane.f32.xlu0 %v5000
    %v5002 = vpop.xlane.xlu0 %5001
    %v5003 = vcvt.f32.s32 %v5002
    %v5004 = vcvt.f32.s32 %v4998
    %v5005 = vshll.u32 %v5004, 16
    %v5006 = vadd.s32 %v5005, %v5003
    %vm5007 = vcmp.eq.s32.totalorder %v2402, %v5006
    %v5008 = vsel %vm5007, 1, 0
    %v5009 = vcvt.s32.f32 %v5008
    %v5010 = vpack.c.bf16 %v5009, %v5009
    %v5012 = vsel %vm2424, %v5010, 0
    %5014 = vmatprep.subr.bf16.mxu0 0
    %5015 = vmatpush1.bf16.msra.mxu0 0
    %5016 = vmatprep.subr.bf16.mxu0 0
    %5017 = vmatpush1.bf16.msra.mxu0 0
    %5018 = vmatprep.subr.bf16.mxu0 0
    %5019 = vmatpush1.bf16.msra.mxu0 0
    %5020 = vmatprep.subr.bf16.mxu0 0
    %5021 = vmatpush1.bf16.msra.mxu0 0
    %5022 = vmatprep.subr.bf16.mxu0 0
    %5023 = vmatpush1.bf16.msra.mxu0 0
    %5024 = vmatprep.subr.bf16.mxu0 0
    %5025 = vmatpush1.bf16.msra.mxu0 0
    %5026 = vmatprep.subr.bf16.mxu0 0
    %5027 = vmatpush1.bf16.msra.mxu0 %v2430
    %5028 = vmatprep.subr.bf16.mxu0 0
    %5029 = vmatpush1.bf16.msra.mxu0 %v2421
    %5030 = vmatprep.subr.bf16.mxu0 0
    %5031 = vmatpush2.bf16.msra.mxu0 0
    %5032 = vmatprep.subr.bf16.mxu0 0
    %5033 = vmatpush2.bf16.msra.mxu0 0
    %5034 = vmatprep.subr.bf16.mxu0 0
    %5035 = vmatpush2.bf16.msra.mxu0 0
    %5036 = vmatprep.subr.bf16.mxu0 0
    %5037 = vmatpush2.bf16.msra.mxu0 0
    %5038 = vmatprep.subr.bf16.mxu0 0
    %5039 = vmatpush2.bf16.msra.mxu0 0
    %5040 = vmatprep.subr.bf16.mxu0 0
    %5041 = vmatpush2.bf16.msra.mxu0 0
    %5042 = vmatprep.subr.bf16.mxu0 0
    %5043 = vmatpush2.bf16.msra.mxu0 0
    %5044 = vmatprep.subr.bf16.mxu0 0
    %5045 = vmatpush2.bf16.msra.mxu0 0
    %5046 = vmatprep.mubr.bf16.mxu0 0
    %5047 = vmatmul.mubr.bf16.gmra.mxu0 %v5012
    %v5048 = vpop.f32.mrf.mxu0
    %v5049 = vadd.f32 0.0, %v5048
    %v5050 = vpop.f32.mrf.mxu0
    %v5051 = vpop.f32.mrf.mxu0
    %v5052 = vpop.f32.mrf.mxu0
    %5053 = vdwg.mxu0
    %5054 = vmatprep.subr.bf16.mxu0 0
    %5055 = vmatpush1.bf16.msra.mxu0 0
    %5056 = vmatprep.subr.bf16.mxu0 0
    %5057 = vmatpush1.bf16.msra.mxu0 0
    %5058 = vmatprep.subr.bf16.mxu0 0
    %5059 = vmatpush1.bf16.msra.mxu0 0
    %5060 = vmatprep.subr.bf16.mxu0 0
    %5061 = vmatpush1.bf16.msra.mxu0 0
    %5062 = vmatprep.subr.bf16.mxu0 0
    %5063 = vmatpush1.bf16.msra.mxu0 0
    %5064 = vmatprep.subr.bf16.mxu0 0
    %5065 = vmatpush1.bf16.msra.mxu0 0
    %5066 = vmatprep.subr.bf16.mxu0 0
    %5067 = vmatpush1.bf16.msra.mxu0 %v2491
    %5068 = vmatprep.subr.bf16.mxu0 0
    %5069 = vmatpush1.bf16.msra.mxu0 %v2490
    %5070 = vmatprep.subr.bf16.mxu0 0
    %5071 = vmatpush2.bf16.msra.mxu0 0
    %5072 = vmatprep.subr.bf16.mxu0 0
    %5073 = vmatpush2.bf16.msra.mxu0 0
    %5074 = vmatprep.subr.bf16.mxu0 0
    %5075 = vmatpush2.bf16.msra.mxu0 0
    %5076 = vmatprep.subr.bf16.mxu0 0
    %5077 = vmatpush2.bf16.msra.mxu0 0
    %5078 = vmatprep.subr.bf16.mxu0 0
    %5079 = vmatpush2.bf16.msra.mxu0 0
    %5080 = vmatprep.subr.bf16.mxu0 0
    %5081 = vmatpush2.bf16.msra.mxu0 0
    %5082 = vmatprep.subr.bf16.mxu0 0
    %5083 = vmatpush2.bf16.msra.mxu0 0
    %5084 = vmatprep.subr.bf16.mxu0 0
    %5085 = vmatpush2.bf16.msra.mxu0 0
    %5086 = vmatprep.mubr.bf16.mxu0 0
    %5087 = vmatmul.mubr.bf16.gmra.mxu0 %v4867
    %v5088 = vpop.f32.mrf.mxu0
    %v5089 = vadd.f32 %v2477, %v5088
    %v5090 = vpop.f32.mrf.mxu0
    %v5091 = vpop.f32.mrf.mxu0
    %v5092 = vpop.f32.mrf.mxu0
    %5093 = vdwg.mxu0
    %v5096 = vunpack.c.l.s4 1966171168
    %v5097 = vunpack.c.0.s8 %v5096
    %v5098 = vlaneseq
    %v5099 = vshrl.u32 %v5098, 7
    %v5100 = vsub.s32 %v5097, %v5099
    %v5101 = vrot.slane %v5089, %v5100
    %v5102 = vcombine.high %v5101, %v5101
    %v5104 = vunpack.c.l.s4 1966171168
    %v5105 = vunpack.c.0.s8 %v5104
    %v5106 = vlaneseq
    %v5107 = vshrl.u32 %v5106, 7
    %v5108 = vsub.s32 %v5105, %v5107
    %v5109 = vrot.slane %v5101, %v5108
    %v5111 = vunpack.c.l.s4 1966171168
    %v5112 = vunpack.c.0.s8 %v5111
    %v5113 = vlaneseq
    %v5114 = vshrl.u32 %v5113, 7
    %v5115 = vsub.s32 %v5112, %v5114
    %v5116 = vrot.slane %v5102, %v5115
    %v5117 = vlaneseq
    %v5118 = vshrl.u32 %v5117, 7
    %v5119 = vsub.s32 0, %v5118
    %v5120 = vrot.slane %v5109, %v5119
    %v5121 = vlaneseq
    %v5122 = vshrl.u32 %v5121, 7
    %v5123 = vsub.s32 0, %v5122
    %v5124 = vrot.slane %v5116, %v5123
    %v5127 = vadd.f32 %v2399, %v5120
    %v5128 = vadd.f32 %v2400, %v5124
    %v5129 = vtanh.pop %v5127
    %v5130 = vtanh.pop %v5128
    %v5131 = vmul.f32 %v5129, %v2578
    %v5132 = vmul.f32 %v5130, %v2578
    %v5133 = vsel %vm358, %v5131, 0.0
    %5134 = vadd.xlane.f32.xlu0 %v5133
    %v5135 = vpop.xlane.xlu0 %5134
    %v5136 = vsel %vm358, %v5132, 0.0
    %5137 = vadd.xlane.f32.xlu0 %v5136
    %v5138 = vpop.xlane.xlu0 %5137
    %v5139 = vadd.f32 %v5135, %v2595
    %v5140 = vadd.f32 %v5138, %v2595
    %v5143 = vlaneseq
    %v5144 = vshrl.u32 %v5143, 7
    %v5145 = vsub.s32 %v2402, %v5144
    %v5146 = vrot.slane %v5139, %v5145
    %v5147 = vlaneseq
    %v5148 = vshrl.u32 %v5147, 7
    %v5149 = vsub.s32 %v2402, %v5148
    %v5150 = vrot.slane %v5140, %v5149
    %v5151 = vsel %vm343, %v5150, %v5146
    %v5153 = vsel %vm2611, %v5151, -inf
    %5154 = vmax.xlane.f32.xlu0 %v5153
    %v5155 = vpop.xlane.xlu0 %5154
    %v5157 = vlaneseq
    %v5158 = vshrl.u32 %v5157, 7
    %v5159 = vsub.s32 0, %v5158
    %v5160 = vrot.slane %v5155, %v5159
    %v5161 = vlaneseq
    %v5162 = vshrl.u32 %v5161, 7
    %v5163 = vsub.s32 1, %v5162
    %v5164 = vrot.slane %v5155, %v5163
    %v5167 = vsub.f32 %v5139, %v5160
    %v5168 = vsub.f32 %v5140, %v5164
    %v5169 = vmul.f32 %v5167, 1.442695
    %v5170 = vpow.pop %v5169
    %v5171 = vmul.f32 %v5168, 1.442695
    %v5172 = vpow.pop %v5171
    %5175 = vset.pattern.permute.xlu0 0
    %5176 = vperm.xlu0 %5175, %v5170
    %v5177 = vpop.permute.xlu0 %5176
    %5178 = vset.pattern.permute.xlu0 0
    %5179 = vperm.xlu0 %5178, %v5172
    %v5180 = vpop.permute.xlu0 %5179
    %v5181 = vlaneseq
    %v5182 = vshrl.u32 %v5181, 7
    %v5183 = vsub.s32 %v2402, %v5182
    %v5184 = vrot.slane %v5177, %v5183
    %v5185 = vlaneseq
    %v5186 = vshrl.u32 %v5185, 7
    %v5187 = vsub.s32 %v2402, %v5186
    %v5188 = vrot.slane %v5180, %v5187
    %v5189 = vsel %vm343, %v5188, %v5184
    %v5191 = vsel %vm2611, %v5189, 0.0
    %5192 = vadd.xlane.f32.xlu0 %v5191
    %v5193 = vpop.xlane.xlu0 %5192
    %v5195 = vlaneseq
    %v5196 = vshrl.u32 %v5195, 7
    %v5197 = vsub.s32 0, %v5196
    %v5198 = vrot.slane %v5193, %v5197
    %v5199 = vlaneseq
    %v5200 = vshrl.u32 %v5199, 7
    %v5201 = vsub.s32 1, %v5200
    %v5202 = vrot.slane %v5193, %v5201
    %v5205 = vrcp.pop %v5198
    %v5206 = vmul.f32 %v5170, %v5205
    %v5207 = vrcp.pop %v5202
    %v5208 = vmul.f32 %v5172, %v5207
    %5210 = vset.pattern.permute.xlu0 0
    %5211 = vperm.xlu0 %5210, %v5206
    %v5212 = vpop.permute.xlu0 %5211
    %5215 = vset.pattern.permute.xlu0 0
    %5216 = vperm.xlu0 %5215, %v5208
    %v5217 = vpop.permute.xlu0 %5216
    %v5219 = vmul.f32 %v5212, %v2397
    %v5220 = vmul.f32 %v5217, %v2398
    %v5221 = vsel %vm358, %v5219, 0.0
    %v5222 = vrot.slane %v5221, 4
    %v5223 = vadd.f32 %v5221, %v5222
    %v5224 = vrot.slane %v5223, 2
    %v5225 = vadd.f32 %v5223, %v5224
    %v5226 = vrot.slane %v5225, 1
    %v5227 = vadd.f32 %v5225, %v5226
    %v5228 = vsel %vm358, %v5220, 0.0
    %v5229 = vrot.slane %v5228, 4
    %v5230 = vadd.f32 %v5228, %v5229
    %v5231 = vrot.slane %v5230, 2
    %v5232 = vadd.f32 %v5230, %v5231
    %v5233 = vrot.slane %v5232, 1
    %v5234 = vadd.f32 %v5232, %v5233
    %v5237 = vsel %vm343, %v5234, %v5227
    %5240 = vrot.lane.b32.xlu0 %v5049, 32
    %v5241 = vpop.permute.xlu0 %5240
    %v5243 = vsel %vm358, %v5237, %v5241
    %v5244 = vpack.c.bf16 %v5243, %v5243
    %v5246 = vsel %vm2734, %v5244, 0
    %5248 = vmatprep.subr.bf16.mxu0 0
    %5249 = vmatpush1.bf16.msra.mxu0 0
    %5250 = vmatprep.subr.bf16.mxu0 0
    %5251 = vmatpush1.bf16.msra.mxu0 0
    %5252 = vmatprep.subr.bf16.mxu0 0
    %5253 = vmatpush1.bf16.msra.mxu0 0
    %5254 = vmatprep.subr.bf16.mxu0 0
    %5255 = vmatpush1.bf16.msra.mxu0 0
    %5256 = vmatprep.subr.bf16.mxu0 0
    %5257 = vmatpush1.bf16.msra.mxu0 %v2729
    %5258 = vmatprep.subr.bf16.mxu0 0
    %5259 = vmatpush1.bf16.msra.mxu0 %v2728
    %5260 = vmatprep.subr.bf16.mxu0 0
    %5261 = vmatpush1.bf16.msra.mxu0 %v2727
    %5262 = vmatprep.subr.bf16.mxu0 0
    %5263 = vmatpush1.bf16.msra.mxu0 %v2726
    %5264 = vmatprep.subr.bf16.mxu0 0
    %5265 = vmatpush2.bf16.msra.mxu0 0
    %5266 = vmatprep.subr.bf16.mxu0 0
    %5267 = vmatpush2.bf16.msra.mxu0 0
    %5268 = vmatprep.subr.bf16.mxu0 0
    %5269 = vmatpush2.bf16.msra.mxu0 0
    %5270 = vmatprep.subr.bf16.mxu0 0
    %5271 = vmatpush2.bf16.msra.mxu0 0
    %5272 = vmatprep.subr.bf16.mxu0 0
    %5273 = vmatpush2.bf16.msra.mxu0 0
    %5274 = vmatprep.subr.bf16.mxu0 0
    %5275 = vmatpush2.bf16.msra.mxu0 0
    %5276 = vmatprep.subr.bf16.mxu0 0
    %5277 = vmatpush2.bf16.msra.mxu0 0
    %5278 = vmatprep.subr.bf16.mxu0 0
    %5279 = vmatpush2.bf16.msra.mxu0 0
    %5280 = vmatprep.mubr.bf16.mxu0 0
    %5281 = vmatmul.mubr.bf16.gmra.mxu0 %v5246
    %v5282 = vpop.f32.mrf.mxu0
    %v5283 = vadd.f32 %v2708, %v5282
    %v5284 = vpop.f32.mrf.mxu0
    %v5285 = vpop.f32.mrf.mxu0
    %v5286 = vpop.f32.mrf.mxu0
    %5287 = vdwg.mxu0
    %5288 = vmatprep.subr.bf16.mxu0 0
    %5289 = vmatpush1.bf16.msra.mxu0 0
    %5290 = vmatprep.subr.bf16.mxu0 0
    %5291 = vmatpush1.bf16.msra.mxu0 0
    %5292 = vmatprep.subr.bf16.mxu0 0
    %5293 = vmatpush1.bf16.msra.mxu0 0
    %5294 = vmatprep.subr.bf16.mxu0 0
    %5295 = vmatpush1.bf16.msra.mxu0 0
    %5296 = vmatprep.subr.bf16.mxu0 0
    %5297 = vmatpush1.bf16.msra.mxu0 0
    %5298 = vmatprep.subr.bf16.mxu0 0
    %5299 = vmatpush1.bf16.msra.mxu0 0
    %5300 = vmatprep.subr.bf16.mxu0 0
    %5301 = vmatpush1.bf16.msra.mxu0 %v2787
    %5302 = vmatprep.subr.bf16.mxu0 0
    %5303 = vmatpush1.bf16.msra.mxu0 %v2786
    %5304 = vmatprep.subr.bf16.mxu0 0
    %5305 = vmatpush2.bf16.msra.mxu0 0
    %5306 = vmatprep.subr.bf16.mxu0 0
    %5307 = vmatpush2.bf16.msra.mxu0 0
    %5308 = vmatprep.subr.bf16.mxu0 0
    %5309 = vmatpush2.bf16.msra.mxu0 0
    %5310 = vmatprep.subr.bf16.mxu0 0
    %5311 = vmatpush2.bf16.msra.mxu0 0
    %5312 = vmatprep.subr.bf16.mxu0 0
    %5313 = vmatpush2.bf16.msra.mxu0 0
    %5314 = vmatprep.subr.bf16.mxu0 0
    %5315 = vmatpush2.bf16.msra.mxu0 0
    %5316 = vmatprep.subr.bf16.mxu0 0
    %5317 = vmatpush2.bf16.msra.mxu0 0
    %5318 = vmatprep.subr.bf16.mxu0 0
    %5319 = vmatpush2.bf16.msra.mxu0 0
    %5320 = vmatprep.mubr.bf16.mxu0 0
    %5321 = vmatmul.mubr.bf16.gmra.mxu0 %v4867
    %v5322 = vpop.f32.mrf.mxu0
    %v5323 = vadd.f32 0.0, %v5322
    %v5324 = vpop.f32.mrf.mxu0
    %v5325 = vpop.f32.mrf.mxu0
    %v5326 = vpop.f32.mrf.mxu0
    %5327 = vdwg.mxu0
    %v5328 = vadd.f32 %v5283, %v5323
    %v5329 = vxor.u32 %v5328, 2147483648
    %v5330 = vmul.f32 %v5329, 1.442695
    %v5331 = vpow.pop %v5330
    %v5332 = vadd.f32 %v5331, 1.0
    %v5333 = vrcp.pop %v5332
    %v5334 = vmul.f32 1.0, %v5333
    %v5335 = vadd.f32 %v5323, %v2843
    %5337 = vrot.lane.b32.xlu0 %v5335, 64
    %v5338 = vpop.permute.xlu0 %5337
    %v5340 = vmul.f32 %v5334, %v5338
    %5342 = vrot.lane.b32.xlu0 %v5340, 64
    %v5343 = vpop.permute.xlu0 %5342
    %v5345 = vadd.f32 %v5283, %v5343
    %v5346 = vtanh.pop %v5345
    %v5347 = vsub.f32 1.0, %v5334
    %5349 = vrot.lane.b32.xlu0 %v5346, 96
    %v5350 = vpop.permute.xlu0 %5349
    %v5352 = vmul.f32 %v5347, %v5350
    %v5353 = vmul.f32 %v5334, %v4861
    %v5354 = vadd.f32 %v5352, %v5353
    %v5355 = vpack.c.bf16 %v5354, %v5354
    %5357 = vrot.lane.b32.xlu0 %v5355, 96
    %v5358 = vpop.permute.xlu0 %5357
    %v5360 = vsel %vm358, %v5358, 0
    %5362 = vmatprep.subr.bf16.mxu0 0
    %5363 = vmatpush1.bf16.msra.mxu0 0
    %5364 = vmatprep.subr.bf16.mxu0 0
    %5365 = vmatpush1.bf16.msra.mxu0 0
    %5366 = vmatprep.subr.bf16.mxu0 0
    %5367 = vmatpush1.bf16.msra.mxu0 0
    %5368 = vmatprep.subr.bf16.mxu0 0
    %5369 = vmatpush1.bf16.msra.mxu0 0
    %5370 = vmatprep.subr.bf16.mxu0 0
    %5371 = vmatpush1.bf16.msra.mxu0 0
    %5372 = vmatprep.subr.bf16.mxu0 0
    %5373 = vmatpush1.bf16.msra.mxu0 0
    %5374 = vmatprep.subr.bf16.mxu0 0
    %5375 = vmatpush1.bf16.msra.mxu0 %v2884
    %5376 = vmatprep.subr.bf16.mxu0 0
    %5377 = vmatpush1.bf16.msra.mxu0 %v2883
    %5378 = vmatprep.subr.bf16.mxu0 0
    %5379 = vmatpush2.bf16.msra.mxu0 0
    %5380 = vmatprep.subr.bf16.mxu0 0
    %5381 = vmatpush2.bf16.msra.mxu0 0
    %5382 = vmatprep.subr.bf16.mxu0 0
    %5383 = vmatpush2.bf16.msra.mxu0 0
    %5384 = vmatprep.subr.bf16.mxu0 0
    %5385 = vmatpush2.bf16.msra.mxu0 0
    %5386 = vmatprep.subr.bf16.mxu0 0
    %5387 = vmatpush2.bf16.msra.mxu0 0
    %5388 = vmatprep.subr.bf16.mxu0 0
    %5389 = vmatpush2.bf16.msra.mxu0 0
    %5390 = vmatprep.subr.bf16.mxu0 0
    %5391 = vmatpush2.bf16.msra.mxu0 0
    %5392 = vmatprep.subr.bf16.mxu0 0
    %5393 = vmatpush2.bf16.msra.mxu0 0
    %5394 = vmatprep.mubr.bf16.mxu0 0
    %5395 = vmatmul.mubr.bf16.gmra.mxu0 %v5360
    %v5396 = vpop.f32.mrf.mxu0
    %v5397 = vadd.f32 %v2870, %v5396
    %v5398 = vpop.f32.mrf.mxu0
    %v5399 = vpop.f32.mrf.mxu0
    %v5400 = vpop.f32.mrf.mxu0
    %5401 = vdwg.mxu0
    %vm5402 = vcmp.gt.f32.partialorder %v5397, 0.0
    %v5403 = vmul.f32 %v5397, 0.01
    %v5404 = vsel %vm5402, %v5397, %v5403
    %v5406 = vsel %vm358, %v5404, 0
    %5408 = vmatprep.subr.mxu0 0.0
    %5409 = vmatpush1.msra.mxu0 0.0
    %5410 = vmatprep.subr.mxu0 0.0
    %5411 = vmatpush1.msra.mxu0 0.0
    %5412 = vmatprep.subr.mxu0 0.0
    %5413 = vmatpush1.msra.mxu0 0.0
    %5414 = vmatprep.subr.mxu0 0.0
    %5415 = vmatpush1.msra.mxu0 0.0
    %5416 = vmatprep.subr.mxu0 0.0
    %5417 = vmatpush1.msra.mxu0 0.0
    %5418 = vmatprep.subr.mxu0 0.0
    %5419 = vmatpush1.msra.mxu0 0.0
    %5420 = vmatprep.subr.mxu0 0.0
    %5421 = vmatpush1.msra.mxu0 0.0
    %5422 = vmatprep.subr.mxu0 0.0
    %5423 = vmatpush1.msra.mxu0 0.0
    %5424 = vmatprep.subr.mxu0 0.0
    %5425 = vmatpush1.msra.mxu0 0.0
    %5426 = vmatprep.subr.mxu0 0.0
    %5427 = vmatpush1.msra.mxu0 0.0
    %5428 = vmatprep.subr.mxu0 0.0
    %5429 = vmatpush1.msra.mxu0 0.0
    %5430 = vmatprep.subr.mxu0 0.0
    %5431 = vmatpush1.msra.mxu0 0.0
    %5432 = vmatprep.subr.mxu0 0.0
    %5433 = vmatpush1.msra.mxu0 %v326
    %5434 = vmatprep.subr.mxu0 0.0
    %5435 = vmatpush1.msra.mxu0 %v325
    %5436 = vmatprep.subr.mxu0 0.0
    %5437 = vmatpush1.msra.mxu0 %v324
    %5438 = vmatprep.subr.mxu0 0.0
    %5439 = vmatpush1.msra.mxu0 %v323
    %5440 = vmatprep.subr.mxu0 0.0
    %5441 = vmatpush2.msra.mxu0 0.0
    %5442 = vmatprep.subr.mxu0 0.0
    %5443 = vmatpush2.msra.mxu0 0.0
    %5444 = vmatprep.subr.mxu0 0.0
    %5445 = vmatpush2.msra.mxu0 0.0
    %5446 = vmatprep.subr.mxu0 0.0
    %5447 = vmatpush2.msra.mxu0 0.0
    %5448 = vmatprep.subr.mxu0 0.0
    %5449 = vmatpush2.msra.mxu0 0.0
    %5450 = vmatprep.subr.mxu0 0.0
    %5451 = vmatpush2.msra.mxu0 0.0
    %5452 = vmatprep.subr.mxu0 0.0
    %5453 = vmatpush2.msra.mxu0 0.0
    %5454 = vmatprep.subr.mxu0 0.0
    %5455 = vmatpush2.msra.mxu0 0.0
    %5456 = vmatprep.subr.mxu0 0.0
    %5457 = vmatpush2.msra.mxu0 0.0
    %5458 = vmatprep.subr.mxu0 0.0
    %5459 = vmatpush2.msra.mxu0 0.0
    %5460 = vmatprep.subr.mxu0 0.0
    %5461 = vmatpush2.msra.mxu0 0.0
    %5462 = vmatprep.subr.mxu0 0.0
    %5463 = vmatpush2.msra.mxu0 0.0
    %5464 = vmatprep.subr.mxu0 0.0
    %5465 = vmatpush2.msra.mxu0 0.0
    %5466 = vmatprep.subr.mxu0 0.0
    %5467 = vmatpush2.msra.mxu0 0.0
    %5468 = vmatprep.subr.mxu0 0.0
    %5469 = vmatpush2.msra.mxu0 0.0
    %5470 = vmatprep.subr.mxu0 0.0
    %5471 = vmatpush2.msra.mxu0 0.0
    %5472 = vmatprep.mubr.f32.mxu0 0.0
    %5473 = vmatmul.mubr.f32.gmra.mxu0 %v5406
    %v5474 = vpop.f32.mrf.mxu0
    %v5475 = vadd.f32 %v2937, %v5474
    %v5476 = vpop.f32.mrf.mxu0
    %5477 = vdwg.mxu0
    %s5478 = scalar_lea.vmem [#allocation31], 12
    %5479 = vst [vmem:[%s5478] sm:$0x3] %v5475
    %v5480 = vsel %vm3014, %v5475, -inf
    %5481 = vmax.xlane.f32.xlu0 %v5480
    %v5482 = vpop.xlane.xlu0 %5481
    %vm5483 = vcmp.eq.f32.partialorder %v5475, %v5482
    %v5484 = vsel %vm5483, %v2402, 128
    %v5485 = vsel %vm3014, %v5484, 2147483647
    %v5486 = vand.u32 %v5485, 65535
    %v5487 = vshra.s32 %v5485, 16
    %v5488 = vcvt.s32.f32 %v5486
    %v5489 = vcvt.s32.f32 %v5487
    %5490 = vmin.xlane.f32.xlu0 %v5489
    %v5491 = vpop.xlane.xlu0 %5490
    %vm5492 = vcmp.eq.f32.partialorder %v5489, %v5491
    %v5493 = vsel %vm5492, %v5488, inf
    %5494 = vmin.xlane.f32.xlu0 %v5493
    %v5495 = vpop.xlane.xlu0 %5494
    %v5496 = vcvt.f32.s32 %v5495
    %v5497 = vcvt.f32.s32 %v5491
    %v5498 = vshll.u32 %v5497, 16
    %v5499 = vadd.s32 %v5498, %v5496
    %vm5500 = vcmp.eq.s32.totalorder %v2402, %v5499
    %v5501 = vsel %vm5500, 1, 0
    %v5502 = vcvt.s32.f32 %v5501
    %v5503 = vpack.c.bf16 %v5502, %v5502
    %v5505 = vsel %vm2424, %v5503, 0
    %5507 = vmatprep.subr.bf16.mxu0 0
    %5508 = vmatpush1.bf16.msra.mxu0 0
    %5509 = vmatprep.subr.bf16.mxu0 0
    %5510 = vmatpush1.bf16.msra.mxu0 0
    %5511 = vmatprep.subr.bf16.mxu0 0
    %5512 = vmatpush1.bf16.msra.mxu0 0
    %5513 = vmatprep.subr.bf16.mxu0 0
    %5514 = vmatpush1.bf16.msra.mxu0 0
    %5515 = vmatprep.subr.bf16.mxu0 0
    %5516 = vmatpush1.bf16.msra.mxu0 0
    %5517 = vmatprep.subr.bf16.mxu0 0
    %5518 = vmatpush1.bf16.msra.mxu0 0
    %5519 = vmatprep.subr.bf16.mxu0 0
    %5520 = vmatpush1.bf16.msra.mxu0 %v2430
    %5521 = vmatprep.subr.bf16.mxu0 0
    %5522 = vmatpush1.bf16.msra.mxu0 %v2421
    %5523 = vmatprep.subr.bf16.mxu0 0
    %5524 = vmatpush2.bf16.msra.mxu0 0
    %5525 = vmatprep.subr.bf16.mxu0 0
    %5526 = vmatpush2.bf16.msra.mxu0 0
    %5527 = vmatprep.subr.bf16.mxu0 0
    %5528 = vmatpush2.bf16.msra.mxu0 0
    %5529 = vmatprep.subr.bf16.mxu0 0
    %5530 = vmatpush2.bf16.msra.mxu0 0
    %5531 = vmatprep.subr.bf16.mxu0 0
    %5532 = vmatpush2.bf16.msra.mxu0 0
    %5533 = vmatprep.subr.bf16.mxu0 0
    %5534 = vmatpush2.bf16.msra.mxu0 0
    %5535 = vmatprep.subr.bf16.mxu0 0
    %5536 = vmatpush2.bf16.msra.mxu0 0
    %5537 = vmatprep.subr.bf16.mxu0 0
    %5538 = vmatpush2.bf16.msra.mxu0 0
    %5539 = vmatprep.mubr.bf16.mxu0 0
    %5540 = vmatmul.mubr.bf16.gmra.mxu0 %v5505
    %v5541 = vpop.f32.mrf.mxu0
    %v5542 = vadd.f32 0.0, %v5541
    %v5543 = vpop.f32.mrf.mxu0
    %v5544 = vpop.f32.mrf.mxu0
    %v5545 = vpop.f32.mrf.mxu0
    %5546 = vdwg.mxu0
    %5547 = vmatprep.subr.bf16.mxu0 0
    %5548 = vmatpush1.bf16.msra.mxu0 0
    %5549 = vmatprep.subr.bf16.mxu0 0
    %5550 = vmatpush1.bf16.msra.mxu0 0
    %5551 = vmatprep.subr.bf16.mxu0 0
    %5552 = vmatpush1.bf16.msra.mxu0 0
    %5553 = vmatprep.subr.bf16.mxu0 0
    %5554 = vmatpush1.bf16.msra.mxu0 0
    %5555 = vmatprep.subr.bf16.mxu0 0
    %5556 = vmatpush1.bf16.msra.mxu0 0
    %5557 = vmatprep.subr.bf16.mxu0 0
    %5558 = vmatpush1.bf16.msra.mxu0 0
    %5559 = vmatprep.subr.bf16.mxu0 0
    %5560 = vmatpush1.bf16.msra.mxu0 %v2491
    %5561 = vmatprep.subr.bf16.mxu0 0
    %5562 = vmatpush1.bf16.msra.mxu0 %v2490
    %5563 = vmatprep.subr.bf16.mxu0 0
    %5564 = vmatpush2.bf16.msra.mxu0 0
    %5565 = vmatprep.subr.bf16.mxu0 0
    %5566 = vmatpush2.bf16.msra.mxu0 0
    %5567 = vmatprep.subr.bf16.mxu0 0
    %5568 = vmatpush2.bf16.msra.mxu0 0
    %5569 = vmatprep.subr.bf16.mxu0 0
    %5570 = vmatpush2.bf16.msra.mxu0 0
    %5571 = vmatprep.subr.bf16.mxu0 0
    %5572 = vmatpush2.bf16.msra.mxu0 0
    %5573 = vmatprep.subr.bf16.mxu0 0
    %5574 = vmatpush2.bf16.msra.mxu0 0
    %5575 = vmatprep.subr.bf16.mxu0 0
    %5576 = vmatpush2.bf16.msra.mxu0 0
    %5577 = vmatprep.subr.bf16.mxu0 0
    %5578 = vmatpush2.bf16.msra.mxu0 0
    %5579 = vmatprep.mubr.bf16.mxu0 0
    %5580 = vmatmul.mubr.bf16.gmra.mxu0 %v5360
    %v5581 = vpop.f32.mrf.mxu0
    %v5582 = vadd.f32 %v2477, %v5581
    %v5583 = vpop.f32.mrf.mxu0
    %v5584 = vpop.f32.mrf.mxu0
    %v5585 = vpop.f32.mrf.mxu0
    %5586 = vdwg.mxu0
    %v5589 = vunpack.c.l.s4 1966171168
    %v5590 = vunpack.c.0.s8 %v5589
    %v5591 = vlaneseq
    %v5592 = vshrl.u32 %v5591, 7
    %v5593 = vsub.s32 %v5590, %v5592
    %v5594 = vrot.slane %v5582, %v5593
    %v5595 = vcombine.high %v5594, %v5594
    %v5597 = vunpack.c.l.s4 1966171168
    %v5598 = vunpack.c.0.s8 %v5597
    %v5599 = vlaneseq
    %v5600 = vshrl.u32 %v5599, 7
    %v5601 = vsub.s32 %v5598, %v5600
    %v5602 = vrot.slane %v5594, %v5601
    %v5604 = vunpack.c.l.s4 1966171168
    %v5605 = vunpack.c.0.s8 %v5604
    %v5606 = vlaneseq
    %v5607 = vshrl.u32 %v5606, 7
    %v5608 = vsub.s32 %v5605, %v5607
    %v5609 = vrot.slane %v5595, %v5608
    %v5610 = vlaneseq
    %v5611 = vshrl.u32 %v5610, 7
    %v5612 = vsub.s32 0, %v5611
    %v5613 = vrot.slane %v5602, %v5612
    %v5614 = vlaneseq
    %v5615 = vshrl.u32 %v5614, 7
    %v5616 = vsub.s32 0, %v5615
    %v5617 = vrot.slane %v5609, %v5616
    %v5620 = vadd.f32 %v2399, %v5613
    %v5621 = vadd.f32 %v2400, %v5617
    %v5622 = vtanh.pop %v5620
    %v5623 = vtanh.pop %v5621
    %v5624 = vmul.f32 %v5622, %v2578
    %v5625 = vmul.f32 %v5623, %v2578
    %v5626 = vsel %vm358, %v5624, 0.0
    %5627 = vadd.xlane.f32.xlu0 %v5626
    %v5628 = vpop.xlane.xlu0 %5627
    %v5629 = vsel %vm358, %v5625, 0.0
    %5630 = vadd.xlane.f32.xlu0 %v5629
    %v5631 = vpop.xlane.xlu0 %5630
    %v5632 = vadd.f32 %v5628, %v2595
    %v5633 = vadd.f32 %v5631, %v2595
    %v5636 = vlaneseq
    %v5637 = vshrl.u32 %v5636, 7
    %v5638 = vsub.s32 %v2402, %v5637
    %v5639 = vrot.slane %v5632, %v5638
    %v5640 = vlaneseq
    %v5641 = vshrl.u32 %v5640, 7
    %v5642 = vsub.s32 %v2402, %v5641
    %v5643 = vrot.slane %v5633, %v5642
    %v5644 = vsel %vm343, %v5643, %v5639
    %v5646 = vsel %vm2611, %v5644, -inf
    %5647 = vmax.xlane.f32.xlu0 %v5646
    %v5648 = vpop.xlane.xlu0 %5647
    %v5650 = vlaneseq
    %v5651 = vshrl.u32 %v5650, 7
    %v5652 = vsub.s32 0, %v5651
    %v5653 = vrot.slane %v5648, %v5652
    %v5654 = vlaneseq
    %v5655 = vshrl.u32 %v5654, 7
    %v5656 = vsub.s32 1, %v5655
    %v5657 = vrot.slane %v5648, %v5656
    %v5660 = vsub.f32 %v5632, %v5653
    %v5661 = vsub.f32 %v5633, %v5657
    %v5662 = vmul.f32 %v5660, 1.442695
    %v5663 = vpow.pop %v5662
    %v5664 = vmul.f32 %v5661, 1.442695
    %v5665 = vpow.pop %v5664
    %5668 = vset.pattern.permute.xlu0 0
    %5669 = vperm.xlu0 %5668, %v5663
    %v5670 = vpop.permute.xlu0 %5669
    %5671 = vset.pattern.permute.xlu0 0
    %5672 = vperm.xlu0 %5671, %v5665
    %v5673 = vpop.permute.xlu0 %5672
    %v5674 = vlaneseq
    %v5675 = vshrl.u32 %v5674, 7
    %v5676 = vsub.s32 %v2402, %v5675
    %v5677 = vrot.slane %v5670, %v5676
    %v5678 = vlaneseq
    %v5679 = vshrl.u32 %v5678, 7
    %v5680 = vsub.s32 %v2402, %v5679
    %v5681 = vrot.slane %v5673, %v5680
    %v5682 = vsel %vm343, %v5681, %v5677
    %v5684 = vsel %vm2611, %v5682, 0.0
    %5685 = vadd.xlane.f32.xlu0 %v5684
    %v5686 = vpop.xlane.xlu0 %5685
    %v5688 = vlaneseq
    %v5689 = vshrl.u32 %v5688, 7
    %v5690 = vsub.s32 0, %v5689
    %v5691 = vrot.slane %v5686, %v5690
    %v5692 = vlaneseq
    %v5693 = vshrl.u32 %v5692, 7
    %v5694 = vsub.s32 1, %v5693
    %v5695 = vrot.slane %v5686, %v5694
    %v5698 = vrcp.pop %v5691
    %v5699 = vmul.f32 %v5663, %v5698
    %v5700 = vrcp.pop %v5695
    %v5701 = vmul.f32 %v5665, %v5700
    %5703 = vset.pattern.permute.xlu0 0
    %5704 = vperm.xlu0 %5703, %v5699
    %v5705 = vpop.permute.xlu0 %5704
    %5708 = vset.pattern.permute.xlu0 0
    %5709 = vperm.xlu0 %5708, %v5701
    %v5710 = vpop.permute.xlu0 %5709
    %v5712 = vmul.f32 %v5705, %v2397
    %v5713 = vmul.f32 %v5710, %v2398
    %v5714 = vsel %vm358, %v5712, 0.0
    %v5715 = vrot.slane %v5714, 4
    %v5716 = vadd.f32 %v5714, %v5715
    %v5717 = vrot.slane %v5716, 2
    %v5718 = vadd.f32 %v5716, %v5717
    %v5719 = vrot.slane %v5718, 1
    %v5720 = vadd.f32 %v5718, %v5719
    %v5721 = vsel %vm358, %v5713, 0.0
    %v5722 = vrot.slane %v5721, 4
    %v5723 = vadd.f32 %v5721, %v5722
    %v5724 = vrot.slane %v5723, 2
    %v5725 = vadd.f32 %v5723, %v5724
    %v5726 = vrot.slane %v5725, 1
    %v5727 = vadd.f32 %v5725, %v5726
    %v5730 = vsel %vm343, %v5727, %v5720
    %5733 = vrot.lane.b32.xlu0 %v5542, 32
    %v5734 = vpop.permute.xlu0 %5733
    %v5736 = vsel %vm358, %v5730, %v5734
    %v5737 = vpack.c.bf16 %v5736, %v5736
    %v5739 = vsel %vm2734, %v5737, 0
    %5741 = vmatprep.subr.bf16.mxu0 0
    %5742 = vmatpush1.bf16.msra.mxu0 0
    %5743 = vmatprep.subr.bf16.mxu0 0
    %5744 = vmatpush1.bf16.msra.mxu0 0
    %5745 = vmatprep.subr.bf16.mxu0 0
    %5746 = vmatpush1.bf16.msra.mxu0 0
    %5747 = vmatprep.subr.bf16.mxu0 0
    %5748 = vmatpush1.bf16.msra.mxu0 0
    %5749 = vmatprep.subr.bf16.mxu0 0
    %5750 = vmatpush1.bf16.msra.mxu0 %v2729
    %5751 = vmatprep.subr.bf16.mxu0 0
    %5752 = vmatpush1.bf16.msra.mxu0 %v2728
    %5753 = vmatprep.subr.bf16.mxu0 0
    %5754 = vmatpush1.bf16.msra.mxu0 %v2727
    %5755 = vmatprep.subr.bf16.mxu0 0
    %5756 = vmatpush1.bf16.msra.mxu0 %v2726
    %5757 = vmatprep.subr.bf16.mxu0 0
    %5758 = vmatpush2.bf16.msra.mxu0 0
    %5759 = vmatprep.subr.bf16.mxu0 0
    %5760 = vmatpush2.bf16.msra.mxu0 0
    %5761 = vmatprep.subr.bf16.mxu0 0
    %5762 = vmatpush2.bf16.msra.mxu0 0
    %5763 = vmatprep.subr.bf16.mxu0 0
    %5764 = vmatpush2.bf16.msra.mxu0 0
    %5765 = vmatprep.subr.bf16.mxu0 0
    %5766 = vmatpush2.bf16.msra.mxu0 0
    %5767 = vmatprep.subr.bf16.mxu0 0
    %5768 = vmatpush2.bf16.msra.mxu0 0
    %5769 = vmatprep.subr.bf16.mxu0 0
    %5770 = vmatpush2.bf16.msra.mxu0 0
    %5771 = vmatprep.subr.bf16.mxu0 0
    %5772 = vmatpush2.bf16.msra.mxu0 0
    %5773 = vmatprep.mubr.bf16.mxu0 0
    %5774 = vmatmul.mubr.bf16.gmra.mxu0 %v5739
    %v5775 = vpop.f32.mrf.mxu0
    %v5776 = vadd.f32 %v2708, %v5775
    %v5777 = vpop.f32.mrf.mxu0
    %v5778 = vpop.f32.mrf.mxu0
    %v5779 = vpop.f32.mrf.mxu0
    %5780 = vdwg.mxu0
    %5781 = vmatprep.subr.bf16.mxu0 0
    %5782 = vmatpush1.bf16.msra.mxu0 0
    %5783 = vmatprep.subr.bf16.mxu0 0
    %5784 = vmatpush1.bf16.msra.mxu0 0
    %5785 = vmatprep.subr.bf16.mxu0 0
    %5786 = vmatpush1.bf16.msra.mxu0 0
    %5787 = vmatprep.subr.bf16.mxu0 0
    %5788 = vmatpush1.bf16.msra.mxu0 0
    %5789 = vmatprep.subr.bf16.mxu0 0
    %5790 = vmatpush1.bf16.msra.mxu0 0
    %5791 = vmatprep.subr.bf16.mxu0 0
    %5792 = vmatpush1.bf16.msra.mxu0 0
    %5793 = vmatprep.subr.bf16.mxu0 0
    %5794 = vmatpush1.bf16.msra.mxu0 %v2787
    %5795 = vmatprep.subr.bf16.mxu0 0
    %5796 = vmatpush1.bf16.msra.mxu0 %v2786
    %5797 = vmatprep.subr.bf16.mxu0 0
    %5798 = vmatpush2.bf16.msra.mxu0 0
    %5799 = vmatprep.subr.bf16.mxu0 0
    %5800 = vmatpush2.bf16.msra.mxu0 0
    %5801 = vmatprep.subr.bf16.mxu0 0
    %5802 = vmatpush2.bf16.msra.mxu0 0
    %5803 = vmatprep.subr.bf16.mxu0 0
    %5804 = vmatpush2.bf16.msra.mxu0 0
    %5805 = vmatprep.subr.bf16.mxu0 0
    %5806 = vmatpush2.bf16.msra.mxu0 0
    %5807 = vmatprep.subr.bf16.mxu0 0
    %5808 = vmatpush2.bf16.msra.mxu0 0
    %5809 = vmatprep.subr.bf16.mxu0 0
    %5810 = vmatpush2.bf16.msra.mxu0 0
    %5811 = vmatprep.subr.bf16.mxu0 0
    %5812 = vmatpush2.bf16.msra.mxu0 0
    %5813 = vmatprep.mubr.bf16.mxu0 0
    %5814 = vmatmul.mubr.bf16.gmra.mxu0 %v5360
    %v5815 = vpop.f32.mrf.mxu0
    %v5816 = vadd.f32 0.0, %v5815
    %v5817 = vpop.f32.mrf.mxu0
    %v5818 = vpop.f32.mrf.mxu0
    %v5819 = vpop.f32.mrf.mxu0
    %5820 = vdwg.mxu0
    %v5821 = vadd.f32 %v5776, %v5816
    %v5822 = vxor.u32 %v5821, 2147483648
    %v5823 = vmul.f32 %v5822, 1.442695
    %v5824 = vpow.pop %v5823
    %v5825 = vadd.f32 %v5824, 1.0
    %v5826 = vrcp.pop %v5825
    %v5827 = vmul.f32 1.0, %v5826
    %v5828 = vadd.f32 %v5816, %v2843
    %5830 = vrot.lane.b32.xlu0 %v5828, 64
    %v5831 = vpop.permute.xlu0 %5830
    %v5833 = vmul.f32 %v5827, %v5831
    %5835 = vrot.lane.b32.xlu0 %v5833, 64
    %v5836 = vpop.permute.xlu0 %5835
    %v5838 = vadd.f32 %v5776, %v5836
    %v5839 = vtanh.pop %v5838
    %v5840 = vsub.f32 1.0, %v5827
    %5842 = vrot.lane.b32.xlu0 %v5839, 96
    %v5843 = vpop.permute.xlu0 %5842
    %v5845 = vmul.f32 %v5840, %v5843
    %v5846 = vmul.f32 %v5827, %v5354
    %v5847 = vadd.f32 %v5845, %v5846
    %v5848 = vpack.c.bf16 %v5847, %v5847
    %5850 = vrot.lane.b32.xlu0 %v5848, 96
    %v5851 = vpop.permute.xlu0 %5850
    %v5853 = vsel %vm358, %v5851, 0
    %5855 = vmatprep.subr.bf16.mxu0 0
    %5856 = vmatpush1.bf16.msra.mxu0 0
    %5857 = vmatprep.subr.bf16.mxu0 0
    %5858 = vmatpush1.bf16.msra.mxu0 0
    %5859 = vmatprep.subr.bf16.mxu0 0
    %5860 = vmatpush1.bf16.msra.mxu0 0
    %5861 = vmatprep.subr.bf16.mxu0 0
    %5862 = vmatpush1.bf16.msra.mxu0 0
    %5863 = vmatprep.subr.bf16.mxu0 0
    %5864 = vmatpush1.bf16.msra.mxu0 0
    %5865 = vmatprep.subr.bf16.mxu0 0
    %5866 = vmatpush1.bf16.msra.mxu0 0
    %5867 = vmatprep.subr.bf16.mxu0 0
    %5868 = vmatpush1.bf16.msra.mxu0 %v2884
    %5869 = vmatprep.subr.bf16.mxu0 0
    %5870 = vmatpush1.bf16.msra.mxu0 %v2883
    %5871 = vmatprep.subr.bf16.mxu0 0
    %5872 = vmatpush2.bf16.msra.mxu0 0
    %5873 = vmatprep.subr.bf16.mxu0 0
    %5874 = vmatpush2.bf16.msra.mxu0 0
    %5875 = vmatprep.subr.bf16.mxu0 0
    %5876 = vmatpush2.bf16.msra.mxu0 0
    %5877 = vmatprep.subr.bf16.mxu0 0
    %5878 = vmatpush2.bf16.msra.mxu0 0
    %5879 = vmatprep.subr.bf16.mxu0 0
    %5880 = vmatpush2.bf16.msra.mxu0 0
    %5881 = vmatprep.subr.bf16.mxu0 0
    %5882 = vmatpush2.bf16.msra.mxu0 0
    %5883 = vmatprep.subr.bf16.mxu0 0
    %5884 = vmatpush2.bf16.msra.mxu0 0
    %5885 = vmatprep.subr.bf16.mxu0 0
    %5886 = vmatpush2.bf16.msra.mxu0 0
    %5887 = vmatprep.mubr.bf16.mxu0 0
    %5888 = vmatmul.mubr.bf16.gmra.mxu0 %v5853
    %v5889 = vpop.f32.mrf.mxu0
    %v5890 = vadd.f32 %v2870, %v5889
    %v5891 = vpop.f32.mrf.mxu0
    %v5892 = vpop.f32.mrf.mxu0
    %v5893 = vpop.f32.mrf.mxu0
    %5894 = vdwg.mxu0
    %vm5895 = vcmp.gt.f32.partialorder %v5890, 0.0
    %v5896 = vmul.f32 %v5890, 0.01
    %v5897 = vsel %vm5895, %v5890, %v5896
    %v5899 = vsel %vm358, %v5897, 0
    %5901 = vmatprep.subr.mxu0 0.0
    %5902 = vmatpush1.msra.mxu0 0.0
    %5903 = vmatprep.subr.mxu0 0.0
    %5904 = vmatpush1.msra.mxu0 0.0
    %5905 = vmatprep.subr.mxu0 0.0
    %5906 = vmatpush1.msra.mxu0 0.0
    %5907 = vmatprep.subr.mxu0 0.0
    %5908 = vmatpush1.msra.mxu0 0.0
    %5909 = vmatprep.subr.mxu0 0.0
    %5910 = vmatpush1.msra.mxu0 0.0
    %5911 = vmatprep.subr.mxu0 0.0
    %5912 = vmatpush1.msra.mxu0 0.0
    %5913 = vmatprep.subr.mxu0 0.0
    %5914 = vmatpush1.msra.mxu0 0.0
    %5915 = vmatprep.subr.mxu0 0.0
    %5916 = vmatpush1.msra.mxu0 0.0
    %5917 = vmatprep.subr.mxu0 0.0
    %5918 = vmatpush1.msra.mxu0 0.0
    %5919 = vmatprep.subr.mxu0 0.0
    %5920 = vmatpush1.msra.mxu0 0.0
    %5921 = vmatprep.subr.mxu0 0.0
    %5922 = vmatpush1.msra.mxu0 0.0
    %5923 = vmatprep.subr.mxu0 0.0
    %5924 = vmatpush1.msra.mxu0 0.0
    %5925 = vmatprep.subr.mxu0 0.0
    %5926 = vmatpush1.msra.mxu0 %v326
    %5927 = vmatprep.subr.mxu0 0.0
    %5928 = vmatpush1.msra.mxu0 %v325
    %5929 = vmatprep.subr.mxu0 0.0
    %5930 = vmatpush1.msra.mxu0 %v324
    %5931 = vmatprep.subr.mxu0 0.0
    %5932 = vmatpush1.msra.mxu0 %v323
    %5933 = vmatprep.subr.mxu0 0.0
    %5934 = vmatpush2.msra.mxu0 0.0
    %5935 = vmatprep.subr.mxu0 0.0
    %5936 = vmatpush2.msra.mxu0 0.0
    %5937 = vmatprep.subr.mxu0 0.0
    %5938 = vmatpush2.msra.mxu0 0.0
    %5939 = vmatprep.subr.mxu0 0.0
    %5940 = vmatpush2.msra.mxu0 0.0
    %5941 = vmatprep.subr.mxu0 0.0
    %5942 = vmatpush2.msra.mxu0 0.0
    %5943 = vmatprep.subr.mxu0 0.0
    %5944 = vmatpush2.msra.mxu0 0.0
    %5945 = vmatprep.subr.mxu0 0.0
    %5946 = vmatpush2.msra.mxu0 0.0
    %5947 = vmatprep.subr.mxu0 0.0
    %5948 = vmatpush2.msra.mxu0 0.0
    %5949 = vmatprep.subr.mxu0 0.0
    %5950 = vmatpush2.msra.mxu0 0.0
    %5951 = vmatprep.subr.mxu0 0.0
    %5952 = vmatpush2.msra.mxu0 0.0
    %5953 = vmatprep.subr.mxu0 0.0
    %5954 = vmatpush2.msra.mxu0 0.0
    %5955 = vmatprep.subr.mxu0 0.0
    %5956 = vmatpush2.msra.mxu0 0.0
    %5957 = vmatprep.subr.mxu0 0.0
    %5958 = vmatpush2.msra.mxu0 0.0
    %5959 = vmatprep.subr.mxu0 0.0
    %5960 = vmatpush2.msra.mxu0 0.0
    %5961 = vmatprep.subr.mxu0 0.0
    %5962 = vmatpush2.msra.mxu0 0.0
    %5963 = vmatprep.subr.mxu0 0.0
    %5964 = vmatpush2.msra.mxu0 0.0
    %5965 = vmatprep.mubr.f32.mxu0 0.0
    %5966 = vmatmul.mubr.f32.gmra.mxu0 %v5899
    %v5967 = vpop.f32.mrf.mxu0
    %v5968 = vadd.f32 %v2937, %v5967
    %v5969 = vpop.f32.mrf.mxu0
    %5970 = vdwg.mxu0
    %s5971 = scalar_lea.vmem [#allocation31], 14
    %5972 = vst [vmem:[%s5971] sm:$0x3] %v5968
    // Predicated region
    $region154: #{tpu_custom_call.1} parent=1 // pred_check
      _
    $region155: #{tpu_custom_call.1} parent=1 // pred_check_branch
      %5974 = sbr.rel (0) target = $region157
    $region156: #{tpu_custom_call.1} parent=1 // pred_region
      %s5976 = ssub.s32 256, 256
      %5977 = vsyncadd [#allocation7], %s5976
      %s5978 = sshll.u32 [#allocation31], 4
      %s5979 = int_to_ptr.vmem [resolvable:$true] %s5978
      %5984 = dma.vmem_to_hbm [thread:$0]  %s5979, 256, %s22, [#allocation7], 32, 32, 2
    $region157: #{tpu_custom_call.1} parent=1 // pred_fallthru
      _
    // Predicated region
    $region158: #{tpu_custom_call.1} parent=1 // pred_check
      _
    $region159: #{tpu_custom_call.1} parent=1 // pred_check_branch
      %5986 = sbr.rel (0) target = $region161
    $region160: #{tpu_custom_call.1} parent=1 // pred_region
      %5987 = dma.done [#allocation7], 256
    $region161: #{tpu_custom_call.1} parent=1 // pred_fallthru
      _
    %5988 = vsyncpa [#allocation6], 1
    %5989 = vsyncpa [#allocation9], 1
    %5990 = vsyncpa [#allocation12], 1
    %5991 = vsyncpa [#allocation15], 1
    %5992 = vsyncpa [#allocation18], 1
    %5993 = vsyncpa [#allocation21], 1
    %5994 = vsyncpa [#allocation24], 1
    %5995 = vsyncpa [#allocation27], 1
    %5996 = vsyncpa [#allocation30], 1
    %5997 = vsyncpa [#allocation7], 1

</llo_original>
